<compile_context>
chip_gen: v5e
topology: v5e:2x2
jax: 0.10.0
libtpu: 0.0.40
codegen_flags: <defaults>
</compile_context>

<pallas_src>
import functools

import jax
import jax.numpy as jnp
import numpy as np
from jax.experimental import pallas as pl
from jax.experimental.pallas import tpu as pltpu


# ------------------------------ Pallas kernel ------------------------------

def _fused_patch_embed_kernel(x_ref, w_ref, b_ref, sel_ref, o_ref, *,
                              p, tg, Ho, Wo, E_pad):
    """One grid step = one batch element x one band of `tg` output patch rows.

    x_ref  : (1, H, W, C)        NHWC input image for this batch element (f32)
    w_ref  : (p*p, C, E_pad)     conv weight, tap-major, bf16, E zero-padded
    b_ref  : (1, E_pad)          conv bias (f32)
    sel_ref: (gW, Wo)            horizontal blur + reflect + ::p subsample matrix (bf16)
    o_ref  : (1, tg, gW, E_pad)  lane-dense output patch embeddings for this band (f32)
    """
    g = pl.program_id(1)

    w_all = w_ref[...]          # (p*p, C, E_pad) resident taps
    sel = sel_ref[...]          # (gW, Wo)
    bvec = b_ref[...]           # (1, E_pad)

    for t in range(tg):
        gi = g * tg + t                       # global output patch row
        r0 = gi * p                           # center conv row
        # reflect padding of the vertical blur taps (only triggers at the image border)
        rm = jnp.where(r0 == 0, 1, r0 - 1)
        rp = jnp.where(r0 == Ho - 1, Ho - 2, r0 + 1)

        # Vertically-blurred conv row, accumulated in f32: (Wo, E_pad).
        acc = jnp.zeros((Wo, E_pad), jnp.float32)
        for r, wv in ((rm, 0.25), (r0, 0.5), (rp, 0.25)):
            conv = jnp.zeros((Wo, E_pad), jnp.float32)
            for kh in range(p):
                row = x_ref[0, r + kh]                            # (W, C) f32, dynamic row
                for kw in range(p):
                    # Shifted im2col-free tap: (Wo, C) @ (C, E_pad) on the MXU.
                    # (K = C is MXU-underfilled, but the op is memory-bound and this
                    #  avoids any in-kernel data shuffling.)
                    a = row[kw:kw + Wo, :].astype(jnp.bfloat16)
                    conv += jnp.dot(a, w_all[kh * p + kw],
                                    preferred_element_type=jnp.float32)
            acc += wv * conv

        # Horizontal blur + reflection + ::p subsample as one tiny MXU dot; the conv bias
        # passes through both blurs unchanged (weights sum to 1), so it is added once here.
        out = jnp.dot(sel, acc.astype(jnp.bfloat16),
                      preferred_element_type=jnp.float32) + bvec
        o_ref[0, t] = out


# -------------------------------- JAX wrapper -------------------------------

def _round_up(n, m):
    return (n + m - 1) // m * m


def _pick_band(gh, p, max_dots=1024):
    """Rows of output patches per grid step (must divide gH; bounds unrolled dot count)."""
    cap = max(1, max_dots // (3 * p * p))
    for t in range(min(gh, cap), 0, -1):
        if gh % t == 0:
            return t
    return 1


@functools.partial(jax.jit, static_argnums=(3, 4))
def patch_embed_forward(x, weight, bias, patch_size, img_size):
    B, C, H, W = x.shape
    p = int(patch_size)
    assert (H, W) == tuple(img_size), "input spatial size must match img_size"
    assert H % p == 0 and W % p == 0
    E = weight.shape[0]
    Ho, Wo = H - p + 1, W - p + 1
    gH, gW = H // p, W // p
    E_pad = _round_up(E, 128)          # lane-dense embed dim (zero padded, exact)
    tg = _pick_band(gH, p)

    # ---- host-side layout prep (one cheap pass over the small input / params) ----
    x_nhwc = jnp.transpose(x, (0, 2, 3, 1)).astype(jnp.float32)          # (B, H, W, C)
    # Conv2d weight (E, C, p, p) -> tap-major (p*p, C, E_pad), bf16.
    wk = jnp.transpose(weight, (2, 3, 1, 0)).reshape(p * p, C, E)
    wk = jnp.pad(wk, ((0, 0), (0, 0), (0, E_pad - E))).astype(jnp.bfloat16)
    b2 = jnp.pad(bias.astype(jnp.float32), (0, E_pad - E)).reshape(1, E_pad)

    # Horizontal blur [0.25, 0.5, 0.25] with reflect padding, evaluated only at the
    # subsampled columns gj*p, folded into a (gW, Wo) matrix built once on the host.
    sel_np = np.zeros((gW, Wo), np.float32)
    for gj in range(gW):
        for dj, wv in ((-1, 0.25), (0, 0.5), (1, 0.25)):
            j = gj * p + dj
            j = -j if j < 0 else (2 * (Wo - 1) - j if j > Wo - 1 else j)  # reflect
            sel_np[gj, j] += wv
    sel = jnp.asarray(sel_np, dtype=jnp.bfloat16)      # 0.25 / 0.5 are exact in bf16

    kernel = functools.partial(_fused_patch_embed_kernel,
                               p=p, tg=tg, Ho=Ho, Wo=Wo, E_pad=E_pad)

    out = pl.pallas_call(
        kernel,
        out_shape=jax.ShapeDtypeStruct((B, gH, gW, E_pad), jnp.float32),
        grid=(B, gH // tg),
        in_specs=[
            # Full image per batch element: x is the small tensor here (no p^2 blowup).
            # For very large img_size this feed should become H-banded slabs via a manual
            # halo DMA (pl.ANY + make_async_copy) to bound VMEM; not needed at these sizes.
            pl.BlockSpec((1, H, W, C), lambda b, g: (b, 0, 0, 0)),
            pl.BlockSpec((p * p, C, E_pad), lambda b, g: (0, 0, 0)),
            pl.BlockSpec((1, E_pad), lambda b, g: (0, 0)),
            pl.BlockSpec((gW, Wo), lambda b, g: (0, 0)),
        ],
        out_specs=pl.BlockSpec((1, tg, gW, E_pad), lambda b, g: (b, g, 0, 0)),
        compiler_params=pltpu.CompilerParams(
            dimension_semantics=("parallel", "parallel")),
    )(x_nhwc, wk, b2, sel)

    # Strip lane padding; equivalent of flatten(2).transpose(1, 2).
    # norm_layer=None -> Identity; self.act (GELU) is unused in the reference forward.
    return out[..., :E].reshape(B, gH * gW, E)


# ----------------------------- pure-JAX reference ----------------------------

def _reference(x, weight, bias, p):
    y = jax.lax.conv_general_dilated(
        x, weight, window_strides=(1, 1), padding="VALID",
        dimension_numbers=("NCHW", "OIHW", "NCHW"),
        precision=jax.lax.Precision.HIGHEST,
    ) + bias[None, :, None, None]
    # horizontal blur with reflect pad
    yp = jnp.pad(y, ((0, 0), (0, 0), (0, 0), (1, 1)), mode="reflect")
    y = 0.25 * yp[..., :-2] + 0.5 * yp[..., 1:-1] + 0.25 * yp[..., 2:]
    # vertical blur with reflect pad
    yp = jnp.pad(y, ((0, 0), (0, 0), (1, 1), (0, 0)), mode="reflect")
    y = 0.25 * yp[:, :, :-2, :] + 0.5 * yp[:, :, 1:-1, :] + 0.25 * yp[:, :, 2:, :]
    y = y[:, :, ::p, ::p]
    B, E = y.shape[0], y.shape[1]
    return jnp.transpose(y.reshape(B, E, -1), (0, 2, 1))


# ----------------------------------- main ------------------------------------

if __name__ == "__main__":
    # Small shapes consistent with the module: img_size=16, patch_size=4, in_chans=4, embed_dim=32
    B, C, IMG, P_SZ, E = 2, 4, 16, 4, 32

    key = jax.random.PRNGKey(0)
    kx, kw, kb = jax.random.split(key, 3)
    x = jax.random.normal(kx, (B, C, IMG, IMG), dtype=jnp.float32)
    weight = 0.02 * jax.random.normal(kw, (E, C, P_SZ, P_SZ), dtype=jnp.float32)
    bias = 0.01 * jax.random.normal(kb, (E,), dtype=jnp.float32)

    out = patch_embed_forward(x, weight, bias, P_SZ, (IMG, IMG))
    out = jax.block_until_ready(out)

    ref = _reference(x, weight, bias, P_SZ)
    assert out.shape == (B, (IMG // P_SZ) * (IMG // P_SZ), E), out.shape
    # bf16-in / f32-accumulate MXU path vs. f32 HIGHEST reference -> loosened tolerance.
    np.testing.assert_allclose(np.asarray(out), np.asarray(ref), rtol=2e-2, atol=2e-2)

    print("KERNEL_OK")
</pallas_src>

<mosaic_0001>
module attributes {stable_mosaic.version = 11 : i64} {
  func.func @_fused_patch_embed_kernel(%arg0: i32, %arg1: i32, %arg2: memref<1x16x16x4xf32, #tpu.memory_space<vmem>>, %arg3: memref<16x4x128xbf16, #tpu.memory_space<vmem>>, %arg4: memref<1x128xf32, #tpu.memory_space<vmem>>, %arg5: memref<4x13xbf16, #tpu.memory_space<vmem>>, %arg6: memref<1x4x4x128xf32, #tpu.memory_space<vmem>>) attributes {dimension_semantics = [#tpu.dimension_semantics<parallel>, #tpu.dimension_semantics<parallel>], iteration_bounds = array<i64: 2, 1>, scalar_prefetch = 0 : i64, scratch_operands = 0 : i64, tpu.core_type = #tpu.core_type<tc>, window_params = [{transform_indices = @transform_0, window_bounds = array<i64: 1, 16, 16, 4>}, {pipeline_mode = #tpu.pipeline_mode<synchronous>, transform_indices = @transform_1, window_bounds = array<i64: 16, 4, 128>}, {pipeline_mode = #tpu.pipeline_mode<synchronous>, transform_indices = @transform_2, window_bounds = array<i64: 1, 128>}, {pipeline_mode = #tpu.pipeline_mode<synchronous>, transform_indices = @transform_3, window_bounds = array<i64: 4, 13>}, {transform_indices = @transform_4, window_bounds = array<i64: 1, 4, 4, 128>}]} {
    %c0 = arith.constant 0 : index
    %c0_0 = arith.constant 0 : index
    %c0_1 = arith.constant 0 : index
    %0 = vector.load %arg3[%c0, %c0_0, %c0_1] : memref<16x4x128xbf16, #tpu.memory_space<vmem>>, vector<16x4x128xbf16>
    %c0_2 = arith.constant 0 : index
    %c0_3 = arith.constant 0 : index
    %1 = vector.load %arg5[%c0_2, %c0_3] : memref<4x13xbf16, #tpu.memory_space<vmem>>, vector<4x13xbf16>
    %c0_4 = arith.constant 0 : index
    %c0_5 = arith.constant 0 : index
    %2 = vector.load %arg4[%c0_4, %c0_5] : memref<1x128xf32, #tpu.memory_space<vmem>>, vector<1x128xf32>
    %c4_i32 = arith.constant 4 : i32
    %3 = arith.muli %arg1, %c4_i32 : i32
    %c0_i32 = arith.constant 0 : i32
    %4 = arith.addi %3, %c0_i32 : i32
    %c4_i32_6 = arith.constant 4 : i32
    %5 = arith.muli %4, %c4_i32_6 : i32
    %c0_i32_7 = arith.constant 0 : i32
    %6 = arith.cmpi eq, %5, %c0_i32_7 : i32
    %c1_i32 = arith.constant 1 : i32
    %7 = arith.subi %5, %c1_i32 : i32
    %c1_i32_8 = arith.constant 1 : i32
    %8 = arith.select %6, %c1_i32_8, %7 : i32
    %c12_i32 = arith.constant 12 : i32
    %9 = arith.cmpi eq, %5, %c12_i32 : i32
    %c1_i32_9 = arith.constant 1 : i32
    %10 = arith.addi %5, %c1_i32_9 : i32
    %c11_i32 = arith.constant 11 : i32
    %11 = arith.select %9, %c11_i32, %10 : i32
    %cst = arith.constant 0.000000e+00 : f32
    %12 = vector.broadcast %cst : f32 to vector<13x128xf32>
    %cst_10 = arith.constant 0.000000e+00 : f32
    %13 = vector.broadcast %cst_10 : f32 to vector<13x128xf32>
    %c0_i32_11 = arith.constant 0 : i32
    %14 = arith.addi %8, %c0_i32_11 : i32
    %c0_12 = arith.constant 0 : index
    %15 = arith.index_cast %14 : i32 to index
    %c0_13 = arith.constant 0 : index
    %c0_14 = arith.constant 0 : index
    %16 = vector.load %arg2[%c0_12, %15, %c0_13, %c0_14] : memref<1x16x16x4xf32, #tpu.memory_space<vmem>>, vector<1x1x16x4xf32>
    %17 = vector.shape_cast %16 : vector<1x1x16x4xf32> to vector<16x4xf32>
    %18 = vector.extract_strided_slice %17 {offsets = [0, 0], sizes = [13, 4], strides = [1, 1]} : vector<16x4xf32> to vector<13x4xf32>
    %19 = arith.truncf %18 : vector<13x4xf32> to vector<13x4xbf16>
    %20 = vector.extract_strided_slice %0 {offsets = [0, 0, 0], sizes = [1, 4, 128], strides = [1, 1, 1]} : vector<16x4x128xbf16> to vector<1x4x128xbf16>
    %21 = vector.shape_cast %20 : vector<1x4x128xbf16> to vector<4x128xbf16>
    %cst_15 = arith.constant dense<0.000000e+00> : vector<13x128xf32>
    %22 = tpu.matmul %19, %21, %cst_15 {dimension_numbers = #tpu.dot_dimension_numbers<[1], [0], [0], [1], [0, 0, 1, 1], [], []>} : vector<13x4xbf16>, vector<4x128xbf16>, vector<13x128xf32> -> vector<13x128xf32>
    %23 = arith.addf %13, %22 : vector<13x128xf32>
    %24 = vector.extract_strided_slice %17 {offsets = [1, 0], sizes = [13, 4], strides = [1, 1]} : vector<16x4xf32> to vector<13x4xf32>
    %25 = arith.truncf %24 : vector<13x4xf32> to vector<13x4xbf16>
    %26 = vector.extract_strided_slice %0 {offsets = [1, 0, 0], sizes = [1, 4, 128], strides = [1, 1, 1]} : vector<16x4x128xbf16> to vector<1x4x128xbf16>
    %27 = vector.shape_cast %26 : vector<1x4x128xbf16> to vector<4x128xbf16>
    %cst_16 = arith.constant dense<0.000000e+00> : vector<13x128xf32>
    %28 = tpu.matmul %25, %27, %cst_16 {dimension_numbers = #tpu.dot_dimension_numbers<[1], [0], [0], [1], [0, 0, 1, 1], [], []>} : vector<13x4xbf16>, vector<4x128xbf16>, vector<13x128xf32> -> vector<13x128xf32>
    %29 = arith.addf %23, %28 : vector<13x128xf32>
    %30 = vector.extract_strided_slice %17 {offsets = [2, 0], sizes = [13, 4], strides = [1, 1]} : vector<16x4xf32> to vector<13x4xf32>
    %31 = arith.truncf %30 : vector<13x4xf32> to vector<13x4xbf16>
    %32 = vector.extract_strided_slice %0 {offsets = [2, 0, 0], sizes = [1, 4, 128], strides = [1, 1, 1]} : vector<16x4x128xbf16> to vector<1x4x128xbf16>
    %33 = vector.shape_cast %32 : vector<1x4x128xbf16> to vector<4x128xbf16>
    %cst_17 = arith.constant dense<0.000000e+00> : vector<13x128xf32>
    %34 = tpu.matmul %31, %33, %cst_17 {dimension_numbers = #tpu.dot_dimension_numbers<[1], [0], [0], [1], [0, 0, 1, 1], [], []>} : vector<13x4xbf16>, vector<4x128xbf16>, vector<13x128xf32> -> vector<13x128xf32>
    %35 = arith.addf %29, %34 : vector<13x128xf32>
    %36 = vector.extract_strided_slice %17 {offsets = [3, 0], sizes = [13, 4], strides = [1, 1]} : vector<16x4xf32> to vector<13x4xf32>
    %37 = arith.truncf %36 : vector<13x4xf32> to vector<13x4xbf16>
    %38 = vector.extract_strided_slice %0 {offsets = [3, 0, 0], sizes = [1, 4, 128], strides = [1, 1, 1]} : vector<16x4x128xbf16> to vector<1x4x128xbf16>
    %39 = vector.shape_cast %38 : vector<1x4x128xbf16> to vector<4x128xbf16>
    %cst_18 = arith.constant dense<0.000000e+00> : vector<13x128xf32>
    %40 = tpu.matmul %37, %39, %cst_18 {dimension_numbers = #tpu.dot_dimension_numbers<[1], [0], [0], [1], [0, 0, 1, 1], [], []>} : vector<13x4xbf16>, vector<4x128xbf16>, vector<13x128xf32> -> vector<13x128xf32>
    %41 = arith.addf %35, %40 : vector<13x128xf32>
    %c1_i32_19 = arith.constant 1 : i32
    %42 = arith.addi %8, %c1_i32_19 : i32
    %c0_20 = arith.constant 0 : index
    %43 = arith.index_cast %42 : i32 to index
    %c0_21 = arith.constant 0 : index
    %c0_22 = arith.constant 0 : index
    %44 = vector.load %arg2[%c0_20, %43, %c0_21, %c0_22] : memref<1x16x16x4xf32, #tpu.memory_space<vmem>>, vector<1x1x16x4xf32>
    %45 = vector.shape_cast %44 : vector<1x1x16x4xf32> to vector<16x4xf32>
    %46 = vector.extract_strided_slice %45 {offsets = [0, 0], sizes = [13, 4], strides = [1, 1]} : vector<16x4xf32> to vector<13x4xf32>
    %47 = arith.truncf %46 : vector<13x4xf32> to vector<13x4xbf16>
    %48 = vector.extract_strided_slice %0 {offsets = [4, 0, 0], sizes = [1, 4, 128], strides = [1, 1, 1]} : vector<16x4x128xbf16> to vector<1x4x128xbf16>
    %49 = vector.shape_cast %48 : vector<1x4x128xbf16> to vector<4x128xbf16>
    %cst_23 = arith.constant dense<0.000000e+00> : vector<13x128xf32>
    %50 = tpu.matmul %47, %49, %cst_23 {dimension_numbers = #tpu.dot_dimension_numbers<[1], [0], [0], [1], [0, 0, 1, 1], [], []>} : vector<13x4xbf16>, vector<4x128xbf16>, vector<13x128xf32> -> vector<13x128xf32>
    %51 = arith.addf %41, %50 : vector<13x128xf32>
    %52 = vector.extract_strided_slice %45 {offsets = [1, 0], sizes = [13, 4], strides = [1, 1]} : vector<16x4xf32> to vector<13x4xf32>
    %53 = arith.truncf %52 : vector<13x4xf32> to vector<13x4xbf16>
    %54 = vector.extract_strided_slice %0 {offsets = [5, 0, 0], sizes = [1, 4, 128], strides = [1, 1, 1]} : vector<16x4x128xbf16> to vector<1x4x128xbf16>
    %55 = vector.shape_cast %54 : vector<1x4x128xbf16> to vector<4x128xbf16>
    %cst_24 = arith.constant dense<0.000000e+00> : vector<13x128xf32>
    %56 = tpu.matmul %53, %55, %cst_24 {dimension_numbers = #tpu.dot_dimension_numbers<[1], [0], [0], [1], [0, 0, 1, 1], [], []>} : vector<13x4xbf16>, vector<4x128xbf16>, vector<13x128xf32> -> vector<13x128xf32>
    %57 = arith.addf %51, %56 : vector<13x128xf32>
    %58 = vector.extract_strided_slice %45 {offsets = [2, 0], sizes = [13, 4], strides = [1, 1]} : vector<16x4xf32> to vector<13x4xf32>
    %59 = arith.truncf %58 : vector<13x4xf32> to vector<13x4xbf16>
    %60 = vector.extract_strided_slice %0 {offsets = [6, 0, 0], sizes = [1, 4, 128], strides = [1, 1, 1]} : vector<16x4x128xbf16> to vector<1x4x128xbf16>
    %61 = vector.shape_cast %60 : vector<1x4x128xbf16> to vector<4x128xbf16>
    %cst_25 = arith.constant dense<0.000000e+00> : vector<13x128xf32>
    %62 = tpu.matmul %59, %61, %cst_25 {dimension_numbers = #tpu.dot_dimension_numbers<[1], [0], [0], [1], [0, 0, 1, 1], [], []>} : vector<13x4xbf16>, vector<4x128xbf16>, vector<13x128xf32> -> vector<13x128xf32>
    %63 = arith.addf %57, %62 : vector<13x128xf32>
    %64 = vector.extract_strided_slice %45 {offsets = [3, 0], sizes = [13, 4], strides = [1, 1]} : vector<16x4xf32> to vector<13x4xf32>
    %65 = arith.truncf %64 : vector<13x4xf32> to vector<13x4xbf16>
    %66 = vector.extract_strided_slice %0 {offsets = [7, 0, 0], sizes = [1, 4, 128], strides = [1, 1, 1]} : vector<16x4x128xbf16> to vector<1x4x128xbf16>
    %67 = vector.shape_cast %66 : vector<1x4x128xbf16> to vector<4x128xbf16>
    %cst_26 = arith.constant dense<0.000000e+00> : vector<13x128xf32>
    %68 = tpu.matmul %65, %67, %cst_26 {dimension_numbers = #tpu.dot_dimension_numbers<[1], [0], [0], [1], [0, 0, 1, 1], [], []>} : vector<13x4xbf16>, vector<4x128xbf16>, vector<13x128xf32> -> vector<13x128xf32>
    %69 = arith.addf %63, %68 : vector<13x128xf32>
    %c2_i32 = arith.constant 2 : i32
    %70 = arith.addi %8, %c2_i32 : i32
    %c0_27 = arith.constant 0 : index
    %71 = arith.index_cast %70 : i32 to index
    %c0_28 = arith.constant 0 : index
    %c0_29 = arith.constant 0 : index
    %72 = vector.load %arg2[%c0_27, %71, %c0_28, %c0_29] : memref<1x16x16x4xf32, #tpu.memory_space<vmem>>, vector<1x1x16x4xf32>
    %73 = vector.shape_cast %72 : vector<1x1x16x4xf32> to vector<16x4xf32>
    %74 = vector.extract_strided_slice %73 {offsets = [0, 0], sizes = [13, 4], strides = [1, 1]} : vector<16x4xf32> to vector<13x4xf32>
    %75 = arith.truncf %74 : vector<13x4xf32> to vector<13x4xbf16>
    %76 = vector.extract_strided_slice %0 {offsets = [8, 0, 0], sizes = [1, 4, 128], strides = [1, 1, 1]} : vector<16x4x128xbf16> to vector<1x4x128xbf16>
    %77 = vector.shape_cast %76 : vector<1x4x128xbf16> to vector<4x128xbf16>
    %cst_30 = arith.constant dense<0.000000e+00> : vector<13x128xf32>
    %78 = tpu.matmul %75, %77, %cst_30 {dimension_numbers = #tpu.dot_dimension_numbers<[1], [0], [0], [1], [0, 0, 1, 1], [], []>} : vector<13x4xbf16>, vector<4x128xbf16>, vector<13x128xf32> -> vector<13x128xf32>
    %79 = arith.addf %69, %78 : vector<13x128xf32>
    %80 = vector.extract_strided_slice %73 {offsets = [1, 0], sizes = [13, 4], strides = [1, 1]} : vector<16x4xf32> to vector<13x4xf32>
    %81 = arith.truncf %80 : vector<13x4xf32> to vector<13x4xbf16>
    %82 = vector.extract_strided_slice %0 {offsets = [9, 0, 0], sizes = [1, 4, 128], strides = [1, 1, 1]} : vector<16x4x128xbf16> to vector<1x4x128xbf16>
    %83 = vector.shape_cast %82 : vector<1x4x128xbf16> to vector<4x128xbf16>
    %cst_31 = arith.constant dense<0.000000e+00> : vector<13x128xf32>
    %84 = tpu.matmul %81, %83, %cst_31 {dimension_numbers = #tpu.dot_dimension_numbers<[1], [0], [0], [1], [0, 0, 1, 1], [], []>} : vector<13x4xbf16>, vector<4x128xbf16>, vector<13x128xf32> -> vector<13x128xf32>
    %85 = arith.addf %79, %84 : vector<13x128xf32>
    %86 = vector.extract_strided_slice %73 {offsets = [2, 0], sizes = [13, 4], strides = [1, 1]} : vector<16x4xf32> to vector<13x4xf32>
    %87 = arith.truncf %86 : vector<13x4xf32> to vector<13x4xbf16>
    %88 = vector.extract_strided_slice %0 {offsets = [10, 0, 0], sizes = [1, 4, 128], strides = [1, 1, 1]} : vector<16x4x128xbf16> to vector<1x4x128xbf16>
    %89 = vector.shape_cast %88 : vector<1x4x128xbf16> to vector<4x128xbf16>
    %cst_32 = arith.constant dense<0.000000e+00> : vector<13x128xf32>
    %90 = tpu.matmul %87, %89, %cst_32 {dimension_numbers = #tpu.dot_dimension_numbers<[1], [0], [0], [1], [0, 0, 1, 1], [], []>} : vector<13x4xbf16>, vector<4x128xbf16>, vector<13x128xf32> -> vector<13x128xf32>
    %91 = arith.addf %85, %90 : vector<13x128xf32>
    %92 = vector.extract_strided_slice %73 {offsets = [3, 0], sizes = [13, 4], strides = [1, 1]} : vector<16x4xf32> to vector<13x4xf32>
    %93 = arith.truncf %92 : vector<13x4xf32> to vector<13x4xbf16>
    %94 = vector.extract_strided_slice %0 {offsets = [11, 0, 0], sizes = [1, 4, 128], strides = [1, 1, 1]} : vector<16x4x128xbf16> to vector<1x4x128xbf16>
    %95 = vector.shape_cast %94 : vector<1x4x128xbf16> to vector<4x128xbf16>
    %cst_33 = arith.constant dense<0.000000e+00> : vector<13x128xf32>
    %96 = tpu.matmul %93, %95, %cst_33 {dimension_numbers = #tpu.dot_dimension_numbers<[1], [0], [0], [1], [0, 0, 1, 1], [], []>} : vector<13x4xbf16>, vector<4x128xbf16>, vector<13x128xf32> -> vector<13x128xf32>
    %97 = arith.addf %91, %96 : vector<13x128xf32>
    %c3_i32 = arith.constant 3 : i32
    %98 = arith.addi %8, %c3_i32 : i32
    %c0_34 = arith.constant 0 : index
    %99 = arith.index_cast %98 : i32 to index
    %c0_35 = arith.constant 0 : index
    %c0_36 = arith.constant 0 : index
    %100 = vector.load %arg2[%c0_34, %99, %c0_35, %c0_36] : memref<1x16x16x4xf32, #tpu.memory_space<vmem>>, vector<1x1x16x4xf32>
    %101 = vector.shape_cast %100 : vector<1x1x16x4xf32> to vector<16x4xf32>
    %102 = vector.extract_strided_slice %101 {offsets = [0, 0], sizes = [13, 4], strides = [1, 1]} : vector<16x4xf32> to vector<13x4xf32>
    %103 = arith.truncf %102 : vector<13x4xf32> to vector<13x4xbf16>
    %104 = vector.extract_strided_slice %0 {offsets = [12, 0, 0], sizes = [1, 4, 128], strides = [1, 1, 1]} : vector<16x4x128xbf16> to vector<1x4x128xbf16>
    %105 = vector.shape_cast %104 : vector<1x4x128xbf16> to vector<4x128xbf16>
    %cst_37 = arith.constant dense<0.000000e+00> : vector<13x128xf32>
    %106 = tpu.matmul %103, %105, %cst_37 {dimension_numbers = #tpu.dot_dimension_numbers<[1], [0], [0], [1], [0, 0, 1, 1], [], []>} : vector<13x4xbf16>, vector<4x128xbf16>, vector<13x128xf32> -> vector<13x128xf32>
    %107 = arith.addf %97, %106 : vector<13x128xf32>
    %108 = vector.extract_strided_slice %101 {offsets = [1, 0], sizes = [13, 4], strides = [1, 1]} : vector<16x4xf32> to vector<13x4xf32>
    %109 = arith.truncf %108 : vector<13x4xf32> to vector<13x4xbf16>
    %110 = vector.extract_strided_slice %0 {offsets = [13, 0, 0], sizes = [1, 4, 128], strides = [1, 1, 1]} : vector<16x4x128xbf16> to vector<1x4x128xbf16>
    %111 = vector.shape_cast %110 : vector<1x4x128xbf16> to vector<4x128xbf16>
    %cst_38 = arith.constant dense<0.000000e+00> : vector<13x128xf32>
    %112 = tpu.matmul %109, %111, %cst_38 {dimension_numbers = #tpu.dot_dimension_numbers<[1], [0], [0], [1], [0, 0, 1, 1], [], []>} : vector<13x4xbf16>, vector<4x128xbf16>, vector<13x128xf32> -> vector<13x128xf32>
    %113 = arith.addf %107, %112 : vector<13x128xf32>
    %114 = vector.extract_strided_slice %101 {offsets = [2, 0], sizes = [13, 4], strides = [1, 1]} : vector<16x4xf32> to vector<13x4xf32>
    %115 = arith.truncf %114 : vector<13x4xf32> to vector<13x4xbf16>
    %116 = vector.extract_strided_slice %0 {offsets = [14, 0, 0], sizes = [1, 4, 128], strides = [1, 1, 1]} : vector<16x4x128xbf16> to vector<1x4x128xbf16>
    %117 = vector.shape_cast %116 : vector<1x4x128xbf16> to vector<4x128xbf16>
    %cst_39 = arith.constant dense<0.000000e+00> : vector<13x128xf32>
    %118 = tpu.matmul %115, %117, %cst_39 {dimension_numbers = #tpu.dot_dimension_numbers<[1], [0], [0], [1], [0, 0, 1, 1], [], []>} : vector<13x4xbf16>, vector<4x128xbf16>, vector<13x128xf32> -> vector<13x128xf32>
    %119 = arith.addf %113, %118 : vector<13x128xf32>
    %120 = vector.extract_strided_slice %101 {offsets = [3, 0], sizes = [13, 4], strides = [1, 1]} : vector<16x4xf32> to vector<13x4xf32>
    %121 = arith.truncf %120 : vector<13x4xf32> to vector<13x4xbf16>
    %122 = vector.extract_strided_slice %0 {offsets = [15, 0, 0], sizes = [1, 4, 128], strides = [1, 1, 1]} : vector<16x4x128xbf16> to vector<1x4x128xbf16>
    %123 = vector.shape_cast %122 : vector<1x4x128xbf16> to vector<4x128xbf16>
    %cst_40 = arith.constant dense<0.000000e+00> : vector<13x128xf32>
    %124 = tpu.matmul %121, %123, %cst_40 {dimension_numbers = #tpu.dot_dimension_numbers<[1], [0], [0], [1], [0, 0, 1, 1], [], []>} : vector<13x4xbf16>, vector<4x128xbf16>, vector<13x128xf32> -> vector<13x128xf32>
    %125 = arith.addf %119, %124 : vector<13x128xf32>
    %cst_41 = arith.constant 2.500000e-01 : f32
    %126 = vector.broadcast %cst_41 : f32 to vector<13x128xf32>
    %127 = arith.mulf %126, %125 : vector<13x128xf32>
    %128 = arith.addf %12, %127 : vector<13x128xf32>
    %cst_42 = arith.constant 0.000000e+00 : f32
    %129 = vector.broadcast %cst_42 : f32 to vector<13x128xf32>
    %c0_i32_43 = arith.constant 0 : i32
    %130 = arith.addi %5, %c0_i32_43 : i32
    %c0_44 = arith.constant 0 : index
    %131 = arith.index_cast %130 : i32 to index
    %c0_45 = arith.constant 0 : index
    %c0_46 = arith.constant 0 : index
    %132 = vector.load %arg2[%c0_44, %131, %c0_45, %c0_46] : memref<1x16x16x4xf32, #tpu.memory_space<vmem>>, vector<1x1x16x4xf32>
    %133 = vector.shape_cast %132 : vector<1x1x16x4xf32> to vector<16x4xf32>
    %134 = vector.extract_strided_slice %133 {offsets = [0, 0], sizes = [13, 4], strides = [1, 1]} : vector<16x4xf32> to vector<13x4xf32>
    %135 = arith.truncf %134 : vector<13x4xf32> to vector<13x4xbf16>
    %136 = vector.extract_strided_slice %0 {offsets = [0, 0, 0], sizes = [1, 4, 128], strides = [1, 1, 1]} : vector<16x4x128xbf16> to vector<1x4x128xbf16>
    %137 = vector.shape_cast %136 : vector<1x4x128xbf16> to vector<4x128xbf16>
    %cst_47 = arith.constant dense<0.000000e+00> : vector<13x128xf32>
    %138 = tpu.matmul %135, %137, %cst_47 {dimension_numbers = #tpu.dot_dimension_numbers<[1], [0], [0], [1], [0, 0, 1, 1], [], []>} : vector<13x4xbf16>, vector<4x128xbf16>, vector<13x128xf32> -> vector<13x128xf32>
    %139 = arith.addf %129, %138 : vector<13x128xf32>
    %140 = vector.extract_strided_slice %133 {offsets = [1, 0], sizes = [13, 4], strides = [1, 1]} : vector<16x4xf32> to vector<13x4xf32>
    %141 = arith.truncf %140 : vector<13x4xf32> to vector<13x4xbf16>
    %142 = vector.extract_strided_slice %0 {offsets = [1, 0, 0], sizes = [1, 4, 128], strides = [1, 1, 1]} : vector<16x4x128xbf16> to vector<1x4x128xbf16>
    %143 = vector.shape_cast %142 : vector<1x4x128xbf16> to vector<4x128xbf16>
    %cst_48 = arith.constant dense<0.000000e+00> : vector<13x128xf32>
    %144 = tpu.matmul %141, %143, %cst_48 {dimension_numbers = #tpu.dot_dimension_numbers<[1], [0], [0], [1], [0, 0, 1, 1], [], []>} : vector<13x4xbf16>, vector<4x128xbf16>, vector<13x128xf32> -> vector<13x128xf32>
    %145 = arith.addf %139, %144 : vector<13x128xf32>
    %146 = vector.extract_strided_slice %133 {offsets = [2, 0], sizes = [13, 4], strides = [1, 1]} : vector<16x4xf32> to vector<13x4xf32>
    %147 = arith.truncf %146 : vector<13x4xf32> to vector<13x4xbf16>
    %148 = vector.extract_strided_slice %0 {offsets = [2, 0, 0], sizes = [1, 4, 128], strides = [1, 1, 1]} : vector<16x4x128xbf16> to vector<1x4x128xbf16>
    %149 = vector.shape_cast %148 : vector<1x4x128xbf16> to vector<4x128xbf16>
    %cst_49 = arith.constant dense<0.000000e+00> : vector<13x128xf32>
    %150 = tpu.matmul %147, %149, %cst_49 {dimension_numbers = #tpu.dot_dimension_numbers<[1], [0], [0], [1], [0, 0, 1, 1], [], []>} : vector<13x4xbf16>, vector<4x128xbf16>, vector<13x128xf32> -> vector<13x128xf32>
    %151 = arith.addf %145, %150 : vector<13x128xf32>
    %152 = vector.extract_strided_slice %133 {offsets = [3, 0], sizes = [13, 4], strides = [1, 1]} : vector<16x4xf32> to vector<13x4xf32>
    %153 = arith.truncf %152 : vector<13x4xf32> to vector<13x4xbf16>
    %154 = vector.extract_strided_slice %0 {offsets = [3, 0, 0], sizes = [1, 4, 128], strides = [1, 1, 1]} : vector<16x4x128xbf16> to vector<1x4x128xbf16>
    %155 = vector.shape_cast %154 : vector<1x4x128xbf16> to vector<4x128xbf16>
    %cst_50 = arith.constant dense<0.000000e+00> : vector<13x128xf32>
    %156 = tpu.matmul %153, %155, %cst_50 {dimension_numbers = #tpu.dot_dimension_numbers<[1], [0], [0], [1], [0, 0, 1, 1], [], []>} : vector<13x4xbf16>, vector<4x128xbf16>, vector<13x128xf32> -> vector<13x128xf32>
    %157 = arith.addf %151, %156 : vector<13x128xf32>
    %c1_i32_51 = arith.constant 1 : i32
    %158 = arith.addi %5, %c1_i32_51 : i32
    %c0_52 = arith.constant 0 : index
    %159 = arith.index_cast %158 : i32 to index
    %c0_53 = arith.constant 0 : index
    %c0_54 = arith.constant 0 : index
    %160 = vector.load %arg2[%c0_52, %159, %c0_53, %c0_54] : memref<1x16x16x4xf32, #tpu.memory_space<vmem>>, vector<1x1x16x4xf32>
    %161 = vector.shape_cast %160 : vector<1x1x16x4xf32> to vector<16x4xf32>
    %162 = vector.extract_strided_slice %161 {offsets = [0, 0], sizes = [13, 4], strides = [1, 1]} : vector<16x4xf32> to vector<13x4xf32>
    %163 = arith.truncf %162 : vector<13x4xf32> to vector<13x4xbf16>
    %164 = vector.extract_strided_slice %0 {offsets = [4, 0, 0], sizes = [1, 4, 128], strides = [1, 1, 1]} : vector<16x4x128xbf16> to vector<1x4x128xbf16>
    %165 = vector.shape_cast %164 : vector<1x4x128xbf16> to vector<4x128xbf16>
    %cst_55 = arith.constant dense<0.000000e+00> : vector<13x128xf32>
    %166 = tpu.matmul %163, %165, %cst_55 {dimension_numbers = #tpu.dot_dimension_numbers<[1], [0], [0], [1], [0, 0, 1, 1], [], []>} : vector<13x4xbf16>, vector<4x128xbf16>, vector<13x128xf32> -> vector<13x128xf32>
    %167 = arith.addf %157, %166 : vector<13x128xf32>
    %168 = vector.extract_strided_slice %161 {offsets = [1, 0], sizes = [13, 4], strides = [1, 1]} : vector<16x4xf32> to vector<13x4xf32>
    %169 = arith.truncf %168 : vector<13x4xf32> to vector<13x4xbf16>
    %170 = vector.extract_strided_slice %0 {offsets = [5, 0, 0], sizes = [1, 4, 128], strides = [1, 1, 1]} : vector<16x4x128xbf16> to vector<1x4x128xbf16>
    %171 = vector.shape_cast %170 : vector<1x4x128xbf16> to vector<4x128xbf16>
    %cst_56 = arith.constant dense<0.000000e+00> : vector<13x128xf32>
    %172 = tpu.matmul %169, %171, %cst_56 {dimension_numbers = #tpu.dot_dimension_numbers<[1], [0], [0], [1], [0, 0, 1, 1], [], []>} : vector<13x4xbf16>, vector<4x128xbf16>, vector<13x128xf32> -> vector<13x128xf32>
    %173 = arith.addf %167, %172 : vector<13x128xf32>
    %174 = vector.extract_strided_slice %161 {offsets = [2, 0], sizes = [13, 4], strides = [1, 1]} : vector<16x4xf32> to vector<13x4xf32>
    %175 = arith.truncf %174 : vector<13x4xf32> to vector<13x4xbf16>
    %176 = vector.extract_strided_slice %0 {offsets = [6, 0, 0], sizes = [1, 4, 128], strides = [1, 1, 1]} : vector<16x4x128xbf16> to vector<1x4x128xbf16>
    %177 = vector.shape_cast %176 : vector<1x4x128xbf16> to vector<4x128xbf16>
    %cst_57 = arith.constant dense<0.000000e+00> : vector<13x128xf32>
    %178 = tpu.matmul %175, %177, %cst_57 {dimension_numbers = #tpu.dot_dimension_numbers<[1], [0], [0], [1], [0, 0, 1, 1], [], []>} : vector<13x4xbf16>, vector<4x128xbf16>, vector<13x128xf32> -> vector<13x128xf32>
    %179 = arith.addf %173, %178 : vector<13x128xf32>
    %180 = vector.extract_strided_slice %161 {offsets = [3, 0], sizes = [13, 4], strides = [1, 1]} : vector<16x4xf32> to vector<13x4xf32>
    %181 = arith.truncf %180 : vector<13x4xf32> to vector<13x4xbf16>
    %182 = vector.extract_strided_slice %0 {offsets = [7, 0, 0], sizes = [1, 4, 128], strides = [1, 1, 1]} : vector<16x4x128xbf16> to vector<1x4x128xbf16>
    %183 = vector.shape_cast %182 : vector<1x4x128xbf16> to vector<4x128xbf16>
    %cst_58 = arith.constant dense<0.000000e+00> : vector<13x128xf32>
    %184 = tpu.matmul %181, %183, %cst_58 {dimension_numbers = #tpu.dot_dimension_numbers<[1], [0], [0], [1], [0, 0, 1, 1], [], []>} : vector<13x4xbf16>, vector<4x128xbf16>, vector<13x128xf32> -> vector<13x128xf32>
    %185 = arith.addf %179, %184 : vector<13x128xf32>
    %c2_i32_59 = arith.constant 2 : i32
    %186 = arith.addi %5, %c2_i32_59 : i32
    %c0_60 = arith.constant 0 : index
    %187 = arith.index_cast %186 : i32 to index
    %c0_61 = arith.constant 0 : index
    %c0_62 = arith.constant 0 : index
    %188 = vector.load %arg2[%c0_60, %187, %c0_61, %c0_62] : memref<1x16x16x4xf32, #tpu.memory_space<vmem>>, vector<1x1x16x4xf32>
    %189 = vector.shape_cast %188 : vector<1x1x16x4xf32> to vector<16x4xf32>
    %190 = vector.extract_strided_slice %189 {offsets = [0, 0], sizes = [13, 4], strides = [1, 1]} : vector<16x4xf32> to vector<13x4xf32>
    %191 = arith.truncf %190 : vector<13x4xf32> to vector<13x4xbf16>
    %192 = vector.extract_strided_slice %0 {offsets = [8, 0, 0], sizes = [1, 4, 128], strides = [1, 1, 1]} : vector<16x4x128xbf16> to vector<1x4x128xbf16>
    %193 = vector.shape_cast %192 : vector<1x4x128xbf16> to vector<4x128xbf16>
    %cst_63 = arith.constant dense<0.000000e+00> : vector<13x128xf32>
    %194 = tpu.matmul %191, %193, %cst_63 {dimension_numbers = #tpu.dot_dimension_numbers<[1], [0], [0], [1], [0, 0, 1, 1], [], []>} : vector<13x4xbf16>, vector<4x128xbf16>, vector<13x128xf32> -> vector<13x128xf32>
    %195 = arith.addf %185, %194 : vector<13x128xf32>
    %196 = vector.extract_strided_slice %189 {offsets = [1, 0], sizes = [13, 4], strides = [1, 1]} : vector<16x4xf32> to vector<13x4xf32>
    %197 = arith.truncf %196 : vector<13x4xf32> to vector<13x4xbf16>
    %198 = vector.extract_strided_slice %0 {offsets = [9, 0, 0], sizes = [1, 4, 128], strides = [1, 1, 1]} : vector<16x4x128xbf16> to vector<1x4x128xbf16>
    %199 = vector.shape_cast %198 : vector<1x4x128xbf16> to vector<4x128xbf16>
    %cst_64 = arith.constant dense<0.000000e+00> : vector<13x128xf32>
    %200 = tpu.matmul %197, %199, %cst_64 {dimension_numbers = #tpu.dot_dimension_numbers<[1], [0], [0], [1], [0, 0, 1, 1], [], []>} : vector<13x4xbf16>, vector<4x128xbf16>, vector<13x128xf32> -> vector<13x128xf32>
    %201 = arith.addf %195, %200 : vector<13x128xf32>
    %202 = vector.extract_strided_slice %189 {offsets = [2, 0], sizes = [13, 4], strides = [1, 1]} : vector<16x4xf32> to vector<13x4xf32>
    %203 = arith.truncf %202 : vector<13x4xf32> to vector<13x4xbf16>
    %204 = vector.extract_strided_slice %0 {offsets = [10, 0, 0], sizes = [1, 4, 128], strides = [1, 1, 1]} : vector<16x4x128xbf16> to vector<1x4x128xbf16>
    %205 = vector.shape_cast %204 : vector<1x4x128xbf16> to vector<4x128xbf16>
    %cst_65 = arith.constant dense<0.000000e+00> : vector<13x128xf32>
    %206 = tpu.matmul %203, %205, %cst_65 {dimension_numbers = #tpu.dot_dimension_numbers<[1], [0], [0], [1], [0, 0, 1, 1], [], []>} : vector<13x4xbf16>, vector<4x128xbf16>, vector<13x128xf32> -> vector<13x128xf32>
    %207 = arith.addf %201, %206 : vector<13x128xf32>
    %208 = vector.extract_strided_slice %189 {offsets = [3, 0], sizes = [13, 4], strides = [1, 1]} : vector<16x4xf32> to vector<13x4xf32>
    %209 = arith.truncf %208 : vector<13x4xf32> to vector<13x4xbf16>
    %210 = vector.extract_strided_slice %0 {offsets = [11, 0, 0], sizes = [1, 4, 128], strides = [1, 1, 1]} : vector<16x4x128xbf16> to vector<1x4x128xbf16>
    %211 = vector.shape_cast %210 : vector<1x4x128xbf16> to vector<4x128xbf16>
    %cst_66 = arith.constant dense<0.000000e+00> : vector<13x128xf32>
    %212 = tpu.matmul %209, %211, %cst_66 {dimension_numbers = #tpu.dot_dimension_numbers<[1], [0], [0], [1], [0, 0, 1, 1], [], []>} : vector<13x4xbf16>, vector<4x128xbf16>, vector<13x128xf32> -> vector<13x128xf32>
    %213 = arith.addf %207, %212 : vector<13x128xf32>
    %c3_i32_67 = arith.constant 3 : i32
    %214 = arith.addi %5, %c3_i32_67 : i32
    %c0_68 = arith.constant 0 : index
    %215 = arith.index_cast %214 : i32 to index
    %c0_69 = arith.constant 0 : index
    %c0_70 = arith.constant 0 : index
    %216 = vector.load %arg2[%c0_68, %215, %c0_69, %c0_70] : memref<1x16x16x4xf32, #tpu.memory_space<vmem>>, vector<1x1x16x4xf32>
    %217 = vector.shape_cast %216 : vector<1x1x16x4xf32> to vector<16x4xf32>
    %218 = vector.extract_strided_slice %217 {offsets = [0, 0], sizes = [13, 4], strides = [1, 1]} : vector<16x4xf32> to vector<13x4xf32>
    %219 = arith.truncf %218 : vector<13x4xf32> to vector<13x4xbf16>
    %220 = vector.extract_strided_slice %0 {offsets = [12, 0, 0], sizes = [1, 4, 128], strides = [1, 1, 1]} : vector<16x4x128xbf16> to vector<1x4x128xbf16>
    %221 = vector.shape_cast %220 : vector<1x4x128xbf16> to vector<4x128xbf16>
    %cst_71 = arith.constant dense<0.000000e+00> : vector<13x128xf32>
    %222 = tpu.matmul %219, %221, %cst_71 {dimension_numbers = #tpu.dot_dimension_numbers<[1], [0], [0], [1], [0, 0, 1, 1], [], []>} : vector<13x4xbf16>, vector<4x128xbf16>, vector<13x128xf32> -> vector<13x128xf32>
    %223 = arith.addf %213, %222 : vector<13x128xf32>
    %224 = vector.extract_strided_slice %217 {offsets = [1, 0], sizes = [13, 4], strides = [1, 1]} : vector<16x4xf32> to vector<13x4xf32>
    %225 = arith.truncf %224 : vector<13x4xf32> to vector<13x4xbf16>
    %226 = vector.extract_strided_slice %0 {offsets = [13, 0, 0], sizes = [1, 4, 128], strides = [1, 1, 1]} : vector<16x4x128xbf16> to vector<1x4x128xbf16>
    %227 = vector.shape_cast %226 : vector<1x4x128xbf16> to vector<4x128xbf16>
    %cst_72 = arith.constant dense<0.000000e+00> : vector<13x128xf32>
    %228 = tpu.matmul %225, %227, %cst_72 {dimension_numbers = #tpu.dot_dimension_numbers<[1], [0], [0], [1], [0, 0, 1, 1], [], []>} : vector<13x4xbf16>, vector<4x128xbf16>, vector<13x128xf32> -> vector<13x128xf32>
    %229 = arith.addf %223, %228 : vector<13x128xf32>
    %230 = vector.extract_strided_slice %217 {offsets = [2, 0], sizes = [13, 4], strides = [1, 1]} : vector<16x4xf32> to vector<13x4xf32>
    %231 = arith.truncf %230 : vector<13x4xf32> to vector<13x4xbf16>
    %232 = vector.extract_strided_slice %0 {offsets = [14, 0, 0], sizes = [1, 4, 128], strides = [1, 1, 1]} : vector<16x4x128xbf16> to vector<1x4x128xbf16>
    %233 = vector.shape_cast %232 : vector<1x4x128xbf16> to vector<4x128xbf16>
    %cst_73 = arith.constant dense<0.000000e+00> : vector<13x128xf32>
    %234 = tpu.matmul %231, %233, %cst_73 {dimension_numbers = #tpu.dot_dimension_numbers<[1], [0], [0], [1], [0, 0, 1, 1], [], []>} : vector<13x4xbf16>, vector<4x128xbf16>, vector<13x128xf32> -> vector<13x128xf32>
    %235 = arith.addf %229, %234 : vector<13x128xf32>
    %236 = vector.extract_strided_slice %217 {offsets = [3, 0], sizes = [13, 4], strides = [1, 1]} : vector<16x4xf32> to vector<13x4xf32>
    %237 = arith.truncf %236 : vector<13x4xf32> to vector<13x4xbf16>
    %238 = vector.extract_strided_slice %0 {offsets = [15, 0, 0], sizes = [1, 4, 128], strides = [1, 1, 1]} : vector<16x4x128xbf16> to vector<1x4x128xbf16>
    %239 = vector.shape_cast %238 : vector<1x4x128xbf16> to vector<4x128xbf16>
    %cst_74 = arith.constant dense<0.000000e+00> : vector<13x128xf32>
    %240 = tpu.matmul %237, %239, %cst_74 {dimension_numbers = #tpu.dot_dimension_numbers<[1], [0], [0], [1], [0, 0, 1, 1], [], []>} : vector<13x4xbf16>, vector<4x128xbf16>, vector<13x128xf32> -> vector<13x128xf32>
    %241 = arith.addf %235, %240 : vector<13x128xf32>
    %cst_75 = arith.constant 5.000000e-01 : f32
    %242 = vector.broadcast %cst_75 : f32 to vector<13x128xf32>
    %243 = arith.mulf %242, %241 : vector<13x128xf32>
    %244 = arith.addf %128, %243 : vector<13x128xf32>
    %cst_76 = arith.constant 0.000000e+00 : f32
    %245 = vector.broadcast %cst_76 : f32 to vector<13x128xf32>
    %c0_i32_77 = arith.constant 0 : i32
    %246 = arith.addi %11, %c0_i32_77 : i32
    %c0_78 = arith.constant 0 : index
    %247 = arith.index_cast %246 : i32 to index
    %c0_79 = arith.constant 0 : index
    %c0_80 = arith.constant 0 : index
    %248 = vector.load %arg2[%c0_78, %247, %c0_79, %c0_80] : memref<1x16x16x4xf32, #tpu.memory_space<vmem>>, vector<1x1x16x4xf32>
    %249 = vector.shape_cast %248 : vector<1x1x16x4xf32> to vector<16x4xf32>
    %250 = vector.extract_strided_slice %249 {offsets = [0, 0], sizes = [13, 4], strides = [1, 1]} : vector<16x4xf32> to vector<13x4xf32>
    %251 = arith.truncf %250 : vector<13x4xf32> to vector<13x4xbf16>
    %252 = vector.extract_strided_slice %0 {offsets = [0, 0, 0], sizes = [1, 4, 128], strides = [1, 1, 1]} : vector<16x4x128xbf16> to vector<1x4x128xbf16>
    %253 = vector.shape_cast %252 : vector<1x4x128xbf16> to vector<4x128xbf16>
    %cst_81 = arith.constant dense<0.000000e+00> : vector<13x128xf32>
    %254 = tpu.matmul %251, %253, %cst_81 {dimension_numbers = #tpu.dot_dimension_numbers<[1], [0], [0], [1], [0, 0, 1, 1], [], []>} : vector<13x4xbf16>, vector<4x128xbf16>, vector<13x128xf32> -> vector<13x128xf32>
    %255 = arith.addf %245, %254 : vector<13x128xf32>
    %256 = vector.extract_strided_slice %249 {offsets = [1, 0], sizes = [13, 4], strides = [1, 1]} : vector<16x4xf32> to vector<13x4xf32>
    %257 = arith.truncf %256 : vector<13x4xf32> to vector<13x4xbf16>
    %258 = vector.extract_strided_slice %0 {offsets = [1, 0, 0], sizes = [1, 4, 128], strides = [1, 1, 1]} : vector<16x4x128xbf16> to vector<1x4x128xbf16>
    %259 = vector.shape_cast %258 : vector<1x4x128xbf16> to vector<4x128xbf16>
    %cst_82 = arith.constant dense<0.000000e+00> : vector<13x128xf32>
    %260 = tpu.matmul %257, %259, %cst_82 {dimension_numbers = #tpu.dot_dimension_numbers<[1], [0], [0], [1], [0, 0, 1, 1], [], []>} : vector<13x4xbf16>, vector<4x128xbf16>, vector<13x128xf32> -> vector<13x128xf32>
    %261 = arith.addf %255, %260 : vector<13x128xf32>
    %262 = vector.extract_strided_slice %249 {offsets = [2, 0], sizes = [13, 4], strides = [1, 1]} : vector<16x4xf32> to vector<13x4xf32>
    %263 = arith.truncf %262 : vector<13x4xf32> to vector<13x4xbf16>
    %264 = vector.extract_strided_slice %0 {offsets = [2, 0, 0], sizes = [1, 4, 128], strides = [1, 1, 1]} : vector<16x4x128xbf16> to vector<1x4x128xbf16>
    %265 = vector.shape_cast %264 : vector<1x4x128xbf16> to vector<4x128xbf16>
    %cst_83 = arith.constant dense<0.000000e+00> : vector<13x128xf32>
    %266 = tpu.matmul %263, %265, %cst_83 {dimension_numbers = #tpu.dot_dimension_numbers<[1], [0], [0], [1], [0, 0, 1, 1], [], []>} : vector<13x4xbf16>, vector<4x128xbf16>, vector<13x128xf32> -> vector<13x128xf32>
    %267 = arith.addf %261, %266 : vector<13x128xf32>
    %268 = vector.extract_strided_slice %249 {offsets = [3, 0], sizes = [13, 4], strides = [1, 1]} : vector<16x4xf32> to vector<13x4xf32>
    %269 = arith.truncf %268 : vector<13x4xf32> to vector<13x4xbf16>
    %270 = vector.extract_strided_slice %0 {offsets = [3, 0, 0], sizes = [1, 4, 128], strides = [1, 1, 1]} : vector<16x4x128xbf16> to vector<1x4x128xbf16>
    %271 = vector.shape_cast %270 : vector<1x4x128xbf16> to vector<4x128xbf16>
    %cst_84 = arith.constant dense<0.000000e+00> : vector<13x128xf32>
    %272 = tpu.matmul %269, %271, %cst_84 {dimension_numbers = #tpu.dot_dimension_numbers<[1], [0], [0], [1], [0, 0, 1, 1], [], []>} : vector<13x4xbf16>, vector<4x128xbf16>, vector<13x128xf32> -> vector<13x128xf32>
    %273 = arith.addf %267, %272 : vector<13x128xf32>
    %c1_i32_85 = arith.constant 1 : i32
    %274 = arith.addi %11, %c1_i32_85 : i32
    %c0_86 = arith.constant 0 : index
    %275 = arith.index_cast %274 : i32 to index
    %c0_87 = arith.constant 0 : index
    %c0_88 = arith.constant 0 : index
    %276 = vector.load %arg2[%c0_86, %275, %c0_87, %c0_88] : memref<1x16x16x4xf32, #tpu.memory_space<vmem>>, vector<1x1x16x4xf32>
    %277 = vector.shape_cast %276 : vector<1x1x16x4xf32> to vector<16x4xf32>
    %278 = vector.extract_strided_slice %277 {offsets = [0, 0], sizes = [13, 4], strides = [1, 1]} : vector<16x4xf32> to vector<13x4xf32>
    %279 = arith.truncf %278 : vector<13x4xf32> to vector<13x4xbf16>
    %280 = vector.extract_strided_slice %0 {offsets = [4, 0, 0], sizes = [1, 4, 128], strides = [1, 1, 1]} : vector<16x4x128xbf16> to vector<1x4x128xbf16>
    %281 = vector.shape_cast %280 : vector<1x4x128xbf16> to vector<4x128xbf16>
    %cst_89 = arith.constant dense<0.000000e+00> : vector<13x128xf32>
    %282 = tpu.matmul %279, %281, %cst_89 {dimension_numbers = #tpu.dot_dimension_numbers<[1], [0], [0], [1], [0, 0, 1, 1], [], []>} : vector<13x4xbf16>, vector<4x128xbf16>, vector<13x128xf32> -> vector<13x128xf32>
    %283 = arith.addf %273, %282 : vector<13x128xf32>
    %284 = vector.extract_strided_slice %277 {offsets = [1, 0], sizes = [13, 4], strides = [1, 1]} : vector<16x4xf32> to vector<13x4xf32>
    %285 = arith.truncf %284 : vector<13x4xf32> to vector<13x4xbf16>
    %286 = vector.extract_strided_slice %0 {offsets = [5, 0, 0], sizes = [1, 4, 128], strides = [1, 1, 1]} : vector<16x4x128xbf16> to vector<1x4x128xbf16>
    %287 = vector.shape_cast %286 : vector<1x4x128xbf16> to vector<4x128xbf16>
    %cst_90 = arith.constant dense<0.000000e+00> : vector<13x128xf32>
    %288 = tpu.matmul %285, %287, %cst_90 {dimension_numbers = #tpu.dot_dimension_numbers<[1], [0], [0], [1], [0, 0, 1, 1], [], []>} : vector<13x4xbf16>, vector<4x128xbf16>, vector<13x128xf32> -> vector<13x128xf32>
    %289 = arith.addf %283, %288 : vector<13x128xf32>
    %290 = vector.extract_strided_slice %277 {offsets = [2, 0], sizes = [13, 4], strides = [1, 1]} : vector<16x4xf32> to vector<13x4xf32>
    %291 = arith.truncf %290 : vector<13x4xf32> to vector<13x4xbf16>
    %292 = vector.extract_strided_slice %0 {offsets = [6, 0, 0], sizes = [1, 4, 128], strides = [1, 1, 1]} : vector<16x4x128xbf16> to vector<1x4x128xbf16>
    %293 = vector.shape_cast %292 : vector<1x4x128xbf16> to vector<4x128xbf16>
    %cst_91 = arith.constant dense<0.000000e+00> : vector<13x128xf32>
    %294 = tpu.matmul %291, %293, %cst_91 {dimension_numbers = #tpu.dot_dimension_numbers<[1], [0], [0], [1], [0, 0, 1, 1], [], []>} : vector<13x4xbf16>, vector<4x128xbf16>, vector<13x128xf32> -> vector<13x128xf32>
    %295 = arith.addf %289, %294 : vector<13x128xf32>
    %296 = vector.extract_strided_slice %277 {offsets = [3, 0], sizes = [13, 4], strides = [1, 1]} : vector<16x4xf32> to vector<13x4xf32>
    %297 = arith.truncf %296 : vector<13x4xf32> to vector<13x4xbf16>
    %298 = vector.extract_strided_slice %0 {offsets = [7, 0, 0], sizes = [1, 4, 128], strides = [1, 1, 1]} : vector<16x4x128xbf16> to vector<1x4x128xbf16>
    %299 = vector.shape_cast %298 : vector<1x4x128xbf16> to vector<4x128xbf16>
    %cst_92 = arith.constant dense<0.000000e+00> : vector<13x128xf32>
    %300 = tpu.matmul %297, %299, %cst_92 {dimension_numbers = #tpu.dot_dimension_numbers<[1], [0], [0], [1], [0, 0, 1, 1], [], []>} : vector<13x4xbf16>, vector<4x128xbf16>, vector<13x128xf32> -> vector<13x128xf32>
    %301 = arith.addf %295, %300 : vector<13x128xf32>
    %c2_i32_93 = arith.constant 2 : i32
    %302 = arith.addi %11, %c2_i32_93 : i32
    %c0_94 = arith.constant 0 : index
    %303 = arith.index_cast %302 : i32 to index
    %c0_95 = arith.constant 0 : index
    %c0_96 = arith.constant 0 : index
    %304 = vector.load %arg2[%c0_94, %303, %c0_95, %c0_96] : memref<1x16x16x4xf32, #tpu.memory_space<vmem>>, vector<1x1x16x4xf32>
    %305 = vector.shape_cast %304 : vector<1x1x16x4xf32> to vector<16x4xf32>
    %306 = vector.extract_strided_slice %305 {offsets = [0, 0], sizes = [13, 4], strides = [1, 1]} : vector<16x4xf32> to vector<13x4xf32>
    %307 = arith.truncf %306 : vector<13x4xf32> to vector<13x4xbf16>
    %308 = vector.extract_strided_slice %0 {offsets = [8, 0, 0], sizes = [1, 4, 128], strides = [1, 1, 1]} : vector<16x4x128xbf16> to vector<1x4x128xbf16>
    %309 = vector.shape_cast %308 : vector<1x4x128xbf16> to vector<4x128xbf16>
    %cst_97 = arith.constant dense<0.000000e+00> : vector<13x128xf32>
    %310 = tpu.matmul %307, %309, %cst_97 {dimension_numbers = #tpu.dot_dimension_numbers<[1], [0], [0], [1], [0, 0, 1, 1], [], []>} : vector<13x4xbf16>, vector<4x128xbf16>, vector<13x128xf32> -> vector<13x128xf32>
    %311 = arith.addf %301, %310 : vector<13x128xf32>
    %312 = vector.extract_strided_slice %305 {offsets = [1, 0], sizes = [13, 4], strides = [1, 1]} : vector<16x4xf32> to vector<13x4xf32>
    %313 = arith.truncf %312 : vector<13x4xf32> to vector<13x4xbf16>
    %314 = vector.extract_strided_slice %0 {offsets = [9, 0, 0], sizes = [1, 4, 128], strides = [1, 1, 1]} : vector<16x4x128xbf16> to vector<1x4x128xbf16>
    %315 = vector.shape_cast %314 : vector<1x4x128xbf16> to vector<4x128xbf16>
    %cst_98 = arith.constant dense<0.000000e+00> : vector<13x128xf32>
    %316 = tpu.matmul %313, %315, %cst_98 {dimension_numbers = #tpu.dot_dimension_numbers<[1], [0], [0], [1], [0, 0, 1, 1], [], []>} : vector<13x4xbf16>, vector<4x128xbf16>, vector<13x128xf32> -> vector<13x128xf32>
    %317 = arith.addf %311, %316 : vector<13x128xf32>
    %318 = vector.extract_strided_slice %305 {offsets = [2, 0], sizes = [13, 4], strides = [1, 1]} : vector<16x4xf32> to vector<13x4xf32>
    %319 = arith.truncf %318 : vector<13x4xf32> to vector<13x4xbf16>
    %320 = vector.extract_strided_slice %0 {offsets = [10, 0, 0], sizes = [1, 4, 128], strides = [1, 1, 1]} : vector<16x4x128xbf16> to vector<1x4x128xbf16>
    %321 = vector.shape_cast %320 : vector<1x4x128xbf16> to vector<4x128xbf16>
    %cst_99 = arith.constant dense<0.000000e+00> : vector<13x128xf32>
    %322 = tpu.matmul %319, %321, %cst_99 {dimension_numbers = #tpu.dot_dimension_numbers<[1], [0], [0], [1], [0, 0, 1, 1], [], []>} : vector<13x4xbf16>, vector<4x128xbf16>, vector<13x128xf32> -> vector<13x128xf32>
    %323 = arith.addf %317, %322 : vector<13x128xf32>
    %324 = vector.extract_strided_slice %305 {offsets = [3, 0], sizes = [13, 4], strides = [1, 1]} : vector<16x4xf32> to vector<13x4xf32>
    %325 = arith.truncf %324 : vector<13x4xf32> to vector<13x4xbf16>
    %326 = vector.extract_strided_slice %0 {offsets = [11, 0, 0], sizes = [1, 4, 128], strides = [1, 1, 1]} : vector<16x4x128xbf16> to vector<1x4x128xbf16>
    %327 = vector.shape_cast %326 : vector<1x4x128xbf16> to vector<4x128xbf16>
    %cst_100 = arith.constant dense<0.000000e+00> : vector<13x128xf32>
    %328 = tpu.matmul %325, %327, %cst_100 {dimension_numbers = #tpu.dot_dimension_numbers<[1], [0], [0], [1], [0, 0, 1, 1], [], []>} : vector<13x4xbf16>, vector<4x128xbf16>, vector<13x128xf32> -> vector<13x128xf32>
    %329 = arith.addf %323, %328 : vector<13x128xf32>
    %c3_i32_101 = arith.constant 3 : i32
    %330 = arith.addi %11, %c3_i32_101 : i32
    %c0_102 = arith.constant 0 : index
    %331 = arith.index_cast %330 : i32 to index
    %c0_103 = arith.constant 0 : index
    %c0_104 = arith.constant 0 : index
    %332 = vector.load %arg2[%c0_102, %331, %c0_103, %c0_104] : memref<1x16x16x4xf32, #tpu.memory_space<vmem>>, vector<1x1x16x4xf32>
    %333 = vector.shape_cast %332 : vector<1x1x16x4xf32> to vector<16x4xf32>
    %334 = vector.extract_strided_slice %333 {offsets = [0, 0], sizes = [13, 4], strides = [1, 1]} : vector<16x4xf32> to vector<13x4xf32>
    %335 = arith.truncf %334 : vector<13x4xf32> to vector<13x4xbf16>
    %336 = vector.extract_strided_slice %0 {offsets = [12, 0, 0], sizes = [1, 4, 128], strides = [1, 1, 1]} : vector<16x4x128xbf16> to vector<1x4x128xbf16>
    %337 = vector.shape_cast %336 : vector<1x4x128xbf16> to vector<4x128xbf16>
    %cst_105 = arith.constant dense<0.000000e+00> : vector<13x128xf32>
    %338 = tpu.matmul %335, %337, %cst_105 {dimension_numbers = #tpu.dot_dimension_numbers<[1], [0], [0], [1], [0, 0, 1, 1], [], []>} : vector<13x4xbf16>, vector<4x128xbf16>, vector<13x128xf32> -> vector<13x128xf32>
    %339 = arith.addf %329, %338 : vector<13x128xf32>
    %340 = vector.extract_strided_slice %333 {offsets = [1, 0], sizes = [13, 4], strides = [1, 1]} : vector<16x4xf32> to vector<13x4xf32>
    %341 = arith.truncf %340 : vector<13x4xf32> to vector<13x4xbf16>
    %342 = vector.extract_strided_slice %0 {offsets = [13, 0, 0], sizes = [1, 4, 128], strides = [1, 1, 1]} : vector<16x4x128xbf16> to vector<1x4x128xbf16>
    %343 = vector.shape_cast %342 : vector<1x4x128xbf16> to vector<4x128xbf16>
    %cst_106 = arith.constant dense<0.000000e+00> : vector<13x128xf32>
    %344 = tpu.matmul %341, %343, %cst_106 {dimension_numbers = #tpu.dot_dimension_numbers<[1], [0], [0], [1], [0, 0, 1, 1], [], []>} : vector<13x4xbf16>, vector<4x128xbf16>, vector<13x128xf32> -> vector<13x128xf32>
    %345 = arith.addf %339, %344 : vector<13x128xf32>
    %346 = vector.extract_strided_slice %333 {offsets = [2, 0], sizes = [13, 4], strides = [1, 1]} : vector<16x4xf32> to vector<13x4xf32>
    %347 = arith.truncf %346 : vector<13x4xf32> to vector<13x4xbf16>
    %348 = vector.extract_strided_slice %0 {offsets = [14, 0, 0], sizes = [1, 4, 128], strides = [1, 1, 1]} : vector<16x4x128xbf16> to vector<1x4x128xbf16>
    %349 = vector.shape_cast %348 : vector<1x4x128xbf16> to vector<4x128xbf16>
    %cst_107 = arith.constant dense<0.000000e+00> : vector<13x128xf32>
    %350 = tpu.matmul %347, %349, %cst_107 {dimension_numbers = #tpu.dot_dimension_numbers<[1], [0], [0], [1], [0, 0, 1, 1], [], []>} : vector<13x4xbf16>, vector<4x128xbf16>, vector<13x128xf32> -> vector<13x128xf32>
    %351 = arith.addf %345, %350 : vector<13x128xf32>
    %352 = vector.extract_strided_slice %333 {offsets = [3, 0], sizes = [13, 4], strides = [1, 1]} : vector<16x4xf32> to vector<13x4xf32>
    %353 = arith.truncf %352 : vector<13x4xf32> to vector<13x4xbf16>
    %354 = vector.extract_strided_slice %0 {offsets = [15, 0, 0], sizes = [1, 4, 128], strides = [1, 1, 1]} : vector<16x4x128xbf16> to vector<1x4x128xbf16>
    %355 = vector.shape_cast %354 : vector<1x4x128xbf16> to vector<4x128xbf16>
    %cst_108 = arith.constant dense<0.000000e+00> : vector<13x128xf32>
    %356 = tpu.matmul %353, %355, %cst_108 {dimension_numbers = #tpu.dot_dimension_numbers<[1], [0], [0], [1], [0, 0, 1, 1], [], []>} : vector<13x4xbf16>, vector<4x128xbf16>, vector<13x128xf32> -> vector<13x128xf32>
    %357 = arith.addf %351, %356 : vector<13x128xf32>
    %cst_109 = arith.constant 2.500000e-01 : f32
    %358 = vector.broadcast %cst_109 : f32 to vector<13x128xf32>
    %359 = arith.mulf %358, %357 : vector<13x128xf32>
    %360 = arith.addf %244, %359 : vector<13x128xf32>
    %361 = arith.truncf %360 : vector<13x128xf32> to vector<13x128xbf16>
    %cst_110 = arith.constant dense<0.000000e+00> : vector<4x128xf32>
    %362 = tpu.matmul %1, %361, %cst_110 {dimension_numbers = #tpu.dot_dimension_numbers<[1], [0], [0], [1], [0, 0, 1, 1], [], []>} : vector<4x13xbf16>, vector<13x128xbf16>, vector<4x128xf32> -> vector<4x128xf32>
    %363 = vector.broadcast %2 : vector<1x128xf32> to vector<4x128xf32>
    %364 = arith.addf %362, %363 : vector<4x128xf32>
    %c0_111 = arith.constant 0 : index
    %c0_112 = arith.constant 0 : index
    %c0_113 = arith.constant 0 : index
    %c0_114 = arith.constant 0 : index
    %365 = vector.load %arg6[%c0_111, %c0_112, %c0_113, %c0_114] : memref<1x4x4x128xf32, #tpu.memory_space<vmem>>, vector<1x1x4x128xf32>
    %366 = vector.shape_cast %365 : vector<1x1x4x128xf32> to vector<4x128xf32>
    %367 = vector.shape_cast %364 : vector<4x128xf32> to vector<1x1x4x128xf32>
    tpu.vector_store %arg6[%c0_111, %c0_112, %c0_113, %c0_114], %367 {strides = array<i32>} : memref<1x4x4x128xf32, #tpu.memory_space<vmem>>, vector<1x1x4x128xf32>,
    %c4_i32_115 = arith.constant 4 : i32
    %368 = arith.muli %arg1, %c4_i32_115 : i32
    %c1_i32_116 = arith.constant 1 : i32
    %369 = arith.addi %368, %c1_i32_116 : i32
    %c4_i32_117 = arith.constant 4 : i32
    %370 = arith.muli %369, %c4_i32_117 : i32
    %c0_i32_118 = arith.constant 0 : i32
    %371 = arith.cmpi eq, %370, %c0_i32_118 : i32
    %c1_i32_119 = arith.constant 1 : i32
    %372 = arith.subi %370, %c1_i32_119 : i32
    %c1_i32_120 = arith.constant 1 : i32
    %373 = arith.select %371, %c1_i32_120, %372 : i32
    %c12_i32_121 = arith.constant 12 : i32
    %374 = arith.cmpi eq, %370, %c12_i32_121 : i32
    %c1_i32_122 = arith.constant 1 : i32
    %375 = arith.addi %370, %c1_i32_122 : i32
    %c11_i32_123 = arith.constant 11 : i32
    %376 = arith.select %374, %c11_i32_123, %375 : i32
    %cst_124 = arith.constant 0.000000e+00 : f32
    %377 = vector.broadcast %cst_124 : f32 to vector<13x128xf32>
    %cst_125 = arith.constant 0.000000e+00 : f32
    %378 = vector.broadcast %cst_125 : f32 to vector<13x128xf32>
    %c0_i32_126 = arith.constant 0 : i32
    %379 = arith.addi %373, %c0_i32_126 : i32
    %c0_127 = arith.constant 0 : index
    %380 = arith.index_cast %379 : i32 to index
    %c0_128 = arith.constant 0 : index
    %c0_129 = arith.constant 0 : index
    %381 = vector.load %arg2[%c0_127, %380, %c0_128, %c0_129] : memref<1x16x16x4xf32, #tpu.memory_space<vmem>>, vector<1x1x16x4xf32>
    %382 = vector.shape_cast %381 : vector<1x1x16x4xf32> to vector<16x4xf32>
    %383 = vector.extract_strided_slice %382 {offsets = [0, 0], sizes = [13, 4], strides = [1, 1]} : vector<16x4xf32> to vector<13x4xf32>
    %384 = arith.truncf %383 : vector<13x4xf32> to vector<13x4xbf16>
    %385 = vector.extract_strided_slice %0 {offsets = [0, 0, 0], sizes = [1, 4, 128], strides = [1, 1, 1]} : vector<16x4x128xbf16> to vector<1x4x128xbf16>
    %386 = vector.shape_cast %385 : vector<1x4x128xbf16> to vector<4x128xbf16>
    %cst_130 = arith.constant dense<0.000000e+00> : vector<13x128xf32>
    %387 = tpu.matmul %384, %386, %cst_130 {dimension_numbers = #tpu.dot_dimension_numbers<[1], [0], [0], [1], [0, 0, 1, 1], [], []>} : vector<13x4xbf16>, vector<4x128xbf16>, vector<13x128xf32> -> vector<13x128xf32>
    %388 = arith.addf %378, %387 : vector<13x128xf32>
    %389 = vector.extract_strided_slice %382 {offsets = [1, 0], sizes = [13, 4], strides = [1, 1]} : vector<16x4xf32> to vector<13x4xf32>
    %390 = arith.truncf %389 : vector<13x4xf32> to vector<13x4xbf16>
    %391 = vector.extract_strided_slice %0 {offsets = [1, 0, 0], sizes = [1, 4, 128], strides = [1, 1, 1]} : vector<16x4x128xbf16> to vector<1x4x128xbf16>
    %392 = vector.shape_cast %391 : vector<1x4x128xbf16> to vector<4x128xbf16>
    %cst_131 = arith.constant dense<0.000000e+00> : vector<13x128xf32>
    %393 = tpu.matmul %390, %392, %cst_131 {dimension_numbers = #tpu.dot_dimension_numbers<[1], [0], [0], [1], [0, 0, 1, 1], [], []>} : vector<13x4xbf16>, vector<4x128xbf16>, vector<13x128xf32> -> vector<13x128xf32>
    %394 = arith.addf %388, %393 : vector<13x128xf32>
    %395 = vector.extract_strided_slice %382 {offsets = [2, 0], sizes = [13, 4], strides = [1, 1]} : vector<16x4xf32> to vector<13x4xf32>
    %396 = arith.truncf %395 : vector<13x4xf32> to vector<13x4xbf16>
    %397 = vector.extract_strided_slice %0 {offsets = [2, 0, 0], sizes = [1, 4, 128], strides = [1, 1, 1]} : vector<16x4x128xbf16> to vector<1x4x128xbf16>
    %398 = vector.shape_cast %397 : vector<1x4x128xbf16> to vector<4x128xbf16>
    %cst_132 = arith.constant dense<0.000000e+00> : vector<13x128xf32>
    %399 = tpu.matmul %396, %398, %cst_132 {dimension_numbers = #tpu.dot_dimension_numbers<[1], [0], [0], [1], [0, 0, 1, 1], [], []>} : vector<13x4xbf16>, vector<4x128xbf16>, vector<13x128xf32> -> vector<13x128xf32>
    %400 = arith.addf %394, %399 : vector<13x128xf32>
    %401 = vector.extract_strided_slice %382 {offsets = [3, 0], sizes = [13, 4], strides = [1, 1]} : vector<16x4xf32> to vector<13x4xf32>
    %402 = arith.truncf %401 : vector<13x4xf32> to vector<13x4xbf16>
    %403 = vector.extract_strided_slice %0 {offsets = [3, 0, 0], sizes = [1, 4, 128], strides = [1, 1, 1]} : vector<16x4x128xbf16> to vector<1x4x128xbf16>
    %404 = vector.shape_cast %403 : vector<1x4x128xbf16> to vector<4x128xbf16>
    %cst_133 = arith.constant dense<0.000000e+00> : vector<13x128xf32>
    %405 = tpu.matmul %402, %404, %cst_133 {dimension_numbers = #tpu.dot_dimension_numbers<[1], [0], [0], [1], [0, 0, 1, 1], [], []>} : vector<13x4xbf16>, vector<4x128xbf16>, vector<13x128xf32> -> vector<13x128xf32>
    %406 = arith.addf %400, %405 : vector<13x128xf32>
    %c1_i32_134 = arith.constant 1 : i32
    %407 = arith.addi %373, %c1_i32_134 : i32
    %c0_135 = arith.constant 0 : index
    %408 = arith.index_cast %407 : i32 to index
    %c0_136 = arith.constant 0 : index
    %c0_137 = arith.constant 0 : index
    %409 = vector.load %arg2[%c0_135, %408, %c0_136, %c0_137] : memref<1x16x16x4xf32, #tpu.memory_space<vmem>>, vector<1x1x16x4xf32>
    %410 = vector.shape_cast %409 : vector<1x1x16x4xf32> to vector<16x4xf32>
    %411 = vector.extract_strided_slice %410 {offsets = [0, 0], sizes = [13, 4], strides = [1, 1]} : vector<16x4xf32> to vector<13x4xf32>
    %412 = arith.truncf %411 : vector<13x4xf32> to vector<13x4xbf16>
    %413 = vector.extract_strided_slice %0 {offsets = [4, 0, 0], sizes = [1, 4, 128], strides = [1, 1, 1]} : vector<16x4x128xbf16> to vector<1x4x128xbf16>
    %414 = vector.shape_cast %413 : vector<1x4x128xbf16> to vector<4x128xbf16>
    %cst_138 = arith.constant dense<0.000000e+00> : vector<13x128xf32>
    %415 = tpu.matmul %412, %414, %cst_138 {dimension_numbers = #tpu.dot_dimension_numbers<[1], [0], [0], [1], [0, 0, 1, 1], [], []>} : vector<13x4xbf16>, vector<4x128xbf16>, vector<13x128xf32> -> vector<13x128xf32>
    %416 = arith.addf %406, %415 : vector<13x128xf32>
    %417 = vector.extract_strided_slice %410 {offsets = [1, 0], sizes = [13, 4], strides = [1, 1]} : vector<16x4xf32> to vector<13x4xf32>
    %418 = arith.truncf %417 : vector<13x4xf32> to vector<13x4xbf16>
    %419 = vector.extract_strided_slice %0 {offsets = [5, 0, 0], sizes = [1, 4, 128], strides = [1, 1, 1]} : vector<16x4x128xbf16> to vector<1x4x128xbf16>
    %420 = vector.shape_cast %419 : vector<1x4x128xbf16> to vector<4x128xbf16>
    %cst_139 = arith.constant dense<0.000000e+00> : vector<13x128xf32>
    %421 = tpu.matmul %418, %420, %cst_139 {dimension_numbers = #tpu.dot_dimension_numbers<[1], [0], [0], [1], [0, 0, 1, 1], [], []>} : vector<13x4xbf16>, vector<4x128xbf16>, vector<13x128xf32> -> vector<13x128xf32>
    %422 = arith.addf %416, %421 : vector<13x128xf32>
    %423 = vector.extract_strided_slice %410 {offsets = [2, 0], sizes = [13, 4], strides = [1, 1]} : vector<16x4xf32> to vector<13x4xf32>
    %424 = arith.truncf %423 : vector<13x4xf32> to vector<13x4xbf16>
    %425 = vector.extract_strided_slice %0 {offsets = [6, 0, 0], sizes = [1, 4, 128], strides = [1, 1, 1]} : vector<16x4x128xbf16> to vector<1x4x128xbf16>
    %426 = vector.shape_cast %425 : vector<1x4x128xbf16> to vector<4x128xbf16>
    %cst_140 = arith.constant dense<0.000000e+00> : vector<13x128xf32>
    %427 = tpu.matmul %424, %426, %cst_140 {dimension_numbers = #tpu.dot_dimension_numbers<[1], [0], [0], [1], [0, 0, 1, 1], [], []>} : vector<13x4xbf16>, vector<4x128xbf16>, vector<13x128xf32> -> vector<13x128xf32>
    %428 = arith.addf %422, %427 : vector<13x128xf32>
    %429 = vector.extract_strided_slice %410 {offsets = [3, 0], sizes = [13, 4], strides = [1, 1]} : vector<16x4xf32> to vector<13x4xf32>
    %430 = arith.truncf %429 : vector<13x4xf32> to vector<13x4xbf16>
    %431 = vector.extract_strided_slice %0 {offsets = [7, 0, 0], sizes = [1, 4, 128], strides = [1, 1, 1]} : vector<16x4x128xbf16> to vector<1x4x128xbf16>
    %432 = vector.shape_cast %431 : vector<1x4x128xbf16> to vector<4x128xbf16>
    %cst_141 = arith.constant dense<0.000000e+00> : vector<13x128xf32>
    %433 = tpu.matmul %430, %432, %cst_141 {dimension_numbers = #tpu.dot_dimension_numbers<[1], [0], [0], [1], [0, 0, 1, 1], [], []>} : vector<13x4xbf16>, vector<4x128xbf16>, vector<13x128xf32> -> vector<13x128xf32>
    %434 = arith.addf %428, %433 : vector<13x128xf32>
    %c2_i32_142 = arith.constant 2 : i32
    %435 = arith.addi %373, %c2_i32_142 : i32
    %c0_143 = arith.constant 0 : index
    %436 = arith.index_cast %435 : i32 to index
    %c0_144 = arith.constant 0 : index
    %c0_145 = arith.constant 0 : index
    %437 = vector.load %arg2[%c0_143, %436, %c0_144, %c0_145] : memref<1x16x16x4xf32, #tpu.memory_space<vmem>>, vector<1x1x16x4xf32>
    %438 = vector.shape_cast %437 : vector<1x1x16x4xf32> to vector<16x4xf32>
    %439 = vector.extract_strided_slice %438 {offsets = [0, 0], sizes = [13, 4], strides = [1, 1]} : vector<16x4xf32> to vector<13x4xf32>
    %440 = arith.truncf %439 : vector<13x4xf32> to vector<13x4xbf16>
    %441 = vector.extract_strided_slice %0 {offsets = [8, 0, 0], sizes = [1, 4, 128], strides = [1, 1, 1]} : vector<16x4x128xbf16> to vector<1x4x128xbf16>
    %442 = vector.shape_cast %441 : vector<1x4x128xbf16> to vector<4x128xbf16>
    %cst_146 = arith.constant dense<0.000000e+00> : vector<13x128xf32>
    %443 = tpu.matmul %440, %442, %cst_146 {dimension_numbers = #tpu.dot_dimension_numbers<[1], [0], [0], [1], [0, 0, 1, 1], [], []>} : vector<13x4xbf16>, vector<4x128xbf16>, vector<13x128xf32> -> vector<13x128xf32>
    %444 = arith.addf %434, %443 : vector<13x128xf32>
    %445 = vector.extract_strided_slice %438 {offsets = [1, 0], sizes = [13, 4], strides = [1, 1]} : vector<16x4xf32> to vector<13x4xf32>
    %446 = arith.truncf %445 : vector<13x4xf32> to vector<13x4xbf16>
    %447 = vector.extract_strided_slice %0 {offsets = [9, 0, 0], sizes = [1, 4, 128], strides = [1, 1, 1]} : vector<16x4x128xbf16> to vector<1x4x128xbf16>
    %448 = vector.shape_cast %447 : vector<1x4x128xbf16> to vector<4x128xbf16>
    %cst_147 = arith.constant dense<0.000000e+00> : vector<13x128xf32>
    %449 = tpu.matmul %446, %448, %cst_147 {dimension_numbers = #tpu.dot_dimension_numbers<[1], [0], [0], [1], [0, 0, 1, 1], [], []>} : vector<13x4xbf16>, vector<4x128xbf16>, vector<13x128xf32> -> vector<13x128xf32>
    %450 = arith.addf %444, %449 : vector<13x128xf32>
    %451 = vector.extract_strided_slice %438 {offsets = [2, 0], sizes = [13, 4], strides = [1, 1]} : vector<16x4xf32> to vector<13x4xf32>
    %452 = arith.truncf %451 : vector<13x4xf32> to vector<13x4xbf16>
    %453 = vector.extract_strided_slice %0 {offsets = [10, 0, 0], sizes = [1, 4, 128], strides = [1, 1, 1]} : vector<16x4x128xbf16> to vector<1x4x128xbf16>
    %454 = vector.shape_cast %453 : vector<1x4x128xbf16> to vector<4x128xbf16>
    %cst_148 = arith.constant dense<0.000000e+00> : vector<13x128xf32>
    %455 = tpu.matmul %452, %454, %cst_148 {dimension_numbers = #tpu.dot_dimension_numbers<[1], [0], [0], [1], [0, 0, 1, 1], [], []>} : vector<13x4xbf16>, vector<4x128xbf16>, vector<13x128xf32> -> vector<13x128xf32>
    %456 = arith.addf %450, %455 : vector<13x128xf32>
    %457 = vector.extract_strided_slice %438 {offsets = [3, 0], sizes = [13, 4], strides = [1, 1]} : vector<16x4xf32> to vector<13x4xf32>
    %458 = arith.truncf %457 : vector<13x4xf32> to vector<13x4xbf16>
    %459 = vector.extract_strided_slice %0 {offsets = [11, 0, 0], sizes = [1, 4, 128], strides = [1, 1, 1]} : vector<16x4x128xbf16> to vector<1x4x128xbf16>
    %460 = vector.shape_cast %459 : vector<1x4x128xbf16> to vector<4x128xbf16>
    %cst_149 = arith.constant dense<0.000000e+00> : vector<13x128xf32>
    %461 = tpu.matmul %458, %460, %cst_149 {dimension_numbers = #tpu.dot_dimension_numbers<[1], [0], [0], [1], [0, 0, 1, 1], [], []>} : vector<13x4xbf16>, vector<4x128xbf16>, vector<13x128xf32> -> vector<13x128xf32>
    %462 = arith.addf %456, %461 : vector<13x128xf32>
    %c3_i32_150 = arith.constant 3 : i32
    %463 = arith.addi %373, %c3_i32_150 : i32
    %c0_151 = arith.constant 0 : index
    %464 = arith.index_cast %463 : i32 to index
    %c0_152 = arith.constant 0 : index
    %c0_153 = arith.constant 0 : index
    %465 = vector.load %arg2[%c0_151, %464, %c0_152, %c0_153] : memref<1x16x16x4xf32, #tpu.memory_space<vmem>>, vector<1x1x16x4xf32>
    %466 = vector.shape_cast %465 : vector<1x1x16x4xf32> to vector<16x4xf32>
    %467 = vector.extract_strided_slice %466 {offsets = [0, 0], sizes = [13, 4], strides = [1, 1]} : vector<16x4xf32> to vector<13x4xf32>
    %468 = arith.truncf %467 : vector<13x4xf32> to vector<13x4xbf16>
    %469 = vector.extract_strided_slice %0 {offsets = [12, 0, 0], sizes = [1, 4, 128], strides = [1, 1, 1]} : vector<16x4x128xbf16> to vector<1x4x128xbf16>
    %470 = vector.shape_cast %469 : vector<1x4x128xbf16> to vector<4x128xbf16>
    %cst_154 = arith.constant dense<0.000000e+00> : vector<13x128xf32>
    %471 = tpu.matmul %468, %470, %cst_154 {dimension_numbers = #tpu.dot_dimension_numbers<[1], [0], [0], [1], [0, 0, 1, 1], [], []>} : vector<13x4xbf16>, vector<4x128xbf16>, vector<13x128xf32> -> vector<13x128xf32>
    %472 = arith.addf %462, %471 : vector<13x128xf32>
    %473 = vector.extract_strided_slice %466 {offsets = [1, 0], sizes = [13, 4], strides = [1, 1]} : vector<16x4xf32> to vector<13x4xf32>
    %474 = arith.truncf %473 : vector<13x4xf32> to vector<13x4xbf16>
    %475 = vector.extract_strided_slice %0 {offsets = [13, 0, 0], sizes = [1, 4, 128], strides = [1, 1, 1]} : vector<16x4x128xbf16> to vector<1x4x128xbf16>
    %476 = vector.shape_cast %475 : vector<1x4x128xbf16> to vector<4x128xbf16>
    %cst_155 = arith.constant dense<0.000000e+00> : vector<13x128xf32>
    %477 = tpu.matmul %474, %476, %cst_155 {dimension_numbers = #tpu.dot_dimension_numbers<[1], [0], [0], [1], [0, 0, 1, 1], [], []>} : vector<13x4xbf16>, vector<4x128xbf16>, vector<13x128xf32> -> vector<13x128xf32>
    %478 = arith.addf %472, %477 : vector<13x128xf32>
    %479 = vector.extract_strided_slice %466 {offsets = [2, 0], sizes = [13, 4], strides = [1, 1]} : vector<16x4xf32> to vector<13x4xf32>
    %480 = arith.truncf %479 : vector<13x4xf32> to vector<13x4xbf16>
    %481 = vector.extract_strided_slice %0 {offsets = [14, 0, 0], sizes = [1, 4, 128], strides = [1, 1, 1]} : vector<16x4x128xbf16> to vector<1x4x128xbf16>
    %482 = vector.shape_cast %481 : vector<1x4x128xbf16> to vector<4x128xbf16>
    %cst_156 = arith.constant dense<0.000000e+00> : vector<13x128xf32>
    %483 = tpu.matmul %480, %482, %cst_156 {dimension_numbers = #tpu.dot_dimension_numbers<[1], [0], [0], [1], [0, 0, 1, 1], [], []>} : vector<13x4xbf16>, vector<4x128xbf16>, vector<13x128xf32> -> vector<13x128xf32>
    %484 = arith.addf %478, %483 : vector<13x128xf32>
    %485 = vector.extract_strided_slice %466 {offsets = [3, 0], sizes = [13, 4], strides = [1, 1]} : vector<16x4xf32> to vector<13x4xf32>
    %486 = arith.truncf %485 : vector<13x4xf32> to vector<13x4xbf16>
    %487 = vector.extract_strided_slice %0 {offsets = [15, 0, 0], sizes = [1, 4, 128], strides = [1, 1, 1]} : vector<16x4x128xbf16> to vector<1x4x128xbf16>
    %488 = vector.shape_cast %487 : vector<1x4x128xbf16> to vector<4x128xbf16>
    %cst_157 = arith.constant dense<0.000000e+00> : vector<13x128xf32>
    %489 = tpu.matmul %486, %488, %cst_157 {dimension_numbers = #tpu.dot_dimension_numbers<[1], [0], [0], [1], [0, 0, 1, 1], [], []>} : vector<13x4xbf16>, vector<4x128xbf16>, vector<13x128xf32> -> vector<13x128xf32>
    %490 = arith.addf %484, %489 : vector<13x128xf32>
    %cst_158 = arith.constant 2.500000e-01 : f32
    %491 = vector.broadcast %cst_158 : f32 to vector<13x128xf32>
    %492 = arith.mulf %491, %490 : vector<13x128xf32>
    %493 = arith.addf %377, %492 : vector<13x128xf32>
    %cst_159 = arith.constant 0.000000e+00 : f32
    %494 = vector.broadcast %cst_159 : f32 to vector<13x128xf32>
    %c0_i32_160 = arith.constant 0 : i32
    %495 = arith.addi %370, %c0_i32_160 : i32
    %c0_161 = arith.constant 0 : index
    %496 = arith.index_cast %495 : i32 to index
    %c0_162 = arith.constant 0 : index
    %c0_163 = arith.constant 0 : index
    %497 = vector.load %arg2[%c0_161, %496, %c0_162, %c0_163] : memref<1x16x16x4xf32, #tpu.memory_space<vmem>>, vector<1x1x16x4xf32>
    %498 = vector.shape_cast %497 : vector<1x1x16x4xf32> to vector<16x4xf32>
    %499 = vector.extract_strided_slice %498 {offsets = [0, 0], sizes = [13, 4], strides = [1, 1]} : vector<16x4xf32> to vector<13x4xf32>
    %500 = arith.truncf %499 : vector<13x4xf32> to vector<13x4xbf16>
    %501 = vector.extract_strided_slice %0 {offsets = [0, 0, 0], sizes = [1, 4, 128], strides = [1, 1, 1]} : vector<16x4x128xbf16> to vector<1x4x128xbf16>
    %502 = vector.shape_cast %501 : vector<1x4x128xbf16> to vector<4x128xbf16>
    %cst_164 = arith.constant dense<0.000000e+00> : vector<13x128xf32>
    %503 = tpu.matmul %500, %502, %cst_164 {dimension_numbers = #tpu.dot_dimension_numbers<[1], [0], [0], [1], [0, 0, 1, 1], [], []>} : vector<13x4xbf16>, vector<4x128xbf16>, vector<13x128xf32> -> vector<13x128xf32>
    %504 = arith.addf %494, %503 : vector<13x128xf32>
    %505 = vector.extract_strided_slice %498 {offsets = [1, 0], sizes = [13, 4], strides = [1, 1]} : vector<16x4xf32> to vector<13x4xf32>
    %506 = arith.truncf %505 : vector<13x4xf32> to vector<13x4xbf16>
    %507 = vector.extract_strided_slice %0 {offsets = [1, 0, 0], sizes = [1, 4, 128], strides = [1, 1, 1]} : vector<16x4x128xbf16> to vector<1x4x128xbf16>
    %508 = vector.shape_cast %507 : vector<1x4x128xbf16> to vector<4x128xbf16>
    %cst_165 = arith.constant dense<0.000000e+00> : vector<13x128xf32>
    %509 = tpu.matmul %506, %508, %cst_165 {dimension_numbers = #tpu.dot_dimension_numbers<[1], [0], [0], [1], [0, 0, 1, 1], [], []>} : vector<13x4xbf16>, vector<4x128xbf16>, vector<13x128xf32> -> vector<13x128xf32>
    %510 = arith.addf %504, %509 : vector<13x128xf32>
    %511 = vector.extract_strided_slice %498 {offsets = [2, 0], sizes = [13, 4], strides = [1, 1]} : vector<16x4xf32> to vector<13x4xf32>
    %512 = arith.truncf %511 : vector<13x4xf32> to vector<13x4xbf16>
    %513 = vector.extract_strided_slice %0 {offsets = [2, 0, 0], sizes = [1, 4, 128], strides = [1, 1, 1]} : vector<16x4x128xbf16> to vector<1x4x128xbf16>
    %514 = vector.shape_cast %513 : vector<1x4x128xbf16> to vector<4x128xbf16>
    %cst_166 = arith.constant dense<0.000000e+00> : vector<13x128xf32>
    %515 = tpu.matmul %512, %514, %cst_166 {dimension_numbers = #tpu.dot_dimension_numbers<[1], [0], [0], [1], [0, 0, 1, 1], [], []>} : vector<13x4xbf16>, vector<4x128xbf16>, vector<13x128xf32> -> vector<13x128xf32>
    %516 = arith.addf %510, %515 : vector<13x128xf32>
    %517 = vector.extract_strided_slice %498 {offsets = [3, 0], sizes = [13, 4], strides = [1, 1]} : vector<16x4xf32> to vector<13x4xf32>
    %518 = arith.truncf %517 : vector<13x4xf32> to vector<13x4xbf16>
    %519 = vector.extract_strided_slice %0 {offsets = [3, 0, 0], sizes = [1, 4, 128], strides = [1, 1, 1]} : vector<16x4x128xbf16> to vector<1x4x128xbf16>
    %520 = vector.shape_cast %519 : vector<1x4x128xbf16> to vector<4x128xbf16>
    %cst_167 = arith.constant dense<0.000000e+00> : vector<13x128xf32>
    %521 = tpu.matmul %518, %520, %cst_167 {dimension_numbers = #tpu.dot_dimension_numbers<[1], [0], [0], [1], [0, 0, 1, 1], [], []>} : vector<13x4xbf16>, vector<4x128xbf16>, vector<13x128xf32> -> vector<13x128xf32>
    %522 = arith.addf %516, %521 : vector<13x128xf32>
    %c1_i32_168 = arith.constant 1 : i32
    %523 = arith.addi %370, %c1_i32_168 : i32
    %c0_169 = arith.constant 0 : index
    %524 = arith.index_cast %523 : i32 to index
    %c0_170 = arith.constant 0 : index
    %c0_171 = arith.constant 0 : index
    %525 = vector.load %arg2[%c0_169, %524, %c0_170, %c0_171] : memref<1x16x16x4xf32, #tpu.memory_space<vmem>>, vector<1x1x16x4xf32>
    %526 = vector.shape_cast %525 : vector<1x1x16x4xf32> to vector<16x4xf32>
    %527 = vector.extract_strided_slice %526 {offsets = [0, 0], sizes = [13, 4], strides = [1, 1]} : vector<16x4xf32> to vector<13x4xf32>
    %528 = arith.truncf %527 : vector<13x4xf32> to vector<13x4xbf16>
    %529 = vector.extract_strided_slice %0 {offsets = [4, 0, 0], sizes = [1, 4, 128], strides = [1, 1, 1]} : vector<16x4x128xbf16> to vector<1x4x128xbf16>
    %530 = vector.shape_cast %529 : vector<1x4x128xbf16> to vector<4x128xbf16>
    %cst_172 = arith.constant dense<0.000000e+00> : vector<13x128xf32>
    %531 = tpu.matmul %528, %530, %cst_172 {dimension_numbers = #tpu.dot_dimension_numbers<[1], [0], [0], [1], [0, 0, 1, 1], [], []>} : vector<13x4xbf16>, vector<4x128xbf16>, vector<13x128xf32> -> vector<13x128xf32>
    %532 = arith.addf %522, %531 : vector<13x128xf32>
    %533 = vector.extract_strided_slice %526 {offsets = [1, 0], sizes = [13, 4], strides = [1, 1]} : vector<16x4xf32> to vector<13x4xf32>
    %534 = arith.truncf %533 : vector<13x4xf32> to vector<13x4xbf16>
    %535 = vector.extract_strided_slice %0 {offsets = [5, 0, 0], sizes = [1, 4, 128], strides = [1, 1, 1]} : vector<16x4x128xbf16> to vector<1x4x128xbf16>
    %536 = vector.shape_cast %535 : vector<1x4x128xbf16> to vector<4x128xbf16>
    %cst_173 = arith.constant dense<0.000000e+00> : vector<13x128xf32>
    %537 = tpu.matmul %534, %536, %cst_173 {dimension_numbers = #tpu.dot_dimension_numbers<[1], [0], [0], [1], [0, 0, 1, 1], [], []>} : vector<13x4xbf16>, vector<4x128xbf16>, vector<13x128xf32> -> vector<13x128xf32>
    %538 = arith.addf %532, %537 : vector<13x128xf32>
    %539 = vector.extract_strided_slice %526 {offsets = [2, 0], sizes = [13, 4], strides = [1, 1]} : vector<16x4xf32> to vector<13x4xf32>
    %540 = arith.truncf %539 : vector<13x4xf32> to vector<13x4xbf16>
    %541 = vector.extract_strided_slice %0 {offsets = [6, 0, 0], sizes = [1, 4, 128], strides = [1, 1, 1]} : vector<16x4x128xbf16> to vector<1x4x128xbf16>
    %542 = vector.shape_cast %541 : vector<1x4x128xbf16> to vector<4x128xbf16>
    %cst_174 = arith.constant dense<0.000000e+00> : vector<13x128xf32>
    %543 = tpu.matmul %540, %542, %cst_174 {dimension_numbers = #tpu.dot_dimension_numbers<[1], [0], [0], [1], [0, 0, 1, 1], [], []>} : vector<13x4xbf16>, vector<4x128xbf16>, vector<13x128xf32> -> vector<13x128xf32>
    %544 = arith.addf %538, %543 : vector<13x128xf32>
    %545 = vector.extract_strided_slice %526 {offsets = [3, 0], sizes = [13, 4], strides = [1, 1]} : vector<16x4xf32> to vector<13x4xf32>
    %546 = arith.truncf %545 : vector<13x4xf32> to vector<13x4xbf16>
    %547 = vector.extract_strided_slice %0 {offsets = [7, 0, 0], sizes = [1, 4, 128], strides = [1, 1, 1]} : vector<16x4x128xbf16> to vector<1x4x128xbf16>
    %548 = vector.shape_cast %547 : vector<1x4x128xbf16> to vector<4x128xbf16>
    %cst_175 = arith.constant dense<0.000000e+00> : vector<13x128xf32>
    %549 = tpu.matmul %546, %548, %cst_175 {dimension_numbers = #tpu.dot_dimension_numbers<[1], [0], [0], [1], [0, 0, 1, 1], [], []>} : vector<13x4xbf16>, vector<4x128xbf16>, vector<13x128xf32> -> vector<13x128xf32>
    %550 = arith.addf %544, %549 : vector<13x128xf32>
    %c2_i32_176 = arith.constant 2 : i32
    %551 = arith.addi %370, %c2_i32_176 : i32
    %c0_177 = arith.constant 0 : index
    %552 = arith.index_cast %551 : i32 to index
    %c0_178 = arith.constant 0 : index
    %c0_179 = arith.constant 0 : index
    %553 = vector.load %arg2[%c0_177, %552, %c0_178, %c0_179] : memref<1x16x16x4xf32, #tpu.memory_space<vmem>>, vector<1x1x16x4xf32>
    %554 = vector.shape_cast %553 : vector<1x1x16x4xf32> to vector<16x4xf32>
    %555 = vector.extract_strided_slice %554 {offsets = [0, 0], sizes = [13, 4], strides = [1, 1]} : vector<16x4xf32> to vector<13x4xf32>
    %556 = arith.truncf %555 : vector<13x4xf32> to vector<13x4xbf16>
    %557 = vector.extract_strided_slice %0 {offsets = [8, 0, 0], sizes = [1, 4, 128], strides = [1, 1, 1]} : vector<16x4x128xbf16> to vector<1x4x128xbf16>
    %558 = vector.shape_cast %557 : vector<1x4x128xbf16> to vector<4x128xbf16>
    %cst_180 = arith.constant dense<0.000000e+00> : vector<13x128xf32>
    %559 = tpu.matmul %556, %558, %cst_180 {dimension_numbers = #tpu.dot_dimension_numbers<[1], [0], [0], [1], [0, 0, 1, 1], [], []>} : vector<13x4xbf16>, vector<4x128xbf16>, vector<13x128xf32> -> vector<13x128xf32>
    %560 = arith.addf %550, %559 : vector<13x128xf32>
    %561 = vector.extract_strided_slice %554 {offsets = [1, 0], sizes = [13, 4], strides = [1, 1]} : vector<16x4xf32> to vector<13x4xf32>
    %562 = arith.truncf %561 : vector<13x4xf32> to vector<13x4xbf16>
    %563 = vector.extract_strided_slice %0 {offsets = [9, 0, 0], sizes = [1, 4, 128], strides = [1, 1, 1]} : vector<16x4x128xbf16> to vector<1x4x128xbf16>
    %564 = vector.shape_cast %563 : vector<1x4x128xbf16> to vector<4x128xbf16>
    %cst_181 = arith.constant dense<0.000000e+00> : vector<13x128xf32>
    %565 = tpu.matmul %562, %564, %cst_181 {dimension_numbers = #tpu.dot_dimension_numbers<[1], [0], [0], [1], [0, 0, 1, 1], [], []>} : vector<13x4xbf16>, vector<4x128xbf16>, vector<13x128xf32> -> vector<13x128xf32>
    %566 = arith.addf %560, %565 : vector<13x128xf32>
    %567 = vector.extract_strided_slice %554 {offsets = [2, 0], sizes = [13, 4], strides = [1, 1]} : vector<16x4xf32> to vector<13x4xf32>
    %568 = arith.truncf %567 : vector<13x4xf32> to vector<13x4xbf16>
    %569 = vector.extract_strided_slice %0 {offsets = [10, 0, 0], sizes = [1, 4, 128], strides = [1, 1, 1]} : vector<16x4x128xbf16> to vector<1x4x128xbf16>
    %570 = vector.shape_cast %569 : vector<1x4x128xbf16> to vector<4x128xbf16>
    %cst_182 = arith.constant dense<0.000000e+00> : vector<13x128xf32>
    %571 = tpu.matmul %568, %570, %cst_182 {dimension_numbers = #tpu.dot_dimension_numbers<[1], [0], [0], [1], [0, 0, 1, 1], [], []>} : vector<13x4xbf16>, vector<4x128xbf16>, vector<13x128xf32> -> vector<13x128xf32>
    %572 = arith.addf %566, %571 : vector<13x128xf32>
    %573 = vector.extract_strided_slice %554 {offsets = [3, 0], sizes = [13, 4], strides = [1, 1]} : vector<16x4xf32> to vector<13x4xf32>
    %574 = arith.truncf %573 : vector<13x4xf32> to vector<13x4xbf16>
    %575 = vector.extract_strided_slice %0 {offsets = [11, 0, 0], sizes = [1, 4, 128], strides = [1, 1, 1]} : vector<16x4x128xbf16> to vector<1x4x128xbf16>
    %576 = vector.shape_cast %575 : vector<1x4x128xbf16> to vector<4x128xbf16>
    %cst_183 = arith.constant dense<0.000000e+00> : vector<13x128xf32>
    %577 = tpu.matmul %574, %576, %cst_183 {dimension_numbers = #tpu.dot_dimension_numbers<[1], [0], [0], [1], [0, 0, 1, 1], [], []>} : vector<13x4xbf16>, vector<4x128xbf16>, vector<13x128xf32> -> vector<13x128xf32>
    %578 = arith.addf %572, %577 : vector<13x128xf32>
    %c3_i32_184 = arith.constant 3 : i32
    %579 = arith.addi %370, %c3_i32_184 : i32
    %c0_185 = arith.constant 0 : index
    %580 = arith.index_cast %579 : i32 to index
    %c0_186 = arith.constant 0 : index
    %c0_187 = arith.constant 0 : index
    %581 = vector.load %arg2[%c0_185, %580, %c0_186, %c0_187] : memref<1x16x16x4xf32, #tpu.memory_space<vmem>>, vector<1x1x16x4xf32>
    %582 = vector.shape_cast %581 : vector<1x1x16x4xf32> to vector<16x4xf32>
    %583 = vector.extract_strided_slice %582 {offsets = [0, 0], sizes = [13, 4], strides = [1, 1]} : vector<16x4xf32> to vector<13x4xf32>
    %584 = arith.truncf %583 : vector<13x4xf32> to vector<13x4xbf16>
    %585 = vector.extract_strided_slice %0 {offsets = [12, 0, 0], sizes = [1, 4, 128], strides = [1, 1, 1]} : vector<16x4x128xbf16> to vector<1x4x128xbf16>
    %586 = vector.shape_cast %585 : vector<1x4x128xbf16> to vector<4x128xbf16>
    %cst_188 = arith.constant dense<0.000000e+00> : vector<13x128xf32>
    %587 = tpu.matmul %584, %586, %cst_188 {dimension_numbers = #tpu.dot_dimension_numbers<[1], [0], [0], [1], [0, 0, 1, 1], [], []>} : vector<13x4xbf16>, vector<4x128xbf16>, vector<13x128xf32> -> vector<13x128xf32>
    %588 = arith.addf %578, %587 : vector<13x128xf32>
    %589 = vector.extract_strided_slice %582 {offsets = [1, 0], sizes = [13, 4], strides = [1, 1]} : vector<16x4xf32> to vector<13x4xf32>
    %590 = arith.truncf %589 : vector<13x4xf32> to vector<13x4xbf16>
    %591 = vector.extract_strided_slice %0 {offsets = [13, 0, 0], sizes = [1, 4, 128], strides = [1, 1, 1]} : vector<16x4x128xbf16> to vector<1x4x128xbf16>
    %592 = vector.shape_cast %591 : vector<1x4x128xbf16> to vector<4x128xbf16>
    %cst_189 = arith.constant dense<0.000000e+00> : vector<13x128xf32>
    %593 = tpu.matmul %590, %592, %cst_189 {dimension_numbers = #tpu.dot_dimension_numbers<[1], [0], [0], [1], [0, 0, 1, 1], [], []>} : vector<13x4xbf16>, vector<4x128xbf16>, vector<13x128xf32> -> vector<13x128xf32>
    %594 = arith.addf %588, %593 : vector<13x128xf32>
    %595 = vector.extract_strided_slice %582 {offsets = [2, 0], sizes = [13, 4], strides = [1, 1]} : vector<16x4xf32> to vector<13x4xf32>
    %596 = arith.truncf %595 : vector<13x4xf32> to vector<13x4xbf16>
    %597 = vector.extract_strided_slice %0 {offsets = [14, 0, 0], sizes = [1, 4, 128], strides = [1, 1, 1]} : vector<16x4x128xbf16> to vector<1x4x128xbf16>
    %598 = vector.shape_cast %597 : vector<1x4x128xbf16> to vector<4x128xbf16>
    %cst_190 = arith.constant dense<0.000000e+00> : vector<13x128xf32>
    %599 = tpu.matmul %596, %598, %cst_190 {dimension_numbers = #tpu.dot_dimension_numbers<[1], [0], [0], [1], [0, 0, 1, 1], [], []>} : vector<13x4xbf16>, vector<4x128xbf16>, vector<13x128xf32> -> vector<13x128xf32>
    %600 = arith.addf %594, %599 : vector<13x128xf32>
    %601 = vector.extract_strided_slice %582 {offsets = [3, 0], sizes = [13, 4], strides = [1, 1]} : vector<16x4xf32> to vector<13x4xf32>
    %602 = arith.truncf %601 : vector<13x4xf32> to vector<13x4xbf16>
    %603 = vector.extract_strided_slice %0 {offsets = [15, 0, 0], sizes = [1, 4, 128], strides = [1, 1, 1]} : vector<16x4x128xbf16> to vector<1x4x128xbf16>
    %604 = vector.shape_cast %603 : vector<1x4x128xbf16> to vector<4x128xbf16>
    %cst_191 = arith.constant dense<0.000000e+00> : vector<13x128xf32>
    %605 = tpu.matmul %602, %604, %cst_191 {dimension_numbers = #tpu.dot_dimension_numbers<[1], [0], [0], [1], [0, 0, 1, 1], [], []>} : vector<13x4xbf16>, vector<4x128xbf16>, vector<13x128xf32> -> vector<13x128xf32>
    %606 = arith.addf %600, %605 : vector<13x128xf32>
    %cst_192 = arith.constant 5.000000e-01 : f32
    %607 = vector.broadcast %cst_192 : f32 to vector<13x128xf32>
    %608 = arith.mulf %607, %606 : vector<13x128xf32>
    %609 = arith.addf %493, %608 : vector<13x128xf32>
    %cst_193 = arith.constant 0.000000e+00 : f32
    %610 = vector.broadcast %cst_193 : f32 to vector<13x128xf32>
    %c0_i32_194 = arith.constant 0 : i32
    %611 = arith.addi %376, %c0_i32_194 : i32
    %c0_195 = arith.constant 0 : index
    %612 = arith.index_cast %611 : i32 to index
    %c0_196 = arith.constant 0 : index
    %c0_197 = arith.constant 0 : index
    %613 = vector.load %arg2[%c0_195, %612, %c0_196, %c0_197] : memref<1x16x16x4xf32, #tpu.memory_space<vmem>>, vector<1x1x16x4xf32>
    %614 = vector.shape_cast %613 : vector<1x1x16x4xf32> to vector<16x4xf32>
    %615 = vector.extract_strided_slice %614 {offsets = [0, 0], sizes = [13, 4], strides = [1, 1]} : vector<16x4xf32> to vector<13x4xf32>
    %616 = arith.truncf %615 : vector<13x4xf32> to vector<13x4xbf16>
    %617 = vector.extract_strided_slice %0 {offsets = [0, 0, 0], sizes = [1, 4, 128], strides = [1, 1, 1]} : vector<16x4x128xbf16> to vector<1x4x128xbf16>
    %618 = vector.shape_cast %617 : vector<1x4x128xbf16> to vector<4x128xbf16>
    %cst_198 = arith.constant dense<0.000000e+00> : vector<13x128xf32>
    %619 = tpu.matmul %616, %618, %cst_198 {dimension_numbers = #tpu.dot_dimension_numbers<[1], [0], [0], [1], [0, 0, 1, 1], [], []>} : vector<13x4xbf16>, vector<4x128xbf16>, vector<13x128xf32> -> vector<13x128xf32>
    %620 = arith.addf %610, %619 : vector<13x128xf32>
    %621 = vector.extract_strided_slice %614 {offsets = [1, 0], sizes = [13, 4], strides = [1, 1]} : vector<16x4xf32> to vector<13x4xf32>
    %622 = arith.truncf %621 : vector<13x4xf32> to vector<13x4xbf16>
    %623 = vector.extract_strided_slice %0 {offsets = [1, 0, 0], sizes = [1, 4, 128], strides = [1, 1, 1]} : vector<16x4x128xbf16> to vector<1x4x128xbf16>
    %624 = vector.shape_cast %623 : vector<1x4x128xbf16> to vector<4x128xbf16>
    %cst_199 = arith.constant dense<0.000000e+00> : vector<13x128xf32>
    %625 = tpu.matmul %622, %624, %cst_199 {dimension_numbers = #tpu.dot_dimension_numbers<[1], [0], [0], [1], [0, 0, 1, 1], [], []>} : vector<13x4xbf16>, vector<4x128xbf16>, vector<13x128xf32> -> vector<13x128xf32>
    %626 = arith.addf %620, %625 : vector<13x128xf32>
    %627 = vector.extract_strided_slice %614 {offsets = [2, 0], sizes = [13, 4], strides = [1, 1]} : vector<16x4xf32> to vector<13x4xf32>
    %628 = arith.truncf %627 : vector<13x4xf32> to vector<13x4xbf16>
    %629 = vector.extract_strided_slice %0 {offsets = [2, 0, 0], sizes = [1, 4, 128], strides = [1, 1, 1]} : vector<16x4x128xbf16> to vector<1x4x128xbf16>
    %630 = vector.shape_cast %629 : vector<1x4x128xbf16> to vector<4x128xbf16>
    %cst_200 = arith.constant dense<0.000000e+00> : vector<13x128xf32>
    %631 = tpu.matmul %628, %630, %cst_200 {dimension_numbers = #tpu.dot_dimension_numbers<[1], [0], [0], [1], [0, 0, 1, 1], [], []>} : vector<13x4xbf16>, vector<4x128xbf16>, vector<13x128xf32> -> vector<13x128xf32>
    %632 = arith.addf %626, %631 : vector<13x128xf32>
    %633 = vector.extract_strided_slice %614 {offsets = [3, 0], sizes = [13, 4], strides = [1, 1]} : vector<16x4xf32> to vector<13x4xf32>
    %634 = arith.truncf %633 : vector<13x4xf32> to vector<13x4xbf16>
    %635 = vector.extract_strided_slice %0 {offsets = [3, 0, 0], sizes = [1, 4, 128], strides = [1, 1, 1]} : vector<16x4x128xbf16> to vector<1x4x128xbf16>
    %636 = vector.shape_cast %635 : vector<1x4x128xbf16> to vector<4x128xbf16>
    %cst_201 = arith.constant dense<0.000000e+00> : vector<13x128xf32>
    %637 = tpu.matmul %634, %636, %cst_201 {dimension_numbers = #tpu.dot_dimension_numbers<[1], [0], [0], [1], [0, 0, 1, 1], [], []>} : vector<13x4xbf16>, vector<4x128xbf16>, vector<13x128xf32> -> vector<13x128xf32>
    %638 = arith.addf %632, %637 : vector<13x128xf32>
    %c1_i32_202 = arith.constant 1 : i32
    %639 = arith.addi %376, %c1_i32_202 : i32
    %c0_203 = arith.constant 0 : index
    %640 = arith.index_cast %639 : i32 to index
    %c0_204 = arith.constant 0 : index
    %c0_205 = arith.constant 0 : index
    %641 = vector.load %arg2[%c0_203, %640, %c0_204, %c0_205] : memref<1x16x16x4xf32, #tpu.memory_space<vmem>>, vector<1x1x16x4xf32>
    %642 = vector.shape_cast %641 : vector<1x1x16x4xf32> to vector<16x4xf32>
    %643 = vector.extract_strided_slice %642 {offsets = [0, 0], sizes = [13, 4], strides = [1, 1]} : vector<16x4xf32> to vector<13x4xf32>
    %644 = arith.truncf %643 : vector<13x4xf32> to vector<13x4xbf16>
    %645 = vector.extract_strided_slice %0 {offsets = [4, 0, 0], sizes = [1, 4, 128], strides = [1, 1, 1]} : vector<16x4x128xbf16> to vector<1x4x128xbf16>
    %646 = vector.shape_cast %645 : vector<1x4x128xbf16> to vector<4x128xbf16>
    %cst_206 = arith.constant dense<0.000000e+00> : vector<13x128xf32>
    %647 = tpu.matmul %644, %646, %cst_206 {dimension_numbers = #tpu.dot_dimension_numbers<[1], [0], [0], [1], [0, 0, 1, 1], [], []>} : vector<13x4xbf16>, vector<4x128xbf16>, vector<13x128xf32> -> vector<13x128xf32>
    %648 = arith.addf %638, %647 : vector<13x128xf32>
    %649 = vector.extract_strided_slice %642 {offsets = [1, 0], sizes = [13, 4], strides = [1, 1]} : vector<16x4xf32> to vector<13x4xf32>
    %650 = arith.truncf %649 : vector<13x4xf32> to vector<13x4xbf16>
    %651 = vector.extract_strided_slice %0 {offsets = [5, 0, 0], sizes = [1, 4, 128], strides = [1, 1, 1]} : vector<16x4x128xbf16> to vector<1x4x128xbf16>
    %652 = vector.shape_cast %651 : vector<1x4x128xbf16> to vector<4x128xbf16>
    %cst_207 = arith.constant dense<0.000000e+00> : vector<13x128xf32>
    %653 = tpu.matmul %650, %652, %cst_207 {dimension_numbers = #tpu.dot_dimension_numbers<[1], [0], [0], [1], [0, 0, 1, 1], [], []>} : vector<13x4xbf16>, vector<4x128xbf16>, vector<13x128xf32> -> vector<13x128xf32>
    %654 = arith.addf %648, %653 : vector<13x128xf32>
    %655 = vector.extract_strided_slice %642 {offsets = [2, 0], sizes = [13, 4], strides = [1, 1]} : vector<16x4xf32> to vector<13x4xf32>
    %656 = arith.truncf %655 : vector<13x4xf32> to vector<13x4xbf16>
    %657 = vector.extract_strided_slice %0 {offsets = [6, 0, 0], sizes = [1, 4, 128], strides = [1, 1, 1]} : vector<16x4x128xbf16> to vector<1x4x128xbf16>
    %658 = vector.shape_cast %657 : vector<1x4x128xbf16> to vector<4x128xbf16>
    %cst_208 = arith.constant dense<0.000000e+00> : vector<13x128xf32>
    %659 = tpu.matmul %656, %658, %cst_208 {dimension_numbers = #tpu.dot_dimension_numbers<[1], [0], [0], [1], [0, 0, 1, 1], [], []>} : vector<13x4xbf16>, vector<4x128xbf16>, vector<13x128xf32> -> vector<13x128xf32>
    %660 = arith.addf %654, %659 : vector<13x128xf32>
    %661 = vector.extract_strided_slice %642 {offsets = [3, 0], sizes = [13, 4], strides = [1, 1]} : vector<16x4xf32> to vector<13x4xf32>
    %662 = arith.truncf %661 : vector<13x4xf32> to vector<13x4xbf16>
    %663 = vector.extract_strided_slice %0 {offsets = [7, 0, 0], sizes = [1, 4, 128], strides = [1, 1, 1]} : vector<16x4x128xbf16> to vector<1x4x128xbf16>
    %664 = vector.shape_cast %663 : vector<1x4x128xbf16> to vector<4x128xbf16>
    %cst_209 = arith.constant dense<0.000000e+00> : vector<13x128xf32>
    %665 = tpu.matmul %662, %664, %cst_209 {dimension_numbers = #tpu.dot_dimension_numbers<[1], [0], [0], [1], [0, 0, 1, 1], [], []>} : vector<13x4xbf16>, vector<4x128xbf16>, vector<13x128xf32> -> vector<13x128xf32>
    %666 = arith.addf %660, %665 : vector<13x128xf32>
    %c2_i32_210 = arith.constant 2 : i32
    %667 = arith.addi %376, %c2_i32_210 : i32
    %c0_211 = arith.constant 0 : index
    %668 = arith.index_cast %667 : i32 to index
    %c0_212 = arith.constant 0 : index
    %c0_213 = arith.constant 0 : index
    %669 = vector.load %arg2[%c0_211, %668, %c0_212, %c0_213] : memref<1x16x16x4xf32, #tpu.memory_space<vmem>>, vector<1x1x16x4xf32>
    %670 = vector.shape_cast %669 : vector<1x1x16x4xf32> to vector<16x4xf32>
    %671 = vector.extract_strided_slice %670 {offsets = [0, 0], sizes = [13, 4], strides = [1, 1]} : vector<16x4xf32> to vector<13x4xf32>
    %672 = arith.truncf %671 : vector<13x4xf32> to vector<13x4xbf16>
    %673 = vector.extract_strided_slice %0 {offsets = [8, 0, 0], sizes = [1, 4, 128], strides = [1, 1, 1]} : vector<16x4x128xbf16> to vector<1x4x128xbf16>
    %674 = vector.shape_cast %673 : vector<1x4x128xbf16> to vector<4x128xbf16>
    %cst_214 = arith.constant dense<0.000000e+00> : vector<13x128xf32>
    %675 = tpu.matmul %672, %674, %cst_214 {dimension_numbers = #tpu.dot_dimension_numbers<[1], [0], [0], [1], [0, 0, 1, 1], [], []>} : vector<13x4xbf16>, vector<4x128xbf16>, vector<13x128xf32> -> vector<13x128xf32>
    %676 = arith.addf %666, %675 : vector<13x128xf32>
    %677 = vector.extract_strided_slice %670 {offsets = [1, 0], sizes = [13, 4], strides = [1, 1]} : vector<16x4xf32> to vector<13x4xf32>
    %678 = arith.truncf %677 : vector<13x4xf32> to vector<13x4xbf16>
    %679 = vector.extract_strided_slice %0 {offsets = [9, 0, 0], sizes = [1, 4, 128], strides = [1, 1, 1]} : vector<16x4x128xbf16> to vector<1x4x128xbf16>
    %680 = vector.shape_cast %679 : vector<1x4x128xbf16> to vector<4x128xbf16>
    %cst_215 = arith.constant dense<0.000000e+00> : vector<13x128xf32>
    %681 = tpu.matmul %678, %680, %cst_215 {dimension_numbers = #tpu.dot_dimension_numbers<[1], [0], [0], [1], [0, 0, 1, 1], [], []>} : vector<13x4xbf16>, vector<4x128xbf16>, vector<13x128xf32> -> vector<13x128xf32>
    %682 = arith.addf %676, %681 : vector<13x128xf32>
    %683 = vector.extract_strided_slice %670 {offsets = [2, 0], sizes = [13, 4], strides = [1, 1]} : vector<16x4xf32> to vector<13x4xf32>
    %684 = arith.truncf %683 : vector<13x4xf32> to vector<13x4xbf16>
    %685 = vector.extract_strided_slice %0 {offsets = [10, 0, 0], sizes = [1, 4, 128], strides = [1, 1, 1]} : vector<16x4x128xbf16> to vector<1x4x128xbf16>
    %686 = vector.shape_cast %685 : vector<1x4x128xbf16> to vector<4x128xbf16>
    %cst_216 = arith.constant dense<0.000000e+00> : vector<13x128xf32>
    %687 = tpu.matmul %684, %686, %cst_216 {dimension_numbers = #tpu.dot_dimension_numbers<[1], [0], [0], [1], [0, 0, 1, 1], [], []>} : vector<13x4xbf16>, vector<4x128xbf16>, vector<13x128xf32> -> vector<13x128xf32>
    %688 = arith.addf %682, %687 : vector<13x128xf32>
    %689 = vector.extract_strided_slice %670 {offsets = [3, 0], sizes = [13, 4], strides = [1, 1]} : vector<16x4xf32> to vector<13x4xf32>
    %690 = arith.truncf %689 : vector<13x4xf32> to vector<13x4xbf16>
    %691 = vector.extract_strided_slice %0 {offsets = [11, 0, 0], sizes = [1, 4, 128], strides = [1, 1, 1]} : vector<16x4x128xbf16> to vector<1x4x128xbf16>
    %692 = vector.shape_cast %691 : vector<1x4x128xbf16> to vector<4x128xbf16>
    %cst_217 = arith.constant dense<0.000000e+00> : vector<13x128xf32>
    %693 = tpu.matmul %690, %692, %cst_217 {dimension_numbers = #tpu.dot_dimension_numbers<[1], [0], [0], [1], [0, 0, 1, 1], [], []>} : vector<13x4xbf16>, vector<4x128xbf16>, vector<13x128xf32> -> vector<13x128xf32>
    %694 = arith.addf %688, %693 : vector<13x128xf32>
    %c3_i32_218 = arith.constant 3 : i32
    %695 = arith.addi %376, %c3_i32_218 : i32
    %c0_219 = arith.constant 0 : index
    %696 = arith.index_cast %695 : i32 to index
    %c0_220 = arith.constant 0 : index
    %c0_221 = arith.constant 0 : index
    %697 = vector.load %arg2[%c0_219, %696, %c0_220, %c0_221] : memref<1x16x16x4xf32, #tpu.memory_space<vmem>>, vector<1x1x16x4xf32>
    %698 = vector.shape_cast %697 : vector<1x1x16x4xf32> to vector<16x4xf32>
    %699 = vector.extract_strided_slice %698 {offsets = [0, 0], sizes = [13, 4], strides = [1, 1]} : vector<16x4xf32> to vector<13x4xf32>
    %700 = arith.truncf %699 : vector<13x4xf32> to vector<13x4xbf16>
    %701 = vector.extract_strided_slice %0 {offsets = [12, 0, 0], sizes = [1, 4, 128], strides = [1, 1, 1]} : vector<16x4x128xbf16> to vector<1x4x128xbf16>
    %702 = vector.shape_cast %701 : vector<1x4x128xbf16> to vector<4x128xbf16>
    %cst_222 = arith.constant dense<0.000000e+00> : vector<13x128xf32>
    %703 = tpu.matmul %700, %702, %cst_222 {dimension_numbers = #tpu.dot_dimension_numbers<[1], [0], [0], [1], [0, 0, 1, 1], [], []>} : vector<13x4xbf16>, vector<4x128xbf16>, vector<13x128xf32> -> vector<13x128xf32>
    %704 = arith.addf %694, %703 : vector<13x128xf32>
    %705 = vector.extract_strided_slice %698 {offsets = [1, 0], sizes = [13, 4], strides = [1, 1]} : vector<16x4xf32> to vector<13x4xf32>
    %706 = arith.truncf %705 : vector<13x4xf32> to vector<13x4xbf16>
    %707 = vector.extract_strided_slice %0 {offsets = [13, 0, 0], sizes = [1, 4, 128], strides = [1, 1, 1]} : vector<16x4x128xbf16> to vector<1x4x128xbf16>
    %708 = vector.shape_cast %707 : vector<1x4x128xbf16> to vector<4x128xbf16>
    %cst_223 = arith.constant dense<0.000000e+00> : vector<13x128xf32>
    %709 = tpu.matmul %706, %708, %cst_223 {dimension_numbers = #tpu.dot_dimension_numbers<[1], [0], [0], [1], [0, 0, 1, 1], [], []>} : vector<13x4xbf16>, vector<4x128xbf16>, vector<13x128xf32> -> vector<13x128xf32>
    %710 = arith.addf %704, %709 : vector<13x128xf32>
    %711 = vector.extract_strided_slice %698 {offsets = [2, 0], sizes = [13, 4], strides = [1, 1]} : vector<16x4xf32> to vector<13x4xf32>
    %712 = arith.truncf %711 : vector<13x4xf32> to vector<13x4xbf16>
    %713 = vector.extract_strided_slice %0 {offsets = [14, 0, 0], sizes = [1, 4, 128], strides = [1, 1, 1]} : vector<16x4x128xbf16> to vector<1x4x128xbf16>
    %714 = vector.shape_cast %713 : vector<1x4x128xbf16> to vector<4x128xbf16>
    %cst_224 = arith.constant dense<0.000000e+00> : vector<13x128xf32>
    %715 = tpu.matmul %712, %714, %cst_224 {dimension_numbers = #tpu.dot_dimension_numbers<[1], [0], [0], [1], [0, 0, 1, 1], [], []>} : vector<13x4xbf16>, vector<4x128xbf16>, vector<13x128xf32> -> vector<13x128xf32>
    %716 = arith.addf %710, %715 : vector<13x128xf32>
    %717 = vector.extract_strided_slice %698 {offsets = [3, 0], sizes = [13, 4], strides = [1, 1]} : vector<16x4xf32> to vector<13x4xf32>
    %718 = arith.truncf %717 : vector<13x4xf32> to vector<13x4xbf16>
    %719 = vector.extract_strided_slice %0 {offsets = [15, 0, 0], sizes = [1, 4, 128], strides = [1, 1, 1]} : vector<16x4x128xbf16> to vector<1x4x128xbf16>
    %720 = vector.shape_cast %719 : vector<1x4x128xbf16> to vector<4x128xbf16>
    %cst_225 = arith.constant dense<0.000000e+00> : vector<13x128xf32>
    %721 = tpu.matmul %718, %720, %cst_225 {dimension_numbers = #tpu.dot_dimension_numbers<[1], [0], [0], [1], [0, 0, 1, 1], [], []>} : vector<13x4xbf16>, vector<4x128xbf16>, vector<13x128xf32> -> vector<13x128xf32>
    %722 = arith.addf %716, %721 : vector<13x128xf32>
    %cst_226 = arith.constant 2.500000e-01 : f32
    %723 = vector.broadcast %cst_226 : f32 to vector<13x128xf32>
    %724 = arith.mulf %723, %722 : vector<13x128xf32>
    %725 = arith.addf %609, %724 : vector<13x128xf32>
    %726 = arith.truncf %725 : vector<13x128xf32> to vector<13x128xbf16>
    %cst_227 = arith.constant dense<0.000000e+00> : vector<4x128xf32>
    %727 = tpu.matmul %1, %726, %cst_227 {dimension_numbers = #tpu.dot_dimension_numbers<[1], [0], [0], [1], [0, 0, 1, 1], [], []>} : vector<4x13xbf16>, vector<13x128xbf16>, vector<4x128xf32> -> vector<4x128xf32>
    %728 = vector.broadcast %2 : vector<1x128xf32> to vector<4x128xf32>
    %729 = arith.addf %727, %728 : vector<4x128xf32>
    %c0_228 = arith.constant 0 : index
    %c1 = arith.constant 1 : index
    %c0_229 = arith.constant 0 : index
    %c0_230 = arith.constant 0 : index
    %730 = vector.load %arg6[%c0_228, %c1, %c0_229, %c0_230] : memref<1x4x4x128xf32, #tpu.memory_space<vmem>>, vector<1x1x4x128xf32>
    %731 = vector.shape_cast %730 : vector<1x1x4x128xf32> to vector<4x128xf32>
    %732 = vector.shape_cast %729 : vector<4x128xf32> to vector<1x1x4x128xf32>
    tpu.vector_store %arg6[%c0_228, %c1, %c0_229, %c0_230], %732 {strides = array<i32>} : memref<1x4x4x128xf32, #tpu.memory_space<vmem>>, vector<1x1x4x128xf32>,
    %c4_i32_231 = arith.constant 4 : i32
    %733 = arith.muli %arg1, %c4_i32_231 : i32
    %c2_i32_232 = arith.constant 2 : i32
    %734 = arith.addi %733, %c2_i32_232 : i32
    %c4_i32_233 = arith.constant 4 : i32
    %735 = arith.muli %734, %c4_i32_233 : i32
    %c0_i32_234 = arith.constant 0 : i32
    %736 = arith.cmpi eq, %735, %c0_i32_234 : i32
    %c1_i32_235 = arith.constant 1 : i32
    %737 = arith.subi %735, %c1_i32_235 : i32
    %c1_i32_236 = arith.constant 1 : i32
    %738 = arith.select %736, %c1_i32_236, %737 : i32
    %c12_i32_237 = arith.constant 12 : i32
    %739 = arith.cmpi eq, %735, %c12_i32_237 : i32
    %c1_i32_238 = arith.constant 1 : i32
    %740 = arith.addi %735, %c1_i32_238 : i32
    %c11_i32_239 = arith.constant 11 : i32
    %741 = arith.select %739, %c11_i32_239, %740 : i32
    %cst_240 = arith.constant 0.000000e+00 : f32
    %742 = vector.broadcast %cst_240 : f32 to vector<13x128xf32>
    %cst_241 = arith.constant 0.000000e+00 : f32
    %743 = vector.broadcast %cst_241 : f32 to vector<13x128xf32>
    %c0_i32_242 = arith.constant 0 : i32
    %744 = arith.addi %738, %c0_i32_242 : i32
    %c0_243 = arith.constant 0 : index
    %745 = arith.index_cast %744 : i32 to index
    %c0_244 = arith.constant 0 : index
    %c0_245 = arith.constant 0 : index
    %746 = vector.load %arg2[%c0_243, %745, %c0_244, %c0_245] : memref<1x16x16x4xf32, #tpu.memory_space<vmem>>, vector<1x1x16x4xf32>
    %747 = vector.shape_cast %746 : vector<1x1x16x4xf32> to vector<16x4xf32>
    %748 = vector.extract_strided_slice %747 {offsets = [0, 0], sizes = [13, 4], strides = [1, 1]} : vector<16x4xf32> to vector<13x4xf32>
    %749 = arith.truncf %748 : vector<13x4xf32> to vector<13x4xbf16>
    %750 = vector.extract_strided_slice %0 {offsets = [0, 0, 0], sizes = [1, 4, 128], strides = [1, 1, 1]} : vector<16x4x128xbf16> to vector<1x4x128xbf16>
    %751 = vector.shape_cast %750 : vector<1x4x128xbf16> to vector<4x128xbf16>
    %cst_246 = arith.constant dense<0.000000e+00> : vector<13x128xf32>
    %752 = tpu.matmul %749, %751, %cst_246 {dimension_numbers = #tpu.dot_dimension_numbers<[1], [0], [0], [1], [0, 0, 1, 1], [], []>} : vector<13x4xbf16>, vector<4x128xbf16>, vector<13x128xf32> -> vector<13x128xf32>
    %753 = arith.addf %743, %752 : vector<13x128xf32>
    %754 = vector.extract_strided_slice %747 {offsets = [1, 0], sizes = [13, 4], strides = [1, 1]} : vector<16x4xf32> to vector<13x4xf32>
    %755 = arith.truncf %754 : vector<13x4xf32> to vector<13x4xbf16>
    %756 = vector.extract_strided_slice %0 {offsets = [1, 0, 0], sizes = [1, 4, 128], strides = [1, 1, 1]} : vector<16x4x128xbf16> to vector<1x4x128xbf16>
    %757 = vector.shape_cast %756 : vector<1x4x128xbf16> to vector<4x128xbf16>
    %cst_247 = arith.constant dense<0.000000e+00> : vector<13x128xf32>
    %758 = tpu.matmul %755, %757, %cst_247 {dimension_numbers = #tpu.dot_dimension_numbers<[1], [0], [0], [1], [0, 0, 1, 1], [], []>} : vector<13x4xbf16>, vector<4x128xbf16>, vector<13x128xf32> -> vector<13x128xf32>
    %759 = arith.addf %753, %758 : vector<13x128xf32>
    %760 = vector.extract_strided_slice %747 {offsets = [2, 0], sizes = [13, 4], strides = [1, 1]} : vector<16x4xf32> to vector<13x4xf32>
    %761 = arith.truncf %760 : vector<13x4xf32> to vector<13x4xbf16>
    %762 = vector.extract_strided_slice %0 {offsets = [2, 0, 0], sizes = [1, 4, 128], strides = [1, 1, 1]} : vector<16x4x128xbf16> to vector<1x4x128xbf16>
    %763 = vector.shape_cast %762 : vector<1x4x128xbf16> to vector<4x128xbf16>
    %cst_248 = arith.constant dense<0.000000e+00> : vector<13x128xf32>
    %764 = tpu.matmul %761, %763, %cst_248 {dimension_numbers = #tpu.dot_dimension_numbers<[1], [0], [0], [1], [0, 0, 1, 1], [], []>} : vector<13x4xbf16>, vector<4x128xbf16>, vector<13x128xf32> -> vector<13x128xf32>
    %765 = arith.addf %759, %764 : vector<13x128xf32>
    %766 = vector.extract_strided_slice %747 {offsets = [3, 0], sizes = [13, 4], strides = [1, 1]} : vector<16x4xf32> to vector<13x4xf32>
    %767 = arith.truncf %766 : vector<13x4xf32> to vector<13x4xbf16>
    %768 = vector.extract_strided_slice %0 {offsets = [3, 0, 0], sizes = [1, 4, 128], strides = [1, 1, 1]} : vector<16x4x128xbf16> to vector<1x4x128xbf16>
    %769 = vector.shape_cast %768 : vector<1x4x128xbf16> to vector<4x128xbf16>
    %cst_249 = arith.constant dense<0.000000e+00> : vector<13x128xf32>
    %770 = tpu.matmul %767, %769, %cst_249 {dimension_numbers = #tpu.dot_dimension_numbers<[1], [0], [0], [1], [0, 0, 1, 1], [], []>} : vector<13x4xbf16>, vector<4x128xbf16>, vector<13x128xf32> -> vector<13x128xf32>
    %771 = arith.addf %765, %770 : vector<13x128xf32>
    %c1_i32_250 = arith.constant 1 : i32
    %772 = arith.addi %738, %c1_i32_250 : i32
    %c0_251 = arith.constant 0 : index
    %773 = arith.index_cast %772 : i32 to index
    %c0_252 = arith.constant 0 : index
    %c0_253 = arith.constant 0 : index
    %774 = vector.load %arg2[%c0_251, %773, %c0_252, %c0_253] : memref<1x16x16x4xf32, #tpu.memory_space<vmem>>, vector<1x1x16x4xf32>
    %775 = vector.shape_cast %774 : vector<1x1x16x4xf32> to vector<16x4xf32>
    %776 = vector.extract_strided_slice %775 {offsets = [0, 0], sizes = [13, 4], strides = [1, 1]} : vector<16x4xf32> to vector<13x4xf32>
    %777 = arith.truncf %776 : vector<13x4xf32> to vector<13x4xbf16>
    %778 = vector.extract_strided_slice %0 {offsets = [4, 0, 0], sizes = [1, 4, 128], strides = [1, 1, 1]} : vector<16x4x128xbf16> to vector<1x4x128xbf16>
    %779 = vector.shape_cast %778 : vector<1x4x128xbf16> to vector<4x128xbf16>
    %cst_254 = arith.constant dense<0.000000e+00> : vector<13x128xf32>
    %780 = tpu.matmul %777, %779, %cst_254 {dimension_numbers = #tpu.dot_dimension_numbers<[1], [0], [0], [1], [0, 0, 1, 1], [], []>} : vector<13x4xbf16>, vector<4x128xbf16>, vector<13x128xf32> -> vector<13x128xf32>
    %781 = arith.addf %771, %780 : vector<13x128xf32>
    %782 = vector.extract_strided_slice %775 {offsets = [1, 0], sizes = [13, 4], strides = [1, 1]} : vector<16x4xf32> to vector<13x4xf32>
    %783 = arith.truncf %782 : vector<13x4xf32> to vector<13x4xbf16>
    %784 = vector.extract_strided_slice %0 {offsets = [5, 0, 0], sizes = [1, 4, 128], strides = [1, 1, 1]} : vector<16x4x128xbf16> to vector<1x4x128xbf16>
    %785 = vector.shape_cast %784 : vector<1x4x128xbf16> to vector<4x128xbf16>
    %cst_255 = arith.constant dense<0.000000e+00> : vector<13x128xf32>
    %786 = tpu.matmul %783, %785, %cst_255 {dimension_numbers = #tpu.dot_dimension_numbers<[1], [0], [0], [1], [0, 0, 1, 1], [], []>} : vector<13x4xbf16>, vector<4x128xbf16>, vector<13x128xf32> -> vector<13x128xf32>
    %787 = arith.addf %781, %786 : vector<13x128xf32>
    %788 = vector.extract_strided_slice %775 {offsets = [2, 0], sizes = [13, 4], strides = [1, 1]} : vector<16x4xf32> to vector<13x4xf32>
    %789 = arith.truncf %788 : vector<13x4xf32> to vector<13x4xbf16>
    %790 = vector.extract_strided_slice %0 {offsets = [6, 0, 0], sizes = [1, 4, 128], strides = [1, 1, 1]} : vector<16x4x128xbf16> to vector<1x4x128xbf16>
    %791 = vector.shape_cast %790 : vector<1x4x128xbf16> to vector<4x128xbf16>
    %cst_256 = arith.constant dense<0.000000e+00> : vector<13x128xf32>
    %792 = tpu.matmul %789, %791, %cst_256 {dimension_numbers = #tpu.dot_dimension_numbers<[1], [0], [0], [1], [0, 0, 1, 1], [], []>} : vector<13x4xbf16>, vector<4x128xbf16>, vector<13x128xf32> -> vector<13x128xf32>
    %793 = arith.addf %787, %792 : vector<13x128xf32>
    %794 = vector.extract_strided_slice %775 {offsets = [3, 0], sizes = [13, 4], strides = [1, 1]} : vector<16x4xf32> to vector<13x4xf32>
    %795 = arith.truncf %794 : vector<13x4xf32> to vector<13x4xbf16>
    %796 = vector.extract_strided_slice %0 {offsets = [7, 0, 0], sizes = [1, 4, 128], strides = [1, 1, 1]} : vector<16x4x128xbf16> to vector<1x4x128xbf16>
    %797 = vector.shape_cast %796 : vector<1x4x128xbf16> to vector<4x128xbf16>
    %cst_257 = arith.constant dense<0.000000e+00> : vector<13x128xf32>
    %798 = tpu.matmul %795, %797, %cst_257 {dimension_numbers = #tpu.dot_dimension_numbers<[1], [0], [0], [1], [0, 0, 1, 1], [], []>} : vector<13x4xbf16>, vector<4x128xbf16>, vector<13x128xf32> -> vector<13x128xf32>
    %799 = arith.addf %793, %798 : vector<13x128xf32>
    %c2_i32_258 = arith.constant 2 : i32
    %800 = arith.addi %738, %c2_i32_258 : i32
    %c0_259 = arith.constant 0 : index
    %801 = arith.index_cast %800 : i32 to index
    %c0_260 = arith.constant 0 : index
    %c0_261 = arith.constant 0 : index
    %802 = vector.load %arg2[%c0_259, %801, %c0_260, %c0_261] : memref<1x16x16x4xf32, #tpu.memory_space<vmem>>, vector<1x1x16x4xf32>
    %803 = vector.shape_cast %802 : vector<1x1x16x4xf32> to vector<16x4xf32>
    %804 = vector.extract_strided_slice %803 {offsets = [0, 0], sizes = [13, 4], strides = [1, 1]} : vector<16x4xf32> to vector<13x4xf32>
    %805 = arith.truncf %804 : vector<13x4xf32> to vector<13x4xbf16>
    %806 = vector.extract_strided_slice %0 {offsets = [8, 0, 0], sizes = [1, 4, 128], strides = [1, 1, 1]} : vector<16x4x128xbf16> to vector<1x4x128xbf16>
    %807 = vector.shape_cast %806 : vector<1x4x128xbf16> to vector<4x128xbf16>
    %cst_262 = arith.constant dense<0.000000e+00> : vector<13x128xf32>
    %808 = tpu.matmul %805, %807, %cst_262 {dimension_numbers = #tpu.dot_dimension_numbers<[1], [0], [0], [1], [0, 0, 1, 1], [], []>} : vector<13x4xbf16>, vector<4x128xbf16>, vector<13x128xf32> -> vector<13x128xf32>
    %809 = arith.addf %799, %808 : vector<13x128xf32>
    %810 = vector.extract_strided_slice %803 {offsets = [1, 0], sizes = [13, 4], strides = [1, 1]} : vector<16x4xf32> to vector<13x4xf32>
    %811 = arith.truncf %810 : vector<13x4xf32> to vector<13x4xbf16>
    %812 = vector.extract_strided_slice %0 {offsets = [9, 0, 0], sizes = [1, 4, 128], strides = [1, 1, 1]} : vector<16x4x128xbf16> to vector<1x4x128xbf16>
    %813 = vector.shape_cast %812 : vector<1x4x128xbf16> to vector<4x128xbf16>
    %cst_263 = arith.constant dense<0.000000e+00> : vector<13x128xf32>
    %814 = tpu.matmul %811, %813, %cst_263 {dimension_numbers = #tpu.dot_dimension_numbers<[1], [0], [0], [1], [0, 0, 1, 1], [], []>} : vector<13x4xbf16>, vector<4x128xbf16>, vector<13x128xf32> -> vector<13x128xf32>
    %815 = arith.addf %809, %814 : vector<13x128xf32>
    %816 = vector.extract_strided_slice %803 {offsets = [2, 0], sizes = [13, 4], strides = [1, 1]} : vector<16x4xf32> to vector<13x4xf32>
    %817 = arith.truncf %816 : vector<13x4xf32> to vector<13x4xbf16>
    %818 = vector.extract_strided_slice %0 {offsets = [10, 0, 0], sizes = [1, 4, 128], strides = [1, 1, 1]} : vector<16x4x128xbf16> to vector<1x4x128xbf16>
    %819 = vector.shape_cast %818 : vector<1x4x128xbf16> to vector<4x128xbf16>
    %cst_264 = arith.constant dense<0.000000e+00> : vector<13x128xf32>
    %820 = tpu.matmul %817, %819, %cst_264 {dimension_numbers = #tpu.dot_dimension_numbers<[1], [0], [0], [1], [0, 0, 1, 1], [], []>} : vector<13x4xbf16>, vector<4x128xbf16>, vector<13x128xf32> -> vector<13x128xf32>
    %821 = arith.addf %815, %820 : vector<13x128xf32>
    %822 = vector.extract_strided_slice %803 {offsets = [3, 0], sizes = [13, 4], strides = [1, 1]} : vector<16x4xf32> to vector<13x4xf32>
    %823 = arith.truncf %822 : vector<13x4xf32> to vector<13x4xbf16>
    %824 = vector.extract_strided_slice %0 {offsets = [11, 0, 0], sizes = [1, 4, 128], strides = [1, 1, 1]} : vector<16x4x128xbf16> to vector<1x4x128xbf16>
    %825 = vector.shape_cast %824 : vector<1x4x128xbf16> to vector<4x128xbf16>
    %cst_265 = arith.constant dense<0.000000e+00> : vector<13x128xf32>
    %826 = tpu.matmul %823, %825, %cst_265 {dimension_numbers = #tpu.dot_dimension_numbers<[1], [0], [0], [1], [0, 0, 1, 1], [], []>} : vector<13x4xbf16>, vector<4x128xbf16>, vector<13x128xf32> -> vector<13x128xf32>
    %827 = arith.addf %821, %826 : vector<13x128xf32>
    %c3_i32_266 = arith.constant 3 : i32
    %828 = arith.addi %738, %c3_i32_266 : i32
    %c0_267 = arith.constant 0 : index
    %829 = arith.index_cast %828 : i32 to index
    %c0_268 = arith.constant 0 : index
    %c0_269 = arith.constant 0 : index
    %830 = vector.load %arg2[%c0_267, %829, %c0_268, %c0_269] : memref<1x16x16x4xf32, #tpu.memory_space<vmem>>, vector<1x1x16x4xf32>
    %831 = vector.shape_cast %830 : vector<1x1x16x4xf32> to vector<16x4xf32>
    %832 = vector.extract_strided_slice %831 {offsets = [0, 0], sizes = [13, 4], strides = [1, 1]} : vector<16x4xf32> to vector<13x4xf32>
    %833 = arith.truncf %832 : vector<13x4xf32> to vector<13x4xbf16>
    %834 = vector.extract_strided_slice %0 {offsets = [12, 0, 0], sizes = [1, 4, 128], strides = [1, 1, 1]} : vector<16x4x128xbf16> to vector<1x4x128xbf16>
    %835 = vector.shape_cast %834 : vector<1x4x128xbf16> to vector<4x128xbf16>
    %cst_270 = arith.constant dense<0.000000e+00> : vector<13x128xf32>
    %836 = tpu.matmul %833, %835, %cst_270 {dimension_numbers = #tpu.dot_dimension_numbers<[1], [0], [0], [1], [0, 0, 1, 1], [], []>} : vector<13x4xbf16>, vector<4x128xbf16>, vector<13x128xf32> -> vector<13x128xf32>
    %837 = arith.addf %827, %836 : vector<13x128xf32>
    %838 = vector.extract_strided_slice %831 {offsets = [1, 0], sizes = [13, 4], strides = [1, 1]} : vector<16x4xf32> to vector<13x4xf32>
    %839 = arith.truncf %838 : vector<13x4xf32> to vector<13x4xbf16>
    %840 = vector.extract_strided_slice %0 {offsets = [13, 0, 0], sizes = [1, 4, 128], strides = [1, 1, 1]} : vector<16x4x128xbf16> to vector<1x4x128xbf16>
    %841 = vector.shape_cast %840 : vector<1x4x128xbf16> to vector<4x128xbf16>
    %cst_271 = arith.constant dense<0.000000e+00> : vector<13x128xf32>
    %842 = tpu.matmul %839, %841, %cst_271 {dimension_numbers = #tpu.dot_dimension_numbers<[1], [0], [0], [1], [0, 0, 1, 1], [], []>} : vector<13x4xbf16>, vector<4x128xbf16>, vector<13x128xf32> -> vector<13x128xf32>
    %843 = arith.addf %837, %842 : vector<13x128xf32>
    %844 = vector.extract_strided_slice %831 {offsets = [2, 0], sizes = [13, 4], strides = [1, 1]} : vector<16x4xf32> to vector<13x4xf32>
    %845 = arith.truncf %844 : vector<13x4xf32> to vector<13x4xbf16>
    %846 = vector.extract_strided_slice %0 {offsets = [14, 0, 0], sizes = [1, 4, 128], strides = [1, 1, 1]} : vector<16x4x128xbf16> to vector<1x4x128xbf16>
    %847 = vector.shape_cast %846 : vector<1x4x128xbf16> to vector<4x128xbf16>
    %cst_272 = arith.constant dense<0.000000e+00> : vector<13x128xf32>
    %848 = tpu.matmul %845, %847, %cst_272 {dimension_numbers = #tpu.dot_dimension_numbers<[1], [0], [0], [1], [0, 0, 1, 1], [], []>} : vector<13x4xbf16>, vector<4x128xbf16>, vector<13x128xf32> -> vector<13x128xf32>
    %849 = arith.addf %843, %848 : vector<13x128xf32>
    %850 = vector.extract_strided_slice %831 {offsets = [3, 0], sizes = [13, 4], strides = [1, 1]} : vector<16x4xf32> to vector<13x4xf32>
    %851 = arith.truncf %850 : vector<13x4xf32> to vector<13x4xbf16>
    %852 = vector.extract_strided_slice %0 {offsets = [15, 0, 0], sizes = [1, 4, 128], strides = [1, 1, 1]} : vector<16x4x128xbf16> to vector<1x4x128xbf16>
    %853 = vector.shape_cast %852 : vector<1x4x128xbf16> to vector<4x128xbf16>
    %cst_273 = arith.constant dense<0.000000e+00> : vector<13x128xf32>
    %854 = tpu.matmul %851, %853, %cst_273 {dimension_numbers = #tpu.dot_dimension_numbers<[1], [0], [0], [1], [0, 0, 1, 1], [], []>} : vector<13x4xbf16>, vector<4x128xbf16>, vector<13x128xf32> -> vector<13x128xf32>
    %855 = arith.addf %849, %854 : vector<13x128xf32>
    %cst_274 = arith.constant 2.500000e-01 : f32
    %856 = vector.broadcast %cst_274 : f32 to vector<13x128xf32>
    %857 = arith.mulf %856, %855 : vector<13x128xf32>
    %858 = arith.addf %742, %857 : vector<13x128xf32>
    %cst_275 = arith.constant 0.000000e+00 : f32
    %859 = vector.broadcast %cst_275 : f32 to vector<13x128xf32>
    %c0_i32_276 = arith.constant 0 : i32
    %860 = arith.addi %735, %c0_i32_276 : i32
    %c0_277 = arith.constant 0 : index
    %861 = arith.index_cast %860 : i32 to index
    %c0_278 = arith.constant 0 : index
    %c0_279 = arith.constant 0 : index
    %862 = vector.load %arg2[%c0_277, %861, %c0_278, %c0_279] : memref<1x16x16x4xf32, #tpu.memory_space<vmem>>, vector<1x1x16x4xf32>
    %863 = vector.shape_cast %862 : vector<1x1x16x4xf32> to vector<16x4xf32>
    %864 = vector.extract_strided_slice %863 {offsets = [0, 0], sizes = [13, 4], strides = [1, 1]} : vector<16x4xf32> to vector<13x4xf32>
    %865 = arith.truncf %864 : vector<13x4xf32> to vector<13x4xbf16>
    %866 = vector.extract_strided_slice %0 {offsets = [0, 0, 0], sizes = [1, 4, 128], strides = [1, 1, 1]} : vector<16x4x128xbf16> to vector<1x4x128xbf16>
    %867 = vector.shape_cast %866 : vector<1x4x128xbf16> to vector<4x128xbf16>
    %cst_280 = arith.constant dense<0.000000e+00> : vector<13x128xf32>
    %868 = tpu.matmul %865, %867, %cst_280 {dimension_numbers = #tpu.dot_dimension_numbers<[1], [0], [0], [1], [0, 0, 1, 1], [], []>} : vector<13x4xbf16>, vector<4x128xbf16>, vector<13x128xf32> -> vector<13x128xf32>
    %869 = arith.addf %859, %868 : vector<13x128xf32>
    %870 = vector.extract_strided_slice %863 {offsets = [1, 0], sizes = [13, 4], strides = [1, 1]} : vector<16x4xf32> to vector<13x4xf32>
    %871 = arith.truncf %870 : vector<13x4xf32> to vector<13x4xbf16>
    %872 = vector.extract_strided_slice %0 {offsets = [1, 0, 0], sizes = [1, 4, 128], strides = [1, 1, 1]} : vector<16x4x128xbf16> to vector<1x4x128xbf16>
    %873 = vector.shape_cast %872 : vector<1x4x128xbf16> to vector<4x128xbf16>
    %cst_281 = arith.constant dense<0.000000e+00> : vector<13x128xf32>
    %874 = tpu.matmul %871, %873, %cst_281 {dimension_numbers = #tpu.dot_dimension_numbers<[1], [0], [0], [1], [0, 0, 1, 1], [], []>} : vector<13x4xbf16>, vector<4x128xbf16>, vector<13x128xf32> -> vector<13x128xf32>
    %875 = arith.addf %869, %874 : vector<13x128xf32>
    %876 = vector.extract_strided_slice %863 {offsets = [2, 0], sizes = [13, 4], strides = [1, 1]} : vector<16x4xf32> to vector<13x4xf32>
    %877 = arith.truncf %876 : vector<13x4xf32> to vector<13x4xbf16>
    %878 = vector.extract_strided_slice %0 {offsets = [2, 0, 0], sizes = [1, 4, 128], strides = [1, 1, 1]} : vector<16x4x128xbf16> to vector<1x4x128xbf16>
    %879 = vector.shape_cast %878 : vector<1x4x128xbf16> to vector<4x128xbf16>
    %cst_282 = arith.constant dense<0.000000e+00> : vector<13x128xf32>
    %880 = tpu.matmul %877, %879, %cst_282 {dimension_numbers = #tpu.dot_dimension_numbers<[1], [0], [0], [1], [0, 0, 1, 1], [], []>} : vector<13x4xbf16>, vector<4x128xbf16>, vector<13x128xf32> -> vector<13x128xf32>
    %881 = arith.addf %875, %880 : vector<13x128xf32>
    %882 = vector.extract_strided_slice %863 {offsets = [3, 0], sizes = [13, 4], strides = [1, 1]} : vector<16x4xf32> to vector<13x4xf32>
    %883 = arith.truncf %882 : vector<13x4xf32> to vector<13x4xbf16>
    %884 = vector.extract_strided_slice %0 {offsets = [3, 0, 0], sizes = [1, 4, 128], strides = [1, 1, 1]} : vector<16x4x128xbf16> to vector<1x4x128xbf16>
    %885 = vector.shape_cast %884 : vector<1x4x128xbf16> to vector<4x128xbf16>
    %cst_283 = arith.constant dense<0.000000e+00> : vector<13x128xf32>
    %886 = tpu.matmul %883, %885, %cst_283 {dimension_numbers = #tpu.dot_dimension_numbers<[1], [0], [0], [1], [0, 0, 1, 1], [], []>} : vector<13x4xbf16>, vector<4x128xbf16>, vector<13x128xf32> -> vector<13x128xf32>
    %887 = arith.addf %881, %886 : vector<13x128xf32>
    %c1_i32_284 = arith.constant 1 : i32
    %888 = arith.addi %735, %c1_i32_284 : i32
    %c0_285 = arith.constant 0 : index
    %889 = arith.index_cast %888 : i32 to index
    %c0_286 = arith.constant 0 : index
    %c0_287 = arith.constant 0 : index
    %890 = vector.load %arg2[%c0_285, %889, %c0_286, %c0_287] : memref<1x16x16x4xf32, #tpu.memory_space<vmem>>, vector<1x1x16x4xf32>
    %891 = vector.shape_cast %890 : vector<1x1x16x4xf32> to vector<16x4xf32>
    %892 = vector.extract_strided_slice %891 {offsets = [0, 0], sizes = [13, 4], strides = [1, 1]} : vector<16x4xf32> to vector<13x4xf32>
    %893 = arith.truncf %892 : vector<13x4xf32> to vector<13x4xbf16>
    %894 = vector.extract_strided_slice %0 {offsets = [4, 0, 0], sizes = [1, 4, 128], strides = [1, 1, 1]} : vector<16x4x128xbf16> to vector<1x4x128xbf16>
    %895 = vector.shape_cast %894 : vector<1x4x128xbf16> to vector<4x128xbf16>
    %cst_288 = arith.constant dense<0.000000e+00> : vector<13x128xf32>
    %896 = tpu.matmul %893, %895, %cst_288 {dimension_numbers = #tpu.dot_dimension_numbers<[1], [0], [0], [1], [0, 0, 1, 1], [], []>} : vector<13x4xbf16>, vector<4x128xbf16>, vector<13x128xf32> -> vector<13x128xf32>
    %897 = arith.addf %887, %896 : vector<13x128xf32>
    %898 = vector.extract_strided_slice %891 {offsets = [1, 0], sizes = [13, 4], strides = [1, 1]} : vector<16x4xf32> to vector<13x4xf32>
    %899 = arith.truncf %898 : vector<13x4xf32> to vector<13x4xbf16>
    %900 = vector.extract_strided_slice %0 {offsets = [5, 0, 0], sizes = [1, 4, 128], strides = [1, 1, 1]} : vector<16x4x128xbf16> to vector<1x4x128xbf16>
    %901 = vector.shape_cast %900 : vector<1x4x128xbf16> to vector<4x128xbf16>
    %cst_289 = arith.constant dense<0.000000e+00> : vector<13x128xf32>
    %902 = tpu.matmul %899, %901, %cst_289 {dimension_numbers = #tpu.dot_dimension_numbers<[1], [0], [0], [1], [0, 0, 1, 1], [], []>} : vector<13x4xbf16>, vector<4x128xbf16>, vector<13x128xf32> -> vector<13x128xf32>
    %903 = arith.addf %897, %902 : vector<13x128xf32>
    %904 = vector.extract_strided_slice %891 {offsets = [2, 0], sizes = [13, 4], strides = [1, 1]} : vector<16x4xf32> to vector<13x4xf32>
    %905 = arith.truncf %904 : vector<13x4xf32> to vector<13x4xbf16>
    %906 = vector.extract_strided_slice %0 {offsets = [6, 0, 0], sizes = [1, 4, 128], strides = [1, 1, 1]} : vector<16x4x128xbf16> to vector<1x4x128xbf16>
    %907 = vector.shape_cast %906 : vector<1x4x128xbf16> to vector<4x128xbf16>
    %cst_290 = arith.constant dense<0.000000e+00> : vector<13x128xf32>
    %908 = tpu.matmul %905, %907, %cst_290 {dimension_numbers = #tpu.dot_dimension_numbers<[1], [0], [0], [1], [0, 0, 1, 1], [], []>} : vector<13x4xbf16>, vector<4x128xbf16>, vector<13x128xf32> -> vector<13x128xf32>
    %909 = arith.addf %903, %908 : vector<13x128xf32>
    %910 = vector.extract_strided_slice %891 {offsets = [3, 0], sizes = [13, 4], strides = [1, 1]} : vector<16x4xf32> to vector<13x4xf32>
    %911 = arith.truncf %910 : vector<13x4xf32> to vector<13x4xbf16>
    %912 = vector.extract_strided_slice %0 {offsets = [7, 0, 0], sizes = [1, 4, 128], strides = [1, 1, 1]} : vector<16x4x128xbf16> to vector<1x4x128xbf16>
    %913 = vector.shape_cast %912 : vector<1x4x128xbf16> to vector<4x128xbf16>
    %cst_291 = arith.constant dense<0.000000e+00> : vector<13x128xf32>
    %914 = tpu.matmul %911, %913, %cst_291 {dimension_numbers = #tpu.dot_dimension_numbers<[1], [0], [0], [1], [0, 0, 1, 1], [], []>} : vector<13x4xbf16>, vector<4x128xbf16>, vector<13x128xf32> -> vector<13x128xf32>
    %915 = arith.addf %909, %914 : vector<13x128xf32>
    %c2_i32_292 = arith.constant 2 : i32
    %916 = arith.addi %735, %c2_i32_292 : i32
    %c0_293 = arith.constant 0 : index
    %917 = arith.index_cast %916 : i32 to index
    %c0_294 = arith.constant 0 : index
    %c0_295 = arith.constant 0 : index
    %918 = vector.load %arg2[%c0_293, %917, %c0_294, %c0_295] : memref<1x16x16x4xf32, #tpu.memory_space<vmem>>, vector<1x1x16x4xf32>
    %919 = vector.shape_cast %918 : vector<1x1x16x4xf32> to vector<16x4xf32>
    %920 = vector.extract_strided_slice %919 {offsets = [0, 0], sizes = [13, 4], strides = [1, 1]} : vector<16x4xf32> to vector<13x4xf32>
    %921 = arith.truncf %920 : vector<13x4xf32> to vector<13x4xbf16>
    %922 = vector.extract_strided_slice %0 {offsets = [8, 0, 0], sizes = [1, 4, 128], strides = [1, 1, 1]} : vector<16x4x128xbf16> to vector<1x4x128xbf16>
    %923 = vector.shape_cast %922 : vector<1x4x128xbf16> to vector<4x128xbf16>
    %cst_296 = arith.constant dense<0.000000e+00> : vector<13x128xf32>
    %924 = tpu.matmul %921, %923, %cst_296 {dimension_numbers = #tpu.dot_dimension_numbers<[1], [0], [0], [1], [0, 0, 1, 1], [], []>} : vector<13x4xbf16>, vector<4x128xbf16>, vector<13x128xf32> -> vector<13x128xf32>
    %925 = arith.addf %915, %924 : vector<13x128xf32>
    %926 = vector.extract_strided_slice %919 {offsets = [1, 0], sizes = [13, 4], strides = [1, 1]} : vector<16x4xf32> to vector<13x4xf32>
    %927 = arith.truncf %926 : vector<13x4xf32> to vector<13x4xbf16>
    %928 = vector.extract_strided_slice %0 {offsets = [9, 0, 0], sizes = [1, 4, 128], strides = [1, 1, 1]} : vector<16x4x128xbf16> to vector<1x4x128xbf16>
    %929 = vector.shape_cast %928 : vector<1x4x128xbf16> to vector<4x128xbf16>
    %cst_297 = arith.constant dense<0.000000e+00> : vector<13x128xf32>
    %930 = tpu.matmul %927, %929, %cst_297 {dimension_numbers = #tpu.dot_dimension_numbers<[1], [0], [0], [1], [0, 0, 1, 1], [], []>} : vector<13x4xbf16>, vector<4x128xbf16>, vector<13x128xf32> -> vector<13x128xf32>
    %931 = arith.addf %925, %930 : vector<13x128xf32>
    %932 = vector.extract_strided_slice %919 {offsets = [2, 0], sizes = [13, 4], strides = [1, 1]} : vector<16x4xf32> to vector<13x4xf32>
    %933 = arith.truncf %932 : vector<13x4xf32> to vector<13x4xbf16>
    %934 = vector.extract_strided_slice %0 {offsets = [10, 0, 0], sizes = [1, 4, 128], strides = [1, 1, 1]} : vector<16x4x128xbf16> to vector<1x4x128xbf16>
    %935 = vector.shape_cast %934 : vector<1x4x128xbf16> to vector<4x128xbf16>
    %cst_298 = arith.constant dense<0.000000e+00> : vector<13x128xf32>
    %936 = tpu.matmul %933, %935, %cst_298 {dimension_numbers = #tpu.dot_dimension_numbers<[1], [0], [0], [1], [0, 0, 1, 1], [], []>} : vector<13x4xbf16>, vector<4x128xbf16>, vector<13x128xf32> -> vector<13x128xf32>
    %937 = arith.addf %931, %936 : vector<13x128xf32>
    %938 = vector.extract_strided_slice %919 {offsets = [3, 0], sizes = [13, 4], strides = [1, 1]} : vector<16x4xf32> to vector<13x4xf32>
    %939 = arith.truncf %938 : vector<13x4xf32> to vector<13x4xbf16>
    %940 = vector.extract_strided_slice %0 {offsets = [11, 0, 0], sizes = [1, 4, 128], strides = [1, 1, 1]} : vector<16x4x128xbf16> to vector<1x4x128xbf16>
    %941 = vector.shape_cast %940 : vector<1x4x128xbf16> to vector<4x128xbf16>
    %cst_299 = arith.constant dense<0.000000e+00> : vector<13x128xf32>
    %942 = tpu.matmul %939, %941, %cst_299 {dimension_numbers = #tpu.dot_dimension_numbers<[1], [0], [0], [1], [0, 0, 1, 1], [], []>} : vector<13x4xbf16>, vector<4x128xbf16>, vector<13x128xf32> -> vector<13x128xf32>
    %943 = arith.addf %937, %942 : vector<13x128xf32>
    %c3_i32_300 = arith.constant 3 : i32
    %944 = arith.addi %735, %c3_i32_300 : i32
    %c0_301 = arith.constant 0 : index
    %945 = arith.index_cast %944 : i32 to index
    %c0_302 = arith.constant 0 : index
    %c0_303 = arith.constant 0 : index
    %946 = vector.load %arg2[%c0_301, %945, %c0_302, %c0_303] : memref<1x16x16x4xf32, #tpu.memory_space<vmem>>, vector<1x1x16x4xf32>
    %947 = vector.shape_cast %946 : vector<1x1x16x4xf32> to vector<16x4xf32>
    %948 = vector.extract_strided_slice %947 {offsets = [0, 0], sizes = [13, 4], strides = [1, 1]} : vector<16x4xf32> to vector<13x4xf32>
    %949 = arith.truncf %948 : vector<13x4xf32> to vector<13x4xbf16>
    %950 = vector.extract_strided_slice %0 {offsets = [12, 0, 0], sizes = [1, 4, 128], strides = [1, 1, 1]} : vector<16x4x128xbf16> to vector<1x4x128xbf16>
    %951 = vector.shape_cast %950 : vector<1x4x128xbf16> to vector<4x128xbf16>
    %cst_304 = arith.constant dense<0.000000e+00> : vector<13x128xf32>
    %952 = tpu.matmul %949, %951, %cst_304 {dimension_numbers = #tpu.dot_dimension_numbers<[1], [0], [0], [1], [0, 0, 1, 1], [], []>} : vector<13x4xbf16>, vector<4x128xbf16>, vector<13x128xf32> -> vector<13x128xf32>
    %953 = arith.addf %943, %952 : vector<13x128xf32>
    %954 = vector.extract_strided_slice %947 {offsets = [1, 0], sizes = [13, 4], strides = [1, 1]} : vector<16x4xf32> to vector<13x4xf32>
    %955 = arith.truncf %954 : vector<13x4xf32> to vector<13x4xbf16>
    %956 = vector.extract_strided_slice %0 {offsets = [13, 0, 0], sizes = [1, 4, 128], strides = [1, 1, 1]} : vector<16x4x128xbf16> to vector<1x4x128xbf16>
    %957 = vector.shape_cast %956 : vector<1x4x128xbf16> to vector<4x128xbf16>
    %cst_305 = arith.constant dense<0.000000e+00> : vector<13x128xf32>
    %958 = tpu.matmul %955, %957, %cst_305 {dimension_numbers = #tpu.dot_dimension_numbers<[1], [0], [0], [1], [0, 0, 1, 1], [], []>} : vector<13x4xbf16>, vector<4x128xbf16>, vector<13x128xf32> -> vector<13x128xf32>
    %959 = arith.addf %953, %958 : vector<13x128xf32>
    %960 = vector.extract_strided_slice %947 {offsets = [2, 0], sizes = [13, 4], strides = [1, 1]} : vector<16x4xf32> to vector<13x4xf32>
    %961 = arith.truncf %960 : vector<13x4xf32> to vector<13x4xbf16>
    %962 = vector.extract_strided_slice %0 {offsets = [14, 0, 0], sizes = [1, 4, 128], strides = [1, 1, 1]} : vector<16x4x128xbf16> to vector<1x4x128xbf16>
    %963 = vector.shape_cast %962 : vector<1x4x128xbf16> to vector<4x128xbf16>
    %cst_306 = arith.constant dense<0.000000e+00> : vector<13x128xf32>
    %964 = tpu.matmul %961, %963, %cst_306 {dimension_numbers = #tpu.dot_dimension_numbers<[1], [0], [0], [1], [0, 0, 1, 1], [], []>} : vector<13x4xbf16>, vector<4x128xbf16>, vector<13x128xf32> -> vector<13x128xf32>
    %965 = arith.addf %959, %964 : vector<13x128xf32>
    %966 = vector.extract_strided_slice %947 {offsets = [3, 0], sizes = [13, 4], strides = [1, 1]} : vector<16x4xf32> to vector<13x4xf32>
    %967 = arith.truncf %966 : vector<13x4xf32> to vector<13x4xbf16>
    %968 = vector.extract_strided_slice %0 {offsets = [15, 0, 0], sizes = [1, 4, 128], strides = [1, 1, 1]} : vector<16x4x128xbf16> to vector<1x4x128xbf16>
    %969 = vector.shape_cast %968 : vector<1x4x128xbf16> to vector<4x128xbf16>
    %cst_307 = arith.constant dense<0.000000e+00> : vector<13x128xf32>
    %970 = tpu.matmul %967, %969, %cst_307 {dimension_numbers = #tpu.dot_dimension_numbers<[1], [0], [0], [1], [0, 0, 1, 1], [], []>} : vector<13x4xbf16>, vector<4x128xbf16>, vector<13x128xf32> -> vector<13x128xf32>
    %971 = arith.addf %965, %970 : vector<13x128xf32>
    %cst_308 = arith.constant 5.000000e-01 : f32
    %972 = vector.broadcast %cst_308 : f32 to vector<13x128xf32>
    %973 = arith.mulf %972, %971 : vector<13x128xf32>
    %974 = arith.addf %858, %973 : vector<13x128xf32>
    %cst_309 = arith.constant 0.000000e+00 : f32
    %975 = vector.broadcast %cst_309 : f32 to vector<13x128xf32>
    %c0_i32_310 = arith.constant 0 : i32
    %976 = arith.addi %741, %c0_i32_310 : i32
    %c0_311 = arith.constant 0 : index
    %977 = arith.index_cast %976 : i32 to index
    %c0_312 = arith.constant 0 : index
    %c0_313 = arith.constant 0 : index
    %978 = vector.load %arg2[%c0_311, %977, %c0_312, %c0_313] : memref<1x16x16x4xf32, #tpu.memory_space<vmem>>, vector<1x1x16x4xf32>
    %979 = vector.shape_cast %978 : vector<1x1x16x4xf32> to vector<16x4xf32>
    %980 = vector.extract_strided_slice %979 {offsets = [0, 0], sizes = [13, 4], strides = [1, 1]} : vector<16x4xf32> to vector<13x4xf32>
    %981 = arith.truncf %980 : vector<13x4xf32> to vector<13x4xbf16>
    %982 = vector.extract_strided_slice %0 {offsets = [0, 0, 0], sizes = [1, 4, 128], strides = [1, 1, 1]} : vector<16x4x128xbf16> to vector<1x4x128xbf16>
    %983 = vector.shape_cast %982 : vector<1x4x128xbf16> to vector<4x128xbf16>
    %cst_314 = arith.constant dense<0.000000e+00> : vector<13x128xf32>
    %984 = tpu.matmul %981, %983, %cst_314 {dimension_numbers = #tpu.dot_dimension_numbers<[1], [0], [0], [1], [0, 0, 1, 1], [], []>} : vector<13x4xbf16>, vector<4x128xbf16>, vector<13x128xf32> -> vector<13x128xf32>
    %985 = arith.addf %975, %984 : vector<13x128xf32>
    %986 = vector.extract_strided_slice %979 {offsets = [1, 0], sizes = [13, 4], strides = [1, 1]} : vector<16x4xf32> to vector<13x4xf32>
    %987 = arith.truncf %986 : vector<13x4xf32> to vector<13x4xbf16>
    %988 = vector.extract_strided_slice %0 {offsets = [1, 0, 0], sizes = [1, 4, 128], strides = [1, 1, 1]} : vector<16x4x128xbf16> to vector<1x4x128xbf16>
    %989 = vector.shape_cast %988 : vector<1x4x128xbf16> to vector<4x128xbf16>
    %cst_315 = arith.constant dense<0.000000e+00> : vector<13x128xf32>
    %990 = tpu.matmul %987, %989, %cst_315 {dimension_numbers = #tpu.dot_dimension_numbers<[1], [0], [0], [1], [0, 0, 1, 1], [], []>} : vector<13x4xbf16>, vector<4x128xbf16>, vector<13x128xf32> -> vector<13x128xf32>
    %991 = arith.addf %985, %990 : vector<13x128xf32>
    %992 = vector.extract_strided_slice %979 {offsets = [2, 0], sizes = [13, 4], strides = [1, 1]} : vector<16x4xf32> to vector<13x4xf32>
    %993 = arith.truncf %992 : vector<13x4xf32> to vector<13x4xbf16>
    %994 = vector.extract_strided_slice %0 {offsets = [2, 0, 0], sizes = [1, 4, 128], strides = [1, 1, 1]} : vector<16x4x128xbf16> to vector<1x4x128xbf16>
    %995 = vector.shape_cast %994 : vector<1x4x128xbf16> to vector<4x128xbf16>
    %cst_316 = arith.constant dense<0.000000e+00> : vector<13x128xf32>
    %996 = tpu.matmul %993, %995, %cst_316 {dimension_numbers = #tpu.dot_dimension_numbers<[1], [0], [0], [1], [0, 0, 1, 1], [], []>} : vector<13x4xbf16>, vector<4x128xbf16>, vector<13x128xf32> -> vector<13x128xf32>
    %997 = arith.addf %991, %996 : vector<13x128xf32>
    %998 = vector.extract_strided_slice %979 {offsets = [3, 0], sizes = [13, 4], strides = [1, 1]} : vector<16x4xf32> to vector<13x4xf32>
    %999 = arith.truncf %998 : vector<13x4xf32> to vector<13x4xbf16>
    %1000 = vector.extract_strided_slice %0 {offsets = [3, 0, 0], sizes = [1, 4, 128], strides = [1, 1, 1]} : vector<16x4x128xbf16> to vector<1x4x128xbf16>
    %1001 = vector.shape_cast %1000 : vector<1x4x128xbf16> to vector<4x128xbf16>
    %cst_317 = arith.constant dense<0.000000e+00> : vector<13x128xf32>
    %1002 = tpu.matmul %999, %1001, %cst_317 {dimension_numbers = #tpu.dot_dimension_numbers<[1], [0], [0], [1], [0, 0, 1, 1], [], []>} : vector<13x4xbf16>, vector<4x128xbf16>, vector<13x128xf32> -> vector<13x128xf32>
    %1003 = arith.addf %997, %1002 : vector<13x128xf32>
    %c1_i32_318 = arith.constant 1 : i32
    %1004 = arith.addi %741, %c1_i32_318 : i32
    %c0_319 = arith.constant 0 : index
    %1005 = arith.index_cast %1004 : i32 to index
    %c0_320 = arith.constant 0 : index
    %c0_321 = arith.constant 0 : index
    %1006 = vector.load %arg2[%c0_319, %1005, %c0_320, %c0_321] : memref<1x16x16x4xf32, #tpu.memory_space<vmem>>, vector<1x1x16x4xf32>
    %1007 = vector.shape_cast %1006 : vector<1x1x16x4xf32> to vector<16x4xf32>
    %1008 = vector.extract_strided_slice %1007 {offsets = [0, 0], sizes = [13, 4], strides = [1, 1]} : vector<16x4xf32> to vector<13x4xf32>
    %1009 = arith.truncf %1008 : vector<13x4xf32> to vector<13x4xbf16>
    %1010 = vector.extract_strided_slice %0 {offsets = [4, 0, 0], sizes = [1, 4, 128], strides = [1, 1, 1]} : vector<16x4x128xbf16> to vector<1x4x128xbf16>
    %1011 = vector.shape_cast %1010 : vector<1x4x128xbf16> to vector<4x128xbf16>
    %cst_322 = arith.constant dense<0.000000e+00> : vector<13x128xf32>
    %1012 = tpu.matmul %1009, %1011, %cst_322 {dimension_numbers = #tpu.dot_dimension_numbers<[1], [0], [0], [1], [0, 0, 1, 1], [], []>} : vector<13x4xbf16>, vector<4x128xbf16>, vector<13x128xf32> -> vector<13x128xf32>
    %1013 = arith.addf %1003, %1012 : vector<13x128xf32>
    %1014 = vector.extract_strided_slice %1007 {offsets = [1, 0], sizes = [13, 4], strides = [1, 1]} : vector<16x4xf32> to vector<13x4xf32>
    %1015 = arith.truncf %1014 : vector<13x4xf32> to vector<13x4xbf16>
    %1016 = vector.extract_strided_slice %0 {offsets = [5, 0, 0], sizes = [1, 4, 128], strides = [1, 1, 1]} : vector<16x4x128xbf16> to vector<1x4x128xbf16>
    %1017 = vector.shape_cast %1016 : vector<1x4x128xbf16> to vector<4x128xbf16>
    %cst_323 = arith.constant dense<0.000000e+00> : vector<13x128xf32>
    %1018 = tpu.matmul %1015, %1017, %cst_323 {dimension_numbers = #tpu.dot_dimension_numbers<[1], [0], [0], [1], [0, 0, 1, 1], [], []>} : vector<13x4xbf16>, vector<4x128xbf16>, vector<13x128xf32> -> vector<13x128xf32>
    %1019 = arith.addf %1013, %1018 : vector<13x128xf32>
    %1020 = vector.extract_strided_slice %1007 {offsets = [2, 0], sizes = [13, 4], strides = [1, 1]} : vector<16x4xf32> to vector<13x4xf32>
    %1021 = arith.truncf %1020 : vector<13x4xf32> to vector<13x4xbf16>
    %1022 = vector.extract_strided_slice %0 {offsets = [6, 0, 0], sizes = [1, 4, 128], strides = [1, 1, 1]} : vector<16x4x128xbf16> to vector<1x4x128xbf16>
    %1023 = vector.shape_cast %1022 : vector<1x4x128xbf16> to vector<4x128xbf16>
    %cst_324 = arith.constant dense<0.000000e+00> : vector<13x128xf32>
    %1024 = tpu.matmul %1021, %1023, %cst_324 {dimension_numbers = #tpu.dot_dimension_numbers<[1], [0], [0], [1], [0, 0, 1, 1], [], []>} : vector<13x4xbf16>, vector<4x128xbf16>, vector<13x128xf32> -> vector<13x128xf32>
    %1025 = arith.addf %1019, %1024 : vector<13x128xf32>
    %1026 = vector.extract_strided_slice %1007 {offsets = [3, 0], sizes = [13, 4], strides = [1, 1]} : vector<16x4xf32> to vector<13x4xf32>
    %1027 = arith.truncf %1026 : vector<13x4xf32> to vector<13x4xbf16>
    %1028 = vector.extract_strided_slice %0 {offsets = [7, 0, 0], sizes = [1, 4, 128], strides = [1, 1, 1]} : vector<16x4x128xbf16> to vector<1x4x128xbf16>
    %1029 = vector.shape_cast %1028 : vector<1x4x128xbf16> to vector<4x128xbf16>
    %cst_325 = arith.constant dense<0.000000e+00> : vector<13x128xf32>
    %1030 = tpu.matmul %1027, %1029, %cst_325 {dimension_numbers = #tpu.dot_dimension_numbers<[1], [0], [0], [1], [0, 0, 1, 1], [], []>} : vector<13x4xbf16>, vector<4x128xbf16>, vector<13x128xf32> -> vector<13x128xf32>
    %1031 = arith.addf %1025, %1030 : vector<13x128xf32>
    %c2_i32_326 = arith.constant 2 : i32
    %1032 = arith.addi %741, %c2_i32_326 : i32
    %c0_327 = arith.constant 0 : index
    %1033 = arith.index_cast %1032 : i32 to index
    %c0_328 = arith.constant 0 : index
    %c0_329 = arith.constant 0 : index
    %1034 = vector.load %arg2[%c0_327, %1033, %c0_328, %c0_329] : memref<1x16x16x4xf32, #tpu.memory_space<vmem>>, vector<1x1x16x4xf32>
    %1035 = vector.shape_cast %1034 : vector<1x1x16x4xf32> to vector<16x4xf32>
    %1036 = vector.extract_strided_slice %1035 {offsets = [0, 0], sizes = [13, 4], strides = [1, 1]} : vector<16x4xf32> to vector<13x4xf32>
    %1037 = arith.truncf %1036 : vector<13x4xf32> to vector<13x4xbf16>
    %1038 = vector.extract_strided_slice %0 {offsets = [8, 0, 0], sizes = [1, 4, 128], strides = [1, 1, 1]} : vector<16x4x128xbf16> to vector<1x4x128xbf16>
    %1039 = vector.shape_cast %1038 : vector<1x4x128xbf16> to vector<4x128xbf16>
    %cst_330 = arith.constant dense<0.000000e+00> : vector<13x128xf32>
    %1040 = tpu.matmul %1037, %1039, %cst_330 {dimension_numbers = #tpu.dot_dimension_numbers<[1], [0], [0], [1], [0, 0, 1, 1], [], []>} : vector<13x4xbf16>, vector<4x128xbf16>, vector<13x128xf32> -> vector<13x128xf32>
    %1041 = arith.addf %1031, %1040 : vector<13x128xf32>
    %1042 = vector.extract_strided_slice %1035 {offsets = [1, 0], sizes = [13, 4], strides = [1, 1]} : vector<16x4xf32> to vector<13x4xf32>
    %1043 = arith.truncf %1042 : vector<13x4xf32> to vector<13x4xbf16>
    %1044 = vector.extract_strided_slice %0 {offsets = [9, 0, 0], sizes = [1, 4, 128], strides = [1, 1, 1]} : vector<16x4x128xbf16> to vector<1x4x128xbf16>
    %1045 = vector.shape_cast %1044 : vector<1x4x128xbf16> to vector<4x128xbf16>
    %cst_331 = arith.constant dense<0.000000e+00> : vector<13x128xf32>
    %1046 = tpu.matmul %1043, %1045, %cst_331 {dimension_numbers = #tpu.dot_dimension_numbers<[1], [0], [0], [1], [0, 0, 1, 1], [], []>} : vector<13x4xbf16>, vector<4x128xbf16>, vector<13x128xf32> -> vector<13x128xf32>
    %1047 = arith.addf %1041, %1046 : vector<13x128xf32>
    %1048 = vector.extract_strided_slice %1035 {offsets = [2, 0], sizes = [13, 4], strides = [1, 1]} : vector<16x4xf32> to vector<13x4xf32>
    %1049 = arith.truncf %1048 : vector<13x4xf32> to vector<13x4xbf16>
    %1050 = vector.extract_strided_slice %0 {offsets = [10, 0, 0], sizes = [1, 4, 128], strides = [1, 1, 1]} : vector<16x4x128xbf16> to vector<1x4x128xbf16>
    %1051 = vector.shape_cast %1050 : vector<1x4x128xbf16> to vector<4x128xbf16>
    %cst_332 = arith.constant dense<0.000000e+00> : vector<13x128xf32>
    %1052 = tpu.matmul %1049, %1051, %cst_332 {dimension_numbers = #tpu.dot_dimension_numbers<[1], [0], [0], [1], [0, 0, 1, 1], [], []>} : vector<13x4xbf16>, vector<4x128xbf16>, vector<13x128xf32> -> vector<13x128xf32>
    %1053 = arith.addf %1047, %1052 : vector<13x128xf32>
    %1054 = vector.extract_strided_slice %1035 {offsets = [3, 0], sizes = [13, 4], strides = [1, 1]} : vector<16x4xf32> to vector<13x4xf32>
    %1055 = arith.truncf %1054 : vector<13x4xf32> to vector<13x4xbf16>
    %1056 = vector.extract_strided_slice %0 {offsets = [11, 0, 0], sizes = [1, 4, 128], strides = [1, 1, 1]} : vector<16x4x128xbf16> to vector<1x4x128xbf16>
    %1057 = vector.shape_cast %1056 : vector<1x4x128xbf16> to vector<4x128xbf16>
    %cst_333 = arith.constant dense<0.000000e+00> : vector<13x128xf32>
    %1058 = tpu.matmul %1055, %1057, %cst_333 {dimension_numbers = #tpu.dot_dimension_numbers<[1], [0], [0], [1], [0, 0, 1, 1], [], []>} : vector<13x4xbf16>, vector<4x128xbf16>, vector<13x128xf32> -> vector<13x128xf32>
    %1059 = arith.addf %1053, %1058 : vector<13x128xf32>
    %c3_i32_334 = arith.constant 3 : i32
    %1060 = arith.addi %741, %c3_i32_334 : i32
    %c0_335 = arith.constant 0 : index
    %1061 = arith.index_cast %1060 : i32 to index
    %c0_336 = arith.constant 0 : index
    %c0_337 = arith.constant 0 : index
    %1062 = vector.load %arg2[%c0_335, %1061, %c0_336, %c0_337] : memref<1x16x16x4xf32, #tpu.memory_space<vmem>>, vector<1x1x16x4xf32>
    %1063 = vector.shape_cast %1062 : vector<1x1x16x4xf32> to vector<16x4xf32>
    %1064 = vector.extract_strided_slice %1063 {offsets = [0, 0], sizes = [13, 4], strides = [1, 1]} : vector<16x4xf32> to vector<13x4xf32>
    %1065 = arith.truncf %1064 : vector<13x4xf32> to vector<13x4xbf16>
    %1066 = vector.extract_strided_slice %0 {offsets = [12, 0, 0], sizes = [1, 4, 128], strides = [1, 1, 1]} : vector<16x4x128xbf16> to vector<1x4x128xbf16>
    %1067 = vector.shape_cast %1066 : vector<1x4x128xbf16> to vector<4x128xbf16>
    %cst_338 = arith.constant dense<0.000000e+00> : vector<13x128xf32>
    %1068 = tpu.matmul %1065, %1067, %cst_338 {dimension_numbers = #tpu.dot_dimension_numbers<[1], [0], [0], [1], [0, 0, 1, 1], [], []>} : vector<13x4xbf16>, vector<4x128xbf16>, vector<13x128xf32> -> vector<13x128xf32>
    %1069 = arith.addf %1059, %1068 : vector<13x128xf32>
    %1070 = vector.extract_strided_slice %1063 {offsets = [1, 0], sizes = [13, 4], strides = [1, 1]} : vector<16x4xf32> to vector<13x4xf32>
    %1071 = arith.truncf %1070 : vector<13x4xf32> to vector<13x4xbf16>
    %1072 = vector.extract_strided_slice %0 {offsets = [13, 0, 0], sizes = [1, 4, 128], strides = [1, 1, 1]} : vector<16x4x128xbf16> to vector<1x4x128xbf16>
    %1073 = vector.shape_cast %1072 : vector<1x4x128xbf16> to vector<4x128xbf16>
    %cst_339 = arith.constant dense<0.000000e+00> : vector<13x128xf32>
    %1074 = tpu.matmul %1071, %1073, %cst_339 {dimension_numbers = #tpu.dot_dimension_numbers<[1], [0], [0], [1], [0, 0, 1, 1], [], []>} : vector<13x4xbf16>, vector<4x128xbf16>, vector<13x128xf32> -> vector<13x128xf32>
    %1075 = arith.addf %1069, %1074 : vector<13x128xf32>
    %1076 = vector.extract_strided_slice %1063 {offsets = [2, 0], sizes = [13, 4], strides = [1, 1]} : vector<16x4xf32> to vector<13x4xf32>
    %1077 = arith.truncf %1076 : vector<13x4xf32> to vector<13x4xbf16>
    %1078 = vector.extract_strided_slice %0 {offsets = [14, 0, 0], sizes = [1, 4, 128], strides = [1, 1, 1]} : vector<16x4x128xbf16> to vector<1x4x128xbf16>
    %1079 = vector.shape_cast %1078 : vector<1x4x128xbf16> to vector<4x128xbf16>
    %cst_340 = arith.constant dense<0.000000e+00> : vector<13x128xf32>
    %1080 = tpu.matmul %1077, %1079, %cst_340 {dimension_numbers = #tpu.dot_dimension_numbers<[1], [0], [0], [1], [0, 0, 1, 1], [], []>} : vector<13x4xbf16>, vector<4x128xbf16>, vector<13x128xf32> -> vector<13x128xf32>
    %1081 = arith.addf %1075, %1080 : vector<13x128xf32>
    %1082 = vector.extract_strided_slice %1063 {offsets = [3, 0], sizes = [13, 4], strides = [1, 1]} : vector<16x4xf32> to vector<13x4xf32>
    %1083 = arith.truncf %1082 : vector<13x4xf32> to vector<13x4xbf16>
    %1084 = vector.extract_strided_slice %0 {offsets = [15, 0, 0], sizes = [1, 4, 128], strides = [1, 1, 1]} : vector<16x4x128xbf16> to vector<1x4x128xbf16>
    %1085 = vector.shape_cast %1084 : vector<1x4x128xbf16> to vector<4x128xbf16>
    %cst_341 = arith.constant dense<0.000000e+00> : vector<13x128xf32>
    %1086 = tpu.matmul %1083, %1085, %cst_341 {dimension_numbers = #tpu.dot_dimension_numbers<[1], [0], [0], [1], [0, 0, 1, 1], [], []>} : vector<13x4xbf16>, vector<4x128xbf16>, vector<13x128xf32> -> vector<13x128xf32>
    %1087 = arith.addf %1081, %1086 : vector<13x128xf32>
    %cst_342 = arith.constant 2.500000e-01 : f32
    %1088 = vector.broadcast %cst_342 : f32 to vector<13x128xf32>
    %1089 = arith.mulf %1088, %1087 : vector<13x128xf32>
    %1090 = arith.addf %974, %1089 : vector<13x128xf32>
    %1091 = arith.truncf %1090 : vector<13x128xf32> to vector<13x128xbf16>
    %cst_343 = arith.constant dense<0.000000e+00> : vector<4x128xf32>
    %1092 = tpu.matmul %1, %1091, %cst_343 {dimension_numbers = #tpu.dot_dimension_numbers<[1], [0], [0], [1], [0, 0, 1, 1], [], []>} : vector<4x13xbf16>, vector<13x128xbf16>, vector<4x128xf32> -> vector<4x128xf32>
    %1093 = vector.broadcast %2 : vector<1x128xf32> to vector<4x128xf32>
    %1094 = arith.addf %1092, %1093 : vector<4x128xf32>
    %c0_344 = arith.constant 0 : index
    %c2 = arith.constant 2 : index
    %c0_345 = arith.constant 0 : index
    %c0_346 = arith.constant 0 : index
    %1095 = vector.load %arg6[%c0_344, %c2, %c0_345, %c0_346] : memref<1x4x4x128xf32, #tpu.memory_space<vmem>>, vector<1x1x4x128xf32>
    %1096 = vector.shape_cast %1095 : vector<1x1x4x128xf32> to vector<4x128xf32>
    %1097 = vector.shape_cast %1094 : vector<4x128xf32> to vector<1x1x4x128xf32>
    tpu.vector_store %arg6[%c0_344, %c2, %c0_345, %c0_346], %1097 {strides = array<i32>} : memref<1x4x4x128xf32, #tpu.memory_space<vmem>>, vector<1x1x4x128xf32>,
    %c4_i32_347 = arith.constant 4 : i32
    %1098 = arith.muli %arg1, %c4_i32_347 : i32
    %c3_i32_348 = arith.constant 3 : i32
    %1099 = arith.addi %1098, %c3_i32_348 : i32
    %c4_i32_349 = arith.constant 4 : i32
    %1100 = arith.muli %1099, %c4_i32_349 : i32
    %c0_i32_350 = arith.constant 0 : i32
    %1101 = arith.cmpi eq, %1100, %c0_i32_350 : i32
    %c1_i32_351 = arith.constant 1 : i32
    %1102 = arith.subi %1100, %c1_i32_351 : i32
    %c1_i32_352 = arith.constant 1 : i32
    %1103 = arith.select %1101, %c1_i32_352, %1102 : i32
    %c12_i32_353 = arith.constant 12 : i32
    %1104 = arith.cmpi eq, %1100, %c12_i32_353 : i32
    %c1_i32_354 = arith.constant 1 : i32
    %1105 = arith.addi %1100, %c1_i32_354 : i32
    %c11_i32_355 = arith.constant 11 : i32
    %1106 = arith.select %1104, %c11_i32_355, %1105 : i32
    %cst_356 = arith.constant 0.000000e+00 : f32
    %1107 = vector.broadcast %cst_356 : f32 to vector<13x128xf32>
    %cst_357 = arith.constant 0.000000e+00 : f32
    %1108 = vector.broadcast %cst_357 : f32 to vector<13x128xf32>
    %c0_i32_358 = arith.constant 0 : i32
    %1109 = arith.addi %1103, %c0_i32_358 : i32
    %c0_359 = arith.constant 0 : index
    %1110 = arith.index_cast %1109 : i32 to index
    %c0_360 = arith.constant 0 : index
    %c0_361 = arith.constant 0 : index
    %1111 = vector.load %arg2[%c0_359, %1110, %c0_360, %c0_361] : memref<1x16x16x4xf32, #tpu.memory_space<vmem>>, vector<1x1x16x4xf32>
    %1112 = vector.shape_cast %1111 : vector<1x1x16x4xf32> to vector<16x4xf32>
    %1113 = vector.extract_strided_slice %1112 {offsets = [0, 0], sizes = [13, 4], strides = [1, 1]} : vector<16x4xf32> to vector<13x4xf32>
    %1114 = arith.truncf %1113 : vector<13x4xf32> to vector<13x4xbf16>
    %1115 = vector.extract_strided_slice %0 {offsets = [0, 0, 0], sizes = [1, 4, 128], strides = [1, 1, 1]} : vector<16x4x128xbf16> to vector<1x4x128xbf16>
    %1116 = vector.shape_cast %1115 : vector<1x4x128xbf16> to vector<4x128xbf16>
    %cst_362 = arith.constant dense<0.000000e+00> : vector<13x128xf32>
    %1117 = tpu.matmul %1114, %1116, %cst_362 {dimension_numbers = #tpu.dot_dimension_numbers<[1], [0], [0], [1], [0, 0, 1, 1], [], []>} : vector<13x4xbf16>, vector<4x128xbf16>, vector<13x128xf32> -> vector<13x128xf32>
    %1118 = arith.addf %1108, %1117 : vector<13x128xf32>
    %1119 = vector.extract_strided_slice %1112 {offsets = [1, 0], sizes = [13, 4], strides = [1, 1]} : vector<16x4xf32> to vector<13x4xf32>
    %1120 = arith.truncf %1119 : vector<13x4xf32> to vector<13x4xbf16>
    %1121 = vector.extract_strided_slice %0 {offsets = [1, 0, 0], sizes = [1, 4, 128], strides = [1, 1, 1]} : vector<16x4x128xbf16> to vector<1x4x128xbf16>
    %1122 = vector.shape_cast %1121 : vector<1x4x128xbf16> to vector<4x128xbf16>
    %cst_363 = arith.constant dense<0.000000e+00> : vector<13x128xf32>
    %1123 = tpu.matmul %1120, %1122, %cst_363 {dimension_numbers = #tpu.dot_dimension_numbers<[1], [0], [0], [1], [0, 0, 1, 1], [], []>} : vector<13x4xbf16>, vector<4x128xbf16>, vector<13x128xf32> -> vector<13x128xf32>
    %1124 = arith.addf %1118, %1123 : vector<13x128xf32>
    %1125 = vector.extract_strided_slice %1112 {offsets = [2, 0], sizes = [13, 4], strides = [1, 1]} : vector<16x4xf32> to vector<13x4xf32>
    %1126 = arith.truncf %1125 : vector<13x4xf32> to vector<13x4xbf16>
    %1127 = vector.extract_strided_slice %0 {offsets = [2, 0, 0], sizes = [1, 4, 128], strides = [1, 1, 1]} : vector<16x4x128xbf16> to vector<1x4x128xbf16>
    %1128 = vector.shape_cast %1127 : vector<1x4x128xbf16> to vector<4x128xbf16>
    %cst_364 = arith.constant dense<0.000000e+00> : vector<13x128xf32>
    %1129 = tpu.matmul %1126, %1128, %cst_364 {dimension_numbers = #tpu.dot_dimension_numbers<[1], [0], [0], [1], [0, 0, 1, 1], [], []>} : vector<13x4xbf16>, vector<4x128xbf16>, vector<13x128xf32> -> vector<13x128xf32>
    %1130 = arith.addf %1124, %1129 : vector<13x128xf32>
    %1131 = vector.extract_strided_slice %1112 {offsets = [3, 0], sizes = [13, 4], strides = [1, 1]} : vector<16x4xf32> to vector<13x4xf32>
    %1132 = arith.truncf %1131 : vector<13x4xf32> to vector<13x4xbf16>
    %1133 = vector.extract_strided_slice %0 {offsets = [3, 0, 0], sizes = [1, 4, 128], strides = [1, 1, 1]} : vector<16x4x128xbf16> to vector<1x4x128xbf16>
    %1134 = vector.shape_cast %1133 : vector<1x4x128xbf16> to vector<4x128xbf16>
    %cst_365 = arith.constant dense<0.000000e+00> : vector<13x128xf32>
    %1135 = tpu.matmul %1132, %1134, %cst_365 {dimension_numbers = #tpu.dot_dimension_numbers<[1], [0], [0], [1], [0, 0, 1, 1], [], []>} : vector<13x4xbf16>, vector<4x128xbf16>, vector<13x128xf32> -> vector<13x128xf32>
    %1136 = arith.addf %1130, %1135 : vector<13x128xf32>
    %c1_i32_366 = arith.constant 1 : i32
    %1137 = arith.addi %1103, %c1_i32_366 : i32
    %c0_367 = arith.constant 0 : index
    %1138 = arith.index_cast %1137 : i32 to index
    %c0_368 = arith.constant 0 : index
    %c0_369 = arith.constant 0 : index
    %1139 = vector.load %arg2[%c0_367, %1138, %c0_368, %c0_369] : memref<1x16x16x4xf32, #tpu.memory_space<vmem>>, vector<1x1x16x4xf32>
    %1140 = vector.shape_cast %1139 : vector<1x1x16x4xf32> to vector<16x4xf32>
    %1141 = vector.extract_strided_slice %1140 {offsets = [0, 0], sizes = [13, 4], strides = [1, 1]} : vector<16x4xf32> to vector<13x4xf32>
    %1142 = arith.truncf %1141 : vector<13x4xf32> to vector<13x4xbf16>
    %1143 = vector.extract_strided_slice %0 {offsets = [4, 0, 0], sizes = [1, 4, 128], strides = [1, 1, 1]} : vector<16x4x128xbf16> to vector<1x4x128xbf16>
    %1144 = vector.shape_cast %1143 : vector<1x4x128xbf16> to vector<4x128xbf16>
    %cst_370 = arith.constant dense<0.000000e+00> : vector<13x128xf32>
    %1145 = tpu.matmul %1142, %1144, %cst_370 {dimension_numbers = #tpu.dot_dimension_numbers<[1], [0], [0], [1], [0, 0, 1, 1], [], []>} : vector<13x4xbf16>, vector<4x128xbf16>, vector<13x128xf32> -> vector<13x128xf32>
    %1146 = arith.addf %1136, %1145 : vector<13x128xf32>
    %1147 = vector.extract_strided_slice %1140 {offsets = [1, 0], sizes = [13, 4], strides = [1, 1]} : vector<16x4xf32> to vector<13x4xf32>
    %1148 = arith.truncf %1147 : vector<13x4xf32> to vector<13x4xbf16>
    %1149 = vector.extract_strided_slice %0 {offsets = [5, 0, 0], sizes = [1, 4, 128], strides = [1, 1, 1]} : vector<16x4x128xbf16> to vector<1x4x128xbf16>
    %1150 = vector.shape_cast %1149 : vector<1x4x128xbf16> to vector<4x128xbf16>
    %cst_371 = arith.constant dense<0.000000e+00> : vector<13x128xf32>
    %1151 = tpu.matmul %1148, %1150, %cst_371 {dimension_numbers = #tpu.dot_dimension_numbers<[1], [0], [0], [1], [0, 0, 1, 1], [], []>} : vector<13x4xbf16>, vector<4x128xbf16>, vector<13x128xf32> -> vector<13x128xf32>
    %1152 = arith.addf %1146, %1151 : vector<13x128xf32>
    %1153 = vector.extract_strided_slice %1140 {offsets = [2, 0], sizes = [13, 4], strides = [1, 1]} : vector<16x4xf32> to vector<13x4xf32>
    %1154 = arith.truncf %1153 : vector<13x4xf32> to vector<13x4xbf16>
    %1155 = vector.extract_strided_slice %0 {offsets = [6, 0, 0], sizes = [1, 4, 128], strides = [1, 1, 1]} : vector<16x4x128xbf16> to vector<1x4x128xbf16>
    %1156 = vector.shape_cast %1155 : vector<1x4x128xbf16> to vector<4x128xbf16>
    %cst_372 = arith.constant dense<0.000000e+00> : vector<13x128xf32>
    %1157 = tpu.matmul %1154, %1156, %cst_372 {dimension_numbers = #tpu.dot_dimension_numbers<[1], [0], [0], [1], [0, 0, 1, 1], [], []>} : vector<13x4xbf16>, vector<4x128xbf16>, vector<13x128xf32> -> vector<13x128xf32>
    %1158 = arith.addf %1152, %1157 : vector<13x128xf32>
    %1159 = vector.extract_strided_slice %1140 {offsets = [3, 0], sizes = [13, 4], strides = [1, 1]} : vector<16x4xf32> to vector<13x4xf32>
    %1160 = arith.truncf %1159 : vector<13x4xf32> to vector<13x4xbf16>
    %1161 = vector.extract_strided_slice %0 {offsets = [7, 0, 0], sizes = [1, 4, 128], strides = [1, 1, 1]} : vector<16x4x128xbf16> to vector<1x4x128xbf16>
    %1162 = vector.shape_cast %1161 : vector<1x4x128xbf16> to vector<4x128xbf16>
    %cst_373 = arith.constant dense<0.000000e+00> : vector<13x128xf32>
    %1163 = tpu.matmul %1160, %1162, %cst_373 {dimension_numbers = #tpu.dot_dimension_numbers<[1], [0], [0], [1], [0, 0, 1, 1], [], []>} : vector<13x4xbf16>, vector<4x128xbf16>, vector<13x128xf32> -> vector<13x128xf32>
    %1164 = arith.addf %1158, %1163 : vector<13x128xf32>
    %c2_i32_374 = arith.constant 2 : i32
    %1165 = arith.addi %1103, %c2_i32_374 : i32
    %c0_375 = arith.constant 0 : index
    %1166 = arith.index_cast %1165 : i32 to index
    %c0_376 = arith.constant 0 : index
    %c0_377 = arith.constant 0 : index
    %1167 = vector.load %arg2[%c0_375, %1166, %c0_376, %c0_377] : memref<1x16x16x4xf32, #tpu.memory_space<vmem>>, vector<1x1x16x4xf32>
    %1168 = vector.shape_cast %1167 : vector<1x1x16x4xf32> to vector<16x4xf32>
    %1169 = vector.extract_strided_slice %1168 {offsets = [0, 0], sizes = [13, 4], strides = [1, 1]} : vector<16x4xf32> to vector<13x4xf32>
    %1170 = arith.truncf %1169 : vector<13x4xf32> to vector<13x4xbf16>
    %1171 = vector.extract_strided_slice %0 {offsets = [8, 0, 0], sizes = [1, 4, 128], strides = [1, 1, 1]} : vector<16x4x128xbf16> to vector<1x4x128xbf16>
    %1172 = vector.shape_cast %1171 : vector<1x4x128xbf16> to vector<4x128xbf16>
    %cst_378 = arith.constant dense<0.000000e+00> : vector<13x128xf32>
    %1173 = tpu.matmul %1170, %1172, %cst_378 {dimension_numbers = #tpu.dot_dimension_numbers<[1], [0], [0], [1], [0, 0, 1, 1], [], []>} : vector<13x4xbf16>, vector<4x128xbf16>, vector<13x128xf32> -> vector<13x128xf32>
    %1174 = arith.addf %1164, %1173 : vector<13x128xf32>
    %1175 = vector.extract_strided_slice %1168 {offsets = [1, 0], sizes = [13, 4], strides = [1, 1]} : vector<16x4xf32> to vector<13x4xf32>
    %1176 = arith.truncf %1175 : vector<13x4xf32> to vector<13x4xbf16>
    %1177 = vector.extract_strided_slice %0 {offsets = [9, 0, 0], sizes = [1, 4, 128], strides = [1, 1, 1]} : vector<16x4x128xbf16> to vector<1x4x128xbf16>
    %1178 = vector.shape_cast %1177 : vector<1x4x128xbf16> to vector<4x128xbf16>
    %cst_379 = arith.constant dense<0.000000e+00> : vector<13x128xf32>
    %1179 = tpu.matmul %1176, %1178, %cst_379 {dimension_numbers = #tpu.dot_dimension_numbers<[1], [0], [0], [1], [0, 0, 1, 1], [], []>} : vector<13x4xbf16>, vector<4x128xbf16>, vector<13x128xf32> -> vector<13x128xf32>
    %1180 = arith.addf %1174, %1179 : vector<13x128xf32>
    %1181 = vector.extract_strided_slice %1168 {offsets = [2, 0], sizes = [13, 4], strides = [1, 1]} : vector<16x4xf32> to vector<13x4xf32>
    %1182 = arith.truncf %1181 : vector<13x4xf32> to vector<13x4xbf16>
    %1183 = vector.extract_strided_slice %0 {offsets = [10, 0, 0], sizes = [1, 4, 128], strides = [1, 1, 1]} : vector<16x4x128xbf16> to vector<1x4x128xbf16>
    %1184 = vector.shape_cast %1183 : vector<1x4x128xbf16> to vector<4x128xbf16>
    %cst_380 = arith.constant dense<0.000000e+00> : vector<13x128xf32>
    %1185 = tpu.matmul %1182, %1184, %cst_380 {dimension_numbers = #tpu.dot_dimension_numbers<[1], [0], [0], [1], [0, 0, 1, 1], [], []>} : vector<13x4xbf16>, vector<4x128xbf16>, vector<13x128xf32> -> vector<13x128xf32>
    %1186 = arith.addf %1180, %1185 : vector<13x128xf32>
    %1187 = vector.extract_strided_slice %1168 {offsets = [3, 0], sizes = [13, 4], strides = [1, 1]} : vector<16x4xf32> to vector<13x4xf32>
    %1188 = arith.truncf %1187 : vector<13x4xf32> to vector<13x4xbf16>
    %1189 = vector.extract_strided_slice %0 {offsets = [11, 0, 0], sizes = [1, 4, 128], strides = [1, 1, 1]} : vector<16x4x128xbf16> to vector<1x4x128xbf16>
    %1190 = vector.shape_cast %1189 : vector<1x4x128xbf16> to vector<4x128xbf16>
    %cst_381 = arith.constant dense<0.000000e+00> : vector<13x128xf32>
    %1191 = tpu.matmul %1188, %1190, %cst_381 {dimension_numbers = #tpu.dot_dimension_numbers<[1], [0], [0], [1], [0, 0, 1, 1], [], []>} : vector<13x4xbf16>, vector<4x128xbf16>, vector<13x128xf32> -> vector<13x128xf32>
    %1192 = arith.addf %1186, %1191 : vector<13x128xf32>
    %c3_i32_382 = arith.constant 3 : i32
    %1193 = arith.addi %1103, %c3_i32_382 : i32
    %c0_383 = arith.constant 0 : index
    %1194 = arith.index_cast %1193 : i32 to index
    %c0_384 = arith.constant 0 : index
    %c0_385 = arith.constant 0 : index
    %1195 = vector.load %arg2[%c0_383, %1194, %c0_384, %c0_385] : memref<1x16x16x4xf32, #tpu.memory_space<vmem>>, vector<1x1x16x4xf32>
    %1196 = vector.shape_cast %1195 : vector<1x1x16x4xf32> to vector<16x4xf32>
    %1197 = vector.extract_strided_slice %1196 {offsets = [0, 0], sizes = [13, 4], strides = [1, 1]} : vector<16x4xf32> to vector<13x4xf32>
    %1198 = arith.truncf %1197 : vector<13x4xf32> to vector<13x4xbf16>
    %1199 = vector.extract_strided_slice %0 {offsets = [12, 0, 0], sizes = [1, 4, 128], strides = [1, 1, 1]} : vector<16x4x128xbf16> to vector<1x4x128xbf16>
    %1200 = vector.shape_cast %1199 : vector<1x4x128xbf16> to vector<4x128xbf16>
    %cst_386 = arith.constant dense<0.000000e+00> : vector<13x128xf32>
    %1201 = tpu.matmul %1198, %1200, %cst_386 {dimension_numbers = #tpu.dot_dimension_numbers<[1], [0], [0], [1], [0, 0, 1, 1], [], []>} : vector<13x4xbf16>, vector<4x128xbf16>, vector<13x128xf32> -> vector<13x128xf32>
    %1202 = arith.addf %1192, %1201 : vector<13x128xf32>
    %1203 = vector.extract_strided_slice %1196 {offsets = [1, 0], sizes = [13, 4], strides = [1, 1]} : vector<16x4xf32> to vector<13x4xf32>
    %1204 = arith.truncf %1203 : vector<13x4xf32> to vector<13x4xbf16>
    %1205 = vector.extract_strided_slice %0 {offsets = [13, 0, 0], sizes = [1, 4, 128], strides = [1, 1, 1]} : vector<16x4x128xbf16> to vector<1x4x128xbf16>
    %1206 = vector.shape_cast %1205 : vector<1x4x128xbf16> to vector<4x128xbf16>
    %cst_387 = arith.constant dense<0.000000e+00> : vector<13x128xf32>
    %1207 = tpu.matmul %1204, %1206, %cst_387 {dimension_numbers = #tpu.dot_dimension_numbers<[1], [0], [0], [1], [0, 0, 1, 1], [], []>} : vector<13x4xbf16>, vector<4x128xbf16>, vector<13x128xf32> -> vector<13x128xf32>
    %1208 = arith.addf %1202, %1207 : vector<13x128xf32>
    %1209 = vector.extract_strided_slice %1196 {offsets = [2, 0], sizes = [13, 4], strides = [1, 1]} : vector<16x4xf32> to vector<13x4xf32>
    %1210 = arith.truncf %1209 : vector<13x4xf32> to vector<13x4xbf16>
    %1211 = vector.extract_strided_slice %0 {offsets = [14, 0, 0], sizes = [1, 4, 128], strides = [1, 1, 1]} : vector<16x4x128xbf16> to vector<1x4x128xbf16>
    %1212 = vector.shape_cast %1211 : vector<1x4x128xbf16> to vector<4x128xbf16>
    %cst_388 = arith.constant dense<0.000000e+00> : vector<13x128xf32>
    %1213 = tpu.matmul %1210, %1212, %cst_388 {dimension_numbers = #tpu.dot_dimension_numbers<[1], [0], [0], [1], [0, 0, 1, 1], [], []>} : vector<13x4xbf16>, vector<4x128xbf16>, vector<13x128xf32> -> vector<13x128xf32>
    %1214 = arith.addf %1208, %1213 : vector<13x128xf32>
    %1215 = vector.extract_strided_slice %1196 {offsets = [3, 0], sizes = [13, 4], strides = [1, 1]} : vector<16x4xf32> to vector<13x4xf32>
    %1216 = arith.truncf %1215 : vector<13x4xf32> to vector<13x4xbf16>
    %1217 = vector.extract_strided_slice %0 {offsets = [15, 0, 0], sizes = [1, 4, 128], strides = [1, 1, 1]} : vector<16x4x128xbf16> to vector<1x4x128xbf16>
    %1218 = vector.shape_cast %1217 : vector<1x4x128xbf16> to vector<4x128xbf16>
    %cst_389 = arith.constant dense<0.000000e+00> : vector<13x128xf32>
    %1219 = tpu.matmul %1216, %1218, %cst_389 {dimension_numbers = #tpu.dot_dimension_numbers<[1], [0], [0], [1], [0, 0, 1, 1], [], []>} : vector<13x4xbf16>, vector<4x128xbf16>, vector<13x128xf32> -> vector<13x128xf32>
    %1220 = arith.addf %1214, %1219 : vector<13x128xf32>
    %cst_390 = arith.constant 2.500000e-01 : f32
    %1221 = vector.broadcast %cst_390 : f32 to vector<13x128xf32>
    %1222 = arith.mulf %1221, %1220 : vector<13x128xf32>
    %1223 = arith.addf %1107, %1222 : vector<13x128xf32>
    %cst_391 = arith.constant 0.000000e+00 : f32
    %1224 = vector.broadcast %cst_391 : f32 to vector<13x128xf32>
    %c0_i32_392 = arith.constant 0 : i32
    %1225 = arith.addi %1100, %c0_i32_392 : i32
    %c0_393 = arith.constant 0 : index
    %1226 = arith.index_cast %1225 : i32 to index
    %c0_394 = arith.constant 0 : index
    %c0_395 = arith.constant 0 : index
    %1227 = vector.load %arg2[%c0_393, %1226, %c0_394, %c0_395] : memref<1x16x16x4xf32, #tpu.memory_space<vmem>>, vector<1x1x16x4xf32>
    %1228 = vector.shape_cast %1227 : vector<1x1x16x4xf32> to vector<16x4xf32>
    %1229 = vector.extract_strided_slice %1228 {offsets = [0, 0], sizes = [13, 4], strides = [1, 1]} : vector<16x4xf32> to vector<13x4xf32>
    %1230 = arith.truncf %1229 : vector<13x4xf32> to vector<13x4xbf16>
    %1231 = vector.extract_strided_slice %0 {offsets = [0, 0, 0], sizes = [1, 4, 128], strides = [1, 1, 1]} : vector<16x4x128xbf16> to vector<1x4x128xbf16>
    %1232 = vector.shape_cast %1231 : vector<1x4x128xbf16> to vector<4x128xbf16>
    %cst_396 = arith.constant dense<0.000000e+00> : vector<13x128xf32>
    %1233 = tpu.matmul %1230, %1232, %cst_396 {dimension_numbers = #tpu.dot_dimension_numbers<[1], [0], [0], [1], [0, 0, 1, 1], [], []>} : vector<13x4xbf16>, vector<4x128xbf16>, vector<13x128xf32> -> vector<13x128xf32>
    %1234 = arith.addf %1224, %1233 : vector<13x128xf32>
    %1235 = vector.extract_strided_slice %1228 {offsets = [1, 0], sizes = [13, 4], strides = [1, 1]} : vector<16x4xf32> to vector<13x4xf32>
    %1236 = arith.truncf %1235 : vector<13x4xf32> to vector<13x4xbf16>
    %1237 = vector.extract_strided_slice %0 {offsets = [1, 0, 0], sizes = [1, 4, 128], strides = [1, 1, 1]} : vector<16x4x128xbf16> to vector<1x4x128xbf16>
    %1238 = vector.shape_cast %1237 : vector<1x4x128xbf16> to vector<4x128xbf16>
    %cst_397 = arith.constant dense<0.000000e+00> : vector<13x128xf32>
    %1239 = tpu.matmul %1236, %1238, %cst_397 {dimension_numbers = #tpu.dot_dimension_numbers<[1], [0], [0], [1], [0, 0, 1, 1], [], []>} : vector<13x4xbf16>, vector<4x128xbf16>, vector<13x128xf32> -> vector<13x128xf32>
    %1240 = arith.addf %1234, %1239 : vector<13x128xf32>
    %1241 = vector.extract_strided_slice %1228 {offsets = [2, 0], sizes = [13, 4], strides = [1, 1]} : vector<16x4xf32> to vector<13x4xf32>
    %1242 = arith.truncf %1241 : vector<13x4xf32> to vector<13x4xbf16>
    %1243 = vector.extract_strided_slice %0 {offsets = [2, 0, 0], sizes = [1, 4, 128], strides = [1, 1, 1]} : vector<16x4x128xbf16> to vector<1x4x128xbf16>
    %1244 = vector.shape_cast %1243 : vector<1x4x128xbf16> to vector<4x128xbf16>
    %cst_398 = arith.constant dense<0.000000e+00> : vector<13x128xf32>
    %1245 = tpu.matmul %1242, %1244, %cst_398 {dimension_numbers = #tpu.dot_dimension_numbers<[1], [0], [0], [1], [0, 0, 1, 1], [], []>} : vector<13x4xbf16>, vector<4x128xbf16>, vector<13x128xf32> -> vector<13x128xf32>
    %1246 = arith.addf %1240, %1245 : vector<13x128xf32>
    %1247 = vector.extract_strided_slice %1228 {offsets = [3, 0], sizes = [13, 4], strides = [1, 1]} : vector<16x4xf32> to vector<13x4xf32>
    %1248 = arith.truncf %1247 : vector<13x4xf32> to vector<13x4xbf16>
    %1249 = vector.extract_strided_slice %0 {offsets = [3, 0, 0], sizes = [1, 4, 128], strides = [1, 1, 1]} : vector<16x4x128xbf16> to vector<1x4x128xbf16>
    %1250 = vector.shape_cast %1249 : vector<1x4x128xbf16> to vector<4x128xbf16>
    %cst_399 = arith.constant dense<0.000000e+00> : vector<13x128xf32>
    %1251 = tpu.matmul %1248, %1250, %cst_399 {dimension_numbers = #tpu.dot_dimension_numbers<[1], [0], [0], [1], [0, 0, 1, 1], [], []>} : vector<13x4xbf16>, vector<4x128xbf16>, vector<13x128xf32> -> vector<13x128xf32>
    %1252 = arith.addf %1246, %1251 : vector<13x128xf32>
    %c1_i32_400 = arith.constant 1 : i32
    %1253 = arith.addi %1100, %c1_i32_400 : i32
    %c0_401 = arith.constant 0 : index
    %1254 = arith.index_cast %1253 : i32 to index
    %c0_402 = arith.constant 0 : index
    %c0_403 = arith.constant 0 : index
    %1255 = vector.load %arg2[%c0_401, %1254, %c0_402, %c0_403] : memref<1x16x16x4xf32, #tpu.memory_space<vmem>>, vector<1x1x16x4xf32>
    %1256 = vector.shape_cast %1255 : vector<1x1x16x4xf32> to vector<16x4xf32>
    %1257 = vector.extract_strided_slice %1256 {offsets = [0, 0], sizes = [13, 4], strides = [1, 1]} : vector<16x4xf32> to vector<13x4xf32>
    %1258 = arith.truncf %1257 : vector<13x4xf32> to vector<13x4xbf16>
    %1259 = vector.extract_strided_slice %0 {offsets = [4, 0, 0], sizes = [1, 4, 128], strides = [1, 1, 1]} : vector<16x4x128xbf16> to vector<1x4x128xbf16>
    %1260 = vector.shape_cast %1259 : vector<1x4x128xbf16> to vector<4x128xbf16>
    %cst_404 = arith.constant dense<0.000000e+00> : vector<13x128xf32>
    %1261 = tpu.matmul %1258, %1260, %cst_404 {dimension_numbers = #tpu.dot_dimension_numbers<[1], [0], [0], [1], [0, 0, 1, 1], [], []>} : vector<13x4xbf16>, vector<4x128xbf16>, vector<13x128xf32> -> vector<13x128xf32>
    %1262 = arith.addf %1252, %1261 : vector<13x128xf32>
    %1263 = vector.extract_strided_slice %1256 {offsets = [1, 0], sizes = [13, 4], strides = [1, 1]} : vector<16x4xf32> to vector<13x4xf32>
    %1264 = arith.truncf %1263 : vector<13x4xf32> to vector<13x4xbf16>
    %1265 = vector.extract_strided_slice %0 {offsets = [5, 0, 0], sizes = [1, 4, 128], strides = [1, 1, 1]} : vector<16x4x128xbf16> to vector<1x4x128xbf16>
    %1266 = vector.shape_cast %1265 : vector<1x4x128xbf16> to vector<4x128xbf16>
    %cst_405 = arith.constant dense<0.000000e+00> : vector<13x128xf32>
    %1267 = tpu.matmul %1264, %1266, %cst_405 {dimension_numbers = #tpu.dot_dimension_numbers<[1], [0], [0], [1], [0, 0, 1, 1], [], []>} : vector<13x4xbf16>, vector<4x128xbf16>, vector<13x128xf32> -> vector<13x128xf32>
    %1268 = arith.addf %1262, %1267 : vector<13x128xf32>
    %1269 = vector.extract_strided_slice %1256 {offsets = [2, 0], sizes = [13, 4], strides = [1, 1]} : vector<16x4xf32> to vector<13x4xf32>
    %1270 = arith.truncf %1269 : vector<13x4xf32> to vector<13x4xbf16>
    %1271 = vector.extract_strided_slice %0 {offsets = [6, 0, 0], sizes = [1, 4, 128], strides = [1, 1, 1]} : vector<16x4x128xbf16> to vector<1x4x128xbf16>
    %1272 = vector.shape_cast %1271 : vector<1x4x128xbf16> to vector<4x128xbf16>
    %cst_406 = arith.constant dense<0.000000e+00> : vector<13x128xf32>
    %1273 = tpu.matmul %1270, %1272, %cst_406 {dimension_numbers = #tpu.dot_dimension_numbers<[1], [0], [0], [1], [0, 0, 1, 1], [], []>} : vector<13x4xbf16>, vector<4x128xbf16>, vector<13x128xf32> -> vector<13x128xf32>
    %1274 = arith.addf %1268, %1273 : vector<13x128xf32>
    %1275 = vector.extract_strided_slice %1256 {offsets = [3, 0], sizes = [13, 4], strides = [1, 1]} : vector<16x4xf32> to vector<13x4xf32>
    %1276 = arith.truncf %1275 : vector<13x4xf32> to vector<13x4xbf16>
    %1277 = vector.extract_strided_slice %0 {offsets = [7, 0, 0], sizes = [1, 4, 128], strides = [1, 1, 1]} : vector<16x4x128xbf16> to vector<1x4x128xbf16>
    %1278 = vector.shape_cast %1277 : vector<1x4x128xbf16> to vector<4x128xbf16>
    %cst_407 = arith.constant dense<0.000000e+00> : vector<13x128xf32>
    %1279 = tpu.matmul %1276, %1278, %cst_407 {dimension_numbers = #tpu.dot_dimension_numbers<[1], [0], [0], [1], [0, 0, 1, 1], [], []>} : vector<13x4xbf16>, vector<4x128xbf16>, vector<13x128xf32> -> vector<13x128xf32>
    %1280 = arith.addf %1274, %1279 : vector<13x128xf32>
    %c2_i32_408 = arith.constant 2 : i32
    %1281 = arith.addi %1100, %c2_i32_408 : i32
    %c0_409 = arith.constant 0 : index
    %1282 = arith.index_cast %1281 : i32 to index
    %c0_410 = arith.constant 0 : index
    %c0_411 = arith.constant 0 : index
    %1283 = vector.load %arg2[%c0_409, %1282, %c0_410, %c0_411] : memref<1x16x16x4xf32, #tpu.memory_space<vmem>>, vector<1x1x16x4xf32>
    %1284 = vector.shape_cast %1283 : vector<1x1x16x4xf32> to vector<16x4xf32>
    %1285 = vector.extract_strided_slice %1284 {offsets = [0, 0], sizes = [13, 4], strides = [1, 1]} : vector<16x4xf32> to vector<13x4xf32>
    %1286 = arith.truncf %1285 : vector<13x4xf32> to vector<13x4xbf16>
    %1287 = vector.extract_strided_slice %0 {offsets = [8, 0, 0], sizes = [1, 4, 128], strides = [1, 1, 1]} : vector<16x4x128xbf16> to vector<1x4x128xbf16>
    %1288 = vector.shape_cast %1287 : vector<1x4x128xbf16> to vector<4x128xbf16>
    %cst_412 = arith.constant dense<0.000000e+00> : vector<13x128xf32>
    %1289 = tpu.matmul %1286, %1288, %cst_412 {dimension_numbers = #tpu.dot_dimension_numbers<[1], [0], [0], [1], [0, 0, 1, 1], [], []>} : vector<13x4xbf16>, vector<4x128xbf16>, vector<13x128xf32> -> vector<13x128xf32>
    %1290 = arith.addf %1280, %1289 : vector<13x128xf32>
    %1291 = vector.extract_strided_slice %1284 {offsets = [1, 0], sizes = [13, 4], strides = [1, 1]} : vector<16x4xf32> to vector<13x4xf32>
    %1292 = arith.truncf %1291 : vector<13x4xf32> to vector<13x4xbf16>
    %1293 = vector.extract_strided_slice %0 {offsets = [9, 0, 0], sizes = [1, 4, 128], strides = [1, 1, 1]} : vector<16x4x128xbf16> to vector<1x4x128xbf16>
    %1294 = vector.shape_cast %1293 : vector<1x4x128xbf16> to vector<4x128xbf16>
    %cst_413 = arith.constant dense<0.000000e+00> : vector<13x128xf32>
    %1295 = tpu.matmul %1292, %1294, %cst_413 {dimension_numbers = #tpu.dot_dimension_numbers<[1], [0], [0], [1], [0, 0, 1, 1], [], []>} : vector<13x4xbf16>, vector<4x128xbf16>, vector<13x128xf32> -> vector<13x128xf32>
    %1296 = arith.addf %1290, %1295 : vector<13x128xf32>
    %1297 = vector.extract_strided_slice %1284 {offsets = [2, 0], sizes = [13, 4], strides = [1, 1]} : vector<16x4xf32> to vector<13x4xf32>
    %1298 = arith.truncf %1297 : vector<13x4xf32> to vector<13x4xbf16>
    %1299 = vector.extract_strided_slice %0 {offsets = [10, 0, 0], sizes = [1, 4, 128], strides = [1, 1, 1]} : vector<16x4x128xbf16> to vector<1x4x128xbf16>
    %1300 = vector.shape_cast %1299 : vector<1x4x128xbf16> to vector<4x128xbf16>
    %cst_414 = arith.constant dense<0.000000e+00> : vector<13x128xf32>
    %1301 = tpu.matmul %1298, %1300, %cst_414 {dimension_numbers = #tpu.dot_dimension_numbers<[1], [0], [0], [1], [0, 0, 1, 1], [], []>} : vector<13x4xbf16>, vector<4x128xbf16>, vector<13x128xf32> -> vector<13x128xf32>
    %1302 = arith.addf %1296, %1301 : vector<13x128xf32>
    %1303 = vector.extract_strided_slice %1284 {offsets = [3, 0], sizes = [13, 4], strides = [1, 1]} : vector<16x4xf32> to vector<13x4xf32>
    %1304 = arith.truncf %1303 : vector<13x4xf32> to vector<13x4xbf16>
    %1305 = vector.extract_strided_slice %0 {offsets = [11, 0, 0], sizes = [1, 4, 128], strides = [1, 1, 1]} : vector<16x4x128xbf16> to vector<1x4x128xbf16>
    %1306 = vector.shape_cast %1305 : vector<1x4x128xbf16> to vector<4x128xbf16>
    %cst_415 = arith.constant dense<0.000000e+00> : vector<13x128xf32>
    %1307 = tpu.matmul %1304, %1306, %cst_415 {dimension_numbers = #tpu.dot_dimension_numbers<[1], [0], [0], [1], [0, 0, 1, 1], [], []>} : vector<13x4xbf16>, vector<4x128xbf16>, vector<13x128xf32> -> vector<13x128xf32>
    %1308 = arith.addf %1302, %1307 : vector<13x128xf32>
    %c3_i32_416 = arith.constant 3 : i32
    %1309 = arith.addi %1100, %c3_i32_416 : i32
    %c0_417 = arith.constant 0 : index
    %1310 = arith.index_cast %1309 : i32 to index
    %c0_418 = arith.constant 0 : index
    %c0_419 = arith.constant 0 : index
    %1311 = vector.load %arg2[%c0_417, %1310, %c0_418, %c0_419] : memref<1x16x16x4xf32, #tpu.memory_space<vmem>>, vector<1x1x16x4xf32>
    %1312 = vector.shape_cast %1311 : vector<1x1x16x4xf32> to vector<16x4xf32>
    %1313 = vector.extract_strided_slice %1312 {offsets = [0, 0], sizes = [13, 4], strides = [1, 1]} : vector<16x4xf32> to vector<13x4xf32>
    %1314 = arith.truncf %1313 : vector<13x4xf32> to vector<13x4xbf16>
    %1315 = vector.extract_strided_slice %0 {offsets = [12, 0, 0], sizes = [1, 4, 128], strides = [1, 1, 1]} : vector<16x4x128xbf16> to vector<1x4x128xbf16>
    %1316 = vector.shape_cast %1315 : vector<1x4x128xbf16> to vector<4x128xbf16>
    %cst_420 = arith.constant dense<0.000000e+00> : vector<13x128xf32>
    %1317 = tpu.matmul %1314, %1316, %cst_420 {dimension_numbers = #tpu.dot_dimension_numbers<[1], [0], [0], [1], [0, 0, 1, 1], [], []>} : vector<13x4xbf16>, vector<4x128xbf16>, vector<13x128xf32> -> vector<13x128xf32>
    %1318 = arith.addf %1308, %1317 : vector<13x128xf32>
    %1319 = vector.extract_strided_slice %1312 {offsets = [1, 0], sizes = [13, 4], strides = [1, 1]} : vector<16x4xf32> to vector<13x4xf32>
    %1320 = arith.truncf %1319 : vector<13x4xf32> to vector<13x4xbf16>
    %1321 = vector.extract_strided_slice %0 {offsets = [13, 0, 0], sizes = [1, 4, 128], strides = [1, 1, 1]} : vector<16x4x128xbf16> to vector<1x4x128xbf16>
    %1322 = vector.shape_cast %1321 : vector<1x4x128xbf16> to vector<4x128xbf16>
    %cst_421 = arith.constant dense<0.000000e+00> : vector<13x128xf32>
    %1323 = tpu.matmul %1320, %1322, %cst_421 {dimension_numbers = #tpu.dot_dimension_numbers<[1], [0], [0], [1], [0, 0, 1, 1], [], []>} : vector<13x4xbf16>, vector<4x128xbf16>, vector<13x128xf32> -> vector<13x128xf32>
    %1324 = arith.addf %1318, %1323 : vector<13x128xf32>
    %1325 = vector.extract_strided_slice %1312 {offsets = [2, 0], sizes = [13, 4], strides = [1, 1]} : vector<16x4xf32> to vector<13x4xf32>
    %1326 = arith.truncf %1325 : vector<13x4xf32> to vector<13x4xbf16>
    %1327 = vector.extract_strided_slice %0 {offsets = [14, 0, 0], sizes = [1, 4, 128], strides = [1, 1, 1]} : vector<16x4x128xbf16> to vector<1x4x128xbf16>
    %1328 = vector.shape_cast %1327 : vector<1x4x128xbf16> to vector<4x128xbf16>
    %cst_422 = arith.constant dense<0.000000e+00> : vector<13x128xf32>
    %1329 = tpu.matmul %1326, %1328, %cst_422 {dimension_numbers = #tpu.dot_dimension_numbers<[1], [0], [0], [1], [0, 0, 1, 1], [], []>} : vector<13x4xbf16>, vector<4x128xbf16>, vector<13x128xf32> -> vector<13x128xf32>
    %1330 = arith.addf %1324, %1329 : vector<13x128xf32>
    %1331 = vector.extract_strided_slice %1312 {offsets = [3, 0], sizes = [13, 4], strides = [1, 1]} : vector<16x4xf32> to vector<13x4xf32>
    %1332 = arith.truncf %1331 : vector<13x4xf32> to vector<13x4xbf16>
    %1333 = vector.extract_strided_slice %0 {offsets = [15, 0, 0], sizes = [1, 4, 128], strides = [1, 1, 1]} : vector<16x4x128xbf16> to vector<1x4x128xbf16>
    %1334 = vector.shape_cast %1333 : vector<1x4x128xbf16> to vector<4x128xbf16>
    %cst_423 = arith.constant dense<0.000000e+00> : vector<13x128xf32>
    %1335 = tpu.matmul %1332, %1334, %cst_423 {dimension_numbers = #tpu.dot_dimension_numbers<[1], [0], [0], [1], [0, 0, 1, 1], [], []>} : vector<13x4xbf16>, vector<4x128xbf16>, vector<13x128xf32> -> vector<13x128xf32>
    %1336 = arith.addf %1330, %1335 : vector<13x128xf32>
    %cst_424 = arith.constant 5.000000e-01 : f32
    %1337 = vector.broadcast %cst_424 : f32 to vector<13x128xf32>
    %1338 = arith.mulf %1337, %1336 : vector<13x128xf32>
    %1339 = arith.addf %1223, %1338 : vector<13x128xf32>
    %cst_425 = arith.constant 0.000000e+00 : f32
    %1340 = vector.broadcast %cst_425 : f32 to vector<13x128xf32>
    %c0_i32_426 = arith.constant 0 : i32
    %1341 = arith.addi %1106, %c0_i32_426 : i32
    %c0_427 = arith.constant 0 : index
    %1342 = arith.index_cast %1341 : i32 to index
    %c0_428 = arith.constant 0 : index
    %c0_429 = arith.constant 0 : index
    %1343 = vector.load %arg2[%c0_427, %1342, %c0_428, %c0_429] : memref<1x16x16x4xf32, #tpu.memory_space<vmem>>, vector<1x1x16x4xf32>
    %1344 = vector.shape_cast %1343 : vector<1x1x16x4xf32> to vector<16x4xf32>
    %1345 = vector.extract_strided_slice %1344 {offsets = [0, 0], sizes = [13, 4], strides = [1, 1]} : vector<16x4xf32> to vector<13x4xf32>
    %1346 = arith.truncf %1345 : vector<13x4xf32> to vector<13x4xbf16>
    %1347 = vector.extract_strided_slice %0 {offsets = [0, 0, 0], sizes = [1, 4, 128], strides = [1, 1, 1]} : vector<16x4x128xbf16> to vector<1x4x128xbf16>
    %1348 = vector.shape_cast %1347 : vector<1x4x128xbf16> to vector<4x128xbf16>
    %cst_430 = arith.constant dense<0.000000e+00> : vector<13x128xf32>
    %1349 = tpu.matmul %1346, %1348, %cst_430 {dimension_numbers = #tpu.dot_dimension_numbers<[1], [0], [0], [1], [0, 0, 1, 1], [], []>} : vector<13x4xbf16>, vector<4x128xbf16>, vector<13x128xf32> -> vector<13x128xf32>
    %1350 = arith.addf %1340, %1349 : vector<13x128xf32>
    %1351 = vector.extract_strided_slice %1344 {offsets = [1, 0], sizes = [13, 4], strides = [1, 1]} : vector<16x4xf32> to vector<13x4xf32>
    %1352 = arith.truncf %1351 : vector<13x4xf32> to vector<13x4xbf16>
    %1353 = vector.extract_strided_slice %0 {offsets = [1, 0, 0], sizes = [1, 4, 128], strides = [1, 1, 1]} : vector<16x4x128xbf16> to vector<1x4x128xbf16>
    %1354 = vector.shape_cast %1353 : vector<1x4x128xbf16> to vector<4x128xbf16>
    %cst_431 = arith.constant dense<0.000000e+00> : vector<13x128xf32>
    %1355 = tpu.matmul %1352, %1354, %cst_431 {dimension_numbers = #tpu.dot_dimension_numbers<[1], [0], [0], [1], [0, 0, 1, 1], [], []>} : vector<13x4xbf16>, vector<4x128xbf16>, vector<13x128xf32> -> vector<13x128xf32>
    %1356 = arith.addf %1350, %1355 : vector<13x128xf32>
    %1357 = vector.extract_strided_slice %1344 {offsets = [2, 0], sizes = [13, 4], strides = [1, 1]} : vector<16x4xf32> to vector<13x4xf32>
    %1358 = arith.truncf %1357 : vector<13x4xf32> to vector<13x4xbf16>
    %1359 = vector.extract_strided_slice %0 {offsets = [2, 0, 0], sizes = [1, 4, 128], strides = [1, 1, 1]} : vector<16x4x128xbf16> to vector<1x4x128xbf16>
    %1360 = vector.shape_cast %1359 : vector<1x4x128xbf16> to vector<4x128xbf16>
    %cst_432 = arith.constant dense<0.000000e+00> : vector<13x128xf32>
    %1361 = tpu.matmul %1358, %1360, %cst_432 {dimension_numbers = #tpu.dot_dimension_numbers<[1], [0], [0], [1], [0, 0, 1, 1], [], []>} : vector<13x4xbf16>, vector<4x128xbf16>, vector<13x128xf32> -> vector<13x128xf32>
    %1362 = arith.addf %1356, %1361 : vector<13x128xf32>
    %1363 = vector.extract_strided_slice %1344 {offsets = [3, 0], sizes = [13, 4], strides = [1, 1]} : vector<16x4xf32> to vector<13x4xf32>
    %1364 = arith.truncf %1363 : vector<13x4xf32> to vector<13x4xbf16>
    %1365 = vector.extract_strided_slice %0 {offsets = [3, 0, 0], sizes = [1, 4, 128], strides = [1, 1, 1]} : vector<16x4x128xbf16> to vector<1x4x128xbf16>
    %1366 = vector.shape_cast %1365 : vector<1x4x128xbf16> to vector<4x128xbf16>
    %cst_433 = arith.constant dense<0.000000e+00> : vector<13x128xf32>
    %1367 = tpu.matmul %1364, %1366, %cst_433 {dimension_numbers = #tpu.dot_dimension_numbers<[1], [0], [0], [1], [0, 0, 1, 1], [], []>} : vector<13x4xbf16>, vector<4x128xbf16>, vector<13x128xf32> -> vector<13x128xf32>
    %1368 = arith.addf %1362, %1367 : vector<13x128xf32>
    %c1_i32_434 = arith.constant 1 : i32
    %1369 = arith.addi %1106, %c1_i32_434 : i32
    %c0_435 = arith.constant 0 : index
    %1370 = arith.index_cast %1369 : i32 to index
    %c0_436 = arith.constant 0 : index
    %c0_437 = arith.constant 0 : index
    %1371 = vector.load %arg2[%c0_435, %1370, %c0_436, %c0_437] : memref<1x16x16x4xf32, #tpu.memory_space<vmem>>, vector<1x1x16x4xf32>
    %1372 = vector.shape_cast %1371 : vector<1x1x16x4xf32> to vector<16x4xf32>
    %1373 = vector.extract_strided_slice %1372 {offsets = [0, 0], sizes = [13, 4], strides = [1, 1]} : vector<16x4xf32> to vector<13x4xf32>
    %1374 = arith.truncf %1373 : vector<13x4xf32> to vector<13x4xbf16>
    %1375 = vector.extract_strided_slice %0 {offsets = [4, 0, 0], sizes = [1, 4, 128], strides = [1, 1, 1]} : vector<16x4x128xbf16> to vector<1x4x128xbf16>
    %1376 = vector.shape_cast %1375 : vector<1x4x128xbf16> to vector<4x128xbf16>
    %cst_438 = arith.constant dense<0.000000e+00> : vector<13x128xf32>
    %1377 = tpu.matmul %1374, %1376, %cst_438 {dimension_numbers = #tpu.dot_dimension_numbers<[1], [0], [0], [1], [0, 0, 1, 1], [], []>} : vector<13x4xbf16>, vector<4x128xbf16>, vector<13x128xf32> -> vector<13x128xf32>
    %1378 = arith.addf %1368, %1377 : vector<13x128xf32>
    %1379 = vector.extract_strided_slice %1372 {offsets = [1, 0], sizes = [13, 4], strides = [1, 1]} : vector<16x4xf32> to vector<13x4xf32>
    %1380 = arith.truncf %1379 : vector<13x4xf32> to vector<13x4xbf16>
    %1381 = vector.extract_strided_slice %0 {offsets = [5, 0, 0], sizes = [1, 4, 128], strides = [1, 1, 1]} : vector<16x4x128xbf16> to vector<1x4x128xbf16>
    %1382 = vector.shape_cast %1381 : vector<1x4x128xbf16> to vector<4x128xbf16>
    %cst_439 = arith.constant dense<0.000000e+00> : vector<13x128xf32>
    %1383 = tpu.matmul %1380, %1382, %cst_439 {dimension_numbers = #tpu.dot_dimension_numbers<[1], [0], [0], [1], [0, 0, 1, 1], [], []>} : vector<13x4xbf16>, vector<4x128xbf16>, vector<13x128xf32> -> vector<13x128xf32>
    %1384 = arith.addf %1378, %1383 : vector<13x128xf32>
    %1385 = vector.extract_strided_slice %1372 {offsets = [2, 0], sizes = [13, 4], strides = [1, 1]} : vector<16x4xf32> to vector<13x4xf32>
    %1386 = arith.truncf %1385 : vector<13x4xf32> to vector<13x4xbf16>
    %1387 = vector.extract_strided_slice %0 {offsets = [6, 0, 0], sizes = [1, 4, 128], strides = [1, 1, 1]} : vector<16x4x128xbf16> to vector<1x4x128xbf16>
    %1388 = vector.shape_cast %1387 : vector<1x4x128xbf16> to vector<4x128xbf16>
    %cst_440 = arith.constant dense<0.000000e+00> : vector<13x128xf32>
    %1389 = tpu.matmul %1386, %1388, %cst_440 {dimension_numbers = #tpu.dot_dimension_numbers<[1], [0], [0], [1], [0, 0, 1, 1], [], []>} : vector<13x4xbf16>, vector<4x128xbf16>, vector<13x128xf32> -> vector<13x128xf32>
    %1390 = arith.addf %1384, %1389 : vector<13x128xf32>
    %1391 = vector.extract_strided_slice %1372 {offsets = [3, 0], sizes = [13, 4], strides = [1, 1]} : vector<16x4xf32> to vector<13x4xf32>
    %1392 = arith.truncf %1391 : vector<13x4xf32> to vector<13x4xbf16>
    %1393 = vector.extract_strided_slice %0 {offsets = [7, 0, 0], sizes = [1, 4, 128], strides = [1, 1, 1]} : vector<16x4x128xbf16> to vector<1x4x128xbf16>
    %1394 = vector.shape_cast %1393 : vector<1x4x128xbf16> to vector<4x128xbf16>
    %cst_441 = arith.constant dense<0.000000e+00> : vector<13x128xf32>
    %1395 = tpu.matmul %1392, %1394, %cst_441 {dimension_numbers = #tpu.dot_dimension_numbers<[1], [0], [0], [1], [0, 0, 1, 1], [], []>} : vector<13x4xbf16>, vector<4x128xbf16>, vector<13x128xf32> -> vector<13x128xf32>
    %1396 = arith.addf %1390, %1395 : vector<13x128xf32>
    %c2_i32_442 = arith.constant 2 : i32
    %1397 = arith.addi %1106, %c2_i32_442 : i32
    %c0_443 = arith.constant 0 : index
    %1398 = arith.index_cast %1397 : i32 to index
    %c0_444 = arith.constant 0 : index
    %c0_445 = arith.constant 0 : index
    %1399 = vector.load %arg2[%c0_443, %1398, %c0_444, %c0_445] : memref<1x16x16x4xf32, #tpu.memory_space<vmem>>, vector<1x1x16x4xf32>
    %1400 = vector.shape_cast %1399 : vector<1x1x16x4xf32> to vector<16x4xf32>
    %1401 = vector.extract_strided_slice %1400 {offsets = [0, 0], sizes = [13, 4], strides = [1, 1]} : vector<16x4xf32> to vector<13x4xf32>
    %1402 = arith.truncf %1401 : vector<13x4xf32> to vector<13x4xbf16>
    %1403 = vector.extract_strided_slice %0 {offsets = [8, 0, 0], sizes = [1, 4, 128], strides = [1, 1, 1]} : vector<16x4x128xbf16> to vector<1x4x128xbf16>
    %1404 = vector.shape_cast %1403 : vector<1x4x128xbf16> to vector<4x128xbf16>
    %cst_446 = arith.constant dense<0.000000e+00> : vector<13x128xf32>
    %1405 = tpu.matmul %1402, %1404, %cst_446 {dimension_numbers = #tpu.dot_dimension_numbers<[1], [0], [0], [1], [0, 0, 1, 1], [], []>} : vector<13x4xbf16>, vector<4x128xbf16>, vector<13x128xf32> -> vector<13x128xf32>
    %1406 = arith.addf %1396, %1405 : vector<13x128xf32>
    %1407 = vector.extract_strided_slice %1400 {offsets = [1, 0], sizes = [13, 4], strides = [1, 1]} : vector<16x4xf32> to vector<13x4xf32>
    %1408 = arith.truncf %1407 : vector<13x4xf32> to vector<13x4xbf16>
    %1409 = vector.extract_strided_slice %0 {offsets = [9, 0, 0], sizes = [1, 4, 128], strides = [1, 1, 1]} : vector<16x4x128xbf16> to vector<1x4x128xbf16>
    %1410 = vector.shape_cast %1409 : vector<1x4x128xbf16> to vector<4x128xbf16>
    %cst_447 = arith.constant dense<0.000000e+00> : vector<13x128xf32>
    %1411 = tpu.matmul %1408, %1410, %cst_447 {dimension_numbers = #tpu.dot_dimension_numbers<[1], [0], [0], [1], [0, 0, 1, 1], [], []>} : vector<13x4xbf16>, vector<4x128xbf16>, vector<13x128xf32> -> vector<13x128xf32>
    %1412 = arith.addf %1406, %1411 : vector<13x128xf32>
    %1413 = vector.extract_strided_slice %1400 {offsets = [2, 0], sizes = [13, 4], strides = [1, 1]} : vector<16x4xf32> to vector<13x4xf32>
    %1414 = arith.truncf %1413 : vector<13x4xf32> to vector<13x4xbf16>
    %1415 = vector.extract_strided_slice %0 {offsets = [10, 0, 0], sizes = [1, 4, 128], strides = [1, 1, 1]} : vector<16x4x128xbf16> to vector<1x4x128xbf16>
    %1416 = vector.shape_cast %1415 : vector<1x4x128xbf16> to vector<4x128xbf16>
    %cst_448 = arith.constant dense<0.000000e+00> : vector<13x128xf32>
    %1417 = tpu.matmul %1414, %1416, %cst_448 {dimension_numbers = #tpu.dot_dimension_numbers<[1], [0], [0], [1], [0, 0, 1, 1], [], []>} : vector<13x4xbf16>, vector<4x128xbf16>, vector<13x128xf32> -> vector<13x128xf32>
    %1418 = arith.addf %1412, %1417 : vector<13x128xf32>
    %1419 = vector.extract_strided_slice %1400 {offsets = [3, 0], sizes = [13, 4], strides = [1, 1]} : vector<16x4xf32> to vector<13x4xf32>
    %1420 = arith.truncf %1419 : vector<13x4xf32> to vector<13x4xbf16>
    %1421 = vector.extract_strided_slice %0 {offsets = [11, 0, 0], sizes = [1, 4, 128], strides = [1, 1, 1]} : vector<16x4x128xbf16> to vector<1x4x128xbf16>
    %1422 = vector.shape_cast %1421 : vector<1x4x128xbf16> to vector<4x128xbf16>
    %cst_449 = arith.constant dense<0.000000e+00> : vector<13x128xf32>
    %1423 = tpu.matmul %1420, %1422, %cst_449 {dimension_numbers = #tpu.dot_dimension_numbers<[1], [0], [0], [1], [0, 0, 1, 1], [], []>} : vector<13x4xbf16>, vector<4x128xbf16>, vector<13x128xf32> -> vector<13x128xf32>
    %1424 = arith.addf %1418, %1423 : vector<13x128xf32>
    %c3_i32_450 = arith.constant 3 : i32
    %1425 = arith.addi %1106, %c3_i32_450 : i32
    %c0_451 = arith.constant 0 : index
    %1426 = arith.index_cast %1425 : i32 to index
    %c0_452 = arith.constant 0 : index
    %c0_453 = arith.constant 0 : index
    %1427 = vector.load %arg2[%c0_451, %1426, %c0_452, %c0_453] : memref<1x16x16x4xf32, #tpu.memory_space<vmem>>, vector<1x1x16x4xf32>
    %1428 = vector.shape_cast %1427 : vector<1x1x16x4xf32> to vector<16x4xf32>
    %1429 = vector.extract_strided_slice %1428 {offsets = [0, 0], sizes = [13, 4], strides = [1, 1]} : vector<16x4xf32> to vector<13x4xf32>
    %1430 = arith.truncf %1429 : vector<13x4xf32> to vector<13x4xbf16>
    %1431 = vector.extract_strided_slice %0 {offsets = [12, 0, 0], sizes = [1, 4, 128], strides = [1, 1, 1]} : vector<16x4x128xbf16> to vector<1x4x128xbf16>
    %1432 = vector.shape_cast %1431 : vector<1x4x128xbf16> to vector<4x128xbf16>
    %cst_454 = arith.constant dense<0.000000e+00> : vector<13x128xf32>
    %1433 = tpu.matmul %1430, %1432, %cst_454 {dimension_numbers = #tpu.dot_dimension_numbers<[1], [0], [0], [1], [0, 0, 1, 1], [], []>} : vector<13x4xbf16>, vector<4x128xbf16>, vector<13x128xf32> -> vector<13x128xf32>
    %1434 = arith.addf %1424, %1433 : vector<13x128xf32>
    %1435 = vector.extract_strided_slice %1428 {offsets = [1, 0], sizes = [13, 4], strides = [1, 1]} : vector<16x4xf32> to vector<13x4xf32>
    %1436 = arith.truncf %1435 : vector<13x4xf32> to vector<13x4xbf16>
    %1437 = vector.extract_strided_slice %0 {offsets = [13, 0, 0], sizes = [1, 4, 128], strides = [1, 1, 1]} : vector<16x4x128xbf16> to vector<1x4x128xbf16>
    %1438 = vector.shape_cast %1437 : vector<1x4x128xbf16> to vector<4x128xbf16>
    %cst_455 = arith.constant dense<0.000000e+00> : vector<13x128xf32>
    %1439 = tpu.matmul %1436, %1438, %cst_455 {dimension_numbers = #tpu.dot_dimension_numbers<[1], [0], [0], [1], [0, 0, 1, 1], [], []>} : vector<13x4xbf16>, vector<4x128xbf16>, vector<13x128xf32> -> vector<13x128xf32>
    %1440 = arith.addf %1434, %1439 : vector<13x128xf32>
    %1441 = vector.extract_strided_slice %1428 {offsets = [2, 0], sizes = [13, 4], strides = [1, 1]} : vector<16x4xf32> to vector<13x4xf32>
    %1442 = arith.truncf %1441 : vector<13x4xf32> to vector<13x4xbf16>
    %1443 = vector.extract_strided_slice %0 {offsets = [14, 0, 0], sizes = [1, 4, 128], strides = [1, 1, 1]} : vector<16x4x128xbf16> to vector<1x4x128xbf16>
    %1444 = vector.shape_cast %1443 : vector<1x4x128xbf16> to vector<4x128xbf16>
    %cst_456 = arith.constant dense<0.000000e+00> : vector<13x128xf32>
    %1445 = tpu.matmul %1442, %1444, %cst_456 {dimension_numbers = #tpu.dot_dimension_numbers<[1], [0], [0], [1], [0, 0, 1, 1], [], []>} : vector<13x4xbf16>, vector<4x128xbf16>, vector<13x128xf32> -> vector<13x128xf32>
    %1446 = arith.addf %1440, %1445 : vector<13x128xf32>
    %1447 = vector.extract_strided_slice %1428 {offsets = [3, 0], sizes = [13, 4], strides = [1, 1]} : vector<16x4xf32> to vector<13x4xf32>
    %1448 = arith.truncf %1447 : vector<13x4xf32> to vector<13x4xbf16>
    %1449 = vector.extract_strided_slice %0 {offsets = [15, 0, 0], sizes = [1, 4, 128], strides = [1, 1, 1]} : vector<16x4x128xbf16> to vector<1x4x128xbf16>
    %1450 = vector.shape_cast %1449 : vector<1x4x128xbf16> to vector<4x128xbf16>
    %cst_457 = arith.constant dense<0.000000e+00> : vector<13x128xf32>
    %1451 = tpu.matmul %1448, %1450, %cst_457 {dimension_numbers = #tpu.dot_dimension_numbers<[1], [0], [0], [1], [0, 0, 1, 1], [], []>} : vector<13x4xbf16>, vector<4x128xbf16>, vector<13x128xf32> -> vector<13x128xf32>
    %1452 = arith.addf %1446, %1451 : vector<13x128xf32>
    %cst_458 = arith.constant 2.500000e-01 : f32
    %1453 = vector.broadcast %cst_458 : f32 to vector<13x128xf32>
    %1454 = arith.mulf %1453, %1452 : vector<13x128xf32>
    %1455 = arith.addf %1339, %1454 : vector<13x128xf32>
    %1456 = arith.truncf %1455 : vector<13x128xf32> to vector<13x128xbf16>
    %cst_459 = arith.constant dense<0.000000e+00> : vector<4x128xf32>
    %1457 = tpu.matmul %1, %1456, %cst_459 {dimension_numbers = #tpu.dot_dimension_numbers<[1], [0], [0], [1], [0, 0, 1, 1], [], []>} : vector<4x13xbf16>, vector<13x128xbf16>, vector<4x128xf32> -> vector<4x128xf32>
    %1458 = vector.broadcast %2 : vector<1x128xf32> to vector<4x128xf32>
    %1459 = arith.addf %1457, %1458 : vector<4x128xf32>
    %c0_460 = arith.constant 0 : index
    %c3 = arith.constant 3 : index
    %c0_461 = arith.constant 0 : index
    %c0_462 = arith.constant 0 : index
    %1460 = vector.load %arg6[%c0_460, %c3, %c0_461, %c0_462] : memref<1x4x4x128xf32, #tpu.memory_space<vmem>>, vector<1x1x4x128xf32>
    %1461 = vector.shape_cast %1460 : vector<1x1x4x128xf32> to vector<4x128xf32>
    %1462 = vector.shape_cast %1459 : vector<4x128xf32> to vector<1x1x4x128xf32>
    tpu.vector_store %arg6[%c0_460, %c3, %c0_461, %c0_462], %1462 {strides = array<i32>} : memref<1x4x4x128xf32, #tpu.memory_space<vmem>>, vector<1x1x4x128xf32>,
    return
  }
  func.func @transform_0(%arg0: i32, %arg1: i32) -> (i32, i32, i32, i32) {
    %c0_i32 = arith.constant 0 : i32
    %c0_i32_0 = arith.constant 0 : i32
    %c0_i32_1 = arith.constant 0 : i32
    %c0_i32_2 = arith.constant 0 : i32
    return %arg0, %c0_i32, %c0_i32_0, %c0_i32_1 : i32, i32, i32, i32
  }
  func.func @transform_1(%arg0: i32, %arg1: i32) -> (i32, i32, i32) {
    %c0_i32 = arith.constant 0 : i32
    %c0_i32_0 = arith.constant 0 : i32
    %c0_i32_1 = arith.constant 0 : i32
    %c0_i32_2 = arith.constant 0 : i32
    return %c0_i32, %c0_i32_0, %c0_i32_1 : i32, i32, i32
  }
  func.func @transform_2(%arg0: i32, %arg1: i32) -> (i32, i32) {
    %c0_i32 = arith.constant 0 : i32
    %c0_i32_0 = arith.constant 0 : i32
    %c0_i32_1 = arith.constant 0 : i32
    return %c0_i32, %c0_i32_0 : i32, i32
  }
  func.func @transform_3(%arg0: i32, %arg1: i32) -> (i32, i32) {
    %c0_i32 = arith.constant 0 : i32
    %c0_i32_0 = arith.constant 0 : i32
    %c0_i32_1 = arith.constant 0 : i32
    return %c0_i32, %c0_i32_0 : i32, i32
  }
  func.func @transform_4(%arg0: i32, %arg1: i32) -> (i32, i32, i32, i32) {
    %c0_i32 = arith.constant 0 : i32
    %c0_i32_0 = arith.constant 0 : i32
    %c0_i32_1 = arith.constant 0 : i32
    return %arg0, %arg1, %c0_i32, %c0_i32_0 : i32, i32, i32, i32
  }
}

</mosaic_0001>

<llo_original>
// kernel: patch_embed_forward.1
$region0: #{patch_embed_forward.1}
  #allocation0 [shape = 'u32[]', space=smem, size = 0x4, offset = 0x4, fixed_abs, tag = 'smem constant byte address 0x4 - core index']
  #allocation1 [shape = 'u32[72,128]{1,0:T(1,128)}', space=vmem, size = 0x9000, scoped, tag = 'internal scratch']
  %s0 = inlined_call_operand.vmem [shape: f32[2,16,16,4], index: 0, kind: input, shape index: {}]
  %s1 = inlined_call_operand.vmem [shape: bf16[16,4,128], index: 1, kind: input, shape index: {}]
  %s2 = inlined_call_operand.vmem [shape: f32[1,128], index: 2, kind: input, shape index: {}]
  %s3 = inlined_call_operand.vmem [shape: bf16[4,13], index: 3, kind: input, shape index: {}]
  %s4 = inlined_call_operand.hbm [shape: f32[2,4,4,128], index: 4, kind: output, shape index: {}]
  %s5 = sld [smem:[#allocation0]]
  $region49: #{patch_embed_forward.1} parent=0
    _
  %s7 = ssub.s32 1, %s5
  %s8 = scalar_select 0, %s7, %s5
  $region1: #{patch_embed_forward.1} parent=0
    #allocation2 [shape = 'u8[16384]{0}', space=vmem, size = 0x4000, scoped, tag = 'output window, operand 0']
    #allocation3 [shape = 's32[2]{0}', space=sflag, size = 0x8, scoped, tag = 'scoped memory for patch_embed_forward.1']
    %9 = vsyncpa [#allocation3], 0
    %s10 = scalar_lea.sflag [#allocation3], 1
    %11 = vsyncpa %s10, 0
    loop: start=0, step=1, limit=4
    $region2: #{patch_embed_forward.1} parent=1 // loop_pre_header
      _
    $region3: #{patch_embed_forward.1} parent=1 // loop_header
      %s13 = sphi 0, %s17
      %p14 = scmp.ge.s32.totalorder %s13, 4
      %s20 = sphi 0, %s32
      %s21 = sphi 0, %s28
      %s22 = sphi 0, %s20
      %s23 = sphi 0, %s21
      %s24 = sphi 0, %s22
      %s25 = sphi 0, %s23
      %s35 = sphi 0, %s37
      %s38 = sphi 0, %s35
      %s39 = sphi 0, %s38
      %s55 = sphi 0, %s39
      %s59 = sphi 0, %s59
      %s61 = sphi 0, %s59
      %s62 = sphi 0, %s61
      %s76 = sphi 0, %s62
      %s80 = sphi 0, %s80
      %s82 = sphi 0, %s80
      %s83 = sphi 0, %s82
      %s97 = sphi 0, %s83
      %s101 = sphi 0, %s101
      %s103 = sphi 0, %s101
      %s104 = sphi 0, %s103
      %s118 = sphi 0, %s104
      %s126 = sphi 0, %s128
      %s129 = sphi 0, %s126
      %s130 = sphi 0, %s129
      %s146 = sphi 0, %s130
    $region4: #{patch_embed_forward.1} parent=1 // loop_header_branch
      %16 = sbr.rel (%p14) target = $region8
    $region5: #{patch_embed_forward.1} parent=1 // loop_body
      %s18 = ssub.s32 %s13, 1
      %s19 = ssub.s32 %s13, 2
      %s26 = sadd.s32 1, %s21
      %p27 = scmp.ge.s32.totalorder %s26, 1
      %s28 = scalar_select %p27, 0, %s26
      %s29 = sadd.s32 1, %s20
      %s30 = scalar_select %p27, %s29, %s20
      %p31 = scmp.ge.s32.totalorder %s30, 2
      %s32 = scalar_select %p31, 0, %s30
      %s33 = ssub.s32 %s20, %s32
      %p34 = scmp.eq.s32.totalorder %s33, 0
      %s36 = sadd.s32 %s35, 1
      %s37 = scalar_select %p34, %s35, %s36
      %p40 = pneg %p34
      %p41 = scmp.eq.s32.totalorder %s13, 1
      %p42 = por %p40, %p41
      %p43 = scmp.ne.s32.totalorder %s35, %s38
      %p44 = scmp.eq.s32.totalorder %s13, 0
      %p45 = por %p43, %p44
      %p46 = scmp.ne.s32.totalorder %s35, %s38
      %p47 = scmp.eq.s32.totalorder %s18, 1
      %p48 = por %p46, %p47
      %p49 = scmp.ne.s32.totalorder %s38, %s39
      %p50 = scmp.eq.s32.totalorder %s18, 0
      %p51 = por %p49, %p50
      %p52 = scmp.ne.s32.totalorder %s38, %s39
      %p53 = scmp.eq.s32.totalorder %s19, 1
      %p54 = por %p52, %p53
      %p56 = scmp.ne.s32.totalorder %s39, %s55
      %p57 = scmp.eq.s32.totalorder %s19, 0
      %p58 = por %p56, %p57
      %s60 = sadd.s32 %s59, 1
      %p63 = scmp.eq.s32.totalorder %s13, 1
      %p64 = scmp.ne.s32.totalorder %s59, %s61
      %p65 = scmp.eq.s32.totalorder %s13, 0
      %p66 = por %p64, %p65
      %p67 = scmp.ne.s32.totalorder %s59, %s61
      %p68 = scmp.eq.s32.totalorder %s18, 1
      %p69 = por %p67, %p68
      %p70 = scmp.ne.s32.totalorder %s61, %s62
      %p71 = scmp.eq.s32.totalorder %s18, 0
      %p72 = por %p70, %p71
      %p73 = scmp.ne.s32.totalorder %s61, %s62
      %p74 = scmp.eq.s32.totalorder %s19, 1
      %p75 = por %p73, %p74
      %p77 = scmp.ne.s32.totalorder %s62, %s76
      %p78 = scmp.eq.s32.totalorder %s19, 0
      %p79 = por %p77, %p78
      %s81 = sadd.s32 %s80, 1
      %p84 = scmp.eq.s32.totalorder %s13, 1
      %p85 = scmp.ne.s32.totalorder %s80, %s82
      %p86 = scmp.eq.s32.totalorder %s13, 0
      %p87 = por %p85, %p86
      %p88 = scmp.ne.s32.totalorder %s80, %s82
      %p89 = scmp.eq.s32.totalorder %s18, 1
      %p90 = por %p88, %p89
      %p91 = scmp.ne.s32.totalorder %s82, %s83
      %p92 = scmp.eq.s32.totalorder %s18, 0
      %p93 = por %p91, %p92
      %p94 = scmp.ne.s32.totalorder %s82, %s83
      %p95 = scmp.eq.s32.totalorder %s19, 1
      %p96 = por %p94, %p95
      %p98 = scmp.ne.s32.totalorder %s83, %s97
      %p99 = scmp.eq.s32.totalorder %s19, 0
      %p100 = por %p98, %p99
      %s102 = sadd.s32 %s101, 1
      %p105 = scmp.eq.s32.totalorder %s13, 1
      %p106 = scmp.ne.s32.totalorder %s101, %s103
      %p107 = scmp.eq.s32.totalorder %s13, 0
      %p108 = por %p106, %p107
      %p109 = scmp.ne.s32.totalorder %s101, %s103
      %p110 = scmp.eq.s32.totalorder %s18, 1
      %p111 = por %p109, %p110
      %p112 = scmp.ne.s32.totalorder %s103, %s104
      %p113 = scmp.eq.s32.totalorder %s18, 0
      %p114 = por %p112, %p113
      %p115 = scmp.ne.s32.totalorder %s103, %s104
      %p116 = scmp.eq.s32.totalorder %s19, 1
      %p117 = por %p115, %p116
      %p119 = scmp.ne.s32.totalorder %s104, %s118
      %p120 = scmp.eq.s32.totalorder %s19, 0
      %p121 = por %p119, %p120
      %s122 = ssub.s32 %s20, %s32
      %s123 = ssub.s32 %s21, %s28
      %s124 = sor.u32 %s122, %s123
      %p125 = scmp.eq.s32.totalorder %s124, 0
      %s127 = sadd.s32 %s126, 1
      %s128 = scalar_select %p125, %s126, %s127
      %p131 = pneg %p125
      %p132 = scmp.eq.s32.totalorder %s13, 1
      %p133 = por %p131, %p132
      %p134 = scmp.ne.s32.totalorder %s126, %s129
      %p135 = scmp.eq.s32.totalorder %s13, 0
      %p136 = por %p134, %p135
      %p137 = scmp.ne.s32.totalorder %s126, %s129
      %p138 = scmp.eq.s32.totalorder %s18, 1
      %p139 = por %p137, %p138
      %p140 = scmp.ne.s32.totalorder %s129, %s130
      %p141 = scmp.eq.s32.totalorder %s18, 0
      %p142 = por %p140, %p141
      %p143 = scmp.ne.s32.totalorder %s129, %s130
      %p144 = scmp.eq.s32.totalorder %s19, 1
      %p145 = por %p143, %p144
      %p147 = scmp.ne.s32.totalorder %s130, %s146
      %p148 = scmp.eq.s32.totalorder %s19, 0
      %p149 = por %p147, %p148
      %p150 = scmp.le.s32.totalorder 1, %s13
      %p151 = scmp.lt.s32.totalorder %s13, 3
      %p152 = pnand %p150, %p151
      %p153 = pneg %p152
      // Predicated region
      $region9: #{patch_embed_forward.1} parent=5 // pred_check
        _
      $region10: #{patch_embed_forward.1} parent=5 // pred_check_branch
        %155 = sbr.rel (%p152) target = $region12
      $region11: #{patch_embed_forward.1} parent=5 // pred_region
        %s156 = ssub.s32 %s13, 1
        // Predicated region
        $region13: #{patch_embed_forward.1} parent=11 // pred_check
          %p157 = pneg %p72
        $region14: #{patch_embed_forward.1} parent=11 // pred_check_branch
          %159 = sbr.rel (%p157) target = $region16
        $region15: #{patch_embed_forward.1} parent=11 // pred_region
          _
        $region16: #{patch_embed_forward.1} parent=11 // pred_fallthru
          _
        // Predicated region
        $region17: #{patch_embed_forward.1} parent=11 // pred_check
          %p160 = pneg %p93
        $region18: #{patch_embed_forward.1} parent=11 // pred_check_branch
          %162 = sbr.rel (%p160) target = $region20
        $region19: #{patch_embed_forward.1} parent=11 // pred_region
          _
        $region20: #{patch_embed_forward.1} parent=11 // pred_fallthru
          _
        // Predicated region
        $region21: #{patch_embed_forward.1} parent=11 // pred_check
          %p163 = pneg %p114
        $region22: #{patch_embed_forward.1} parent=11 // pred_check_branch
          %165 = sbr.rel (%p163) target = $region24
        $region23: #{patch_embed_forward.1} parent=11 // pred_region
          _
        $region24: #{patch_embed_forward.1} parent=11 // pred_fallthru
          _
      $region12: #{patch_embed_forward.1} parent=5 // pred_fallthru
        _
      %p166 = scmp.lt.s32.totalorder %s13, 2
      // Predicated region
      $region25: #{patch_embed_forward.1} parent=5 // pred_check
        %p167 = pneg %p166
      $region26: #{patch_embed_forward.1} parent=5 // pred_check_branch
        %169 = sbr.rel (%p167) target = $region28
      $region27: #{patch_embed_forward.1} parent=5 // pred_region
        // Predicated region
        $region29: #{patch_embed_forward.1} parent=27 // pred_check
          %p170 = pneg %p45
        $region30: #{patch_embed_forward.1} parent=27 // pred_check_branch
          %172 = sbr.rel (%p170) target = $region32
        $region31: #{patch_embed_forward.1} parent=27 // pred_region
          %p173 = scmp.lt.s32.totalorder %s20, 1
          %s174 = scalar_select %p173, %s20, 1
          %s175 = smul.addr %s174, 32
          %s176 = smul.addr %s175, 8
          %s177 = scalar_lea.vmem %s0, %s176
        $region32: #{patch_embed_forward.1} parent=27 // pred_fallthru
          _
      $region28: #{patch_embed_forward.1} parent=5 // pred_fallthru
        _
      %p178 = scmp.le.s32.totalorder 1, %s13
      %p179 = scmp.lt.s32.totalorder %s13, 3
      %p180 = pnand %p178, %p179
      %p181 = pneg %p180
      // Predicated region
      $region33: #{patch_embed_forward.1} parent=5 // pred_check
        _
      $region34: #{patch_embed_forward.1} parent=5 // pred_check_branch
        %183 = sbr.rel (%p180) target = $region36
      $region35: #{patch_embed_forward.1} parent=5 // pred_region
        %s184 = ssub.s32 %s13, 1
        %p185 = scmp.lt.s32.totalorder %s22, 1
        %s186 = scalar_select %p185, %s22, 1
        %s187 = smul.addr %s186, 32
        %s188 = smul.addr %s187, 8
        %s189 = scalar_lea.vmem %s0, %s188
        %p190 = pneg %p51
        %p191 = pneg %p48
        %p192 = pneg %p72
        %p193 = pneg %p69
        %p194 = pneg %p93
        %p195 = pneg %p90
        %p196 = pneg %p114
        %p197 = pneg %p111
        %p198 = pneg %p142
        %p199 = pneg %p139
        %s200 = sand.u32 %s129, 1
        %s201 = scalar_lea.sflag [#allocation3], %s200
        %s202 = sand.u32 %s129, 1
        %s203 = smul.addr %s202, 16
        %s204 = scalar_lea.vmem [#allocation2], %s203
        %p205 = scmp.lt.s32.totalorder %s22, 1
        %s206 = scalar_select %p205, %s22, 1
        %s207 = smul.addr %s206, 32
        %s208 = smul.addr %s207, 8
        %s209 = scalar_lea.vmem %s0, %s208
        %s210 = smul.u32 4, %s23
        %v212 = vld [vmem:[%s1] sm:$0x3]
        %v213 = vld [vmem:[%s1 + $0x2] sm:$0x3]
        %v214 = vld [vmem:[%s1 + $0x4] sm:$0x3]
        %v215 = vld [vmem:[%s1 + $0x6] sm:$0x3]
        %v216 = vld [vmem:[%s1 + $0x8] sm:$0x3]
        %v217 = vld [vmem:[%s1 + $0xa] sm:$0x3]
        %v218 = vld [vmem:[%s1 + $0xc] sm:$0x3]
        %v219 = vld [vmem:[%s1 + $0xe] sm:$0x3]
        %v220 = vld [vmem:[%s1 + $0x10] sm:$0x3]
        %v221 = vld [vmem:[%s1 + $0x12] sm:$0x3]
        %v222 = vld [vmem:[%s1 + $0x14] sm:$0x3]
        %v223 = vld [vmem:[%s1 + $0x16] sm:$0x3]
        %v224 = vld [vmem:[%s1 + $0x18] sm:$0x3]
        %v225 = vld [vmem:[%s1 + $0x1a] sm:$0x3]
        %v226 = vld [vmem:[%s1 + $0x1c] sm:$0x3]
        %v227 = vld [vmem:[%s1 + $0x1e] sm:$0x3]
        %v228 = vld [vmem:[%s3] sm:$0x3]
        %v229 = vld [vmem:[%s2] sm:$0x1]
        %s230 = smul.u32 %s23, 16
        %p231 = scmp.eq.s32.totalorder %s230, 0
        %s232 = ssub.s32 %s230, 1
        %s233 = scalar_select %p231, 1, %s232
        %p234 = scmp.eq.s32.totalorder %s230, 12
        %s235 = sadd.s32 %s230, 1
        %s236 = scalar_select %p234, 11, %s235
        %s237 = smul.u32 %s233, 16
        %s238 = scalar_lea.vmem %s209, %s237
        %v239 = vld [vmem:[%s238] sm:$0xff]
        %v240 = vld [vmem:[%s238 + $0x8] sm:$0xff]
        %v241 = vpack.c.bf16 %v240, %v239
        %v243 = vshrl.u32 %v241, 16
        %v245 = vshll.u32 %v241, 16
        %v247 = vrot.slane %v245, 1
        %v248 = vor.u32 %v243, %v247
        %vm249 = vcmask 31744
        %v251 = vsel %vm249, %v248, 0
        %vm253 = vcmask 1041408
        %v255 = vsel %vm253, %v213, 0
        %257 = vmatpush.bf16.msra.mxu0 0
        %258 = vmatpush.bf16.msra.mxu0 0
        %259 = vmatpush.bf16.msra.mxu0 0
        %260 = vmatpush.bf16.msra.mxu0 0
        %261 = vmatpush.bf16.msra.mxu0 0
        %262 = vmatpush.bf16.msra.mxu0 0
        %263 = vmatpush.bf16.msra.mxu0 0
        %264 = vmatpush.bf16.msra.mxu0 %v255
        %265 = vmatmul.bf16.gmra.mxu0 %v251
        %v266 = vpop.f32.mrf.mxu0
        %v267 = vadd.f32 0.0, %v266
        %v268 = vpop.f32.mrf.mxu0
        %v269 = vadd.f32 0.0, %v268
        %270 = vdwg.mxu0
        %v271 = vsel %vm249, %v241, 0
        %v274 = vsel %vm253, %v212, 0
        %276 = vmatpush.bf16.msra.mxu0 0
        %277 = vmatpush.bf16.msra.mxu0 0
        %278 = vmatpush.bf16.msra.mxu0 0
        %279 = vmatpush.bf16.msra.mxu0 0
        %280 = vmatpush.bf16.msra.mxu0 0
        %281 = vmatpush.bf16.msra.mxu0 0
        %282 = vmatpush.bf16.msra.mxu0 0
        %283 = vmatpush.bf16.msra.mxu0 %v274
        %284 = vmatmul.bf16.gmra.mxu0 %v271
        %v285 = vpop.f32.mrf.mxu0
        %v286 = vadd.f32 %v267, %v285
        %v287 = vpop.f32.mrf.mxu0
        %v288 = vadd.f32 %v269, %v287
        %289 = vdwg.mxu0
        %v291 = vrot.slane %v241, 1
        %v293 = vsel %vm249, %v291, 0
        %v296 = vsel %vm253, %v214, 0
        %298 = vmatpush.bf16.msra.mxu0 0
        %299 = vmatpush.bf16.msra.mxu0 0
        %300 = vmatpush.bf16.msra.mxu0 0
        %301 = vmatpush.bf16.msra.mxu0 0
        %302 = vmatpush.bf16.msra.mxu0 0
        %303 = vmatpush.bf16.msra.mxu0 0
        %304 = vmatpush.bf16.msra.mxu0 0
        %305 = vmatpush.bf16.msra.mxu0 %v296
        %306 = vmatmul.bf16.gmra.mxu0 %v293
        %v307 = vpop.f32.mrf.mxu0
        %v308 = vadd.f32 0.0, %v307
        %v309 = vpop.f32.mrf.mxu0
        %v310 = vadd.f32 0.0, %v309
        %311 = vdwg.mxu0
        %v312 = vadd.f32 %v286, %v308
        %v313 = vadd.f32 %v288, %v310
        %v314 = vrot.slane %v243, 1
        %v315 = vrot.slane %v245, 2
        %v316 = vor.u32 %v314, %v315
        %v318 = vsel %vm249, %v316, 0
        %v321 = vsel %vm253, %v215, 0
        %323 = vmatpush.bf16.msra.mxu0 0
        %324 = vmatpush.bf16.msra.mxu0 0
        %325 = vmatpush.bf16.msra.mxu0 0
        %326 = vmatpush.bf16.msra.mxu0 0
        %327 = vmatpush.bf16.msra.mxu0 0
        %328 = vmatpush.bf16.msra.mxu0 0
        %329 = vmatpush.bf16.msra.mxu0 0
        %330 = vmatpush.bf16.msra.mxu0 %v321
        %331 = vmatmul.bf16.gmra.mxu0 %v318
        %v332 = vpop.f32.mrf.mxu0
        %v333 = vadd.f32 0.0, %v332
        %v334 = vpop.f32.mrf.mxu0
        %v335 = vadd.f32 0.0, %v334
        %336 = vdwg.mxu0
        %v337 = vadd.f32 %v312, %v333
        %v338 = vadd.f32 %v313, %v335
        %s339 = sadd.s32 %s233, 1
        %s340 = smul.u32 %s339, 16
        %s341 = scalar_lea.vmem %s209, %s340
        %v342 = vld [vmem:[%s341] sm:$0xff]
        %v343 = vld [vmem:[%s341 + $0x8] sm:$0xff]
        %v344 = vpack.c.bf16 %v343, %v342
        %v346 = vsel %vm249, %v344, 0
        %v349 = vsel %vm253, %v216, 0
        %351 = vmatpush.bf16.msra.mxu0 0
        %352 = vmatpush.bf16.msra.mxu0 0
        %353 = vmatpush.bf16.msra.mxu0 0
        %354 = vmatpush.bf16.msra.mxu0 0
        %355 = vmatpush.bf16.msra.mxu0 0
        %356 = vmatpush.bf16.msra.mxu0 0
        %357 = vmatpush.bf16.msra.mxu0 0
        %358 = vmatpush.bf16.msra.mxu0 %v349
        %359 = vmatmul.bf16.gmra.mxu0 %v346
        %v360 = vpop.f32.mrf.mxu0
        %v361 = vadd.f32 0.0, %v360
        %v362 = vpop.f32.mrf.mxu0
        %v363 = vadd.f32 0.0, %v362
        %364 = vdwg.mxu0
        %v365 = vadd.f32 %v337, %v361
        %v366 = vadd.f32 %v338, %v363
        %v367 = vshrl.u32 %v344, 16
        %v369 = vshll.u32 %v344, 16
        %v371 = vrot.slane %v369, 1
        %v372 = vor.u32 %v367, %v371
        %v374 = vsel %vm249, %v372, 0
        %v377 = vsel %vm253, %v217, 0
        %379 = vmatpush.bf16.msra.mxu0 0
        %380 = vmatpush.bf16.msra.mxu0 0
        %381 = vmatpush.bf16.msra.mxu0 0
        %382 = vmatpush.bf16.msra.mxu0 0
        %383 = vmatpush.bf16.msra.mxu0 0
        %384 = vmatpush.bf16.msra.mxu0 0
        %385 = vmatpush.bf16.msra.mxu0 0
        %386 = vmatpush.bf16.msra.mxu0 %v377
        %387 = vmatmul.bf16.gmra.mxu0 %v374
        %v388 = vpop.f32.mrf.mxu0
        %v389 = vadd.f32 0.0, %v388
        %v390 = vpop.f32.mrf.mxu0
        %v391 = vadd.f32 0.0, %v390
        %392 = vdwg.mxu0
        %v393 = vadd.f32 %v365, %v389
        %v394 = vadd.f32 %v366, %v391
        %v396 = vrot.slane %v344, 1
        %v398 = vsel %vm249, %v396, 0
        %v401 = vsel %vm253, %v218, 0
        %403 = vmatpush.bf16.msra.mxu0 0
        %404 = vmatpush.bf16.msra.mxu0 0
        %405 = vmatpush.bf16.msra.mxu0 0
        %406 = vmatpush.bf16.msra.mxu0 0
        %407 = vmatpush.bf16.msra.mxu0 0
        %408 = vmatpush.bf16.msra.mxu0 0
        %409 = vmatpush.bf16.msra.mxu0 0
        %410 = vmatpush.bf16.msra.mxu0 %v401
        %411 = vmatmul.bf16.gmra.mxu0 %v398
        %v412 = vpop.f32.mrf.mxu0
        %v413 = vadd.f32 0.0, %v412
        %v414 = vpop.f32.mrf.mxu0
        %v415 = vadd.f32 0.0, %v414
        %416 = vdwg.mxu0
        %v417 = vadd.f32 %v393, %v413
        %v418 = vadd.f32 %v394, %v415
        %v419 = vrot.slane %v367, 1
        %v420 = vrot.slane %v369, 2
        %v421 = vor.u32 %v419, %v420
        %v423 = vsel %vm249, %v421, 0
        %v426 = vsel %vm253, %v219, 0
        %428 = vmatpush.bf16.msra.mxu0 0
        %429 = vmatpush.bf16.msra.mxu0 0
        %430 = vmatpush.bf16.msra.mxu0 0
        %431 = vmatpush.bf16.msra.mxu0 0
        %432 = vmatpush.bf16.msra.mxu0 0
        %433 = vmatpush.bf16.msra.mxu0 0
        %434 = vmatpush.bf16.msra.mxu0 0
        %435 = vmatpush.bf16.msra.mxu0 %v426
        %436 = vmatmul.bf16.gmra.mxu0 %v423
        %v437 = vpop.f32.mrf.mxu0
        %v438 = vadd.f32 0.0, %v437
        %v439 = vpop.f32.mrf.mxu0
        %v440 = vadd.f32 0.0, %v439
        %441 = vdwg.mxu0
        %v442 = vadd.f32 %v417, %v438
        %v443 = vadd.f32 %v418, %v440
        %s444 = sadd.s32 %s233, 2
        %s445 = smul.u32 %s444, 16
        %s446 = scalar_lea.vmem %s209, %s445
        %v447 = vld [vmem:[%s446] sm:$0xff]
        %v448 = vld [vmem:[%s446 + $0x8] sm:$0xff]
        %v449 = vpack.c.bf16 %v448, %v447
        %v451 = vsel %vm249, %v449, 0
        %v454 = vsel %vm253, %v220, 0
        %456 = vmatpush.bf16.msra.mxu0 0
        %457 = vmatpush.bf16.msra.mxu0 0
        %458 = vmatpush.bf16.msra.mxu0 0
        %459 = vmatpush.bf16.msra.mxu0 0
        %460 = vmatpush.bf16.msra.mxu0 0
        %461 = vmatpush.bf16.msra.mxu0 0
        %462 = vmatpush.bf16.msra.mxu0 0
        %463 = vmatpush.bf16.msra.mxu0 %v454
        %464 = vmatmul.bf16.gmra.mxu0 %v451
        %v465 = vpop.f32.mrf.mxu0
        %v466 = vadd.f32 0.0, %v465
        %v467 = vpop.f32.mrf.mxu0
        %v468 = vadd.f32 0.0, %v467
        %469 = vdwg.mxu0
        %v470 = vadd.f32 %v442, %v466
        %v471 = vadd.f32 %v443, %v468
        %v472 = vshrl.u32 %v449, 16
        %v474 = vshll.u32 %v449, 16
        %v476 = vrot.slane %v474, 1
        %v477 = vor.u32 %v472, %v476
        %v479 = vsel %vm249, %v477, 0
        %v482 = vsel %vm253, %v221, 0
        %484 = vmatpush.bf16.msra.mxu0 0
        %485 = vmatpush.bf16.msra.mxu0 0
        %486 = vmatpush.bf16.msra.mxu0 0
        %487 = vmatpush.bf16.msra.mxu0 0
        %488 = vmatpush.bf16.msra.mxu0 0
        %489 = vmatpush.bf16.msra.mxu0 0
        %490 = vmatpush.bf16.msra.mxu0 0
        %491 = vmatpush.bf16.msra.mxu0 %v482
        %492 = vmatmul.bf16.gmra.mxu0 %v479
        %v493 = vpop.f32.mrf.mxu0
        %v494 = vadd.f32 0.0, %v493
        %v495 = vpop.f32.mrf.mxu0
        %v496 = vadd.f32 0.0, %v495
        %497 = vdwg.mxu0
        %v498 = vadd.f32 %v470, %v494
        %v499 = vadd.f32 %v471, %v496
        %v501 = vrot.slane %v449, 1
        %v503 = vsel %vm249, %v501, 0
        %v506 = vsel %vm253, %v222, 0
        %508 = vmatpush.bf16.msra.mxu0 0
        %509 = vmatpush.bf16.msra.mxu0 0
        %510 = vmatpush.bf16.msra.mxu0 0
        %511 = vmatpush.bf16.msra.mxu0 0
        %512 = vmatpush.bf16.msra.mxu0 0
        %513 = vmatpush.bf16.msra.mxu0 0
        %514 = vmatpush.bf16.msra.mxu0 0
        %515 = vmatpush.bf16.msra.mxu0 %v506
        %516 = vmatmul.bf16.gmra.mxu0 %v503
        %v517 = vpop.f32.mrf.mxu0
        %v518 = vadd.f32 0.0, %v517
        %v519 = vpop.f32.mrf.mxu0
        %v520 = vadd.f32 0.0, %v519
        %521 = vdwg.mxu0
        %v522 = vadd.f32 %v498, %v518
        %v523 = vadd.f32 %v499, %v520
        %v524 = vrot.slane %v472, 1
        %v525 = vrot.slane %v474, 2
        %v526 = vor.u32 %v524, %v525
        %v528 = vsel %vm249, %v526, 0
        %v531 = vsel %vm253, %v223, 0
        %533 = vmatpush.bf16.msra.mxu0 0
        %534 = vmatpush.bf16.msra.mxu0 0
        %535 = vmatpush.bf16.msra.mxu0 0
        %536 = vmatpush.bf16.msra.mxu0 0
        %537 = vmatpush.bf16.msra.mxu0 0
        %538 = vmatpush.bf16.msra.mxu0 0
        %539 = vmatpush.bf16.msra.mxu0 0
        %540 = vmatpush.bf16.msra.mxu0 %v531
        %541 = vmatmul.bf16.gmra.mxu0 %v528
        %v542 = vpop.f32.mrf.mxu0
        %v543 = vadd.f32 0.0, %v542
        %v544 = vpop.f32.mrf.mxu0
        %v545 = vadd.f32 0.0, %v544
        %546 = vdwg.mxu0
        %v547 = vadd.f32 %v522, %v543
        %v548 = vadd.f32 %v523, %v545
        %s549 = sadd.s32 %s233, 3
        %s550 = smul.u32 %s549, 16
        %s551 = scalar_lea.vmem %s209, %s550
        %v552 = vld [vmem:[%s551] sm:$0xff]
        %v553 = vld [vmem:[%s551 + $0x8] sm:$0xff]
        %v554 = vpack.c.bf16 %v553, %v552
        %v556 = vsel %vm249, %v554, 0
        %v559 = vsel %vm253, %v224, 0
        %561 = vmatpush.bf16.msra.mxu0 0
        %562 = vmatpush.bf16.msra.mxu0 0
        %563 = vmatpush.bf16.msra.mxu0 0
        %564 = vmatpush.bf16.msra.mxu0 0
        %565 = vmatpush.bf16.msra.mxu0 0
        %566 = vmatpush.bf16.msra.mxu0 0
        %567 = vmatpush.bf16.msra.mxu0 0
        %568 = vmatpush.bf16.msra.mxu0 %v559
        %569 = vmatmul.bf16.gmra.mxu0 %v556
        %v570 = vpop.f32.mrf.mxu0
        %v571 = vadd.f32 0.0, %v570
        %v572 = vpop.f32.mrf.mxu0
        %v573 = vadd.f32 0.0, %v572
        %574 = vdwg.mxu0
        %v575 = vadd.f32 %v547, %v571
        %v576 = vadd.f32 %v548, %v573
        %v577 = vshrl.u32 %v554, 16
        %v579 = vshll.u32 %v554, 16
        %v581 = vrot.slane %v579, 1
        %v582 = vor.u32 %v577, %v581
        %v584 = vsel %vm249, %v582, 0
        %v587 = vsel %vm253, %v225, 0
        %589 = vmatpush.bf16.msra.mxu0 0
        %590 = vmatpush.bf16.msra.mxu0 0
        %591 = vmatpush.bf16.msra.mxu0 0
        %592 = vmatpush.bf16.msra.mxu0 0
        %593 = vmatpush.bf16.msra.mxu0 0
        %594 = vmatpush.bf16.msra.mxu0 0
        %595 = vmatpush.bf16.msra.mxu0 0
        %596 = vmatpush.bf16.msra.mxu0 %v587
        %597 = vmatmul.bf16.gmra.mxu0 %v584
        %v598 = vpop.f32.mrf.mxu0
        %v599 = vadd.f32 0.0, %v598
        %v600 = vpop.f32.mrf.mxu0
        %v601 = vadd.f32 0.0, %v600
        %602 = vdwg.mxu0
        %v603 = vadd.f32 %v575, %v599
        %v604 = vadd.f32 %v576, %v601
        %v606 = vrot.slane %v554, 1
        %v608 = vsel %vm249, %v606, 0
        %v611 = vsel %vm253, %v226, 0
        %613 = vmatpush.bf16.msra.mxu0 0
        %614 = vmatpush.bf16.msra.mxu0 0
        %615 = vmatpush.bf16.msra.mxu0 0
        %616 = vmatpush.bf16.msra.mxu0 0
        %617 = vmatpush.bf16.msra.mxu0 0
        %618 = vmatpush.bf16.msra.mxu0 0
        %619 = vmatpush.bf16.msra.mxu0 0
        %620 = vmatpush.bf16.msra.mxu0 %v611
        %621 = vmatmul.bf16.gmra.mxu0 %v608
        %v622 = vpop.f32.mrf.mxu0
        %v623 = vadd.f32 0.0, %v622
        %v624 = vpop.f32.mrf.mxu0
        %v625 = vadd.f32 0.0, %v624
        %626 = vdwg.mxu0
        %v627 = vadd.f32 %v603, %v623
        %v628 = vadd.f32 %v604, %v625
        %v629 = vrot.slane %v577, 1
        %v630 = vrot.slane %v579, 2
        %v631 = vor.u32 %v629, %v630
        %v633 = vsel %vm249, %v631, 0
        %v636 = vsel %vm253, %v227, 0
        %638 = vmatpush.bf16.msra.mxu0 0
        %639 = vmatpush.bf16.msra.mxu0 0
        %640 = vmatpush.bf16.msra.mxu0 0
        %641 = vmatpush.bf16.msra.mxu0 0
        %642 = vmatpush.bf16.msra.mxu0 0
        %643 = vmatpush.bf16.msra.mxu0 0
        %644 = vmatpush.bf16.msra.mxu0 0
        %645 = vmatpush.bf16.msra.mxu0 %v636
        %646 = vmatmul.bf16.gmra.mxu0 %v633
        %v647 = vpop.f32.mrf.mxu0
        %v648 = vadd.f32 0.0, %v647
        %v649 = vpop.f32.mrf.mxu0
        %v650 = vadd.f32 0.0, %v649
        %651 = vdwg.mxu0
        %v652 = vadd.f32 %v627, %v648
        %v653 = vadd.f32 %v628, %v650
        %v654 = vmul.f32 %v652, 0.25
        %v655 = vmul.f32 %v653, 0.25
        %v656 = vadd.f32 %v654, 0.0
        %v657 = vadd.f32 %v655, 0.0
        %s658 = smul.u32 %s230, 16
        %s659 = scalar_lea.vmem %s209, %s658
        %v660 = vld [vmem:[%s659] sm:$0xff]
        %v661 = vld [vmem:[%s659 + $0x8] sm:$0xff]
        %v662 = vpack.c.bf16 %v661, %v660
        %v664 = vshrl.u32 %v662, 16
        %v666 = vshll.u32 %v662, 16
        %v668 = vrot.slane %v666, 1
        %v669 = vor.u32 %v664, %v668
        %v671 = vsel %vm249, %v669, 0
        %673 = vmatpush.bf16.msra.mxu0 0
        %674 = vmatpush.bf16.msra.mxu0 0
        %675 = vmatpush.bf16.msra.mxu0 0
        %676 = vmatpush.bf16.msra.mxu0 0
        %677 = vmatpush.bf16.msra.mxu0 0
        %678 = vmatpush.bf16.msra.mxu0 0
        %679 = vmatpush.bf16.msra.mxu0 0
        %680 = vmatpush.bf16.msra.mxu0 %v255
        %681 = vmatmul.bf16.gmra.mxu0 %v671
        %v682 = vpop.f32.mrf.mxu0
        %v683 = vadd.f32 0.0, %v682
        %v684 = vpop.f32.mrf.mxu0
        %v685 = vadd.f32 0.0, %v684
        %686 = vdwg.mxu0
        %v687 = vsel %vm249, %v662, 0
        %689 = vmatpush.bf16.msra.mxu0 0
        %690 = vmatpush.bf16.msra.mxu0 0
        %691 = vmatpush.bf16.msra.mxu0 0
        %692 = vmatpush.bf16.msra.mxu0 0
        %693 = vmatpush.bf16.msra.mxu0 0
        %694 = vmatpush.bf16.msra.mxu0 0
        %695 = vmatpush.bf16.msra.mxu0 0
        %696 = vmatpush.bf16.msra.mxu0 %v274
        %697 = vmatmul.bf16.gmra.mxu0 %v687
        %v698 = vpop.f32.mrf.mxu0
        %v699 = vadd.f32 %v683, %v698
        %v700 = vpop.f32.mrf.mxu0
        %v701 = vadd.f32 %v685, %v700
        %702 = vdwg.mxu0
        %v704 = vrot.slane %v662, 1
        %v706 = vsel %vm249, %v704, 0
        %708 = vmatpush.bf16.msra.mxu0 0
        %709 = vmatpush.bf16.msra.mxu0 0
        %710 = vmatpush.bf16.msra.mxu0 0
        %711 = vmatpush.bf16.msra.mxu0 0
        %712 = vmatpush.bf16.msra.mxu0 0
        %713 = vmatpush.bf16.msra.mxu0 0
        %714 = vmatpush.bf16.msra.mxu0 0
        %715 = vmatpush.bf16.msra.mxu0 %v296
        %716 = vmatmul.bf16.gmra.mxu0 %v706
        %v717 = vpop.f32.mrf.mxu0
        %v718 = vadd.f32 0.0, %v717
        %v719 = vpop.f32.mrf.mxu0
        %v720 = vadd.f32 0.0, %v719
        %721 = vdwg.mxu0
        %v722 = vadd.f32 %v699, %v718
        %v723 = vadd.f32 %v701, %v720
        %v724 = vrot.slane %v664, 1
        %v725 = vrot.slane %v666, 2
        %v726 = vor.u32 %v724, %v725
        %v728 = vsel %vm249, %v726, 0
        %730 = vmatpush.bf16.msra.mxu0 0
        %731 = vmatpush.bf16.msra.mxu0 0
        %732 = vmatpush.bf16.msra.mxu0 0
        %733 = vmatpush.bf16.msra.mxu0 0
        %734 = vmatpush.bf16.msra.mxu0 0
        %735 = vmatpush.bf16.msra.mxu0 0
        %736 = vmatpush.bf16.msra.mxu0 0
        %737 = vmatpush.bf16.msra.mxu0 %v321
        %738 = vmatmul.bf16.gmra.mxu0 %v728
        %v739 = vpop.f32.mrf.mxu0
        %v740 = vadd.f32 0.0, %v739
        %v741 = vpop.f32.mrf.mxu0
        %v742 = vadd.f32 0.0, %v741
        %743 = vdwg.mxu0
        %v744 = vadd.f32 %v722, %v740
        %v745 = vadd.f32 %v723, %v742
        %s746 = smul.u32 %s235, 16
        %s747 = scalar_lea.vmem %s209, %s746
        %v748 = vld [vmem:[%s747] sm:$0xff]
        %v749 = vld [vmem:[%s747 + $0x8] sm:$0xff]
        %v750 = vpack.c.bf16 %v749, %v748
        %v752 = vsel %vm249, %v750, 0
        %754 = vmatpush.bf16.msra.mxu0 0
        %755 = vmatpush.bf16.msra.mxu0 0
        %756 = vmatpush.bf16.msra.mxu0 0
        %757 = vmatpush.bf16.msra.mxu0 0
        %758 = vmatpush.bf16.msra.mxu0 0
        %759 = vmatpush.bf16.msra.mxu0 0
        %760 = vmatpush.bf16.msra.mxu0 0
        %761 = vmatpush.bf16.msra.mxu0 %v349
        %762 = vmatmul.bf16.gmra.mxu0 %v752
        %v763 = vpop.f32.mrf.mxu0
        %v764 = vadd.f32 0.0, %v763
        %v765 = vpop.f32.mrf.mxu0
        %v766 = vadd.f32 0.0, %v765
        %767 = vdwg.mxu0
        %v768 = vadd.f32 %v744, %v764
        %v769 = vadd.f32 %v745, %v766
        %v770 = vshrl.u32 %v750, 16
        %v772 = vshll.u32 %v750, 16
        %v774 = vrot.slane %v772, 1
        %v775 = vor.u32 %v770, %v774
        %v777 = vsel %vm249, %v775, 0
        %779 = vmatpush.bf16.msra.mxu0 0
        %780 = vmatpush.bf16.msra.mxu0 0
        %781 = vmatpush.bf16.msra.mxu0 0
        %782 = vmatpush.bf16.msra.mxu0 0
        %783 = vmatpush.bf16.msra.mxu0 0
        %784 = vmatpush.bf16.msra.mxu0 0
        %785 = vmatpush.bf16.msra.mxu0 0
        %786 = vmatpush.bf16.msra.mxu0 %v377
        %787 = vmatmul.bf16.gmra.mxu0 %v777
        %v788 = vpop.f32.mrf.mxu0
        %v789 = vadd.f32 0.0, %v788
        %v790 = vpop.f32.mrf.mxu0
        %v791 = vadd.f32 0.0, %v790
        %792 = vdwg.mxu0
        %v793 = vadd.f32 %v768, %v789
        %v794 = vadd.f32 %v769, %v791
        %v796 = vrot.slane %v750, 1
        %v798 = vsel %vm249, %v796, 0
        %800 = vmatpush.bf16.msra.mxu0 0
        %801 = vmatpush.bf16.msra.mxu0 0
        %802 = vmatpush.bf16.msra.mxu0 0
        %803 = vmatpush.bf16.msra.mxu0 0
        %804 = vmatpush.bf16.msra.mxu0 0
        %805 = vmatpush.bf16.msra.mxu0 0
        %806 = vmatpush.bf16.msra.mxu0 0
        %807 = vmatpush.bf16.msra.mxu0 %v401
        %808 = vmatmul.bf16.gmra.mxu0 %v798
        %v809 = vpop.f32.mrf.mxu0
        %v810 = vadd.f32 0.0, %v809
        %v811 = vpop.f32.mrf.mxu0
        %v812 = vadd.f32 0.0, %v811
        %813 = vdwg.mxu0
        %v814 = vadd.f32 %v793, %v810
        %v815 = vadd.f32 %v794, %v812
        %v816 = vrot.slane %v770, 1
        %v817 = vrot.slane %v772, 2
        %v818 = vor.u32 %v816, %v817
        %v820 = vsel %vm249, %v818, 0
        %822 = vmatpush.bf16.msra.mxu0 0
        %823 = vmatpush.bf16.msra.mxu0 0
        %824 = vmatpush.bf16.msra.mxu0 0
        %825 = vmatpush.bf16.msra.mxu0 0
        %826 = vmatpush.bf16.msra.mxu0 0
        %827 = vmatpush.bf16.msra.mxu0 0
        %828 = vmatpush.bf16.msra.mxu0 0
        %829 = vmatpush.bf16.msra.mxu0 %v426
        %830 = vmatmul.bf16.gmra.mxu0 %v820
        %v831 = vpop.f32.mrf.mxu0
        %v832 = vadd.f32 0.0, %v831
        %v833 = vpop.f32.mrf.mxu0
        %v834 = vadd.f32 0.0, %v833
        %835 = vdwg.mxu0
        %v836 = vadd.f32 %v814, %v832
        %v837 = vadd.f32 %v815, %v834
        %s838 = sadd.s32 %s230, 2
        %s839 = smul.u32 %s838, 16
        %s840 = scalar_lea.vmem %s209, %s839
        %v841 = vld [vmem:[%s840] sm:$0xff]
        %v842 = vld [vmem:[%s840 + $0x8] sm:$0xff]
        %v843 = vpack.c.bf16 %v842, %v841
        %v845 = vsel %vm249, %v843, 0
        %847 = vmatpush.bf16.msra.mxu0 0
        %848 = vmatpush.bf16.msra.mxu0 0
        %849 = vmatpush.bf16.msra.mxu0 0
        %850 = vmatpush.bf16.msra.mxu0 0
        %851 = vmatpush.bf16.msra.mxu0 0
        %852 = vmatpush.bf16.msra.mxu0 0
        %853 = vmatpush.bf16.msra.mxu0 0
        %854 = vmatpush.bf16.msra.mxu0 %v454
        %855 = vmatmul.bf16.gmra.mxu0 %v845
        %v856 = vpop.f32.mrf.mxu0
        %v857 = vadd.f32 0.0, %v856
        %v858 = vpop.f32.mrf.mxu0
        %v859 = vadd.f32 0.0, %v858
        %860 = vdwg.mxu0
        %v861 = vadd.f32 %v836, %v857
        %v862 = vadd.f32 %v837, %v859
        %v863 = vshrl.u32 %v843, 16
        %v865 = vshll.u32 %v843, 16
        %v867 = vrot.slane %v865, 1
        %v868 = vor.u32 %v863, %v867
        %v870 = vsel %vm249, %v868, 0
        %872 = vmatpush.bf16.msra.mxu0 0
        %873 = vmatpush.bf16.msra.mxu0 0
        %874 = vmatpush.bf16.msra.mxu0 0
        %875 = vmatpush.bf16.msra.mxu0 0
        %876 = vmatpush.bf16.msra.mxu0 0
        %877 = vmatpush.bf16.msra.mxu0 0
        %878 = vmatpush.bf16.msra.mxu0 0
        %879 = vmatpush.bf16.msra.mxu0 %v482
        %880 = vmatmul.bf16.gmra.mxu0 %v870
        %v881 = vpop.f32.mrf.mxu0
        %v882 = vadd.f32 0.0, %v881
        %v883 = vpop.f32.mrf.mxu0
        %v884 = vadd.f32 0.0, %v883
        %885 = vdwg.mxu0
        %v886 = vadd.f32 %v861, %v882
        %v887 = vadd.f32 %v862, %v884
        %v889 = vrot.slane %v843, 1
        %v891 = vsel %vm249, %v889, 0
        %893 = vmatpush.bf16.msra.mxu0 0
        %894 = vmatpush.bf16.msra.mxu0 0
        %895 = vmatpush.bf16.msra.mxu0 0
        %896 = vmatpush.bf16.msra.mxu0 0
        %897 = vmatpush.bf16.msra.mxu0 0
        %898 = vmatpush.bf16.msra.mxu0 0
        %899 = vmatpush.bf16.msra.mxu0 0
        %900 = vmatpush.bf16.msra.mxu0 %v506
        %901 = vmatmul.bf16.gmra.mxu0 %v891
        %v902 = vpop.f32.mrf.mxu0
        %v903 = vadd.f32 0.0, %v902
        %v904 = vpop.f32.mrf.mxu0
        %v905 = vadd.f32 0.0, %v904
        %906 = vdwg.mxu0
        %v907 = vadd.f32 %v886, %v903
        %v908 = vadd.f32 %v887, %v905
        %v909 = vrot.slane %v863, 1
        %v910 = vrot.slane %v865, 2
        %v911 = vor.u32 %v909, %v910
        %v913 = vsel %vm249, %v911, 0
        %915 = vmatpush.bf16.msra.mxu0 0
        %916 = vmatpush.bf16.msra.mxu0 0
        %917 = vmatpush.bf16.msra.mxu0 0
        %918 = vmatpush.bf16.msra.mxu0 0
        %919 = vmatpush.bf16.msra.mxu0 0
        %920 = vmatpush.bf16.msra.mxu0 0
        %921 = vmatpush.bf16.msra.mxu0 0
        %922 = vmatpush.bf16.msra.mxu0 %v531
        %923 = vmatmul.bf16.gmra.mxu0 %v913
        %v924 = vpop.f32.mrf.mxu0
        %v925 = vadd.f32 0.0, %v924
        %v926 = vpop.f32.mrf.mxu0
        %v927 = vadd.f32 0.0, %v926
        %928 = vdwg.mxu0
        %v929 = vadd.f32 %v907, %v925
        %v930 = vadd.f32 %v908, %v927
        %s931 = sadd.s32 %s230, 3
        %s932 = smul.u32 %s931, 16
        %s933 = scalar_lea.vmem %s209, %s932
        %v934 = vld [vmem:[%s933] sm:$0xff]
        %v935 = vld [vmem:[%s933 + $0x8] sm:$0xff]
        %v936 = vpack.c.bf16 %v935, %v934
        %v938 = vsel %vm249, %v936, 0
        %940 = vmatpush.bf16.msra.mxu0 0
        %941 = vmatpush.bf16.msra.mxu0 0
        %942 = vmatpush.bf16.msra.mxu0 0
        %943 = vmatpush.bf16.msra.mxu0 0
        %944 = vmatpush.bf16.msra.mxu0 0
        %945 = vmatpush.bf16.msra.mxu0 0
        %946 = vmatpush.bf16.msra.mxu0 0
        %947 = vmatpush.bf16.msra.mxu0 %v559
        %948 = vmatmul.bf16.gmra.mxu0 %v938
        %v949 = vpop.f32.mrf.mxu0
        %v950 = vadd.f32 0.0, %v949
        %v951 = vpop.f32.mrf.mxu0
        %v952 = vadd.f32 0.0, %v951
        %953 = vdwg.mxu0
        %v954 = vadd.f32 %v929, %v950
        %v955 = vadd.f32 %v930, %v952
        %v956 = vshrl.u32 %v936, 16
        %v958 = vshll.u32 %v936, 16
        %v960 = vrot.slane %v958, 1
        %v961 = vor.u32 %v956, %v960
        %v963 = vsel %vm249, %v961, 0
        %965 = vmatpush.bf16.msra.mxu0 0
        %966 = vmatpush.bf16.msra.mxu0 0
        %967 = vmatpush.bf16.msra.mxu0 0
        %968 = vmatpush.bf16.msra.mxu0 0
        %969 = vmatpush.bf16.msra.mxu0 0
        %970 = vmatpush.bf16.msra.mxu0 0
        %971 = vmatpush.bf16.msra.mxu0 0
        %972 = vmatpush.bf16.msra.mxu0 %v587
        %973 = vmatmul.bf16.gmra.mxu0 %v963
        %v974 = vpop.f32.mrf.mxu0
        %v975 = vadd.f32 0.0, %v974
        %v976 = vpop.f32.mrf.mxu0
        %v977 = vadd.f32 0.0, %v976
        %978 = vdwg.mxu0
        %v979 = vadd.f32 %v954, %v975
        %v980 = vadd.f32 %v955, %v977
        %v982 = vrot.slane %v936, 1
        %v984 = vsel %vm249, %v982, 0
        %986 = vmatpush.bf16.msra.mxu0 0
        %987 = vmatpush.bf16.msra.mxu0 0
        %988 = vmatpush.bf16.msra.mxu0 0
        %989 = vmatpush.bf16.msra.mxu0 0
        %990 = vmatpush.bf16.msra.mxu0 0
        %991 = vmatpush.bf16.msra.mxu0 0
        %992 = vmatpush.bf16.msra.mxu0 0
        %993 = vmatpush.bf16.msra.mxu0 %v611
        %994 = vmatmul.bf16.gmra.mxu0 %v984
        %v995 = vpop.f32.mrf.mxu0
        %v996 = vadd.f32 0.0, %v995
        %v997 = vpop.f32.mrf.mxu0
        %v998 = vadd.f32 0.0, %v997
        %999 = vdwg.mxu0
        %v1000 = vadd.f32 %v979, %v996
        %v1001 = vadd.f32 %v980, %v998
        %v1002 = vrot.slane %v956, 1
        %v1003 = vrot.slane %v958, 2
        %v1004 = vor.u32 %v1002, %v1003
        %v1006 = vsel %vm249, %v1004, 0
        %1008 = vmatpush.bf16.msra.mxu0 0
        %1009 = vmatpush.bf16.msra.mxu0 0
        %1010 = vmatpush.bf16.msra.mxu0 0
        %1011 = vmatpush.bf16.msra.mxu0 0
        %1012 = vmatpush.bf16.msra.mxu0 0
        %1013 = vmatpush.bf16.msra.mxu0 0
        %1014 = vmatpush.bf16.msra.mxu0 0
        %1015 = vmatpush.bf16.msra.mxu0 %v636
        %1016 = vmatmul.bf16.gmra.mxu0 %v1006
        %v1017 = vpop.f32.mrf.mxu0
        %v1018 = vadd.f32 0.0, %v1017
        %v1019 = vpop.f32.mrf.mxu0
        %v1020 = vadd.f32 0.0, %v1019
        %1021 = vdwg.mxu0
        %v1022 = vadd.f32 %v1000, %v1018
        %v1023 = vadd.f32 %v1001, %v1020
        %v1024 = vmul.f32 %v1022, 0.5
        %v1025 = vmul.f32 %v1023, 0.5
        %v1026 = vadd.f32 %v656, %v1024
        %v1027 = vadd.f32 %v657, %v1025
        %s1028 = smul.u32 %s236, 16
        %s1029 = scalar_lea.vmem %s209, %s1028
        %v1030 = vld [vmem:[%s1029] sm:$0xff]
        %v1031 = vld [vmem:[%s1029 + $0x8] sm:$0xff]
        %v1032 = vpack.c.bf16 %v1031, %v1030
        %v1034 = vshrl.u32 %v1032, 16
        %v1036 = vshll.u32 %v1032, 16
        %v1038 = vrot.slane %v1036, 1
        %v1039 = vor.u32 %v1034, %v1038
        %v1041 = vsel %vm249, %v1039, 0
        %1043 = vmatpush.bf16.msra.mxu0 0
        %1044 = vmatpush.bf16.msra.mxu0 0
        %1045 = vmatpush.bf16.msra.mxu0 0
        %1046 = vmatpush.bf16.msra.mxu0 0
        %1047 = vmatpush.bf16.msra.mxu0 0
        %1048 = vmatpush.bf16.msra.mxu0 0
        %1049 = vmatpush.bf16.msra.mxu0 0
        %1050 = vmatpush.bf16.msra.mxu0 %v255
        %1051 = vmatmul.bf16.gmra.mxu0 %v1041
        %v1052 = vpop.f32.mrf.mxu0
        %v1053 = vadd.f32 0.0, %v1052
        %v1054 = vpop.f32.mrf.mxu0
        %v1055 = vadd.f32 0.0, %v1054
        %1056 = vdwg.mxu0
        %v1057 = vsel %vm249, %v1032, 0
        %1059 = vmatpush.bf16.msra.mxu0 0
        %1060 = vmatpush.bf16.msra.mxu0 0
        %1061 = vmatpush.bf16.msra.mxu0 0
        %1062 = vmatpush.bf16.msra.mxu0 0
        %1063 = vmatpush.bf16.msra.mxu0 0
        %1064 = vmatpush.bf16.msra.mxu0 0
        %1065 = vmatpush.bf16.msra.mxu0 0
        %1066 = vmatpush.bf16.msra.mxu0 %v274
        %1067 = vmatmul.bf16.gmra.mxu0 %v1057
        %v1068 = vpop.f32.mrf.mxu0
        %v1069 = vadd.f32 %v1053, %v1068
        %v1070 = vpop.f32.mrf.mxu0
        %v1071 = vadd.f32 %v1055, %v1070
        %1072 = vdwg.mxu0
        %v1074 = vrot.slane %v1032, 1
        %v1076 = vsel %vm249, %v1074, 0
        %1078 = vmatpush.bf16.msra.mxu0 0
        %1079 = vmatpush.bf16.msra.mxu0 0
        %1080 = vmatpush.bf16.msra.mxu0 0
        %1081 = vmatpush.bf16.msra.mxu0 0
        %1082 = vmatpush.bf16.msra.mxu0 0
        %1083 = vmatpush.bf16.msra.mxu0 0
        %1084 = vmatpush.bf16.msra.mxu0 0
        %1085 = vmatpush.bf16.msra.mxu0 %v296
        %1086 = vmatmul.bf16.gmra.mxu0 %v1076
        %v1087 = vpop.f32.mrf.mxu0
        %v1088 = vadd.f32 0.0, %v1087
        %v1089 = vpop.f32.mrf.mxu0
        %v1090 = vadd.f32 0.0, %v1089
        %1091 = vdwg.mxu0
        %v1092 = vadd.f32 %v1069, %v1088
        %v1093 = vadd.f32 %v1071, %v1090
        %v1094 = vrot.slane %v1034, 1
        %v1095 = vrot.slane %v1036, 2
        %v1096 = vor.u32 %v1094, %v1095
        %v1098 = vsel %vm249, %v1096, 0
        %1100 = vmatpush.bf16.msra.mxu0 0
        %1101 = vmatpush.bf16.msra.mxu0 0
        %1102 = vmatpush.bf16.msra.mxu0 0
        %1103 = vmatpush.bf16.msra.mxu0 0
        %1104 = vmatpush.bf16.msra.mxu0 0
        %1105 = vmatpush.bf16.msra.mxu0 0
        %1106 = vmatpush.bf16.msra.mxu0 0
        %1107 = vmatpush.bf16.msra.mxu0 %v321
        %1108 = vmatmul.bf16.gmra.mxu0 %v1098
        %v1109 = vpop.f32.mrf.mxu0
        %v1110 = vadd.f32 0.0, %v1109
        %v1111 = vpop.f32.mrf.mxu0
        %v1112 = vadd.f32 0.0, %v1111
        %1113 = vdwg.mxu0
        %v1114 = vadd.f32 %v1092, %v1110
        %v1115 = vadd.f32 %v1093, %v1112
        %s1116 = sadd.s32 %s236, 1
        %s1117 = smul.u32 %s1116, 16
        %s1118 = scalar_lea.vmem %s209, %s1117
        %v1119 = vld [vmem:[%s1118] sm:$0xff]
        %v1120 = vld [vmem:[%s1118 + $0x8] sm:$0xff]
        %v1121 = vpack.c.bf16 %v1120, %v1119
        %v1123 = vsel %vm249, %v1121, 0
        %1125 = vmatpush.bf16.msra.mxu0 0
        %1126 = vmatpush.bf16.msra.mxu0 0
        %1127 = vmatpush.bf16.msra.mxu0 0
        %1128 = vmatpush.bf16.msra.mxu0 0
        %1129 = vmatpush.bf16.msra.mxu0 0
        %1130 = vmatpush.bf16.msra.mxu0 0
        %1131 = vmatpush.bf16.msra.mxu0 0
        %1132 = vmatpush.bf16.msra.mxu0 %v349
        %1133 = vmatmul.bf16.gmra.mxu0 %v1123
        %v1134 = vpop.f32.mrf.mxu0
        %v1135 = vadd.f32 0.0, %v1134
        %v1136 = vpop.f32.mrf.mxu0
        %v1137 = vadd.f32 0.0, %v1136
        %1138 = vdwg.mxu0
        %v1139 = vadd.f32 %v1114, %v1135
        %v1140 = vadd.f32 %v1115, %v1137
        %v1141 = vshrl.u32 %v1121, 16
        %v1143 = vshll.u32 %v1121, 16
        %v1145 = vrot.slane %v1143, 1
        %v1146 = vor.u32 %v1141, %v1145
        %v1148 = vsel %vm249, %v1146, 0
        %1150 = vmatpush.bf16.msra.mxu0 0
        %1151 = vmatpush.bf16.msra.mxu0 0
        %1152 = vmatpush.bf16.msra.mxu0 0
        %1153 = vmatpush.bf16.msra.mxu0 0
        %1154 = vmatpush.bf16.msra.mxu0 0
        %1155 = vmatpush.bf16.msra.mxu0 0
        %1156 = vmatpush.bf16.msra.mxu0 0
        %1157 = vmatpush.bf16.msra.mxu0 %v377
        %1158 = vmatmul.bf16.gmra.mxu0 %v1148
        %v1159 = vpop.f32.mrf.mxu0
        %v1160 = vadd.f32 0.0, %v1159
        %v1161 = vpop.f32.mrf.mxu0
        %v1162 = vadd.f32 0.0, %v1161
        %1163 = vdwg.mxu0
        %v1164 = vadd.f32 %v1139, %v1160
        %v1165 = vadd.f32 %v1140, %v1162
        %v1167 = vrot.slane %v1121, 1
        %v1169 = vsel %vm249, %v1167, 0
        %1171 = vmatpush.bf16.msra.mxu0 0
        %1172 = vmatpush.bf16.msra.mxu0 0
        %1173 = vmatpush.bf16.msra.mxu0 0
        %1174 = vmatpush.bf16.msra.mxu0 0
        %1175 = vmatpush.bf16.msra.mxu0 0
        %1176 = vmatpush.bf16.msra.mxu0 0
        %1177 = vmatpush.bf16.msra.mxu0 0
        %1178 = vmatpush.bf16.msra.mxu0 %v401
        %1179 = vmatmul.bf16.gmra.mxu0 %v1169
        %v1180 = vpop.f32.mrf.mxu0
        %v1181 = vadd.f32 0.0, %v1180
        %v1182 = vpop.f32.mrf.mxu0
        %v1183 = vadd.f32 0.0, %v1182
        %1184 = vdwg.mxu0
        %v1185 = vadd.f32 %v1164, %v1181
        %v1186 = vadd.f32 %v1165, %v1183
        %v1187 = vrot.slane %v1141, 1
        %v1188 = vrot.slane %v1143, 2
        %v1189 = vor.u32 %v1187, %v1188
        %v1191 = vsel %vm249, %v1189, 0
        %1193 = vmatpush.bf16.msra.mxu0 0
        %1194 = vmatpush.bf16.msra.mxu0 0
        %1195 = vmatpush.bf16.msra.mxu0 0
        %1196 = vmatpush.bf16.msra.mxu0 0
        %1197 = vmatpush.bf16.msra.mxu0 0
        %1198 = vmatpush.bf16.msra.mxu0 0
        %1199 = vmatpush.bf16.msra.mxu0 0
        %1200 = vmatpush.bf16.msra.mxu0 %v426
        %1201 = vmatmul.bf16.gmra.mxu0 %v1191
        %v1202 = vpop.f32.mrf.mxu0
        %v1203 = vadd.f32 0.0, %v1202
        %v1204 = vpop.f32.mrf.mxu0
        %v1205 = vadd.f32 0.0, %v1204
        %1206 = vdwg.mxu0
        %v1207 = vadd.f32 %v1185, %v1203
        %v1208 = vadd.f32 %v1186, %v1205
        %s1209 = sadd.s32 %s236, 2
        %s1210 = smul.u32 %s1209, 16
        %s1211 = scalar_lea.vmem %s209, %s1210
        %v1212 = vld [vmem:[%s1211] sm:$0xff]
        %v1213 = vld [vmem:[%s1211 + $0x8] sm:$0xff]
        %v1214 = vpack.c.bf16 %v1213, %v1212
        %v1216 = vsel %vm249, %v1214, 0
        %1218 = vmatpush.bf16.msra.mxu0 0
        %1219 = vmatpush.bf16.msra.mxu0 0
        %1220 = vmatpush.bf16.msra.mxu0 0
        %1221 = vmatpush.bf16.msra.mxu0 0
        %1222 = vmatpush.bf16.msra.mxu0 0
        %1223 = vmatpush.bf16.msra.mxu0 0
        %1224 = vmatpush.bf16.msra.mxu0 0
        %1225 = vmatpush.bf16.msra.mxu0 %v454
        %1226 = vmatmul.bf16.gmra.mxu0 %v1216
        %v1227 = vpop.f32.mrf.mxu0
        %v1228 = vadd.f32 0.0, %v1227
        %v1229 = vpop.f32.mrf.mxu0
        %v1230 = vadd.f32 0.0, %v1229
        %1231 = vdwg.mxu0
        %v1232 = vadd.f32 %v1207, %v1228
        %v1233 = vadd.f32 %v1208, %v1230
        %v1234 = vshrl.u32 %v1214, 16
        %v1236 = vshll.u32 %v1214, 16
        %v1238 = vrot.slane %v1236, 1
        %v1239 = vor.u32 %v1234, %v1238
        %v1241 = vsel %vm249, %v1239, 0
        %1243 = vmatpush.bf16.msra.mxu0 0
        %1244 = vmatpush.bf16.msra.mxu0 0
        %1245 = vmatpush.bf16.msra.mxu0 0
        %1246 = vmatpush.bf16.msra.mxu0 0
        %1247 = vmatpush.bf16.msra.mxu0 0
        %1248 = vmatpush.bf16.msra.mxu0 0
        %1249 = vmatpush.bf16.msra.mxu0 0
        %1250 = vmatpush.bf16.msra.mxu0 %v482
        %1251 = vmatmul.bf16.gmra.mxu0 %v1241
        %v1252 = vpop.f32.mrf.mxu0
        %v1253 = vadd.f32 0.0, %v1252
        %v1254 = vpop.f32.mrf.mxu0
        %v1255 = vadd.f32 0.0, %v1254
        %1256 = vdwg.mxu0
        %v1257 = vadd.f32 %v1232, %v1253
        %v1258 = vadd.f32 %v1233, %v1255
        %v1260 = vrot.slane %v1214, 1
        %v1262 = vsel %vm249, %v1260, 0
        %1264 = vmatpush.bf16.msra.mxu0 0
        %1265 = vmatpush.bf16.msra.mxu0 0
        %1266 = vmatpush.bf16.msra.mxu0 0
        %1267 = vmatpush.bf16.msra.mxu0 0
        %1268 = vmatpush.bf16.msra.mxu0 0
        %1269 = vmatpush.bf16.msra.mxu0 0
        %1270 = vmatpush.bf16.msra.mxu0 0
        %1271 = vmatpush.bf16.msra.mxu0 %v506
        %1272 = vmatmul.bf16.gmra.mxu0 %v1262
        %v1273 = vpop.f32.mrf.mxu0
        %v1274 = vadd.f32 0.0, %v1273
        %v1275 = vpop.f32.mrf.mxu0
        %v1276 = vadd.f32 0.0, %v1275
        %1277 = vdwg.mxu0
        %v1278 = vadd.f32 %v1257, %v1274
        %v1279 = vadd.f32 %v1258, %v1276
        %v1280 = vrot.slane %v1234, 1
        %v1281 = vrot.slane %v1236, 2
        %v1282 = vor.u32 %v1280, %v1281
        %v1284 = vsel %vm249, %v1282, 0
        %1286 = vmatpush.bf16.msra.mxu0 0
        %1287 = vmatpush.bf16.msra.mxu0 0
        %1288 = vmatpush.bf16.msra.mxu0 0
        %1289 = vmatpush.bf16.msra.mxu0 0
        %1290 = vmatpush.bf16.msra.mxu0 0
        %1291 = vmatpush.bf16.msra.mxu0 0
        %1292 = vmatpush.bf16.msra.mxu0 0
        %1293 = vmatpush.bf16.msra.mxu0 %v531
        %1294 = vmatmul.bf16.gmra.mxu0 %v1284
        %v1295 = vpop.f32.mrf.mxu0
        %v1296 = vadd.f32 0.0, %v1295
        %v1297 = vpop.f32.mrf.mxu0
        %v1298 = vadd.f32 0.0, %v1297
        %1299 = vdwg.mxu0
        %v1300 = vadd.f32 %v1278, %v1296
        %v1301 = vadd.f32 %v1279, %v1298
        %s1302 = sadd.s32 %s236, 3
        %s1303 = smul.u32 %s1302, 16
        %s1304 = scalar_lea.vmem %s209, %s1303
        %v1305 = vld [vmem:[%s1304] sm:$0xff]
        %v1306 = vld [vmem:[%s1304 + $0x8] sm:$0xff]
        %v1307 = vpack.c.bf16 %v1306, %v1305
        %v1309 = vsel %vm249, %v1307, 0
        %1311 = vmatpush.bf16.msra.mxu0 0
        %1312 = vmatpush.bf16.msra.mxu0 0
        %1313 = vmatpush.bf16.msra.mxu0 0
        %1314 = vmatpush.bf16.msra.mxu0 0
        %1315 = vmatpush.bf16.msra.mxu0 0
        %1316 = vmatpush.bf16.msra.mxu0 0
        %1317 = vmatpush.bf16.msra.mxu0 0
        %1318 = vmatpush.bf16.msra.mxu0 %v559
        %1319 = vmatmul.bf16.gmra.mxu0 %v1309
        %v1320 = vpop.f32.mrf.mxu0
        %v1321 = vadd.f32 0.0, %v1320
        %v1322 = vpop.f32.mrf.mxu0
        %v1323 = vadd.f32 0.0, %v1322
        %1324 = vdwg.mxu0
        %v1325 = vadd.f32 %v1300, %v1321
        %v1326 = vadd.f32 %v1301, %v1323
        %v1327 = vshrl.u32 %v1307, 16
        %v1329 = vshll.u32 %v1307, 16
        %v1331 = vrot.slane %v1329, 1
        %v1332 = vor.u32 %v1327, %v1331
        %v1334 = vsel %vm249, %v1332, 0
        %1336 = vmatpush.bf16.msra.mxu0 0
        %1337 = vmatpush.bf16.msra.mxu0 0
        %1338 = vmatpush.bf16.msra.mxu0 0
        %1339 = vmatpush.bf16.msra.mxu0 0
        %1340 = vmatpush.bf16.msra.mxu0 0
        %1341 = vmatpush.bf16.msra.mxu0 0
        %1342 = vmatpush.bf16.msra.mxu0 0
        %1343 = vmatpush.bf16.msra.mxu0 %v587
        %1344 = vmatmul.bf16.gmra.mxu0 %v1334
        %v1345 = vpop.f32.mrf.mxu0
        %v1346 = vadd.f32 0.0, %v1345
        %v1347 = vpop.f32.mrf.mxu0
        %v1348 = vadd.f32 0.0, %v1347
        %1349 = vdwg.mxu0
        %v1350 = vadd.f32 %v1325, %v1346
        %v1351 = vadd.f32 %v1326, %v1348
        %v1353 = vrot.slane %v1307, 1
        %v1355 = vsel %vm249, %v1353, 0
        %1357 = vmatpush.bf16.msra.mxu0 0
        %1358 = vmatpush.bf16.msra.mxu0 0
        %1359 = vmatpush.bf16.msra.mxu0 0
        %1360 = vmatpush.bf16.msra.mxu0 0
        %1361 = vmatpush.bf16.msra.mxu0 0
        %1362 = vmatpush.bf16.msra.mxu0 0
        %1363 = vmatpush.bf16.msra.mxu0 0
        %1364 = vmatpush.bf16.msra.mxu0 %v611
        %1365 = vmatmul.bf16.gmra.mxu0 %v1355
        %v1366 = vpop.f32.mrf.mxu0
        %v1367 = vadd.f32 0.0, %v1366
        %v1368 = vpop.f32.mrf.mxu0
        %v1369 = vadd.f32 0.0, %v1368
        %1370 = vdwg.mxu0
        %v1371 = vadd.f32 %v1350, %v1367
        %v1372 = vadd.f32 %v1351, %v1369
        %v1373 = vrot.slane %v1327, 1
        %v1374 = vrot.slane %v1329, 2
        %v1375 = vor.u32 %v1373, %v1374
        %v1377 = vsel %vm249, %v1375, 0
        %1379 = vmatpush.bf16.msra.mxu0 0
        %1380 = vmatpush.bf16.msra.mxu0 0
        %1381 = vmatpush.bf16.msra.mxu0 0
        %1382 = vmatpush.bf16.msra.mxu0 0
        %1383 = vmatpush.bf16.msra.mxu0 0
        %1384 = vmatpush.bf16.msra.mxu0 0
        %1385 = vmatpush.bf16.msra.mxu0 0
        %1386 = vmatpush.bf16.msra.mxu0 %v636
        %1387 = vmatmul.bf16.gmra.mxu0 %v1377
        %v1388 = vpop.f32.mrf.mxu0
        %v1389 = vadd.f32 0.0, %v1388
        %v1390 = vpop.f32.mrf.mxu0
        %v1391 = vadd.f32 0.0, %v1390
        %1392 = vdwg.mxu0
        %v1393 = vadd.f32 %v1371, %v1389
        %v1394 = vadd.f32 %v1372, %v1391
        %v1395 = vmul.f32 %v1393, 0.25
        %v1396 = vmul.f32 %v1394, 0.25
        %v1397 = vadd.f32 %v1026, %v1395
        %v1398 = vadd.f32 %v1027, %v1396
        %v1399 = vpack.c.bf16 %v1398, %v1397
        %v1401 = vperm.slane %v229, 0
        %vm1403 = vcmask 105472
        %v1405 = vsel %vm1403, %v228, 0
        %vm1407 = vcmask 1045504
        %vm1408 = vcmask 1046528
        %v1409 = vsel %vm1407, 4294967295, 65535
        %v1410 = vsel %vm1408, %v1409, 0
        %v1412 = vand.u32 %v1399, %v1410
        %1414 = vmatpush.bf16.msra.mxu0 0
        %1415 = vmatpush.bf16.msra.mxu0 0
        %1416 = vmatpush.bf16.msra.mxu0 0
        %1417 = vmatpush.bf16.msra.mxu0 0
        %1418 = vmatpush.bf16.msra.mxu0 0
        %1419 = vmatpush.bf16.msra.mxu0 0
        %1420 = vmatpush.bf16.msra.mxu0 0
        %1421 = vmatpush.bf16.msra.mxu0 %v1412
        %1422 = vmatmul.bf16.gmra.mxu0 %v1405
        %v1423 = vpop.f32.mrf.mxu0
        %v1424 = vadd.f32 %v1401, %v1423
        %v1425 = vpop.f32.mrf.mxu0
        %1426 = vdwg.mxu0
        %1427 = vst [vmem:[%s204] sm:$0xf] %v1424
        %s1428 = smul.u32 %s23, 4
        %s1429 = sadd.s32 %s1428, 1
        %s1430 = smul.u32 %s1429, 4
        %p1431 = scmp.eq.s32.totalorder %s1430, 0
        %s1432 = ssub.s32 %s1430, 1
        %s1433 = scalar_select %p1431, 1, %s1432
        %p1434 = scmp.eq.s32.totalorder %s1430, 12
        %s1435 = sadd.s32 %s1430, 1
        %s1436 = scalar_select %p1434, 11, %s1435
        %s1437 = smul.u32 %s1433, 16
        %s1438 = scalar_lea.vmem %s209, %s1437
        %v1439 = vld [vmem:[%s1438] sm:$0xff]
        %v1440 = vld [vmem:[%s1438 + $0x8] sm:$0xff]
        %v1441 = vpack.c.bf16 %v1440, %v1439
        %v1443 = vshrl.u32 %v1441, 16
        %v1445 = vshll.u32 %v1441, 16
        %v1447 = vrot.slane %v1445, 1
        %v1448 = vor.u32 %v1443, %v1447
        %v1450 = vsel %vm249, %v1448, 0
        %1452 = vmatpush.bf16.msra.mxu0 0
        %1453 = vmatpush.bf16.msra.mxu0 0
        %1454 = vmatpush.bf16.msra.mxu0 0
        %1455 = vmatpush.bf16.msra.mxu0 0
        %1456 = vmatpush.bf16.msra.mxu0 0
        %1457 = vmatpush.bf16.msra.mxu0 0
        %1458 = vmatpush.bf16.msra.mxu0 0
        %1459 = vmatpush.bf16.msra.mxu0 %v255
        %1460 = vmatmul.bf16.gmra.mxu0 %v1450
        %v1461 = vpop.f32.mrf.mxu0
        %v1462 = vadd.f32 0.0, %v1461
        %v1463 = vpop.f32.mrf.mxu0
        %v1464 = vadd.f32 0.0, %v1463
        %1465 = vdwg.mxu0
        %v1466 = vsel %vm249, %v1441, 0
        %1468 = vmatpush.bf16.msra.mxu0 0
        %1469 = vmatpush.bf16.msra.mxu0 0
        %1470 = vmatpush.bf16.msra.mxu0 0
        %1471 = vmatpush.bf16.msra.mxu0 0
        %1472 = vmatpush.bf16.msra.mxu0 0
        %1473 = vmatpush.bf16.msra.mxu0 0
        %1474 = vmatpush.bf16.msra.mxu0 0
        %1475 = vmatpush.bf16.msra.mxu0 %v274
        %1476 = vmatmul.bf16.gmra.mxu0 %v1466
        %v1477 = vpop.f32.mrf.mxu0
        %v1478 = vadd.f32 %v1462, %v1477
        %v1479 = vpop.f32.mrf.mxu0
        %v1480 = vadd.f32 %v1464, %v1479
        %1481 = vdwg.mxu0
        %v1483 = vrot.slane %v1441, 1
        %v1485 = vsel %vm249, %v1483, 0
        %1487 = vmatpush.bf16.msra.mxu0 0
        %1488 = vmatpush.bf16.msra.mxu0 0
        %1489 = vmatpush.bf16.msra.mxu0 0
        %1490 = vmatpush.bf16.msra.mxu0 0
        %1491 = vmatpush.bf16.msra.mxu0 0
        %1492 = vmatpush.bf16.msra.mxu0 0
        %1493 = vmatpush.bf16.msra.mxu0 0
        %1494 = vmatpush.bf16.msra.mxu0 %v296
        %1495 = vmatmul.bf16.gmra.mxu0 %v1485
        %v1496 = vpop.f32.mrf.mxu0
        %v1497 = vadd.f32 0.0, %v1496
        %v1498 = vpop.f32.mrf.mxu0
        %v1499 = vadd.f32 0.0, %v1498
        %1500 = vdwg.mxu0
        %v1501 = vadd.f32 %v1478, %v1497
        %v1502 = vadd.f32 %v1480, %v1499
        %v1503 = vrot.slane %v1443, 1
        %v1504 = vrot.slane %v1445, 2
        %v1505 = vor.u32 %v1503, %v1504
        %v1507 = vsel %vm249, %v1505, 0
        %1509 = vmatpush.bf16.msra.mxu0 0
        %1510 = vmatpush.bf16.msra.mxu0 0
        %1511 = vmatpush.bf16.msra.mxu0 0
        %1512 = vmatpush.bf16.msra.mxu0 0
        %1513 = vmatpush.bf16.msra.mxu0 0
        %1514 = vmatpush.bf16.msra.mxu0 0
        %1515 = vmatpush.bf16.msra.mxu0 0
        %1516 = vmatpush.bf16.msra.mxu0 %v321
        %1517 = vmatmul.bf16.gmra.mxu0 %v1507
        %v1518 = vpop.f32.mrf.mxu0
        %v1519 = vadd.f32 0.0, %v1518
        %v1520 = vpop.f32.mrf.mxu0
        %v1521 = vadd.f32 0.0, %v1520
        %1522 = vdwg.mxu0
        %v1523 = vadd.f32 %v1501, %v1519
        %v1524 = vadd.f32 %v1502, %v1521
        %s1525 = sadd.s32 %s1433, 1
        %s1526 = smul.u32 %s1525, 16
        %s1527 = scalar_lea.vmem %s209, %s1526
        %v1528 = vld [vmem:[%s1527] sm:$0xff]
        %v1529 = vld [vmem:[%s1527 + $0x8] sm:$0xff]
        %v1530 = vpack.c.bf16 %v1529, %v1528
        %v1532 = vsel %vm249, %v1530, 0
        %1534 = vmatpush.bf16.msra.mxu0 0
        %1535 = vmatpush.bf16.msra.mxu0 0
        %1536 = vmatpush.bf16.msra.mxu0 0
        %1537 = vmatpush.bf16.msra.mxu0 0
        %1538 = vmatpush.bf16.msra.mxu0 0
        %1539 = vmatpush.bf16.msra.mxu0 0
        %1540 = vmatpush.bf16.msra.mxu0 0
        %1541 = vmatpush.bf16.msra.mxu0 %v349
        %1542 = vmatmul.bf16.gmra.mxu0 %v1532
        %v1543 = vpop.f32.mrf.mxu0
        %v1544 = vadd.f32 0.0, %v1543
        %v1545 = vpop.f32.mrf.mxu0
        %v1546 = vadd.f32 0.0, %v1545
        %1547 = vdwg.mxu0
        %v1548 = vadd.f32 %v1523, %v1544
        %v1549 = vadd.f32 %v1524, %v1546
        %v1550 = vshrl.u32 %v1530, 16
        %v1552 = vshll.u32 %v1530, 16
        %v1554 = vrot.slane %v1552, 1
        %v1555 = vor.u32 %v1550, %v1554
        %v1557 = vsel %vm249, %v1555, 0
        %1559 = vmatpush.bf16.msra.mxu0 0
        %1560 = vmatpush.bf16.msra.mxu0 0
        %1561 = vmatpush.bf16.msra.mxu0 0
        %1562 = vmatpush.bf16.msra.mxu0 0
        %1563 = vmatpush.bf16.msra.mxu0 0
        %1564 = vmatpush.bf16.msra.mxu0 0
        %1565 = vmatpush.bf16.msra.mxu0 0
        %1566 = vmatpush.bf16.msra.mxu0 %v377
        %1567 = vmatmul.bf16.gmra.mxu0 %v1557
        %v1568 = vpop.f32.mrf.mxu0
        %v1569 = vadd.f32 0.0, %v1568
        %v1570 = vpop.f32.mrf.mxu0
        %v1571 = vadd.f32 0.0, %v1570
        %1572 = vdwg.mxu0
        %v1573 = vadd.f32 %v1548, %v1569
        %v1574 = vadd.f32 %v1549, %v1571
        %v1576 = vrot.slane %v1530, 1
        %v1578 = vsel %vm249, %v1576, 0
        %1580 = vmatpush.bf16.msra.mxu0 0
        %1581 = vmatpush.bf16.msra.mxu0 0
        %1582 = vmatpush.bf16.msra.mxu0 0
        %1583 = vmatpush.bf16.msra.mxu0 0
        %1584 = vmatpush.bf16.msra.mxu0 0
        %1585 = vmatpush.bf16.msra.mxu0 0
        %1586 = vmatpush.bf16.msra.mxu0 0
        %1587 = vmatpush.bf16.msra.mxu0 %v401
        %1588 = vmatmul.bf16.gmra.mxu0 %v1578
        %v1589 = vpop.f32.mrf.mxu0
        %v1590 = vadd.f32 0.0, %v1589
        %v1591 = vpop.f32.mrf.mxu0
        %v1592 = vadd.f32 0.0, %v1591
        %1593 = vdwg.mxu0
        %v1594 = vadd.f32 %v1573, %v1590
        %v1595 = vadd.f32 %v1574, %v1592
        %v1596 = vrot.slane %v1550, 1
        %v1597 = vrot.slane %v1552, 2
        %v1598 = vor.u32 %v1596, %v1597
        %v1600 = vsel %vm249, %v1598, 0
        %1602 = vmatpush.bf16.msra.mxu0 0
        %1603 = vmatpush.bf16.msra.mxu0 0
        %1604 = vmatpush.bf16.msra.mxu0 0
        %1605 = vmatpush.bf16.msra.mxu0 0
        %1606 = vmatpush.bf16.msra.mxu0 0
        %1607 = vmatpush.bf16.msra.mxu0 0
        %1608 = vmatpush.bf16.msra.mxu0 0
        %1609 = vmatpush.bf16.msra.mxu0 %v426
        %1610 = vmatmul.bf16.gmra.mxu0 %v1600
        %v1611 = vpop.f32.mrf.mxu0
        %v1612 = vadd.f32 0.0, %v1611
        %v1613 = vpop.f32.mrf.mxu0
        %v1614 = vadd.f32 0.0, %v1613
        %1615 = vdwg.mxu0
        %v1616 = vadd.f32 %v1594, %v1612
        %v1617 = vadd.f32 %v1595, %v1614
        %s1618 = sadd.s32 %s1433, 2
        %s1619 = smul.u32 %s1618, 16
        %s1620 = scalar_lea.vmem %s209, %s1619
        %v1621 = vld [vmem:[%s1620] sm:$0xff]
        %v1622 = vld [vmem:[%s1620 + $0x8] sm:$0xff]
        %v1623 = vpack.c.bf16 %v1622, %v1621
        %v1625 = vsel %vm249, %v1623, 0
        %1627 = vmatpush.bf16.msra.mxu0 0
        %1628 = vmatpush.bf16.msra.mxu0 0
        %1629 = vmatpush.bf16.msra.mxu0 0
        %1630 = vmatpush.bf16.msra.mxu0 0
        %1631 = vmatpush.bf16.msra.mxu0 0
        %1632 = vmatpush.bf16.msra.mxu0 0
        %1633 = vmatpush.bf16.msra.mxu0 0
        %1634 = vmatpush.bf16.msra.mxu0 %v454
        %1635 = vmatmul.bf16.gmra.mxu0 %v1625
        %v1636 = vpop.f32.mrf.mxu0
        %v1637 = vadd.f32 0.0, %v1636
        %v1638 = vpop.f32.mrf.mxu0
        %v1639 = vadd.f32 0.0, %v1638
        %1640 = vdwg.mxu0
        %v1641 = vadd.f32 %v1616, %v1637
        %v1642 = vadd.f32 %v1617, %v1639
        %v1643 = vshrl.u32 %v1623, 16
        %v1645 = vshll.u32 %v1623, 16
        %v1647 = vrot.slane %v1645, 1
        %v1648 = vor.u32 %v1643, %v1647
        %v1650 = vsel %vm249, %v1648, 0
        %1652 = vmatpush.bf16.msra.mxu0 0
        %1653 = vmatpush.bf16.msra.mxu0 0
        %1654 = vmatpush.bf16.msra.mxu0 0
        %1655 = vmatpush.bf16.msra.mxu0 0
        %1656 = vmatpush.bf16.msra.mxu0 0
        %1657 = vmatpush.bf16.msra.mxu0 0
        %1658 = vmatpush.bf16.msra.mxu0 0
        %1659 = vmatpush.bf16.msra.mxu0 %v482
        %1660 = vmatmul.bf16.gmra.mxu0 %v1650
        %v1661 = vpop.f32.mrf.mxu0
        %v1662 = vadd.f32 0.0, %v1661
        %v1663 = vpop.f32.mrf.mxu0
        %v1664 = vadd.f32 0.0, %v1663
        %1665 = vdwg.mxu0
        %v1666 = vadd.f32 %v1641, %v1662
        %v1667 = vadd.f32 %v1642, %v1664
        %v1669 = vrot.slane %v1623, 1
        %v1671 = vsel %vm249, %v1669, 0
        %1673 = vmatpush.bf16.msra.mxu0 0
        %1674 = vmatpush.bf16.msra.mxu0 0
        %1675 = vmatpush.bf16.msra.mxu0 0
        %1676 = vmatpush.bf16.msra.mxu0 0
        %1677 = vmatpush.bf16.msra.mxu0 0
        %1678 = vmatpush.bf16.msra.mxu0 0
        %1679 = vmatpush.bf16.msra.mxu0 0
        %1680 = vmatpush.bf16.msra.mxu0 %v506
        %1681 = vmatmul.bf16.gmra.mxu0 %v1671
        %v1682 = vpop.f32.mrf.mxu0
        %v1683 = vadd.f32 0.0, %v1682
        %v1684 = vpop.f32.mrf.mxu0
        %v1685 = vadd.f32 0.0, %v1684
        %1686 = vdwg.mxu0
        %v1687 = vadd.f32 %v1666, %v1683
        %v1688 = vadd.f32 %v1667, %v1685
        %v1689 = vrot.slane %v1643, 1
        %v1690 = vrot.slane %v1645, 2
        %v1691 = vor.u32 %v1689, %v1690
        %v1693 = vsel %vm249, %v1691, 0
        %1695 = vmatpush.bf16.msra.mxu0 0
        %1696 = vmatpush.bf16.msra.mxu0 0
        %1697 = vmatpush.bf16.msra.mxu0 0
        %1698 = vmatpush.bf16.msra.mxu0 0
        %1699 = vmatpush.bf16.msra.mxu0 0
        %1700 = vmatpush.bf16.msra.mxu0 0
        %1701 = vmatpush.bf16.msra.mxu0 0
        %1702 = vmatpush.bf16.msra.mxu0 %v531
        %1703 = vmatmul.bf16.gmra.mxu0 %v1693
        %v1704 = vpop.f32.mrf.mxu0
        %v1705 = vadd.f32 0.0, %v1704
        %v1706 = vpop.f32.mrf.mxu0
        %v1707 = vadd.f32 0.0, %v1706
        %1708 = vdwg.mxu0
        %v1709 = vadd.f32 %v1687, %v1705
        %v1710 = vadd.f32 %v1688, %v1707
        %s1711 = sadd.s32 %s1433, 3
        %s1712 = smul.u32 %s1711, 16
        %s1713 = scalar_lea.vmem %s209, %s1712
        %v1714 = vld [vmem:[%s1713] sm:$0xff]
        %v1715 = vld [vmem:[%s1713 + $0x8] sm:$0xff]
        %v1716 = vpack.c.bf16 %v1715, %v1714
        %v1718 = vsel %vm249, %v1716, 0
        %1720 = vmatpush.bf16.msra.mxu0 0
        %1721 = vmatpush.bf16.msra.mxu0 0
        %1722 = vmatpush.bf16.msra.mxu0 0
        %1723 = vmatpush.bf16.msra.mxu0 0
        %1724 = vmatpush.bf16.msra.mxu0 0
        %1725 = vmatpush.bf16.msra.mxu0 0
        %1726 = vmatpush.bf16.msra.mxu0 0
        %1727 = vmatpush.bf16.msra.mxu0 %v559
        %1728 = vmatmul.bf16.gmra.mxu0 %v1718
        %v1729 = vpop.f32.mrf.mxu0
        %v1730 = vadd.f32 0.0, %v1729
        %v1731 = vpop.f32.mrf.mxu0
        %v1732 = vadd.f32 0.0, %v1731
        %1733 = vdwg.mxu0
        %v1734 = vadd.f32 %v1709, %v1730
        %v1735 = vadd.f32 %v1710, %v1732
        %v1736 = vshrl.u32 %v1716, 16
        %v1738 = vshll.u32 %v1716, 16
        %v1740 = vrot.slane %v1738, 1
        %v1741 = vor.u32 %v1736, %v1740
        %v1743 = vsel %vm249, %v1741, 0
        %1745 = vmatpush.bf16.msra.mxu0 0
        %1746 = vmatpush.bf16.msra.mxu0 0
        %1747 = vmatpush.bf16.msra.mxu0 0
        %1748 = vmatpush.bf16.msra.mxu0 0
        %1749 = vmatpush.bf16.msra.mxu0 0
        %1750 = vmatpush.bf16.msra.mxu0 0
        %1751 = vmatpush.bf16.msra.mxu0 0
        %1752 = vmatpush.bf16.msra.mxu0 %v587
        %1753 = vmatmul.bf16.gmra.mxu0 %v1743
        %v1754 = vpop.f32.mrf.mxu0
        %v1755 = vadd.f32 0.0, %v1754
        %v1756 = vpop.f32.mrf.mxu0
        %v1757 = vadd.f32 0.0, %v1756
        %1758 = vdwg.mxu0
        %v1759 = vadd.f32 %v1734, %v1755
        %v1760 = vadd.f32 %v1735, %v1757
        %v1762 = vrot.slane %v1716, 1
        %v1764 = vsel %vm249, %v1762, 0
        %1766 = vmatpush.bf16.msra.mxu0 0
        %1767 = vmatpush.bf16.msra.mxu0 0
        %1768 = vmatpush.bf16.msra.mxu0 0
        %1769 = vmatpush.bf16.msra.mxu0 0
        %1770 = vmatpush.bf16.msra.mxu0 0
        %1771 = vmatpush.bf16.msra.mxu0 0
        %1772 = vmatpush.bf16.msra.mxu0 0
        %1773 = vmatpush.bf16.msra.mxu0 %v611
        %1774 = vmatmul.bf16.gmra.mxu0 %v1764
        %v1775 = vpop.f32.mrf.mxu0
        %v1776 = vadd.f32 0.0, %v1775
        %v1777 = vpop.f32.mrf.mxu0
        %v1778 = vadd.f32 0.0, %v1777
        %1779 = vdwg.mxu0
        %v1780 = vadd.f32 %v1759, %v1776
        %v1781 = vadd.f32 %v1760, %v1778
        %v1782 = vrot.slane %v1736, 1
        %v1783 = vrot.slane %v1738, 2
        %v1784 = vor.u32 %v1782, %v1783
        %v1786 = vsel %vm249, %v1784, 0
        %1788 = vmatpush.bf16.msra.mxu0 0
        %1789 = vmatpush.bf16.msra.mxu0 0
        %1790 = vmatpush.bf16.msra.mxu0 0
        %1791 = vmatpush.bf16.msra.mxu0 0
        %1792 = vmatpush.bf16.msra.mxu0 0
        %1793 = vmatpush.bf16.msra.mxu0 0
        %1794 = vmatpush.bf16.msra.mxu0 0
        %1795 = vmatpush.bf16.msra.mxu0 %v636
        %1796 = vmatmul.bf16.gmra.mxu0 %v1786
        %v1797 = vpop.f32.mrf.mxu0
        %v1798 = vadd.f32 0.0, %v1797
        %v1799 = vpop.f32.mrf.mxu0
        %v1800 = vadd.f32 0.0, %v1799
        %1801 = vdwg.mxu0
        %v1802 = vadd.f32 %v1780, %v1798
        %v1803 = vadd.f32 %v1781, %v1800
        %v1804 = vmul.f32 %v1802, 0.25
        %v1805 = vmul.f32 %v1803, 0.25
        %v1806 = vadd.f32 %v1804, 0.0
        %v1807 = vadd.f32 %v1805, 0.0
        %s1808 = smul.u32 %s1430, 16
        %s1809 = scalar_lea.vmem %s209, %s1808
        %v1810 = vld [vmem:[%s1809] sm:$0xff]
        %v1811 = vld [vmem:[%s1809 + $0x8] sm:$0xff]
        %v1812 = vpack.c.bf16 %v1811, %v1810
        %v1814 = vshrl.u32 %v1812, 16
        %v1816 = vshll.u32 %v1812, 16
        %v1818 = vrot.slane %v1816, 1
        %v1819 = vor.u32 %v1814, %v1818
        %v1821 = vsel %vm249, %v1819, 0
        %1823 = vmatpush.bf16.msra.mxu0 0
        %1824 = vmatpush.bf16.msra.mxu0 0
        %1825 = vmatpush.bf16.msra.mxu0 0
        %1826 = vmatpush.bf16.msra.mxu0 0
        %1827 = vmatpush.bf16.msra.mxu0 0
        %1828 = vmatpush.bf16.msra.mxu0 0
        %1829 = vmatpush.bf16.msra.mxu0 0
        %1830 = vmatpush.bf16.msra.mxu0 %v255
        %1831 = vmatmul.bf16.gmra.mxu0 %v1821
        %v1832 = vpop.f32.mrf.mxu0
        %v1833 = vadd.f32 0.0, %v1832
        %v1834 = vpop.f32.mrf.mxu0
        %v1835 = vadd.f32 0.0, %v1834
        %1836 = vdwg.mxu0
        %v1837 = vsel %vm249, %v1812, 0
        %1839 = vmatpush.bf16.msra.mxu0 0
        %1840 = vmatpush.bf16.msra.mxu0 0
        %1841 = vmatpush.bf16.msra.mxu0 0
        %1842 = vmatpush.bf16.msra.mxu0 0
        %1843 = vmatpush.bf16.msra.mxu0 0
        %1844 = vmatpush.bf16.msra.mxu0 0
        %1845 = vmatpush.bf16.msra.mxu0 0
        %1846 = vmatpush.bf16.msra.mxu0 %v274
        %1847 = vmatmul.bf16.gmra.mxu0 %v1837
        %v1848 = vpop.f32.mrf.mxu0
        %v1849 = vadd.f32 %v1833, %v1848
        %v1850 = vpop.f32.mrf.mxu0
        %v1851 = vadd.f32 %v1835, %v1850
        %1852 = vdwg.mxu0
        %v1854 = vrot.slane %v1812, 1
        %v1856 = vsel %vm249, %v1854, 0
        %1858 = vmatpush.bf16.msra.mxu0 0
        %1859 = vmatpush.bf16.msra.mxu0 0
        %1860 = vmatpush.bf16.msra.mxu0 0
        %1861 = vmatpush.bf16.msra.mxu0 0
        %1862 = vmatpush.bf16.msra.mxu0 0
        %1863 = vmatpush.bf16.msra.mxu0 0
        %1864 = vmatpush.bf16.msra.mxu0 0
        %1865 = vmatpush.bf16.msra.mxu0 %v296
        %1866 = vmatmul.bf16.gmra.mxu0 %v1856
        %v1867 = vpop.f32.mrf.mxu0
        %v1868 = vadd.f32 0.0, %v1867
        %v1869 = vpop.f32.mrf.mxu0
        %v1870 = vadd.f32 0.0, %v1869
        %1871 = vdwg.mxu0
        %v1872 = vadd.f32 %v1849, %v1868
        %v1873 = vadd.f32 %v1851, %v1870
        %v1874 = vrot.slane %v1814, 1
        %v1875 = vrot.slane %v1816, 2
        %v1876 = vor.u32 %v1874, %v1875
        %v1878 = vsel %vm249, %v1876, 0
        %1880 = vmatpush.bf16.msra.mxu0 0
        %1881 = vmatpush.bf16.msra.mxu0 0
        %1882 = vmatpush.bf16.msra.mxu0 0
        %1883 = vmatpush.bf16.msra.mxu0 0
        %1884 = vmatpush.bf16.msra.mxu0 0
        %1885 = vmatpush.bf16.msra.mxu0 0
        %1886 = vmatpush.bf16.msra.mxu0 0
        %1887 = vmatpush.bf16.msra.mxu0 %v321
        %1888 = vmatmul.bf16.gmra.mxu0 %v1878
        %v1889 = vpop.f32.mrf.mxu0
        %v1890 = vadd.f32 0.0, %v1889
        %v1891 = vpop.f32.mrf.mxu0
        %v1892 = vadd.f32 0.0, %v1891
        %1893 = vdwg.mxu0
        %v1894 = vadd.f32 %v1872, %v1890
        %v1895 = vadd.f32 %v1873, %v1892
        %s1896 = smul.u32 %s1435, 16
        %s1897 = scalar_lea.vmem %s209, %s1896
        %v1898 = vld [vmem:[%s1897] sm:$0xff]
        %v1899 = vld [vmem:[%s1897 + $0x8] sm:$0xff]
        %v1900 = vpack.c.bf16 %v1899, %v1898
        %v1902 = vsel %vm249, %v1900, 0
        %1904 = vmatpush.bf16.msra.mxu0 0
        %1905 = vmatpush.bf16.msra.mxu0 0
        %1906 = vmatpush.bf16.msra.mxu0 0
        %1907 = vmatpush.bf16.msra.mxu0 0
        %1908 = vmatpush.bf16.msra.mxu0 0
        %1909 = vmatpush.bf16.msra.mxu0 0
        %1910 = vmatpush.bf16.msra.mxu0 0
        %1911 = vmatpush.bf16.msra.mxu0 %v349
        %1912 = vmatmul.bf16.gmra.mxu0 %v1902
        %v1913 = vpop.f32.mrf.mxu0
        %v1914 = vadd.f32 0.0, %v1913
        %v1915 = vpop.f32.mrf.mxu0
        %v1916 = vadd.f32 0.0, %v1915
        %1917 = vdwg.mxu0
        %v1918 = vadd.f32 %v1894, %v1914
        %v1919 = vadd.f32 %v1895, %v1916
        %v1920 = vshrl.u32 %v1900, 16
        %v1922 = vshll.u32 %v1900, 16
        %v1924 = vrot.slane %v1922, 1
        %v1925 = vor.u32 %v1920, %v1924
        %v1927 = vsel %vm249, %v1925, 0
        %1929 = vmatpush.bf16.msra.mxu0 0
        %1930 = vmatpush.bf16.msra.mxu0 0
        %1931 = vmatpush.bf16.msra.mxu0 0
        %1932 = vmatpush.bf16.msra.mxu0 0
        %1933 = vmatpush.bf16.msra.mxu0 0
        %1934 = vmatpush.bf16.msra.mxu0 0
        %1935 = vmatpush.bf16.msra.mxu0 0
        %1936 = vmatpush.bf16.msra.mxu0 %v377
        %1937 = vmatmul.bf16.gmra.mxu0 %v1927
        %v1938 = vpop.f32.mrf.mxu0
        %v1939 = vadd.f32 0.0, %v1938
        %v1940 = vpop.f32.mrf.mxu0
        %v1941 = vadd.f32 0.0, %v1940
        %1942 = vdwg.mxu0
        %v1943 = vadd.f32 %v1918, %v1939
        %v1944 = vadd.f32 %v1919, %v1941
        %v1946 = vrot.slane %v1900, 1
        %v1948 = vsel %vm249, %v1946, 0
        %1950 = vmatpush.bf16.msra.mxu0 0
        %1951 = vmatpush.bf16.msra.mxu0 0
        %1952 = vmatpush.bf16.msra.mxu0 0
        %1953 = vmatpush.bf16.msra.mxu0 0
        %1954 = vmatpush.bf16.msra.mxu0 0
        %1955 = vmatpush.bf16.msra.mxu0 0
        %1956 = vmatpush.bf16.msra.mxu0 0
        %1957 = vmatpush.bf16.msra.mxu0 %v401
        %1958 = vmatmul.bf16.gmra.mxu0 %v1948
        %v1959 = vpop.f32.mrf.mxu0
        %v1960 = vadd.f32 0.0, %v1959
        %v1961 = vpop.f32.mrf.mxu0
        %v1962 = vadd.f32 0.0, %v1961
        %1963 = vdwg.mxu0
        %v1964 = vadd.f32 %v1943, %v1960
        %v1965 = vadd.f32 %v1944, %v1962
        %v1966 = vrot.slane %v1920, 1
        %v1967 = vrot.slane %v1922, 2
        %v1968 = vor.u32 %v1966, %v1967
        %v1970 = vsel %vm249, %v1968, 0
        %1972 = vmatpush.bf16.msra.mxu0 0
        %1973 = vmatpush.bf16.msra.mxu0 0
        %1974 = vmatpush.bf16.msra.mxu0 0
        %1975 = vmatpush.bf16.msra.mxu0 0
        %1976 = vmatpush.bf16.msra.mxu0 0
        %1977 = vmatpush.bf16.msra.mxu0 0
        %1978 = vmatpush.bf16.msra.mxu0 0
        %1979 = vmatpush.bf16.msra.mxu0 %v426
        %1980 = vmatmul.bf16.gmra.mxu0 %v1970
        %v1981 = vpop.f32.mrf.mxu0
        %v1982 = vadd.f32 0.0, %v1981
        %v1983 = vpop.f32.mrf.mxu0
        %v1984 = vadd.f32 0.0, %v1983
        %1985 = vdwg.mxu0
        %v1986 = vadd.f32 %v1964, %v1982
        %v1987 = vadd.f32 %v1965, %v1984
        %s1988 = sadd.s32 %s1430, 2
        %s1989 = smul.u32 %s1988, 16
        %s1990 = scalar_lea.vmem %s209, %s1989
        %v1991 = vld [vmem:[%s1990] sm:$0xff]
        %v1992 = vld [vmem:[%s1990 + $0x8] sm:$0xff]
        %v1993 = vpack.c.bf16 %v1992, %v1991
        %v1995 = vsel %vm249, %v1993, 0
        %1997 = vmatpush.bf16.msra.mxu0 0
        %1998 = vmatpush.bf16.msra.mxu0 0
        %1999 = vmatpush.bf16.msra.mxu0 0
        %2000 = vmatpush.bf16.msra.mxu0 0
        %2001 = vmatpush.bf16.msra.mxu0 0
        %2002 = vmatpush.bf16.msra.mxu0 0
        %2003 = vmatpush.bf16.msra.mxu0 0
        %2004 = vmatpush.bf16.msra.mxu0 %v454
        %2005 = vmatmul.bf16.gmra.mxu0 %v1995
        %v2006 = vpop.f32.mrf.mxu0
        %v2007 = vadd.f32 0.0, %v2006
        %v2008 = vpop.f32.mrf.mxu0
        %v2009 = vadd.f32 0.0, %v2008
        %2010 = vdwg.mxu0
        %v2011 = vadd.f32 %v1986, %v2007
        %v2012 = vadd.f32 %v1987, %v2009
        %v2013 = vshrl.u32 %v1993, 16
        %v2015 = vshll.u32 %v1993, 16
        %v2017 = vrot.slane %v2015, 1
        %v2018 = vor.u32 %v2013, %v2017
        %v2020 = vsel %vm249, %v2018, 0
        %2022 = vmatpush.bf16.msra.mxu0 0
        %2023 = vmatpush.bf16.msra.mxu0 0
        %2024 = vmatpush.bf16.msra.mxu0 0
        %2025 = vmatpush.bf16.msra.mxu0 0
        %2026 = vmatpush.bf16.msra.mxu0 0
        %2027 = vmatpush.bf16.msra.mxu0 0
        %2028 = vmatpush.bf16.msra.mxu0 0
        %2029 = vmatpush.bf16.msra.mxu0 %v482
        %2030 = vmatmul.bf16.gmra.mxu0 %v2020
        %v2031 = vpop.f32.mrf.mxu0
        %v2032 = vadd.f32 0.0, %v2031
        %v2033 = vpop.f32.mrf.mxu0
        %v2034 = vadd.f32 0.0, %v2033
        %2035 = vdwg.mxu0
        %v2036 = vadd.f32 %v2011, %v2032
        %v2037 = vadd.f32 %v2012, %v2034
        %v2039 = vrot.slane %v1993, 1
        %v2041 = vsel %vm249, %v2039, 0
        %2043 = vmatpush.bf16.msra.mxu0 0
        %2044 = vmatpush.bf16.msra.mxu0 0
        %2045 = vmatpush.bf16.msra.mxu0 0
        %2046 = vmatpush.bf16.msra.mxu0 0
        %2047 = vmatpush.bf16.msra.mxu0 0
        %2048 = vmatpush.bf16.msra.mxu0 0
        %2049 = vmatpush.bf16.msra.mxu0 0
        %2050 = vmatpush.bf16.msra.mxu0 %v506
        %2051 = vmatmul.bf16.gmra.mxu0 %v2041
        %v2052 = vpop.f32.mrf.mxu0
        %v2053 = vadd.f32 0.0, %v2052
        %v2054 = vpop.f32.mrf.mxu0
        %v2055 = vadd.f32 0.0, %v2054
        %2056 = vdwg.mxu0
        %v2057 = vadd.f32 %v2036, %v2053
        %v2058 = vadd.f32 %v2037, %v2055
        %v2059 = vrot.slane %v2013, 1
        %v2060 = vrot.slane %v2015, 2
        %v2061 = vor.u32 %v2059, %v2060
        %v2063 = vsel %vm249, %v2061, 0
        %2065 = vmatpush.bf16.msra.mxu0 0
        %2066 = vmatpush.bf16.msra.mxu0 0
        %2067 = vmatpush.bf16.msra.mxu0 0
        %2068 = vmatpush.bf16.msra.mxu0 0
        %2069 = vmatpush.bf16.msra.mxu0 0
        %2070 = vmatpush.bf16.msra.mxu0 0
        %2071 = vmatpush.bf16.msra.mxu0 0
        %2072 = vmatpush.bf16.msra.mxu0 %v531
        %2073 = vmatmul.bf16.gmra.mxu0 %v2063
        %v2074 = vpop.f32.mrf.mxu0
        %v2075 = vadd.f32 0.0, %v2074
        %v2076 = vpop.f32.mrf.mxu0
        %v2077 = vadd.f32 0.0, %v2076
        %2078 = vdwg.mxu0
        %v2079 = vadd.f32 %v2057, %v2075
        %v2080 = vadd.f32 %v2058, %v2077
        %s2081 = sadd.s32 %s1430, 3
        %s2082 = smul.u32 %s2081, 16
        %s2083 = scalar_lea.vmem %s209, %s2082
        %v2084 = vld [vmem:[%s2083] sm:$0xff]
        %v2085 = vld [vmem:[%s2083 + $0x8] sm:$0xff]
        %v2086 = vpack.c.bf16 %v2085, %v2084
        %v2088 = vsel %vm249, %v2086, 0
        %2090 = vmatpush.bf16.msra.mxu0 0
        %2091 = vmatpush.bf16.msra.mxu0 0
        %2092 = vmatpush.bf16.msra.mxu0 0
        %2093 = vmatpush.bf16.msra.mxu0 0
        %2094 = vmatpush.bf16.msra.mxu0 0
        %2095 = vmatpush.bf16.msra.mxu0 0
        %2096 = vmatpush.bf16.msra.mxu0 0
        %2097 = vmatpush.bf16.msra.mxu0 %v559
        %2098 = vmatmul.bf16.gmra.mxu0 %v2088
        %v2099 = vpop.f32.mrf.mxu0
        %v2100 = vadd.f32 0.0, %v2099
        %v2101 = vpop.f32.mrf.mxu0
        %v2102 = vadd.f32 0.0, %v2101
        %2103 = vdwg.mxu0
        %v2104 = vadd.f32 %v2079, %v2100
        %v2105 = vadd.f32 %v2080, %v2102
        %v2106 = vshrl.u32 %v2086, 16
        %v2108 = vshll.u32 %v2086, 16
        %v2110 = vrot.slane %v2108, 1
        %v2111 = vor.u32 %v2106, %v2110
        %v2113 = vsel %vm249, %v2111, 0
        %2115 = vmatpush.bf16.msra.mxu0 0
        %2116 = vmatpush.bf16.msra.mxu0 0
        %2117 = vmatpush.bf16.msra.mxu0 0
        %2118 = vmatpush.bf16.msra.mxu0 0
        %2119 = vmatpush.bf16.msra.mxu0 0
        %2120 = vmatpush.bf16.msra.mxu0 0
        %2121 = vmatpush.bf16.msra.mxu0 0
        %2122 = vmatpush.bf16.msra.mxu0 %v587
        %2123 = vmatmul.bf16.gmra.mxu0 %v2113
        %v2124 = vpop.f32.mrf.mxu0
        %v2125 = vadd.f32 0.0, %v2124
        %v2126 = vpop.f32.mrf.mxu0
        %v2127 = vadd.f32 0.0, %v2126
        %2128 = vdwg.mxu0
        %v2129 = vadd.f32 %v2104, %v2125
        %v2130 = vadd.f32 %v2105, %v2127
        %v2132 = vrot.slane %v2086, 1
        %v2134 = vsel %vm249, %v2132, 0
        %2136 = vmatpush.bf16.msra.mxu0 0
        %2137 = vmatpush.bf16.msra.mxu0 0
        %2138 = vmatpush.bf16.msra.mxu0 0
        %2139 = vmatpush.bf16.msra.mxu0 0
        %2140 = vmatpush.bf16.msra.mxu0 0
        %2141 = vmatpush.bf16.msra.mxu0 0
        %2142 = vmatpush.bf16.msra.mxu0 0
        %2143 = vmatpush.bf16.msra.mxu0 %v611
        %2144 = vmatmul.bf16.gmra.mxu0 %v2134
        %v2145 = vpop.f32.mrf.mxu0
        %v2146 = vadd.f32 0.0, %v2145
        %v2147 = vpop.f32.mrf.mxu0
        %v2148 = vadd.f32 0.0, %v2147
        %2149 = vdwg.mxu0
        %v2150 = vadd.f32 %v2129, %v2146
        %v2151 = vadd.f32 %v2130, %v2148
        %v2152 = vrot.slane %v2106, 1
        %v2153 = vrot.slane %v2108, 2
        %v2154 = vor.u32 %v2152, %v2153
        %v2156 = vsel %vm249, %v2154, 0
        %2158 = vmatpush.bf16.msra.mxu0 0
        %2159 = vmatpush.bf16.msra.mxu0 0
        %2160 = vmatpush.bf16.msra.mxu0 0
        %2161 = vmatpush.bf16.msra.mxu0 0
        %2162 = vmatpush.bf16.msra.mxu0 0
        %2163 = vmatpush.bf16.msra.mxu0 0
        %2164 = vmatpush.bf16.msra.mxu0 0
        %2165 = vmatpush.bf16.msra.mxu0 %v636
        %2166 = vmatmul.bf16.gmra.mxu0 %v2156
        %v2167 = vpop.f32.mrf.mxu0
        %v2168 = vadd.f32 0.0, %v2167
        %v2169 = vpop.f32.mrf.mxu0
        %v2170 = vadd.f32 0.0, %v2169
        %2171 = vdwg.mxu0
        %v2172 = vadd.f32 %v2150, %v2168
        %v2173 = vadd.f32 %v2151, %v2170
        %v2174 = vmul.f32 %v2172, 0.5
        %v2175 = vmul.f32 %v2173, 0.5
        %v2176 = vadd.f32 %v1806, %v2174
        %v2177 = vadd.f32 %v1807, %v2175
        %s2178 = smul.u32 %s1436, 16
        %s2179 = scalar_lea.vmem %s209, %s2178
        %v2180 = vld [vmem:[%s2179] sm:$0xff]
        %v2181 = vld [vmem:[%s2179 + $0x8] sm:$0xff]
        %v2182 = vpack.c.bf16 %v2181, %v2180
        %v2184 = vshrl.u32 %v2182, 16
        %v2186 = vshll.u32 %v2182, 16
        %v2188 = vrot.slane %v2186, 1
        %v2189 = vor.u32 %v2184, %v2188
        %v2191 = vsel %vm249, %v2189, 0
        %2193 = vmatpush.bf16.msra.mxu0 0
        %2194 = vmatpush.bf16.msra.mxu0 0
        %2195 = vmatpush.bf16.msra.mxu0 0
        %2196 = vmatpush.bf16.msra.mxu0 0
        %2197 = vmatpush.bf16.msra.mxu0 0
        %2198 = vmatpush.bf16.msra.mxu0 0
        %2199 = vmatpush.bf16.msra.mxu0 0
        %2200 = vmatpush.bf16.msra.mxu0 %v255
        %2201 = vmatmul.bf16.gmra.mxu0 %v2191
        %v2202 = vpop.f32.mrf.mxu0
        %v2203 = vadd.f32 0.0, %v2202
        %v2204 = vpop.f32.mrf.mxu0
        %v2205 = vadd.f32 0.0, %v2204
        %2206 = vdwg.mxu0
        %v2207 = vsel %vm249, %v2182, 0
        %2209 = vmatpush.bf16.msra.mxu0 0
        %2210 = vmatpush.bf16.msra.mxu0 0
        %2211 = vmatpush.bf16.msra.mxu0 0
        %2212 = vmatpush.bf16.msra.mxu0 0
        %2213 = vmatpush.bf16.msra.mxu0 0
        %2214 = vmatpush.bf16.msra.mxu0 0
        %2215 = vmatpush.bf16.msra.mxu0 0
        %2216 = vmatpush.bf16.msra.mxu0 %v274
        %2217 = vmatmul.bf16.gmra.mxu0 %v2207
        %v2218 = vpop.f32.mrf.mxu0
        %v2219 = vadd.f32 %v2203, %v2218
        %v2220 = vpop.f32.mrf.mxu0
        %v2221 = vadd.f32 %v2205, %v2220
        %2222 = vdwg.mxu0
        %v2224 = vrot.slane %v2182, 1
        %v2226 = vsel %vm249, %v2224, 0
        %2228 = vmatpush.bf16.msra.mxu0 0
        %2229 = vmatpush.bf16.msra.mxu0 0
        %2230 = vmatpush.bf16.msra.mxu0 0
        %2231 = vmatpush.bf16.msra.mxu0 0
        %2232 = vmatpush.bf16.msra.mxu0 0
        %2233 = vmatpush.bf16.msra.mxu0 0
        %2234 = vmatpush.bf16.msra.mxu0 0
        %2235 = vmatpush.bf16.msra.mxu0 %v296
        %2236 = vmatmul.bf16.gmra.mxu0 %v2226
        %v2237 = vpop.f32.mrf.mxu0
        %v2238 = vadd.f32 0.0, %v2237
        %v2239 = vpop.f32.mrf.mxu0
        %v2240 = vadd.f32 0.0, %v2239
        %2241 = vdwg.mxu0
        %v2242 = vadd.f32 %v2219, %v2238
        %v2243 = vadd.f32 %v2221, %v2240
        %v2244 = vrot.slane %v2184, 1
        %v2245 = vrot.slane %v2186, 2
        %v2246 = vor.u32 %v2244, %v2245
        %v2248 = vsel %vm249, %v2246, 0
        %2250 = vmatpush.bf16.msra.mxu0 0
        %2251 = vmatpush.bf16.msra.mxu0 0
        %2252 = vmatpush.bf16.msra.mxu0 0
        %2253 = vmatpush.bf16.msra.mxu0 0
        %2254 = vmatpush.bf16.msra.mxu0 0
        %2255 = vmatpush.bf16.msra.mxu0 0
        %2256 = vmatpush.bf16.msra.mxu0 0
        %2257 = vmatpush.bf16.msra.mxu0 %v321
        %2258 = vmatmul.bf16.gmra.mxu0 %v2248
        %v2259 = vpop.f32.mrf.mxu0
        %v2260 = vadd.f32 0.0, %v2259
        %v2261 = vpop.f32.mrf.mxu0
        %v2262 = vadd.f32 0.0, %v2261
        %2263 = vdwg.mxu0
        %v2264 = vadd.f32 %v2242, %v2260
        %v2265 = vadd.f32 %v2243, %v2262
        %s2266 = sadd.s32 %s1436, 1
        %s2267 = smul.u32 %s2266, 16
        %s2268 = scalar_lea.vmem %s209, %s2267
        %v2269 = vld [vmem:[%s2268] sm:$0xff]
        %v2270 = vld [vmem:[%s2268 + $0x8] sm:$0xff]
        %v2271 = vpack.c.bf16 %v2270, %v2269
        %v2273 = vsel %vm249, %v2271, 0
        %2275 = vmatpush.bf16.msra.mxu0 0
        %2276 = vmatpush.bf16.msra.mxu0 0
        %2277 = vmatpush.bf16.msra.mxu0 0
        %2278 = vmatpush.bf16.msra.mxu0 0
        %2279 = vmatpush.bf16.msra.mxu0 0
        %2280 = vmatpush.bf16.msra.mxu0 0
        %2281 = vmatpush.bf16.msra.mxu0 0
        %2282 = vmatpush.bf16.msra.mxu0 %v349
        %2283 = vmatmul.bf16.gmra.mxu0 %v2273
        %v2284 = vpop.f32.mrf.mxu0
        %v2285 = vadd.f32 0.0, %v2284
        %v2286 = vpop.f32.mrf.mxu0
        %v2287 = vadd.f32 0.0, %v2286
        %2288 = vdwg.mxu0
        %v2289 = vadd.f32 %v2264, %v2285
        %v2290 = vadd.f32 %v2265, %v2287
        %v2291 = vshrl.u32 %v2271, 16
        %v2293 = vshll.u32 %v2271, 16
        %v2295 = vrot.slane %v2293, 1
        %v2296 = vor.u32 %v2291, %v2295
        %v2298 = vsel %vm249, %v2296, 0
        %2300 = vmatpush.bf16.msra.mxu0 0
        %2301 = vmatpush.bf16.msra.mxu0 0
        %2302 = vmatpush.bf16.msra.mxu0 0
        %2303 = vmatpush.bf16.msra.mxu0 0
        %2304 = vmatpush.bf16.msra.mxu0 0
        %2305 = vmatpush.bf16.msra.mxu0 0
        %2306 = vmatpush.bf16.msra.mxu0 0
        %2307 = vmatpush.bf16.msra.mxu0 %v377
        %2308 = vmatmul.bf16.gmra.mxu0 %v2298
        %v2309 = vpop.f32.mrf.mxu0
        %v2310 = vadd.f32 0.0, %v2309
        %v2311 = vpop.f32.mrf.mxu0
        %v2312 = vadd.f32 0.0, %v2311
        %2313 = vdwg.mxu0
        %v2314 = vadd.f32 %v2289, %v2310
        %v2315 = vadd.f32 %v2290, %v2312
        %v2317 = vrot.slane %v2271, 1
        %v2319 = vsel %vm249, %v2317, 0
        %2321 = vmatpush.bf16.msra.mxu0 0
        %2322 = vmatpush.bf16.msra.mxu0 0
        %2323 = vmatpush.bf16.msra.mxu0 0
        %2324 = vmatpush.bf16.msra.mxu0 0
        %2325 = vmatpush.bf16.msra.mxu0 0
        %2326 = vmatpush.bf16.msra.mxu0 0
        %2327 = vmatpush.bf16.msra.mxu0 0
        %2328 = vmatpush.bf16.msra.mxu0 %v401
        %2329 = vmatmul.bf16.gmra.mxu0 %v2319
        %v2330 = vpop.f32.mrf.mxu0
        %v2331 = vadd.f32 0.0, %v2330
        %v2332 = vpop.f32.mrf.mxu0
        %v2333 = vadd.f32 0.0, %v2332
        %2334 = vdwg.mxu0
        %v2335 = vadd.f32 %v2314, %v2331
        %v2336 = vadd.f32 %v2315, %v2333
        %v2337 = vrot.slane %v2291, 1
        %v2338 = vrot.slane %v2293, 2
        %v2339 = vor.u32 %v2337, %v2338
        %v2341 = vsel %vm249, %v2339, 0
        %2343 = vmatpush.bf16.msra.mxu0 0
        %2344 = vmatpush.bf16.msra.mxu0 0
        %2345 = vmatpush.bf16.msra.mxu0 0
        %2346 = vmatpush.bf16.msra.mxu0 0
        %2347 = vmatpush.bf16.msra.mxu0 0
        %2348 = vmatpush.bf16.msra.mxu0 0
        %2349 = vmatpush.bf16.msra.mxu0 0
        %2350 = vmatpush.bf16.msra.mxu0 %v426
        %2351 = vmatmul.bf16.gmra.mxu0 %v2341
        %v2352 = vpop.f32.mrf.mxu0
        %v2353 = vadd.f32 0.0, %v2352
        %v2354 = vpop.f32.mrf.mxu0
        %v2355 = vadd.f32 0.0, %v2354
        %2356 = vdwg.mxu0
        %v2357 = vadd.f32 %v2335, %v2353
        %v2358 = vadd.f32 %v2336, %v2355
        %s2359 = sadd.s32 %s1436, 2
        %s2360 = smul.u32 %s2359, 16
        %s2361 = scalar_lea.vmem %s209, %s2360
        %v2362 = vld [vmem:[%s2361] sm:$0xff]
        %v2363 = vld [vmem:[%s2361 + $0x8] sm:$0xff]
        %v2364 = vpack.c.bf16 %v2363, %v2362
        %v2366 = vsel %vm249, %v2364, 0
        %2368 = vmatpush.bf16.msra.mxu0 0
        %2369 = vmatpush.bf16.msra.mxu0 0
        %2370 = vmatpush.bf16.msra.mxu0 0
        %2371 = vmatpush.bf16.msra.mxu0 0
        %2372 = vmatpush.bf16.msra.mxu0 0
        %2373 = vmatpush.bf16.msra.mxu0 0
        %2374 = vmatpush.bf16.msra.mxu0 0
        %2375 = vmatpush.bf16.msra.mxu0 %v454
        %2376 = vmatmul.bf16.gmra.mxu0 %v2366
        %v2377 = vpop.f32.mrf.mxu0
        %v2378 = vadd.f32 0.0, %v2377
        %v2379 = vpop.f32.mrf.mxu0
        %v2380 = vadd.f32 0.0, %v2379
        %2381 = vdwg.mxu0
        %v2382 = vadd.f32 %v2357, %v2378
        %v2383 = vadd.f32 %v2358, %v2380
        %v2384 = vshrl.u32 %v2364, 16
        %v2386 = vshll.u32 %v2364, 16
        %v2388 = vrot.slane %v2386, 1
        %v2389 = vor.u32 %v2384, %v2388
        %v2391 = vsel %vm249, %v2389, 0
        %2393 = vmatpush.bf16.msra.mxu0 0
        %2394 = vmatpush.bf16.msra.mxu0 0
        %2395 = vmatpush.bf16.msra.mxu0 0
        %2396 = vmatpush.bf16.msra.mxu0 0
        %2397 = vmatpush.bf16.msra.mxu0 0
        %2398 = vmatpush.bf16.msra.mxu0 0
        %2399 = vmatpush.bf16.msra.mxu0 0
        %2400 = vmatpush.bf16.msra.mxu0 %v482
        %2401 = vmatmul.bf16.gmra.mxu0 %v2391
        %v2402 = vpop.f32.mrf.mxu0
        %v2403 = vadd.f32 0.0, %v2402
        %v2404 = vpop.f32.mrf.mxu0
        %v2405 = vadd.f32 0.0, %v2404
        %2406 = vdwg.mxu0
        %v2407 = vadd.f32 %v2382, %v2403
        %v2408 = vadd.f32 %v2383, %v2405
        %v2410 = vrot.slane %v2364, 1
        %v2412 = vsel %vm249, %v2410, 0
        %2414 = vmatpush.bf16.msra.mxu0 0
        %2415 = vmatpush.bf16.msra.mxu0 0
        %2416 = vmatpush.bf16.msra.mxu0 0
        %2417 = vmatpush.bf16.msra.mxu0 0
        %2418 = vmatpush.bf16.msra.mxu0 0
        %2419 = vmatpush.bf16.msra.mxu0 0
        %2420 = vmatpush.bf16.msra.mxu0 0
        %2421 = vmatpush.bf16.msra.mxu0 %v506
        %2422 = vmatmul.bf16.gmra.mxu0 %v2412
        %v2423 = vpop.f32.mrf.mxu0
        %v2424 = vadd.f32 0.0, %v2423
        %v2425 = vpop.f32.mrf.mxu0
        %v2426 = vadd.f32 0.0, %v2425
        %2427 = vdwg.mxu0
        %v2428 = vadd.f32 %v2407, %v2424
        %v2429 = vadd.f32 %v2408, %v2426
        %v2430 = vrot.slane %v2384, 1
        %v2431 = vrot.slane %v2386, 2
        %v2432 = vor.u32 %v2430, %v2431
        %v2434 = vsel %vm249, %v2432, 0
        %2436 = vmatpush.bf16.msra.mxu0 0
        %2437 = vmatpush.bf16.msra.mxu0 0
        %2438 = vmatpush.bf16.msra.mxu0 0
        %2439 = vmatpush.bf16.msra.mxu0 0
        %2440 = vmatpush.bf16.msra.mxu0 0
        %2441 = vmatpush.bf16.msra.mxu0 0
        %2442 = vmatpush.bf16.msra.mxu0 0
        %2443 = vmatpush.bf16.msra.mxu0 %v531
        %2444 = vmatmul.bf16.gmra.mxu0 %v2434
        %v2445 = vpop.f32.mrf.mxu0
        %v2446 = vadd.f32 0.0, %v2445
        %v2447 = vpop.f32.mrf.mxu0
        %v2448 = vadd.f32 0.0, %v2447
        %2449 = vdwg.mxu0
        %v2450 = vadd.f32 %v2428, %v2446
        %v2451 = vadd.f32 %v2429, %v2448
        %s2452 = sadd.s32 %s1436, 3
        %s2453 = smul.u32 %s2452, 16
        %s2454 = scalar_lea.vmem %s209, %s2453
        %v2455 = vld [vmem:[%s2454] sm:$0xff]
        %v2456 = vld [vmem:[%s2454 + $0x8] sm:$0xff]
        %v2457 = vpack.c.bf16 %v2456, %v2455
        %v2459 = vsel %vm249, %v2457, 0
        %2461 = vmatpush.bf16.msra.mxu0 0
        %2462 = vmatpush.bf16.msra.mxu0 0
        %2463 = vmatpush.bf16.msra.mxu0 0
        %2464 = vmatpush.bf16.msra.mxu0 0
        %2465 = vmatpush.bf16.msra.mxu0 0
        %2466 = vmatpush.bf16.msra.mxu0 0
        %2467 = vmatpush.bf16.msra.mxu0 0
        %2468 = vmatpush.bf16.msra.mxu0 %v559
        %2469 = vmatmul.bf16.gmra.mxu0 %v2459
        %v2470 = vpop.f32.mrf.mxu0
        %v2471 = vadd.f32 0.0, %v2470
        %v2472 = vpop.f32.mrf.mxu0
        %v2473 = vadd.f32 0.0, %v2472
        %2474 = vdwg.mxu0
        %v2475 = vadd.f32 %v2450, %v2471
        %v2476 = vadd.f32 %v2451, %v2473
        %v2477 = vshrl.u32 %v2457, 16
        %v2479 = vshll.u32 %v2457, 16
        %v2481 = vrot.slane %v2479, 1
        %v2482 = vor.u32 %v2477, %v2481
        %v2484 = vsel %vm249, %v2482, 0
        %2486 = vmatpush.bf16.msra.mxu0 0
        %2487 = vmatpush.bf16.msra.mxu0 0
        %2488 = vmatpush.bf16.msra.mxu0 0
        %2489 = vmatpush.bf16.msra.mxu0 0
        %2490 = vmatpush.bf16.msra.mxu0 0
        %2491 = vmatpush.bf16.msra.mxu0 0
        %2492 = vmatpush.bf16.msra.mxu0 0
        %2493 = vmatpush.bf16.msra.mxu0 %v587
        %2494 = vmatmul.bf16.gmra.mxu0 %v2484
        %v2495 = vpop.f32.mrf.mxu0
        %v2496 = vadd.f32 0.0, %v2495
        %v2497 = vpop.f32.mrf.mxu0
        %v2498 = vadd.f32 0.0, %v2497
        %2499 = vdwg.mxu0
        %v2500 = vadd.f32 %v2475, %v2496
        %v2501 = vadd.f32 %v2476, %v2498
        %v2503 = vrot.slane %v2457, 1
        %v2505 = vsel %vm249, %v2503, 0
        %2507 = vmatpush.bf16.msra.mxu0 0
        %2508 = vmatpush.bf16.msra.mxu0 0
        %2509 = vmatpush.bf16.msra.mxu0 0
        %2510 = vmatpush.bf16.msra.mxu0 0
        %2511 = vmatpush.bf16.msra.mxu0 0
        %2512 = vmatpush.bf16.msra.mxu0 0
        %2513 = vmatpush.bf16.msra.mxu0 0
        %2514 = vmatpush.bf16.msra.mxu0 %v611
        %2515 = vmatmul.bf16.gmra.mxu0 %v2505
        %v2516 = vpop.f32.mrf.mxu0
        %v2517 = vadd.f32 0.0, %v2516
        %v2518 = vpop.f32.mrf.mxu0
        %v2519 = vadd.f32 0.0, %v2518
        %2520 = vdwg.mxu0
        %v2521 = vadd.f32 %v2500, %v2517
        %v2522 = vadd.f32 %v2501, %v2519
        %v2523 = vrot.slane %v2477, 1
        %v2524 = vrot.slane %v2479, 2
        %v2525 = vor.u32 %v2523, %v2524
        %v2527 = vsel %vm249, %v2525, 0
        %2529 = vmatpush.bf16.msra.mxu0 0
        %2530 = vmatpush.bf16.msra.mxu0 0
        %2531 = vmatpush.bf16.msra.mxu0 0
        %2532 = vmatpush.bf16.msra.mxu0 0
        %2533 = vmatpush.bf16.msra.mxu0 0
        %2534 = vmatpush.bf16.msra.mxu0 0
        %2535 = vmatpush.bf16.msra.mxu0 0
        %2536 = vmatpush.bf16.msra.mxu0 %v636
        %2537 = vmatmul.bf16.gmra.mxu0 %v2527
        %v2538 = vpop.f32.mrf.mxu0
        %v2539 = vadd.f32 0.0, %v2538
        %v2540 = vpop.f32.mrf.mxu0
        %v2541 = vadd.f32 0.0, %v2540
        %2542 = vdwg.mxu0
        %v2543 = vadd.f32 %v2521, %v2539
        %v2544 = vadd.f32 %v2522, %v2541
        %v2545 = vmul.f32 %v2543, 0.25
        %v2546 = vmul.f32 %v2544, 0.25
        %v2547 = vadd.f32 %v2176, %v2545
        %v2548 = vadd.f32 %v2177, %v2546
        %v2549 = vpack.c.bf16 %v2548, %v2547
        %v2551 = vand.u32 %v2549, %v1410
        %2553 = vmatpush.bf16.msra.mxu0 0
        %2554 = vmatpush.bf16.msra.mxu0 0
        %2555 = vmatpush.bf16.msra.mxu0 0
        %2556 = vmatpush.bf16.msra.mxu0 0
        %2557 = vmatpush.bf16.msra.mxu0 0
        %2558 = vmatpush.bf16.msra.mxu0 0
        %2559 = vmatpush.bf16.msra.mxu0 0
        %2560 = vmatpush.bf16.msra.mxu0 %v2551
        %2561 = vmatmul.bf16.gmra.mxu0 %v1405
        %v2562 = vpop.f32.mrf.mxu0
        %v2563 = vadd.f32 %v1401, %v2562
        %v2564 = vpop.f32.mrf.mxu0
        %2565 = vdwg.mxu0
        %s2566 = scalar_lea.vmem %s204, 4 [#allocation2]
        %2567 = vst [vmem:[%s2566] sm:$0xf] %v2563
        %s2568 = sadd.s32 %s1428, 2
        %s2569 = smul.u32 %s2568, 4
        %p2570 = scmp.eq.s32.totalorder %s2569, 0
        %s2571 = ssub.s32 %s2569, 1
        %s2572 = scalar_select %p2570, 1, %s2571
        %p2573 = scmp.eq.s32.totalorder %s2569, 12
        %s2574 = sadd.s32 %s2569, 1
        %s2575 = scalar_select %p2573, 11, %s2574
        %s2576 = smul.u32 %s2572, 16
        %s2577 = scalar_lea.vmem %s209, %s2576
        %v2578 = vld [vmem:[%s2577] sm:$0xff]
        %v2579 = vld [vmem:[%s2577 + $0x8] sm:$0xff]
        %v2580 = vpack.c.bf16 %v2579, %v2578
        %v2582 = vshrl.u32 %v2580, 16
        %v2584 = vshll.u32 %v2580, 16
        %v2586 = vrot.slane %v2584, 1
        %v2587 = vor.u32 %v2582, %v2586
        %v2589 = vsel %vm249, %v2587, 0
        %2591 = vmatpush.bf16.msra.mxu0 0
        %2592 = vmatpush.bf16.msra.mxu0 0
        %2593 = vmatpush.bf16.msra.mxu0 0
        %2594 = vmatpush.bf16.msra.mxu0 0
        %2595 = vmatpush.bf16.msra.mxu0 0
        %2596 = vmatpush.bf16.msra.mxu0 0
        %2597 = vmatpush.bf16.msra.mxu0 0
        %2598 = vmatpush.bf16.msra.mxu0 %v255
        %2599 = vmatmul.bf16.gmra.mxu0 %v2589
        %v2600 = vpop.f32.mrf.mxu0
        %v2601 = vadd.f32 0.0, %v2600
        %v2602 = vpop.f32.mrf.mxu0
        %v2603 = vadd.f32 0.0, %v2602
        %2604 = vdwg.mxu0
        %v2605 = vsel %vm249, %v2580, 0
        %2607 = vmatpush.bf16.msra.mxu0 0
        %2608 = vmatpush.bf16.msra.mxu0 0
        %2609 = vmatpush.bf16.msra.mxu0 0
        %2610 = vmatpush.bf16.msra.mxu0 0
        %2611 = vmatpush.bf16.msra.mxu0 0
        %2612 = vmatpush.bf16.msra.mxu0 0
        %2613 = vmatpush.bf16.msra.mxu0 0
        %2614 = vmatpush.bf16.msra.mxu0 %v274
        %2615 = vmatmul.bf16.gmra.mxu0 %v2605
        %v2616 = vpop.f32.mrf.mxu0
        %v2617 = vadd.f32 %v2601, %v2616
        %v2618 = vpop.f32.mrf.mxu0
        %v2619 = vadd.f32 %v2603, %v2618
        %2620 = vdwg.mxu0
        %v2622 = vrot.slane %v2580, 1
        %v2624 = vsel %vm249, %v2622, 0
        %2626 = vmatpush.bf16.msra.mxu0 0
        %2627 = vmatpush.bf16.msra.mxu0 0
        %2628 = vmatpush.bf16.msra.mxu0 0
        %2629 = vmatpush.bf16.msra.mxu0 0
        %2630 = vmatpush.bf16.msra.mxu0 0
        %2631 = vmatpush.bf16.msra.mxu0 0
        %2632 = vmatpush.bf16.msra.mxu0 0
        %2633 = vmatpush.bf16.msra.mxu0 %v296
        %2634 = vmatmul.bf16.gmra.mxu0 %v2624
        %v2635 = vpop.f32.mrf.mxu0
        %v2636 = vadd.f32 0.0, %v2635
        %v2637 = vpop.f32.mrf.mxu0
        %v2638 = vadd.f32 0.0, %v2637
        %2639 = vdwg.mxu0
        %v2640 = vadd.f32 %v2617, %v2636
        %v2641 = vadd.f32 %v2619, %v2638
        %v2642 = vrot.slane %v2582, 1
        %v2643 = vrot.slane %v2584, 2
        %v2644 = vor.u32 %v2642, %v2643
        %v2646 = vsel %vm249, %v2644, 0
        %2648 = vmatpush.bf16.msra.mxu0 0
        %2649 = vmatpush.bf16.msra.mxu0 0
        %2650 = vmatpush.bf16.msra.mxu0 0
        %2651 = vmatpush.bf16.msra.mxu0 0
        %2652 = vmatpush.bf16.msra.mxu0 0
        %2653 = vmatpush.bf16.msra.mxu0 0
        %2654 = vmatpush.bf16.msra.mxu0 0
        %2655 = vmatpush.bf16.msra.mxu0 %v321
        %2656 = vmatmul.bf16.gmra.mxu0 %v2646
        %v2657 = vpop.f32.mrf.mxu0
        %v2658 = vadd.f32 0.0, %v2657
        %v2659 = vpop.f32.mrf.mxu0
        %v2660 = vadd.f32 0.0, %v2659
        %2661 = vdwg.mxu0
        %v2662 = vadd.f32 %v2640, %v2658
        %v2663 = vadd.f32 %v2641, %v2660
        %s2664 = sadd.s32 %s2572, 1
        %s2665 = smul.u32 %s2664, 16
        %s2666 = scalar_lea.vmem %s209, %s2665
        %v2667 = vld [vmem:[%s2666] sm:$0xff]
        %v2668 = vld [vmem:[%s2666 + $0x8] sm:$0xff]
        %v2669 = vpack.c.bf16 %v2668, %v2667
        %v2671 = vsel %vm249, %v2669, 0
        %2673 = vmatpush.bf16.msra.mxu0 0
        %2674 = vmatpush.bf16.msra.mxu0 0
        %2675 = vmatpush.bf16.msra.mxu0 0
        %2676 = vmatpush.bf16.msra.mxu0 0
        %2677 = vmatpush.bf16.msra.mxu0 0
        %2678 = vmatpush.bf16.msra.mxu0 0
        %2679 = vmatpush.bf16.msra.mxu0 0
        %2680 = vmatpush.bf16.msra.mxu0 %v349
        %2681 = vmatmul.bf16.gmra.mxu0 %v2671
        %v2682 = vpop.f32.mrf.mxu0
        %v2683 = vadd.f32 0.0, %v2682
        %v2684 = vpop.f32.mrf.mxu0
        %v2685 = vadd.f32 0.0, %v2684
        %2686 = vdwg.mxu0
        %v2687 = vadd.f32 %v2662, %v2683
        %v2688 = vadd.f32 %v2663, %v2685
        %v2689 = vshrl.u32 %v2669, 16
        %v2691 = vshll.u32 %v2669, 16
        %v2693 = vrot.slane %v2691, 1
        %v2694 = vor.u32 %v2689, %v2693
        %v2696 = vsel %vm249, %v2694, 0
        %2698 = vmatpush.bf16.msra.mxu0 0
        %2699 = vmatpush.bf16.msra.mxu0 0
        %2700 = vmatpush.bf16.msra.mxu0 0
        %2701 = vmatpush.bf16.msra.mxu0 0
        %2702 = vmatpush.bf16.msra.mxu0 0
        %2703 = vmatpush.bf16.msra.mxu0 0
        %2704 = vmatpush.bf16.msra.mxu0 0
        %2705 = vmatpush.bf16.msra.mxu0 %v377
        %2706 = vmatmul.bf16.gmra.mxu0 %v2696
        %v2707 = vpop.f32.mrf.mxu0
        %v2708 = vadd.f32 0.0, %v2707
        %v2709 = vpop.f32.mrf.mxu0
        %v2710 = vadd.f32 0.0, %v2709
        %2711 = vdwg.mxu0
        %v2712 = vadd.f32 %v2687, %v2708
        %v2713 = vadd.f32 %v2688, %v2710
        %v2715 = vrot.slane %v2669, 1
        %v2717 = vsel %vm249, %v2715, 0
        %2719 = vmatpush.bf16.msra.mxu0 0
        %2720 = vmatpush.bf16.msra.mxu0 0
        %2721 = vmatpush.bf16.msra.mxu0 0
        %2722 = vmatpush.bf16.msra.mxu0 0
        %2723 = vmatpush.bf16.msra.mxu0 0
        %2724 = vmatpush.bf16.msra.mxu0 0
        %2725 = vmatpush.bf16.msra.mxu0 0
        %2726 = vmatpush.bf16.msra.mxu0 %v401
        %2727 = vmatmul.bf16.gmra.mxu0 %v2717
        %v2728 = vpop.f32.mrf.mxu0
        %v2729 = vadd.f32 0.0, %v2728
        %v2730 = vpop.f32.mrf.mxu0
        %v2731 = vadd.f32 0.0, %v2730
        %2732 = vdwg.mxu0
        %v2733 = vadd.f32 %v2712, %v2729
        %v2734 = vadd.f32 %v2713, %v2731
        %v2735 = vrot.slane %v2689, 1
        %v2736 = vrot.slane %v2691, 2
        %v2737 = vor.u32 %v2735, %v2736
        %v2739 = vsel %vm249, %v2737, 0
        %2741 = vmatpush.bf16.msra.mxu0 0
        %2742 = vmatpush.bf16.msra.mxu0 0
        %2743 = vmatpush.bf16.msra.mxu0 0
        %2744 = vmatpush.bf16.msra.mxu0 0
        %2745 = vmatpush.bf16.msra.mxu0 0
        %2746 = vmatpush.bf16.msra.mxu0 0
        %2747 = vmatpush.bf16.msra.mxu0 0
        %2748 = vmatpush.bf16.msra.mxu0 %v426
        %2749 = vmatmul.bf16.gmra.mxu0 %v2739
        %v2750 = vpop.f32.mrf.mxu0
        %v2751 = vadd.f32 0.0, %v2750
        %v2752 = vpop.f32.mrf.mxu0
        %v2753 = vadd.f32 0.0, %v2752
        %2754 = vdwg.mxu0
        %v2755 = vadd.f32 %v2733, %v2751
        %v2756 = vadd.f32 %v2734, %v2753
        %s2757 = sadd.s32 %s2572, 2
        %s2758 = smul.u32 %s2757, 16
        %s2759 = scalar_lea.vmem %s209, %s2758
        %v2760 = vld [vmem:[%s2759] sm:$0xff]
        %v2761 = vld [vmem:[%s2759 + $0x8] sm:$0xff]
        %v2762 = vpack.c.bf16 %v2761, %v2760
        %v2764 = vsel %vm249, %v2762, 0
        %2766 = vmatpush.bf16.msra.mxu0 0
        %2767 = vmatpush.bf16.msra.mxu0 0
        %2768 = vmatpush.bf16.msra.mxu0 0
        %2769 = vmatpush.bf16.msra.mxu0 0
        %2770 = vmatpush.bf16.msra.mxu0 0
        %2771 = vmatpush.bf16.msra.mxu0 0
        %2772 = vmatpush.bf16.msra.mxu0 0
        %2773 = vmatpush.bf16.msra.mxu0 %v454
        %2774 = vmatmul.bf16.gmra.mxu0 %v2764
        %v2775 = vpop.f32.mrf.mxu0
        %v2776 = vadd.f32 0.0, %v2775
        %v2777 = vpop.f32.mrf.mxu0
        %v2778 = vadd.f32 0.0, %v2777
        %2779 = vdwg.mxu0
        %v2780 = vadd.f32 %v2755, %v2776
        %v2781 = vadd.f32 %v2756, %v2778
        %v2782 = vshrl.u32 %v2762, 16
        %v2784 = vshll.u32 %v2762, 16
        %v2786 = vrot.slane %v2784, 1
        %v2787 = vor.u32 %v2782, %v2786
        %v2789 = vsel %vm249, %v2787, 0
        %2791 = vmatpush.bf16.msra.mxu0 0
        %2792 = vmatpush.bf16.msra.mxu0 0
        %2793 = vmatpush.bf16.msra.mxu0 0
        %2794 = vmatpush.bf16.msra.mxu0 0
        %2795 = vmatpush.bf16.msra.mxu0 0
        %2796 = vmatpush.bf16.msra.mxu0 0
        %2797 = vmatpush.bf16.msra.mxu0 0
        %2798 = vmatpush.bf16.msra.mxu0 %v482
        %2799 = vmatmul.bf16.gmra.mxu0 %v2789
        %v2800 = vpop.f32.mrf.mxu0
        %v2801 = vadd.f32 0.0, %v2800
        %v2802 = vpop.f32.mrf.mxu0
        %v2803 = vadd.f32 0.0, %v2802
        %2804 = vdwg.mxu0
        %v2805 = vadd.f32 %v2780, %v2801
        %v2806 = vadd.f32 %v2781, %v2803
        %v2808 = vrot.slane %v2762, 1
        %v2810 = vsel %vm249, %v2808, 0
        %2812 = vmatpush.bf16.msra.mxu0 0
        %2813 = vmatpush.bf16.msra.mxu0 0
        %2814 = vmatpush.bf16.msra.mxu0 0
        %2815 = vmatpush.bf16.msra.mxu0 0
        %2816 = vmatpush.bf16.msra.mxu0 0
        %2817 = vmatpush.bf16.msra.mxu0 0
        %2818 = vmatpush.bf16.msra.mxu0 0
        %2819 = vmatpush.bf16.msra.mxu0 %v506
        %2820 = vmatmul.bf16.gmra.mxu0 %v2810
        %v2821 = vpop.f32.mrf.mxu0
        %v2822 = vadd.f32 0.0, %v2821
        %v2823 = vpop.f32.mrf.mxu0
        %v2824 = vadd.f32 0.0, %v2823
        %2825 = vdwg.mxu0
        %v2826 = vadd.f32 %v2805, %v2822
        %v2827 = vadd.f32 %v2806, %v2824
        %v2828 = vrot.slane %v2782, 1
        %v2829 = vrot.slane %v2784, 2
        %v2830 = vor.u32 %v2828, %v2829
        %v2832 = vsel %vm249, %v2830, 0
        %2834 = vmatpush.bf16.msra.mxu0 0
        %2835 = vmatpush.bf16.msra.mxu0 0
        %2836 = vmatpush.bf16.msra.mxu0 0
        %2837 = vmatpush.bf16.msra.mxu0 0
        %2838 = vmatpush.bf16.msra.mxu0 0
        %2839 = vmatpush.bf16.msra.mxu0 0
        %2840 = vmatpush.bf16.msra.mxu0 0
        %2841 = vmatpush.bf16.msra.mxu0 %v531
        %2842 = vmatmul.bf16.gmra.mxu0 %v2832
        %v2843 = vpop.f32.mrf.mxu0
        %v2844 = vadd.f32 0.0, %v2843
        %v2845 = vpop.f32.mrf.mxu0
        %v2846 = vadd.f32 0.0, %v2845
        %2847 = vdwg.mxu0
        %v2848 = vadd.f32 %v2826, %v2844
        %v2849 = vadd.f32 %v2827, %v2846
        %s2850 = sadd.s32 %s2572, 3
        %s2851 = smul.u32 %s2850, 16
        %s2852 = scalar_lea.vmem %s209, %s2851
        %v2853 = vld [vmem:[%s2852] sm:$0xff]
        %v2854 = vld [vmem:[%s2852 + $0x8] sm:$0xff]
        %v2855 = vpack.c.bf16 %v2854, %v2853
        %v2857 = vsel %vm249, %v2855, 0
        %2859 = vmatpush.bf16.msra.mxu0 0
        %2860 = vmatpush.bf16.msra.mxu0 0
        %2861 = vmatpush.bf16.msra.mxu0 0
        %2862 = vmatpush.bf16.msra.mxu0 0
        %2863 = vmatpush.bf16.msra.mxu0 0
        %2864 = vmatpush.bf16.msra.mxu0 0
        %2865 = vmatpush.bf16.msra.mxu0 0
        %2866 = vmatpush.bf16.msra.mxu0 %v559
        %2867 = vmatmul.bf16.gmra.mxu0 %v2857
        %v2868 = vpop.f32.mrf.mxu0
        %v2869 = vadd.f32 0.0, %v2868
        %v2870 = vpop.f32.mrf.mxu0
        %v2871 = vadd.f32 0.0, %v2870
        %2872 = vdwg.mxu0
        %v2873 = vadd.f32 %v2848, %v2869
        %v2874 = vadd.f32 %v2849, %v2871
        %v2875 = vshrl.u32 %v2855, 16
        %v2877 = vshll.u32 %v2855, 16
        %v2879 = vrot.slane %v2877, 1
        %v2880 = vor.u32 %v2875, %v2879
        %v2882 = vsel %vm249, %v2880, 0
        %2884 = vmatpush.bf16.msra.mxu0 0
        %2885 = vmatpush.bf16.msra.mxu0 0
        %2886 = vmatpush.bf16.msra.mxu0 0
        %2887 = vmatpush.bf16.msra.mxu0 0
        %2888 = vmatpush.bf16.msra.mxu0 0
        %2889 = vmatpush.bf16.msra.mxu0 0
        %2890 = vmatpush.bf16.msra.mxu0 0
        %2891 = vmatpush.bf16.msra.mxu0 %v587
        %2892 = vmatmul.bf16.gmra.mxu0 %v2882
        %v2893 = vpop.f32.mrf.mxu0
        %v2894 = vadd.f32 0.0, %v2893
        %v2895 = vpop.f32.mrf.mxu0
        %v2896 = vadd.f32 0.0, %v2895
        %2897 = vdwg.mxu0
        %v2898 = vadd.f32 %v2873, %v2894
        %v2899 = vadd.f32 %v2874, %v2896
        %v2901 = vrot.slane %v2855, 1
        %v2903 = vsel %vm249, %v2901, 0
        %2905 = vmatpush.bf16.msra.mxu0 0
        %2906 = vmatpush.bf16.msra.mxu0 0
        %2907 = vmatpush.bf16.msra.mxu0 0
        %2908 = vmatpush.bf16.msra.mxu0 0
        %2909 = vmatpush.bf16.msra.mxu0 0
        %2910 = vmatpush.bf16.msra.mxu0 0
        %2911 = vmatpush.bf16.msra.mxu0 0
        %2912 = vmatpush.bf16.msra.mxu0 %v611
        %2913 = vmatmul.bf16.gmra.mxu0 %v2903
        %v2914 = vpop.f32.mrf.mxu0
        %v2915 = vadd.f32 0.0, %v2914
        %v2916 = vpop.f32.mrf.mxu0
        %v2917 = vadd.f32 0.0, %v2916
        %2918 = vdwg.mxu0
        %v2919 = vadd.f32 %v2898, %v2915
        %v2920 = vadd.f32 %v2899, %v2917
        %v2921 = vrot.slane %v2875, 1
        %v2922 = vrot.slane %v2877, 2
        %v2923 = vor.u32 %v2921, %v2922
        %v2925 = vsel %vm249, %v2923, 0
        %2927 = vmatpush.bf16.msra.mxu0 0
        %2928 = vmatpush.bf16.msra.mxu0 0
        %2929 = vmatpush.bf16.msra.mxu0 0
        %2930 = vmatpush.bf16.msra.mxu0 0
        %2931 = vmatpush.bf16.msra.mxu0 0
        %2932 = vmatpush.bf16.msra.mxu0 0
        %2933 = vmatpush.bf16.msra.mxu0 0
        %2934 = vmatpush.bf16.msra.mxu0 %v636
        %2935 = vmatmul.bf16.gmra.mxu0 %v2925
        %v2936 = vpop.f32.mrf.mxu0
        %v2937 = vadd.f32 0.0, %v2936
        %v2938 = vpop.f32.mrf.mxu0
        %v2939 = vadd.f32 0.0, %v2938
        %2940 = vdwg.mxu0
        %v2941 = vadd.f32 %v2919, %v2937
        %v2942 = vadd.f32 %v2920, %v2939
        %v2943 = vmul.f32 %v2941, 0.25
        %v2944 = vmul.f32 %v2942, 0.25
        %v2945 = vadd.f32 %v2943, 0.0
        %v2946 = vadd.f32 %v2944, 0.0
        %s2947 = smul.u32 %s2569, 16
        %s2948 = scalar_lea.vmem %s209, %s2947
        %v2949 = vld [vmem:[%s2948] sm:$0xff]
        %v2950 = vld [vmem:[%s2948 + $0x8] sm:$0xff]
        %v2951 = vpack.c.bf16 %v2950, %v2949
        %v2953 = vshrl.u32 %v2951, 16
        %v2955 = vshll.u32 %v2951, 16
        %v2957 = vrot.slane %v2955, 1
        %v2958 = vor.u32 %v2953, %v2957
        %v2960 = vsel %vm249, %v2958, 0
        %2962 = vmatpush.bf16.msra.mxu0 0
        %2963 = vmatpush.bf16.msra.mxu0 0
        %2964 = vmatpush.bf16.msra.mxu0 0
        %2965 = vmatpush.bf16.msra.mxu0 0
        %2966 = vmatpush.bf16.msra.mxu0 0
        %2967 = vmatpush.bf16.msra.mxu0 0
        %2968 = vmatpush.bf16.msra.mxu0 0
        %2969 = vmatpush.bf16.msra.mxu0 %v255
        %2970 = vmatmul.bf16.gmra.mxu0 %v2960
        %v2971 = vpop.f32.mrf.mxu0
        %v2972 = vadd.f32 0.0, %v2971
        %v2973 = vpop.f32.mrf.mxu0
        %v2974 = vadd.f32 0.0, %v2973
        %2975 = vdwg.mxu0
        %v2976 = vsel %vm249, %v2951, 0
        %2978 = vmatpush.bf16.msra.mxu0 0
        %2979 = vmatpush.bf16.msra.mxu0 0
        %2980 = vmatpush.bf16.msra.mxu0 0
        %2981 = vmatpush.bf16.msra.mxu0 0
        %2982 = vmatpush.bf16.msra.mxu0 0
        %2983 = vmatpush.bf16.msra.mxu0 0
        %2984 = vmatpush.bf16.msra.mxu0 0
        %2985 = vmatpush.bf16.msra.mxu0 %v274
        %2986 = vmatmul.bf16.gmra.mxu0 %v2976
        %v2987 = vpop.f32.mrf.mxu0
        %v2988 = vadd.f32 %v2972, %v2987
        %v2989 = vpop.f32.mrf.mxu0
        %v2990 = vadd.f32 %v2974, %v2989
        %2991 = vdwg.mxu0
        %v2993 = vrot.slane %v2951, 1
        %v2995 = vsel %vm249, %v2993, 0
        %2997 = vmatpush.bf16.msra.mxu0 0
        %2998 = vmatpush.bf16.msra.mxu0 0
        %2999 = vmatpush.bf16.msra.mxu0 0
        %3000 = vmatpush.bf16.msra.mxu0 0
        %3001 = vmatpush.bf16.msra.mxu0 0
        %3002 = vmatpush.bf16.msra.mxu0 0
        %3003 = vmatpush.bf16.msra.mxu0 0
        %3004 = vmatpush.bf16.msra.mxu0 %v296
        %3005 = vmatmul.bf16.gmra.mxu0 %v2995
        %v3006 = vpop.f32.mrf.mxu0
        %v3007 = vadd.f32 0.0, %v3006
        %v3008 = vpop.f32.mrf.mxu0
        %v3009 = vadd.f32 0.0, %v3008
        %3010 = vdwg.mxu0
        %v3011 = vadd.f32 %v2988, %v3007
        %v3012 = vadd.f32 %v2990, %v3009
        %v3013 = vrot.slane %v2953, 1
        %v3014 = vrot.slane %v2955, 2
        %v3015 = vor.u32 %v3013, %v3014
        %v3017 = vsel %vm249, %v3015, 0
        %3019 = vmatpush.bf16.msra.mxu0 0
        %3020 = vmatpush.bf16.msra.mxu0 0
        %3021 = vmatpush.bf16.msra.mxu0 0
        %3022 = vmatpush.bf16.msra.mxu0 0
        %3023 = vmatpush.bf16.msra.mxu0 0
        %3024 = vmatpush.bf16.msra.mxu0 0
        %3025 = vmatpush.bf16.msra.mxu0 0
        %3026 = vmatpush.bf16.msra.mxu0 %v321
        %3027 = vmatmul.bf16.gmra.mxu0 %v3017
        %v3028 = vpop.f32.mrf.mxu0
        %v3029 = vadd.f32 0.0, %v3028
        %v3030 = vpop.f32.mrf.mxu0
        %v3031 = vadd.f32 0.0, %v3030
        %3032 = vdwg.mxu0
        %v3033 = vadd.f32 %v3011, %v3029
        %v3034 = vadd.f32 %v3012, %v3031
        %s3035 = smul.u32 %s2574, 16
        %s3036 = scalar_lea.vmem %s209, %s3035
        %v3037 = vld [vmem:[%s3036] sm:$0xff]
        %v3038 = vld [vmem:[%s3036 + $0x8] sm:$0xff]
        %v3039 = vpack.c.bf16 %v3038, %v3037
        %v3041 = vsel %vm249, %v3039, 0
        %3043 = vmatpush.bf16.msra.mxu0 0
        %3044 = vmatpush.bf16.msra.mxu0 0
        %3045 = vmatpush.bf16.msra.mxu0 0
        %3046 = vmatpush.bf16.msra.mxu0 0
        %3047 = vmatpush.bf16.msra.mxu0 0
        %3048 = vmatpush.bf16.msra.mxu0 0
        %3049 = vmatpush.bf16.msra.mxu0 0
        %3050 = vmatpush.bf16.msra.mxu0 %v349
        %3051 = vmatmul.bf16.gmra.mxu0 %v3041
        %v3052 = vpop.f32.mrf.mxu0
        %v3053 = vadd.f32 0.0, %v3052
        %v3054 = vpop.f32.mrf.mxu0
        %v3055 = vadd.f32 0.0, %v3054
        %3056 = vdwg.mxu0
        %v3057 = vadd.f32 %v3033, %v3053
        %v3058 = vadd.f32 %v3034, %v3055
        %v3059 = vshrl.u32 %v3039, 16
        %v3061 = vshll.u32 %v3039, 16
        %v3063 = vrot.slane %v3061, 1
        %v3064 = vor.u32 %v3059, %v3063
        %v3066 = vsel %vm249, %v3064, 0
        %3068 = vmatpush.bf16.msra.mxu0 0
        %3069 = vmatpush.bf16.msra.mxu0 0
        %3070 = vmatpush.bf16.msra.mxu0 0
        %3071 = vmatpush.bf16.msra.mxu0 0
        %3072 = vmatpush.bf16.msra.mxu0 0
        %3073 = vmatpush.bf16.msra.mxu0 0
        %3074 = vmatpush.bf16.msra.mxu0 0
        %3075 = vmatpush.bf16.msra.mxu0 %v377
        %3076 = vmatmul.bf16.gmra.mxu0 %v3066
        %v3077 = vpop.f32.mrf.mxu0
        %v3078 = vadd.f32 0.0, %v3077
        %v3079 = vpop.f32.mrf.mxu0
        %v3080 = vadd.f32 0.0, %v3079
        %3081 = vdwg.mxu0
        %v3082 = vadd.f32 %v3057, %v3078
        %v3083 = vadd.f32 %v3058, %v3080
        %v3085 = vrot.slane %v3039, 1
        %v3087 = vsel %vm249, %v3085, 0
        %3089 = vmatpush.bf16.msra.mxu0 0
        %3090 = vmatpush.bf16.msra.mxu0 0
        %3091 = vmatpush.bf16.msra.mxu0 0
        %3092 = vmatpush.bf16.msra.mxu0 0
        %3093 = vmatpush.bf16.msra.mxu0 0
        %3094 = vmatpush.bf16.msra.mxu0 0
        %3095 = vmatpush.bf16.msra.mxu0 0
        %3096 = vmatpush.bf16.msra.mxu0 %v401
        %3097 = vmatmul.bf16.gmra.mxu0 %v3087
        %v3098 = vpop.f32.mrf.mxu0
        %v3099 = vadd.f32 0.0, %v3098
        %v3100 = vpop.f32.mrf.mxu0
        %v3101 = vadd.f32 0.0, %v3100
        %3102 = vdwg.mxu0
        %v3103 = vadd.f32 %v3082, %v3099
        %v3104 = vadd.f32 %v3083, %v3101
        %v3105 = vrot.slane %v3059, 1
        %v3106 = vrot.slane %v3061, 2
        %v3107 = vor.u32 %v3105, %v3106
        %v3109 = vsel %vm249, %v3107, 0
        %3111 = vmatpush.bf16.msra.mxu0 0
        %3112 = vmatpush.bf16.msra.mxu0 0
        %3113 = vmatpush.bf16.msra.mxu0 0
        %3114 = vmatpush.bf16.msra.mxu0 0
        %3115 = vmatpush.bf16.msra.mxu0 0
        %3116 = vmatpush.bf16.msra.mxu0 0
        %3117 = vmatpush.bf16.msra.mxu0 0
        %3118 = vmatpush.bf16.msra.mxu0 %v426
        %3119 = vmatmul.bf16.gmra.mxu0 %v3109
        %v3120 = vpop.f32.mrf.mxu0
        %v3121 = vadd.f32 0.0, %v3120
        %v3122 = vpop.f32.mrf.mxu0
        %v3123 = vadd.f32 0.0, %v3122
        %3124 = vdwg.mxu0
        %v3125 = vadd.f32 %v3103, %v3121
        %v3126 = vadd.f32 %v3104, %v3123
        %s3127 = sadd.s32 %s2569, 2
        %s3128 = smul.u32 %s3127, 16
        %s3129 = scalar_lea.vmem %s209, %s3128
        %v3130 = vld [vmem:[%s3129] sm:$0xff]
        %v3131 = vld [vmem:[%s3129 + $0x8] sm:$0xff]
        %v3132 = vpack.c.bf16 %v3131, %v3130
        %v3134 = vsel %vm249, %v3132, 0
        %3136 = vmatpush.bf16.msra.mxu0 0
        %3137 = vmatpush.bf16.msra.mxu0 0
        %3138 = vmatpush.bf16.msra.mxu0 0
        %3139 = vmatpush.bf16.msra.mxu0 0
        %3140 = vmatpush.bf16.msra.mxu0 0
        %3141 = vmatpush.bf16.msra.mxu0 0
        %3142 = vmatpush.bf16.msra.mxu0 0
        %3143 = vmatpush.bf16.msra.mxu0 %v454
        %3144 = vmatmul.bf16.gmra.mxu0 %v3134
        %v3145 = vpop.f32.mrf.mxu0
        %v3146 = vadd.f32 0.0, %v3145
        %v3147 = vpop.f32.mrf.mxu0
        %v3148 = vadd.f32 0.0, %v3147
        %3149 = vdwg.mxu0
        %v3150 = vadd.f32 %v3125, %v3146
        %v3151 = vadd.f32 %v3126, %v3148
        %v3152 = vshrl.u32 %v3132, 16
        %v3154 = vshll.u32 %v3132, 16
        %v3156 = vrot.slane %v3154, 1
        %v3157 = vor.u32 %v3152, %v3156
        %v3159 = vsel %vm249, %v3157, 0
        %3161 = vmatpush.bf16.msra.mxu0 0
        %3162 = vmatpush.bf16.msra.mxu0 0
        %3163 = vmatpush.bf16.msra.mxu0 0
        %3164 = vmatpush.bf16.msra.mxu0 0
        %3165 = vmatpush.bf16.msra.mxu0 0
        %3166 = vmatpush.bf16.msra.mxu0 0
        %3167 = vmatpush.bf16.msra.mxu0 0
        %3168 = vmatpush.bf16.msra.mxu0 %v482
        %3169 = vmatmul.bf16.gmra.mxu0 %v3159
        %v3170 = vpop.f32.mrf.mxu0
        %v3171 = vadd.f32 0.0, %v3170
        %v3172 = vpop.f32.mrf.mxu0
        %v3173 = vadd.f32 0.0, %v3172
        %3174 = vdwg.mxu0
        %v3175 = vadd.f32 %v3150, %v3171
        %v3176 = vadd.f32 %v3151, %v3173
        %v3178 = vrot.slane %v3132, 1
        %v3180 = vsel %vm249, %v3178, 0
        %3182 = vmatpush.bf16.msra.mxu0 0
        %3183 = vmatpush.bf16.msra.mxu0 0
        %3184 = vmatpush.bf16.msra.mxu0 0
        %3185 = vmatpush.bf16.msra.mxu0 0
        %3186 = vmatpush.bf16.msra.mxu0 0
        %3187 = vmatpush.bf16.msra.mxu0 0
        %3188 = vmatpush.bf16.msra.mxu0 0
        %3189 = vmatpush.bf16.msra.mxu0 %v506
        %3190 = vmatmul.bf16.gmra.mxu0 %v3180
        %v3191 = vpop.f32.mrf.mxu0
        %v3192 = vadd.f32 0.0, %v3191
        %v3193 = vpop.f32.mrf.mxu0
        %v3194 = vadd.f32 0.0, %v3193
        %3195 = vdwg.mxu0
        %v3196 = vadd.f32 %v3175, %v3192
        %v3197 = vadd.f32 %v3176, %v3194
        %v3198 = vrot.slane %v3152, 1
        %v3199 = vrot.slane %v3154, 2
        %v3200 = vor.u32 %v3198, %v3199
        %v3202 = vsel %vm249, %v3200, 0
        %3204 = vmatpush.bf16.msra.mxu0 0
        %3205 = vmatpush.bf16.msra.mxu0 0
        %3206 = vmatpush.bf16.msra.mxu0 0
        %3207 = vmatpush.bf16.msra.mxu0 0
        %3208 = vmatpush.bf16.msra.mxu0 0
        %3209 = vmatpush.bf16.msra.mxu0 0
        %3210 = vmatpush.bf16.msra.mxu0 0
        %3211 = vmatpush.bf16.msra.mxu0 %v531
        %3212 = vmatmul.bf16.gmra.mxu0 %v3202
        %v3213 = vpop.f32.mrf.mxu0
        %v3214 = vadd.f32 0.0, %v3213
        %v3215 = vpop.f32.mrf.mxu0
        %v3216 = vadd.f32 0.0, %v3215
        %3217 = vdwg.mxu0
        %v3218 = vadd.f32 %v3196, %v3214
        %v3219 = vadd.f32 %v3197, %v3216
        %s3220 = sadd.s32 %s2569, 3
        %s3221 = smul.u32 %s3220, 16
        %s3222 = scalar_lea.vmem %s209, %s3221
        %v3223 = vld [vmem:[%s3222] sm:$0xff]
        %v3224 = vld [vmem:[%s3222 + $0x8] sm:$0xff]
        %v3225 = vpack.c.bf16 %v3224, %v3223
        %v3227 = vsel %vm249, %v3225, 0
        %3229 = vmatpush.bf16.msra.mxu0 0
        %3230 = vmatpush.bf16.msra.mxu0 0
        %3231 = vmatpush.bf16.msra.mxu0 0
        %3232 = vmatpush.bf16.msra.mxu0 0
        %3233 = vmatpush.bf16.msra.mxu0 0
        %3234 = vmatpush.bf16.msra.mxu0 0
        %3235 = vmatpush.bf16.msra.mxu0 0
        %3236 = vmatpush.bf16.msra.mxu0 %v559
        %3237 = vmatmul.bf16.gmra.mxu0 %v3227
        %v3238 = vpop.f32.mrf.mxu0
        %v3239 = vadd.f32 0.0, %v3238
        %v3240 = vpop.f32.mrf.mxu0
        %v3241 = vadd.f32 0.0, %v3240
        %3242 = vdwg.mxu0
        %v3243 = vadd.f32 %v3218, %v3239
        %v3244 = vadd.f32 %v3219, %v3241
        %v3245 = vshrl.u32 %v3225, 16
        %v3247 = vshll.u32 %v3225, 16
        %v3249 = vrot.slane %v3247, 1
        %v3250 = vor.u32 %v3245, %v3249
        %v3252 = vsel %vm249, %v3250, 0
        %3254 = vmatpush.bf16.msra.mxu0 0
        %3255 = vmatpush.bf16.msra.mxu0 0
        %3256 = vmatpush.bf16.msra.mxu0 0
        %3257 = vmatpush.bf16.msra.mxu0 0
        %3258 = vmatpush.bf16.msra.mxu0 0
        %3259 = vmatpush.bf16.msra.mxu0 0
        %3260 = vmatpush.bf16.msra.mxu0 0
        %3261 = vmatpush.bf16.msra.mxu0 %v587
        %3262 = vmatmul.bf16.gmra.mxu0 %v3252
        %v3263 = vpop.f32.mrf.mxu0
        %v3264 = vadd.f32 0.0, %v3263
        %v3265 = vpop.f32.mrf.mxu0
        %v3266 = vadd.f32 0.0, %v3265
        %3267 = vdwg.mxu0
        %v3268 = vadd.f32 %v3243, %v3264
        %v3269 = vadd.f32 %v3244, %v3266
        %v3271 = vrot.slane %v3225, 1
        %v3273 = vsel %vm249, %v3271, 0
        %3275 = vmatpush.bf16.msra.mxu0 0
        %3276 = vmatpush.bf16.msra.mxu0 0
        %3277 = vmatpush.bf16.msra.mxu0 0
        %3278 = vmatpush.bf16.msra.mxu0 0
        %3279 = vmatpush.bf16.msra.mxu0 0
        %3280 = vmatpush.bf16.msra.mxu0 0
        %3281 = vmatpush.bf16.msra.mxu0 0
        %3282 = vmatpush.bf16.msra.mxu0 %v611
        %3283 = vmatmul.bf16.gmra.mxu0 %v3273
        %v3284 = vpop.f32.mrf.mxu0
        %v3285 = vadd.f32 0.0, %v3284
        %v3286 = vpop.f32.mrf.mxu0
        %v3287 = vadd.f32 0.0, %v3286
        %3288 = vdwg.mxu0
        %v3289 = vadd.f32 %v3268, %v3285
        %v3290 = vadd.f32 %v3269, %v3287
        %v3291 = vrot.slane %v3245, 1
        %v3292 = vrot.slane %v3247, 2
        %v3293 = vor.u32 %v3291, %v3292
        %v3295 = vsel %vm249, %v3293, 0
        %3297 = vmatpush.bf16.msra.mxu0 0
        %3298 = vmatpush.bf16.msra.mxu0 0
        %3299 = vmatpush.bf16.msra.mxu0 0
        %3300 = vmatpush.bf16.msra.mxu0 0
        %3301 = vmatpush.bf16.msra.mxu0 0
        %3302 = vmatpush.bf16.msra.mxu0 0
        %3303 = vmatpush.bf16.msra.mxu0 0
        %3304 = vmatpush.bf16.msra.mxu0 %v636
        %3305 = vmatmul.bf16.gmra.mxu0 %v3295
        %v3306 = vpop.f32.mrf.mxu0
        %v3307 = vadd.f32 0.0, %v3306
        %v3308 = vpop.f32.mrf.mxu0
        %v3309 = vadd.f32 0.0, %v3308
        %3310 = vdwg.mxu0
        %v3311 = vadd.f32 %v3289, %v3307
        %v3312 = vadd.f32 %v3290, %v3309
        %v3313 = vmul.f32 %v3311, 0.5
        %v3314 = vmul.f32 %v3312, 0.5
        %v3315 = vadd.f32 %v2945, %v3313
        %v3316 = vadd.f32 %v2946, %v3314
        %s3317 = smul.u32 %s2575, 16
        %s3318 = scalar_lea.vmem %s209, %s3317
        %v3319 = vld [vmem:[%s3318] sm:$0xff]
        %v3320 = vld [vmem:[%s3318 + $0x8] sm:$0xff]
        %v3321 = vpack.c.bf16 %v3320, %v3319
        %v3323 = vshrl.u32 %v3321, 16
        %v3325 = vshll.u32 %v3321, 16
        %v3327 = vrot.slane %v3325, 1
        %v3328 = vor.u32 %v3323, %v3327
        %v3330 = vsel %vm249, %v3328, 0
        %3332 = vmatpush.bf16.msra.mxu0 0
        %3333 = vmatpush.bf16.msra.mxu0 0
        %3334 = vmatpush.bf16.msra.mxu0 0
        %3335 = vmatpush.bf16.msra.mxu0 0
        %3336 = vmatpush.bf16.msra.mxu0 0
        %3337 = vmatpush.bf16.msra.mxu0 0
        %3338 = vmatpush.bf16.msra.mxu0 0
        %3339 = vmatpush.bf16.msra.mxu0 %v255
        %3340 = vmatmul.bf16.gmra.mxu0 %v3330
        %v3341 = vpop.f32.mrf.mxu0
        %v3342 = vadd.f32 0.0, %v3341
        %v3343 = vpop.f32.mrf.mxu0
        %v3344 = vadd.f32 0.0, %v3343
        %3345 = vdwg.mxu0
        %v3346 = vsel %vm249, %v3321, 0
        %3348 = vmatpush.bf16.msra.mxu0 0
        %3349 = vmatpush.bf16.msra.mxu0 0
        %3350 = vmatpush.bf16.msra.mxu0 0
        %3351 = vmatpush.bf16.msra.mxu0 0
        %3352 = vmatpush.bf16.msra.mxu0 0
        %3353 = vmatpush.bf16.msra.mxu0 0
        %3354 = vmatpush.bf16.msra.mxu0 0
        %3355 = vmatpush.bf16.msra.mxu0 %v274
        %3356 = vmatmul.bf16.gmra.mxu0 %v3346
        %v3357 = vpop.f32.mrf.mxu0
        %v3358 = vadd.f32 %v3342, %v3357
        %v3359 = vpop.f32.mrf.mxu0
        %v3360 = vadd.f32 %v3344, %v3359
        %3361 = vdwg.mxu0
        %v3363 = vrot.slane %v3321, 1
        %v3365 = vsel %vm249, %v3363, 0
        %3367 = vmatpush.bf16.msra.mxu0 0
        %3368 = vmatpush.bf16.msra.mxu0 0
        %3369 = vmatpush.bf16.msra.mxu0 0
        %3370 = vmatpush.bf16.msra.mxu0 0
        %3371 = vmatpush.bf16.msra.mxu0 0
        %3372 = vmatpush.bf16.msra.mxu0 0
        %3373 = vmatpush.bf16.msra.mxu0 0
        %3374 = vmatpush.bf16.msra.mxu0 %v296
        %3375 = vmatmul.bf16.gmra.mxu0 %v3365
        %v3376 = vpop.f32.mrf.mxu0
        %v3377 = vadd.f32 0.0, %v3376
        %v3378 = vpop.f32.mrf.mxu0
        %v3379 = vadd.f32 0.0, %v3378
        %3380 = vdwg.mxu0
        %v3381 = vadd.f32 %v3358, %v3377
        %v3382 = vadd.f32 %v3360, %v3379
        %v3383 = vrot.slane %v3323, 1
        %v3384 = vrot.slane %v3325, 2
        %v3385 = vor.u32 %v3383, %v3384
        %v3387 = vsel %vm249, %v3385, 0
        %3389 = vmatpush.bf16.msra.mxu0 0
        %3390 = vmatpush.bf16.msra.mxu0 0
        %3391 = vmatpush.bf16.msra.mxu0 0
        %3392 = vmatpush.bf16.msra.mxu0 0
        %3393 = vmatpush.bf16.msra.mxu0 0
        %3394 = vmatpush.bf16.msra.mxu0 0
        %3395 = vmatpush.bf16.msra.mxu0 0
        %3396 = vmatpush.bf16.msra.mxu0 %v321
        %3397 = vmatmul.bf16.gmra.mxu0 %v3387
        %v3398 = vpop.f32.mrf.mxu0
        %v3399 = vadd.f32 0.0, %v3398
        %v3400 = vpop.f32.mrf.mxu0
        %v3401 = vadd.f32 0.0, %v3400
        %3402 = vdwg.mxu0
        %v3403 = vadd.f32 %v3381, %v3399
        %v3404 = vadd.f32 %v3382, %v3401
        %s3405 = sadd.s32 %s2575, 1
        %s3406 = smul.u32 %s3405, 16
        %s3407 = scalar_lea.vmem %s209, %s3406
        %v3408 = vld [vmem:[%s3407] sm:$0xff]
        %v3409 = vld [vmem:[%s3407 + $0x8] sm:$0xff]
        %v3410 = vpack.c.bf16 %v3409, %v3408
        %v3412 = vsel %vm249, %v3410, 0
        %3414 = vmatpush.bf16.msra.mxu0 0
        %3415 = vmatpush.bf16.msra.mxu0 0
        %3416 = vmatpush.bf16.msra.mxu0 0
        %3417 = vmatpush.bf16.msra.mxu0 0
        %3418 = vmatpush.bf16.msra.mxu0 0
        %3419 = vmatpush.bf16.msra.mxu0 0
        %3420 = vmatpush.bf16.msra.mxu0 0
        %3421 = vmatpush.bf16.msra.mxu0 %v349
        %3422 = vmatmul.bf16.gmra.mxu0 %v3412
        %v3423 = vpop.f32.mrf.mxu0
        %v3424 = vadd.f32 0.0, %v3423
        %v3425 = vpop.f32.mrf.mxu0
        %v3426 = vadd.f32 0.0, %v3425
        %3427 = vdwg.mxu0
        %v3428 = vadd.f32 %v3403, %v3424
        %v3429 = vadd.f32 %v3404, %v3426
        %v3430 = vshrl.u32 %v3410, 16
        %v3432 = vshll.u32 %v3410, 16
        %v3434 = vrot.slane %v3432, 1
        %v3435 = vor.u32 %v3430, %v3434
        %v3437 = vsel %vm249, %v3435, 0
        %3439 = vmatpush.bf16.msra.mxu0 0
        %3440 = vmatpush.bf16.msra.mxu0 0
        %3441 = vmatpush.bf16.msra.mxu0 0
        %3442 = vmatpush.bf16.msra.mxu0 0
        %3443 = vmatpush.bf16.msra.mxu0 0
        %3444 = vmatpush.bf16.msra.mxu0 0
        %3445 = vmatpush.bf16.msra.mxu0 0
        %3446 = vmatpush.bf16.msra.mxu0 %v377
        %3447 = vmatmul.bf16.gmra.mxu0 %v3437
        %v3448 = vpop.f32.mrf.mxu0
        %v3449 = vadd.f32 0.0, %v3448
        %v3450 = vpop.f32.mrf.mxu0
        %v3451 = vadd.f32 0.0, %v3450
        %3452 = vdwg.mxu0
        %v3453 = vadd.f32 %v3428, %v3449
        %v3454 = vadd.f32 %v3429, %v3451
        %v3456 = vrot.slane %v3410, 1
        %v3458 = vsel %vm249, %v3456, 0
        %3460 = vmatpush.bf16.msra.mxu0 0
        %3461 = vmatpush.bf16.msra.mxu0 0
        %3462 = vmatpush.bf16.msra.mxu0 0
        %3463 = vmatpush.bf16.msra.mxu0 0
        %3464 = vmatpush.bf16.msra.mxu0 0
        %3465 = vmatpush.bf16.msra.mxu0 0
        %3466 = vmatpush.bf16.msra.mxu0 0
        %3467 = vmatpush.bf16.msra.mxu0 %v401
        %3468 = vmatmul.bf16.gmra.mxu0 %v3458
        %v3469 = vpop.f32.mrf.mxu0
        %v3470 = vadd.f32 0.0, %v3469
        %v3471 = vpop.f32.mrf.mxu0
        %v3472 = vadd.f32 0.0, %v3471
        %3473 = vdwg.mxu0
        %v3474 = vadd.f32 %v3453, %v3470
        %v3475 = vadd.f32 %v3454, %v3472
        %v3476 = vrot.slane %v3430, 1
        %v3477 = vrot.slane %v3432, 2
        %v3478 = vor.u32 %v3476, %v3477
        %v3480 = vsel %vm249, %v3478, 0
        %3482 = vmatpush.bf16.msra.mxu0 0
        %3483 = vmatpush.bf16.msra.mxu0 0
        %3484 = vmatpush.bf16.msra.mxu0 0
        %3485 = vmatpush.bf16.msra.mxu0 0
        %3486 = vmatpush.bf16.msra.mxu0 0
        %3487 = vmatpush.bf16.msra.mxu0 0
        %3488 = vmatpush.bf16.msra.mxu0 0
        %3489 = vmatpush.bf16.msra.mxu0 %v426
        %3490 = vmatmul.bf16.gmra.mxu0 %v3480
        %v3491 = vpop.f32.mrf.mxu0
        %v3492 = vadd.f32 0.0, %v3491
        %v3493 = vpop.f32.mrf.mxu0
        %v3494 = vadd.f32 0.0, %v3493
        %3495 = vdwg.mxu0
        %v3496 = vadd.f32 %v3474, %v3492
        %v3497 = vadd.f32 %v3475, %v3494
        %s3498 = sadd.s32 %s2575, 2
        %s3499 = smul.u32 %s3498, 16
        %s3500 = scalar_lea.vmem %s209, %s3499
        %v3501 = vld [vmem:[%s3500] sm:$0xff]
        %v3502 = vld [vmem:[%s3500 + $0x8] sm:$0xff]
        %v3503 = vpack.c.bf16 %v3502, %v3501
        %v3505 = vsel %vm249, %v3503, 0
        %3507 = vmatpush.bf16.msra.mxu0 0
        %3508 = vmatpush.bf16.msra.mxu0 0
        %3509 = vmatpush.bf16.msra.mxu0 0
        %3510 = vmatpush.bf16.msra.mxu0 0
        %3511 = vmatpush.bf16.msra.mxu0 0
        %3512 = vmatpush.bf16.msra.mxu0 0
        %3513 = vmatpush.bf16.msra.mxu0 0
        %3514 = vmatpush.bf16.msra.mxu0 %v454
        %3515 = vmatmul.bf16.gmra.mxu0 %v3505
        %v3516 = vpop.f32.mrf.mxu0
        %v3517 = vadd.f32 0.0, %v3516
        %v3518 = vpop.f32.mrf.mxu0
        %v3519 = vadd.f32 0.0, %v3518
        %3520 = vdwg.mxu0
        %v3521 = vadd.f32 %v3496, %v3517
        %v3522 = vadd.f32 %v3497, %v3519
        %v3523 = vshrl.u32 %v3503, 16
        %v3525 = vshll.u32 %v3503, 16
        %v3527 = vrot.slane %v3525, 1
        %v3528 = vor.u32 %v3523, %v3527
        %v3530 = vsel %vm249, %v3528, 0
        %3532 = vmatpush.bf16.msra.mxu0 0
        %3533 = vmatpush.bf16.msra.mxu0 0
        %3534 = vmatpush.bf16.msra.mxu0 0
        %3535 = vmatpush.bf16.msra.mxu0 0
        %3536 = vmatpush.bf16.msra.mxu0 0
        %3537 = vmatpush.bf16.msra.mxu0 0
        %3538 = vmatpush.bf16.msra.mxu0 0
        %3539 = vmatpush.bf16.msra.mxu0 %v482
        %3540 = vmatmul.bf16.gmra.mxu0 %v3530
        %v3541 = vpop.f32.mrf.mxu0
        %v3542 = vadd.f32 0.0, %v3541
        %v3543 = vpop.f32.mrf.mxu0
        %v3544 = vadd.f32 0.0, %v3543
        %3545 = vdwg.mxu0
        %v3546 = vadd.f32 %v3521, %v3542
        %v3547 = vadd.f32 %v3522, %v3544
        %v3549 = vrot.slane %v3503, 1
        %v3551 = vsel %vm249, %v3549, 0
        %3553 = vmatpush.bf16.msra.mxu0 0
        %3554 = vmatpush.bf16.msra.mxu0 0
        %3555 = vmatpush.bf16.msra.mxu0 0
        %3556 = vmatpush.bf16.msra.mxu0 0
        %3557 = vmatpush.bf16.msra.mxu0 0
        %3558 = vmatpush.bf16.msra.mxu0 0
        %3559 = vmatpush.bf16.msra.mxu0 0
        %3560 = vmatpush.bf16.msra.mxu0 %v506
        %3561 = vmatmul.bf16.gmra.mxu0 %v3551
        %v3562 = vpop.f32.mrf.mxu0
        %v3563 = vadd.f32 0.0, %v3562
        %v3564 = vpop.f32.mrf.mxu0
        %v3565 = vadd.f32 0.0, %v3564
        %3566 = vdwg.mxu0
        %v3567 = vadd.f32 %v3546, %v3563
        %v3568 = vadd.f32 %v3547, %v3565
        %v3569 = vrot.slane %v3523, 1
        %v3570 = vrot.slane %v3525, 2
        %v3571 = vor.u32 %v3569, %v3570
        %v3573 = vsel %vm249, %v3571, 0
        %3575 = vmatpush.bf16.msra.mxu0 0
        %3576 = vmatpush.bf16.msra.mxu0 0
        %3577 = vmatpush.bf16.msra.mxu0 0
        %3578 = vmatpush.bf16.msra.mxu0 0
        %3579 = vmatpush.bf16.msra.mxu0 0
        %3580 = vmatpush.bf16.msra.mxu0 0
        %3581 = vmatpush.bf16.msra.mxu0 0
        %3582 = vmatpush.bf16.msra.mxu0 %v531
        %3583 = vmatmul.bf16.gmra.mxu0 %v3573
        %v3584 = vpop.f32.mrf.mxu0
        %v3585 = vadd.f32 0.0, %v3584
        %v3586 = vpop.f32.mrf.mxu0
        %v3587 = vadd.f32 0.0, %v3586
        %3588 = vdwg.mxu0
        %v3589 = vadd.f32 %v3567, %v3585
        %v3590 = vadd.f32 %v3568, %v3587
        %s3591 = sadd.s32 %s2575, 3
        %s3592 = smul.u32 %s3591, 16
        %s3593 = scalar_lea.vmem %s209, %s3592
        %v3594 = vld [vmem:[%s3593] sm:$0xff]
        %v3595 = vld [vmem:[%s3593 + $0x8] sm:$0xff]
        %v3596 = vpack.c.bf16 %v3595, %v3594
        %v3598 = vsel %vm249, %v3596, 0
        %3600 = vmatpush.bf16.msra.mxu0 0
        %3601 = vmatpush.bf16.msra.mxu0 0
        %3602 = vmatpush.bf16.msra.mxu0 0
        %3603 = vmatpush.bf16.msra.mxu0 0
        %3604 = vmatpush.bf16.msra.mxu0 0
        %3605 = vmatpush.bf16.msra.mxu0 0
        %3606 = vmatpush.bf16.msra.mxu0 0
        %3607 = vmatpush.bf16.msra.mxu0 %v559
        %3608 = vmatmul.bf16.gmra.mxu0 %v3598
        %v3609 = vpop.f32.mrf.mxu0
        %v3610 = vadd.f32 0.0, %v3609
        %v3611 = vpop.f32.mrf.mxu0
        %v3612 = vadd.f32 0.0, %v3611
        %3613 = vdwg.mxu0
        %v3614 = vadd.f32 %v3589, %v3610
        %v3615 = vadd.f32 %v3590, %v3612
        %v3616 = vshrl.u32 %v3596, 16
        %v3618 = vshll.u32 %v3596, 16
        %v3620 = vrot.slane %v3618, 1
        %v3621 = vor.u32 %v3616, %v3620
        %v3623 = vsel %vm249, %v3621, 0
        %3625 = vmatpush.bf16.msra.mxu0 0
        %3626 = vmatpush.bf16.msra.mxu0 0
        %3627 = vmatpush.bf16.msra.mxu0 0
        %3628 = vmatpush.bf16.msra.mxu0 0
        %3629 = vmatpush.bf16.msra.mxu0 0
        %3630 = vmatpush.bf16.msra.mxu0 0
        %3631 = vmatpush.bf16.msra.mxu0 0
        %3632 = vmatpush.bf16.msra.mxu0 %v587
        %3633 = vmatmul.bf16.gmra.mxu0 %v3623
        %v3634 = vpop.f32.mrf.mxu0
        %v3635 = vadd.f32 0.0, %v3634
        %v3636 = vpop.f32.mrf.mxu0
        %v3637 = vadd.f32 0.0, %v3636
        %3638 = vdwg.mxu0
        %v3639 = vadd.f32 %v3614, %v3635
        %v3640 = vadd.f32 %v3615, %v3637
        %v3642 = vrot.slane %v3596, 1
        %v3644 = vsel %vm249, %v3642, 0
        %3646 = vmatpush.bf16.msra.mxu0 0
        %3647 = vmatpush.bf16.msra.mxu0 0
        %3648 = vmatpush.bf16.msra.mxu0 0
        %3649 = vmatpush.bf16.msra.mxu0 0
        %3650 = vmatpush.bf16.msra.mxu0 0
        %3651 = vmatpush.bf16.msra.mxu0 0
        %3652 = vmatpush.bf16.msra.mxu0 0
        %3653 = vmatpush.bf16.msra.mxu0 %v611
        %3654 = vmatmul.bf16.gmra.mxu0 %v3644
        %v3655 = vpop.f32.mrf.mxu0
        %v3656 = vadd.f32 0.0, %v3655
        %v3657 = vpop.f32.mrf.mxu0
        %v3658 = vadd.f32 0.0, %v3657
        %3659 = vdwg.mxu0
        %v3660 = vadd.f32 %v3639, %v3656
        %v3661 = vadd.f32 %v3640, %v3658
        %v3662 = vrot.slane %v3616, 1
        %v3663 = vrot.slane %v3618, 2
        %v3664 = vor.u32 %v3662, %v3663
        %v3666 = vsel %vm249, %v3664, 0
        %3668 = vmatpush.bf16.msra.mxu0 0
        %3669 = vmatpush.bf16.msra.mxu0 0
        %3670 = vmatpush.bf16.msra.mxu0 0
        %3671 = vmatpush.bf16.msra.mxu0 0
        %3672 = vmatpush.bf16.msra.mxu0 0
        %3673 = vmatpush.bf16.msra.mxu0 0
        %3674 = vmatpush.bf16.msra.mxu0 0
        %3675 = vmatpush.bf16.msra.mxu0 %v636
        %3676 = vmatmul.bf16.gmra.mxu0 %v3666
        %v3677 = vpop.f32.mrf.mxu0
        %v3678 = vadd.f32 0.0, %v3677
        %v3679 = vpop.f32.mrf.mxu0
        %v3680 = vadd.f32 0.0, %v3679
        %3681 = vdwg.mxu0
        %v3682 = vadd.f32 %v3660, %v3678
        %v3683 = vadd.f32 %v3661, %v3680
        %v3684 = vmul.f32 %v3682, 0.25
        %v3685 = vmul.f32 %v3683, 0.25
        %v3686 = vadd.f32 %v3315, %v3684
        %v3687 = vadd.f32 %v3316, %v3685
        %v3688 = vpack.c.bf16 %v3687, %v3686
        %v3690 = vand.u32 %v3688, %v1410
        %3692 = vmatpush.bf16.msra.mxu0 0
        %3693 = vmatpush.bf16.msra.mxu0 0
        %3694 = vmatpush.bf16.msra.mxu0 0
        %3695 = vmatpush.bf16.msra.mxu0 0
        %3696 = vmatpush.bf16.msra.mxu0 0
        %3697 = vmatpush.bf16.msra.mxu0 0
        %3698 = vmatpush.bf16.msra.mxu0 0
        %3699 = vmatpush.bf16.msra.mxu0 %v3690
        %3700 = vmatmul.bf16.gmra.mxu0 %v1405
        %v3701 = vpop.f32.mrf.mxu0
        %v3702 = vadd.f32 %v1401, %v3701
        %v3703 = vpop.f32.mrf.mxu0
        %3704 = vdwg.mxu0
        %s3705 = scalar_lea.vmem %s204, 8 [#allocation2]
        %3706 = vst [vmem:[%s3705] sm:$0xf] %v3702
        %s3707 = sadd.s32 %s1428, 3
        %s3708 = smul.u32 %s3707, 4
        %p3709 = scmp.eq.s32.totalorder %s3708, 0
        %s3710 = ssub.s32 %s3708, 1
        %s3711 = scalar_select %p3709, 1, %s3710
        %p3712 = scmp.eq.s32.totalorder %s3708, 12
        %s3713 = sadd.s32 %s3708, 1
        %s3714 = scalar_select %p3712, 11, %s3713
        %s3715 = smul.u32 %s3711, 16
        %s3716 = scalar_lea.vmem %s209, %s3715
        %v3717 = vld [vmem:[%s3716] sm:$0xff]
        %v3718 = vld [vmem:[%s3716 + $0x8] sm:$0xff]
        %v3719 = vpack.c.bf16 %v3718, %v3717
        %v3721 = vshrl.u32 %v3719, 16
        %v3723 = vshll.u32 %v3719, 16
        %v3725 = vrot.slane %v3723, 1
        %v3726 = vor.u32 %v3721, %v3725
        %v3728 = vsel %vm249, %v3726, 0
        %3730 = vmatpush.bf16.msra.mxu0 0
        %3731 = vmatpush.bf16.msra.mxu0 0
        %3732 = vmatpush.bf16.msra.mxu0 0
        %3733 = vmatpush.bf16.msra.mxu0 0
        %3734 = vmatpush.bf16.msra.mxu0 0
        %3735 = vmatpush.bf16.msra.mxu0 0
        %3736 = vmatpush.bf16.msra.mxu0 0
        %3737 = vmatpush.bf16.msra.mxu0 %v255
        %3738 = vmatmul.bf16.gmra.mxu0 %v3728
        %v3739 = vpop.f32.mrf.mxu0
        %v3740 = vadd.f32 0.0, %v3739
        %v3741 = vpop.f32.mrf.mxu0
        %v3742 = vadd.f32 0.0, %v3741
        %3743 = vdwg.mxu0
        %v3744 = vsel %vm249, %v3719, 0
        %3746 = vmatpush.bf16.msra.mxu0 0
        %3747 = vmatpush.bf16.msra.mxu0 0
        %3748 = vmatpush.bf16.msra.mxu0 0
        %3749 = vmatpush.bf16.msra.mxu0 0
        %3750 = vmatpush.bf16.msra.mxu0 0
        %3751 = vmatpush.bf16.msra.mxu0 0
        %3752 = vmatpush.bf16.msra.mxu0 0
        %3753 = vmatpush.bf16.msra.mxu0 %v274
        %3754 = vmatmul.bf16.gmra.mxu0 %v3744
        %v3755 = vpop.f32.mrf.mxu0
        %v3756 = vadd.f32 %v3740, %v3755
        %v3757 = vpop.f32.mrf.mxu0
        %v3758 = vadd.f32 %v3742, %v3757
        %3759 = vdwg.mxu0
        %v3761 = vrot.slane %v3719, 1
        %v3763 = vsel %vm249, %v3761, 0
        %3765 = vmatpush.bf16.msra.mxu0 0
        %3766 = vmatpush.bf16.msra.mxu0 0
        %3767 = vmatpush.bf16.msra.mxu0 0
        %3768 = vmatpush.bf16.msra.mxu0 0
        %3769 = vmatpush.bf16.msra.mxu0 0
        %3770 = vmatpush.bf16.msra.mxu0 0
        %3771 = vmatpush.bf16.msra.mxu0 0
        %3772 = vmatpush.bf16.msra.mxu0 %v296
        %3773 = vmatmul.bf16.gmra.mxu0 %v3763
        %v3774 = vpop.f32.mrf.mxu0
        %v3775 = vadd.f32 0.0, %v3774
        %v3776 = vpop.f32.mrf.mxu0
        %v3777 = vadd.f32 0.0, %v3776
        %3778 = vdwg.mxu0
        %v3779 = vadd.f32 %v3756, %v3775
        %v3780 = vadd.f32 %v3758, %v3777
        %v3781 = vrot.slane %v3721, 1
        %v3782 = vrot.slane %v3723, 2
        %v3783 = vor.u32 %v3781, %v3782
        %v3785 = vsel %vm249, %v3783, 0
        %3787 = vmatpush.bf16.msra.mxu0 0
        %3788 = vmatpush.bf16.msra.mxu0 0
        %3789 = vmatpush.bf16.msra.mxu0 0
        %3790 = vmatpush.bf16.msra.mxu0 0
        %3791 = vmatpush.bf16.msra.mxu0 0
        %3792 = vmatpush.bf16.msra.mxu0 0
        %3793 = vmatpush.bf16.msra.mxu0 0
        %3794 = vmatpush.bf16.msra.mxu0 %v321
        %3795 = vmatmul.bf16.gmra.mxu0 %v3785
        %v3796 = vpop.f32.mrf.mxu0
        %v3797 = vadd.f32 0.0, %v3796
        %v3798 = vpop.f32.mrf.mxu0
        %v3799 = vadd.f32 0.0, %v3798
        %3800 = vdwg.mxu0
        %v3801 = vadd.f32 %v3779, %v3797
        %v3802 = vadd.f32 %v3780, %v3799
        %s3803 = sadd.s32 %s3711, 1
        %s3804 = smul.u32 %s3803, 16
        %s3805 = scalar_lea.vmem %s209, %s3804
        %v3806 = vld [vmem:[%s3805] sm:$0xff]
        %v3807 = vld [vmem:[%s3805 + $0x8] sm:$0xff]
        %v3808 = vpack.c.bf16 %v3807, %v3806
        %v3810 = vsel %vm249, %v3808, 0
        %3812 = vmatpush.bf16.msra.mxu0 0
        %3813 = vmatpush.bf16.msra.mxu0 0
        %3814 = vmatpush.bf16.msra.mxu0 0
        %3815 = vmatpush.bf16.msra.mxu0 0
        %3816 = vmatpush.bf16.msra.mxu0 0
        %3817 = vmatpush.bf16.msra.mxu0 0
        %3818 = vmatpush.bf16.msra.mxu0 0
        %3819 = vmatpush.bf16.msra.mxu0 %v349
        %3820 = vmatmul.bf16.gmra.mxu0 %v3810
        %v3821 = vpop.f32.mrf.mxu0
        %v3822 = vadd.f32 0.0, %v3821
        %v3823 = vpop.f32.mrf.mxu0
        %v3824 = vadd.f32 0.0, %v3823
        %3825 = vdwg.mxu0
        %v3826 = vadd.f32 %v3801, %v3822
        %v3827 = vadd.f32 %v3802, %v3824
        %v3828 = vshrl.u32 %v3808, 16
        %v3830 = vshll.u32 %v3808, 16
        %v3832 = vrot.slane %v3830, 1
        %v3833 = vor.u32 %v3828, %v3832
        %v3835 = vsel %vm249, %v3833, 0
        %3837 = vmatpush.bf16.msra.mxu0 0
        %3838 = vmatpush.bf16.msra.mxu0 0
        %3839 = vmatpush.bf16.msra.mxu0 0
        %3840 = vmatpush.bf16.msra.mxu0 0
        %3841 = vmatpush.bf16.msra.mxu0 0
        %3842 = vmatpush.bf16.msra.mxu0 0
        %3843 = vmatpush.bf16.msra.mxu0 0
        %3844 = vmatpush.bf16.msra.mxu0 %v377
        %3845 = vmatmul.bf16.gmra.mxu0 %v3835
        %v3846 = vpop.f32.mrf.mxu0
        %v3847 = vadd.f32 0.0, %v3846
        %v3848 = vpop.f32.mrf.mxu0
        %v3849 = vadd.f32 0.0, %v3848
        %3850 = vdwg.mxu0
        %v3851 = vadd.f32 %v3826, %v3847
        %v3852 = vadd.f32 %v3827, %v3849
        %v3854 = vrot.slane %v3808, 1
        %v3856 = vsel %vm249, %v3854, 0
        %3858 = vmatpush.bf16.msra.mxu0 0
        %3859 = vmatpush.bf16.msra.mxu0 0
        %3860 = vmatpush.bf16.msra.mxu0 0
        %3861 = vmatpush.bf16.msra.mxu0 0
        %3862 = vmatpush.bf16.msra.mxu0 0
        %3863 = vmatpush.bf16.msra.mxu0 0
        %3864 = vmatpush.bf16.msra.mxu0 0
        %3865 = vmatpush.bf16.msra.mxu0 %v401
        %3866 = vmatmul.bf16.gmra.mxu0 %v3856
        %v3867 = vpop.f32.mrf.mxu0
        %v3868 = vadd.f32 0.0, %v3867
        %v3869 = vpop.f32.mrf.mxu0
        %v3870 = vadd.f32 0.0, %v3869
        %3871 = vdwg.mxu0
        %v3872 = vadd.f32 %v3851, %v3868
        %v3873 = vadd.f32 %v3852, %v3870
        %v3874 = vrot.slane %v3828, 1
        %v3875 = vrot.slane %v3830, 2
        %v3876 = vor.u32 %v3874, %v3875
        %v3878 = vsel %vm249, %v3876, 0
        %3880 = vmatpush.bf16.msra.mxu0 0
        %3881 = vmatpush.bf16.msra.mxu0 0
        %3882 = vmatpush.bf16.msra.mxu0 0
        %3883 = vmatpush.bf16.msra.mxu0 0
        %3884 = vmatpush.bf16.msra.mxu0 0
        %3885 = vmatpush.bf16.msra.mxu0 0
        %3886 = vmatpush.bf16.msra.mxu0 0
        %3887 = vmatpush.bf16.msra.mxu0 %v426
        %3888 = vmatmul.bf16.gmra.mxu0 %v3878
        %v3889 = vpop.f32.mrf.mxu0
        %v3890 = vadd.f32 0.0, %v3889
        %v3891 = vpop.f32.mrf.mxu0
        %v3892 = vadd.f32 0.0, %v3891
        %3893 = vdwg.mxu0
        %v3894 = vadd.f32 %v3872, %v3890
        %v3895 = vadd.f32 %v3873, %v3892
        %s3896 = sadd.s32 %s3711, 2
        %s3897 = smul.u32 %s3896, 16
        %s3898 = scalar_lea.vmem %s209, %s3897
        %v3899 = vld [vmem:[%s3898] sm:$0xff]
        %v3900 = vld [vmem:[%s3898 + $0x8] sm:$0xff]
        %v3901 = vpack.c.bf16 %v3900, %v3899
        %v3903 = vsel %vm249, %v3901, 0
        %3905 = vmatpush.bf16.msra.mxu0 0
        %3906 = vmatpush.bf16.msra.mxu0 0
        %3907 = vmatpush.bf16.msra.mxu0 0
        %3908 = vmatpush.bf16.msra.mxu0 0
        %3909 = vmatpush.bf16.msra.mxu0 0
        %3910 = vmatpush.bf16.msra.mxu0 0
        %3911 = vmatpush.bf16.msra.mxu0 0
        %3912 = vmatpush.bf16.msra.mxu0 %v454
        %3913 = vmatmul.bf16.gmra.mxu0 %v3903
        %v3914 = vpop.f32.mrf.mxu0
        %v3915 = vadd.f32 0.0, %v3914
        %v3916 = vpop.f32.mrf.mxu0
        %v3917 = vadd.f32 0.0, %v3916
        %3918 = vdwg.mxu0
        %v3919 = vadd.f32 %v3894, %v3915
        %v3920 = vadd.f32 %v3895, %v3917
        %v3921 = vshrl.u32 %v3901, 16
        %v3923 = vshll.u32 %v3901, 16
        %v3925 = vrot.slane %v3923, 1
        %v3926 = vor.u32 %v3921, %v3925
        %v3928 = vsel %vm249, %v3926, 0
        %3930 = vmatpush.bf16.msra.mxu0 0
        %3931 = vmatpush.bf16.msra.mxu0 0
        %3932 = vmatpush.bf16.msra.mxu0 0
        %3933 = vmatpush.bf16.msra.mxu0 0
        %3934 = vmatpush.bf16.msra.mxu0 0
        %3935 = vmatpush.bf16.msra.mxu0 0
        %3936 = vmatpush.bf16.msra.mxu0 0
        %3937 = vmatpush.bf16.msra.mxu0 %v482
        %3938 = vmatmul.bf16.gmra.mxu0 %v3928
        %v3939 = vpop.f32.mrf.mxu0
        %v3940 = vadd.f32 0.0, %v3939
        %v3941 = vpop.f32.mrf.mxu0
        %v3942 = vadd.f32 0.0, %v3941
        %3943 = vdwg.mxu0
        %v3944 = vadd.f32 %v3919, %v3940
        %v3945 = vadd.f32 %v3920, %v3942
        %v3947 = vrot.slane %v3901, 1
        %v3949 = vsel %vm249, %v3947, 0
        %3951 = vmatpush.bf16.msra.mxu0 0
        %3952 = vmatpush.bf16.msra.mxu0 0
        %3953 = vmatpush.bf16.msra.mxu0 0
        %3954 = vmatpush.bf16.msra.mxu0 0
        %3955 = vmatpush.bf16.msra.mxu0 0
        %3956 = vmatpush.bf16.msra.mxu0 0
        %3957 = vmatpush.bf16.msra.mxu0 0
        %3958 = vmatpush.bf16.msra.mxu0 %v506
        %3959 = vmatmul.bf16.gmra.mxu0 %v3949
        %v3960 = vpop.f32.mrf.mxu0
        %v3961 = vadd.f32 0.0, %v3960
        %v3962 = vpop.f32.mrf.mxu0
        %v3963 = vadd.f32 0.0, %v3962
        %3964 = vdwg.mxu0
        %v3965 = vadd.f32 %v3944, %v3961
        %v3966 = vadd.f32 %v3945, %v3963
        %v3967 = vrot.slane %v3921, 1
        %v3968 = vrot.slane %v3923, 2
        %v3969 = vor.u32 %v3967, %v3968
        %v3971 = vsel %vm249, %v3969, 0
        %3973 = vmatpush.bf16.msra.mxu0 0
        %3974 = vmatpush.bf16.msra.mxu0 0
        %3975 = vmatpush.bf16.msra.mxu0 0
        %3976 = vmatpush.bf16.msra.mxu0 0
        %3977 = vmatpush.bf16.msra.mxu0 0
        %3978 = vmatpush.bf16.msra.mxu0 0
        %3979 = vmatpush.bf16.msra.mxu0 0
        %3980 = vmatpush.bf16.msra.mxu0 %v531
        %3981 = vmatmul.bf16.gmra.mxu0 %v3971
        %v3982 = vpop.f32.mrf.mxu0
        %v3983 = vadd.f32 0.0, %v3982
        %v3984 = vpop.f32.mrf.mxu0
        %v3985 = vadd.f32 0.0, %v3984
        %3986 = vdwg.mxu0
        %v3987 = vadd.f32 %v3965, %v3983
        %v3988 = vadd.f32 %v3966, %v3985
        %s3989 = sadd.s32 %s3711, 3
        %s3990 = smul.u32 %s3989, 16
        %s3991 = scalar_lea.vmem %s209, %s3990
        %v3992 = vld [vmem:[%s3991] sm:$0xff]
        %v3993 = vld [vmem:[%s3991 + $0x8] sm:$0xff]
        %v3994 = vpack.c.bf16 %v3993, %v3992
        %v3996 = vsel %vm249, %v3994, 0
        %3998 = vmatpush.bf16.msra.mxu0 0
        %3999 = vmatpush.bf16.msra.mxu0 0
        %4000 = vmatpush.bf16.msra.mxu0 0
        %4001 = vmatpush.bf16.msra.mxu0 0
        %4002 = vmatpush.bf16.msra.mxu0 0
        %4003 = vmatpush.bf16.msra.mxu0 0
        %4004 = vmatpush.bf16.msra.mxu0 0
        %4005 = vmatpush.bf16.msra.mxu0 %v559
        %4006 = vmatmul.bf16.gmra.mxu0 %v3996
        %v4007 = vpop.f32.mrf.mxu0
        %v4008 = vadd.f32 0.0, %v4007
        %v4009 = vpop.f32.mrf.mxu0
        %v4010 = vadd.f32 0.0, %v4009
        %4011 = vdwg.mxu0
        %v4012 = vadd.f32 %v3987, %v4008
        %v4013 = vadd.f32 %v3988, %v4010
        %v4014 = vshrl.u32 %v3994, 16
        %v4016 = vshll.u32 %v3994, 16
        %v4018 = vrot.slane %v4016, 1
        %v4019 = vor.u32 %v4014, %v4018
        %v4021 = vsel %vm249, %v4019, 0
        %4023 = vmatpush.bf16.msra.mxu0 0
        %4024 = vmatpush.bf16.msra.mxu0 0
        %4025 = vmatpush.bf16.msra.mxu0 0
        %4026 = vmatpush.bf16.msra.mxu0 0
        %4027 = vmatpush.bf16.msra.mxu0 0
        %4028 = vmatpush.bf16.msra.mxu0 0
        %4029 = vmatpush.bf16.msra.mxu0 0
        %4030 = vmatpush.bf16.msra.mxu0 %v587
        %4031 = vmatmul.bf16.gmra.mxu0 %v4021
        %v4032 = vpop.f32.mrf.mxu0
        %v4033 = vadd.f32 0.0, %v4032
        %v4034 = vpop.f32.mrf.mxu0
        %v4035 = vadd.f32 0.0, %v4034
        %4036 = vdwg.mxu0
        %v4037 = vadd.f32 %v4012, %v4033
        %v4038 = vadd.f32 %v4013, %v4035
        %v4040 = vrot.slane %v3994, 1
        %v4042 = vsel %vm249, %v4040, 0
        %4044 = vmatpush.bf16.msra.mxu0 0
        %4045 = vmatpush.bf16.msra.mxu0 0
        %4046 = vmatpush.bf16.msra.mxu0 0
        %4047 = vmatpush.bf16.msra.mxu0 0
        %4048 = vmatpush.bf16.msra.mxu0 0
        %4049 = vmatpush.bf16.msra.mxu0 0
        %4050 = vmatpush.bf16.msra.mxu0 0
        %4051 = vmatpush.bf16.msra.mxu0 %v611
        %4052 = vmatmul.bf16.gmra.mxu0 %v4042
        %v4053 = vpop.f32.mrf.mxu0
        %v4054 = vadd.f32 0.0, %v4053
        %v4055 = vpop.f32.mrf.mxu0
        %v4056 = vadd.f32 0.0, %v4055
        %4057 = vdwg.mxu0
        %v4058 = vadd.f32 %v4037, %v4054
        %v4059 = vadd.f32 %v4038, %v4056
        %v4060 = vrot.slane %v4014, 1
        %v4061 = vrot.slane %v4016, 2
        %v4062 = vor.u32 %v4060, %v4061
        %v4064 = vsel %vm249, %v4062, 0
        %4066 = vmatpush.bf16.msra.mxu0 0
        %4067 = vmatpush.bf16.msra.mxu0 0
        %4068 = vmatpush.bf16.msra.mxu0 0
        %4069 = vmatpush.bf16.msra.mxu0 0
        %4070 = vmatpush.bf16.msra.mxu0 0
        %4071 = vmatpush.bf16.msra.mxu0 0
        %4072 = vmatpush.bf16.msra.mxu0 0
        %4073 = vmatpush.bf16.msra.mxu0 %v636
        %4074 = vmatmul.bf16.gmra.mxu0 %v4064
        %v4075 = vpop.f32.mrf.mxu0
        %v4076 = vadd.f32 0.0, %v4075
        %v4077 = vpop.f32.mrf.mxu0
        %v4078 = vadd.f32 0.0, %v4077
        %4079 = vdwg.mxu0
        %v4080 = vadd.f32 %v4058, %v4076
        %v4081 = vadd.f32 %v4059, %v4078
        %v4082 = vmul.f32 %v4080, 0.25
        %v4083 = vmul.f32 %v4081, 0.25
        %v4084 = vadd.f32 %v4082, 0.0
        %v4085 = vadd.f32 %v4083, 0.0
        %s4086 = smul.u32 %s3708, 16
        %s4087 = scalar_lea.vmem %s209, %s4086
        %v4088 = vld [vmem:[%s4087] sm:$0xff]
        %v4089 = vld [vmem:[%s4087 + $0x8] sm:$0xff]
        %v4090 = vpack.c.bf16 %v4089, %v4088
        %v4092 = vshrl.u32 %v4090, 16
        %v4094 = vshll.u32 %v4090, 16
        %v4096 = vrot.slane %v4094, 1
        %v4097 = vor.u32 %v4092, %v4096
        %v4099 = vsel %vm249, %v4097, 0
        %4101 = vmatpush.bf16.msra.mxu0 0
        %4102 = vmatpush.bf16.msra.mxu0 0
        %4103 = vmatpush.bf16.msra.mxu0 0
        %4104 = vmatpush.bf16.msra.mxu0 0
        %4105 = vmatpush.bf16.msra.mxu0 0
        %4106 = vmatpush.bf16.msra.mxu0 0
        %4107 = vmatpush.bf16.msra.mxu0 0
        %4108 = vmatpush.bf16.msra.mxu0 %v255
        %4109 = vmatmul.bf16.gmra.mxu0 %v4099
        %v4110 = vpop.f32.mrf.mxu0
        %v4111 = vadd.f32 0.0, %v4110
        %v4112 = vpop.f32.mrf.mxu0
        %v4113 = vadd.f32 0.0, %v4112
        %4114 = vdwg.mxu0
        %v4115 = vsel %vm249, %v4090, 0
        %4117 = vmatpush.bf16.msra.mxu0 0
        %4118 = vmatpush.bf16.msra.mxu0 0
        %4119 = vmatpush.bf16.msra.mxu0 0
        %4120 = vmatpush.bf16.msra.mxu0 0
        %4121 = vmatpush.bf16.msra.mxu0 0
        %4122 = vmatpush.bf16.msra.mxu0 0
        %4123 = vmatpush.bf16.msra.mxu0 0
        %4124 = vmatpush.bf16.msra.mxu0 %v274
        %4125 = vmatmul.bf16.gmra.mxu0 %v4115
        %v4126 = vpop.f32.mrf.mxu0
        %v4127 = vadd.f32 %v4111, %v4126
        %v4128 = vpop.f32.mrf.mxu0
        %v4129 = vadd.f32 %v4113, %v4128
        %4130 = vdwg.mxu0
        %v4132 = vrot.slane %v4090, 1
        %v4134 = vsel %vm249, %v4132, 0
        %4136 = vmatpush.bf16.msra.mxu0 0
        %4137 = vmatpush.bf16.msra.mxu0 0
        %4138 = vmatpush.bf16.msra.mxu0 0
        %4139 = vmatpush.bf16.msra.mxu0 0
        %4140 = vmatpush.bf16.msra.mxu0 0
        %4141 = vmatpush.bf16.msra.mxu0 0
        %4142 = vmatpush.bf16.msra.mxu0 0
        %4143 = vmatpush.bf16.msra.mxu0 %v296
        %4144 = vmatmul.bf16.gmra.mxu0 %v4134
        %v4145 = vpop.f32.mrf.mxu0
        %v4146 = vadd.f32 0.0, %v4145
        %v4147 = vpop.f32.mrf.mxu0
        %v4148 = vadd.f32 0.0, %v4147
        %4149 = vdwg.mxu0
        %v4150 = vadd.f32 %v4127, %v4146
        %v4151 = vadd.f32 %v4129, %v4148
        %v4152 = vrot.slane %v4092, 1
        %v4153 = vrot.slane %v4094, 2
        %v4154 = vor.u32 %v4152, %v4153
        %v4156 = vsel %vm249, %v4154, 0
        %4158 = vmatpush.bf16.msra.mxu0 0
        %4159 = vmatpush.bf16.msra.mxu0 0
        %4160 = vmatpush.bf16.msra.mxu0 0
        %4161 = vmatpush.bf16.msra.mxu0 0
        %4162 = vmatpush.bf16.msra.mxu0 0
        %4163 = vmatpush.bf16.msra.mxu0 0
        %4164 = vmatpush.bf16.msra.mxu0 0
        %4165 = vmatpush.bf16.msra.mxu0 %v321
        %4166 = vmatmul.bf16.gmra.mxu0 %v4156
        %v4167 = vpop.f32.mrf.mxu0
        %v4168 = vadd.f32 0.0, %v4167
        %v4169 = vpop.f32.mrf.mxu0
        %v4170 = vadd.f32 0.0, %v4169
        %4171 = vdwg.mxu0
        %v4172 = vadd.f32 %v4150, %v4168
        %v4173 = vadd.f32 %v4151, %v4170
        %s4174 = smul.u32 %s3713, 16
        %s4175 = scalar_lea.vmem %s209, %s4174
        %v4176 = vld [vmem:[%s4175] sm:$0xff]
        %v4177 = vld [vmem:[%s4175 + $0x8] sm:$0xff]
        %v4178 = vpack.c.bf16 %v4177, %v4176
        %v4180 = vsel %vm249, %v4178, 0
        %4182 = vmatpush.bf16.msra.mxu0 0
        %4183 = vmatpush.bf16.msra.mxu0 0
        %4184 = vmatpush.bf16.msra.mxu0 0
        %4185 = vmatpush.bf16.msra.mxu0 0
        %4186 = vmatpush.bf16.msra.mxu0 0
        %4187 = vmatpush.bf16.msra.mxu0 0
        %4188 = vmatpush.bf16.msra.mxu0 0
        %4189 = vmatpush.bf16.msra.mxu0 %v349
        %4190 = vmatmul.bf16.gmra.mxu0 %v4180
        %v4191 = vpop.f32.mrf.mxu0
        %v4192 = vadd.f32 0.0, %v4191
        %v4193 = vpop.f32.mrf.mxu0
        %v4194 = vadd.f32 0.0, %v4193
        %4195 = vdwg.mxu0
        %v4196 = vadd.f32 %v4172, %v4192
        %v4197 = vadd.f32 %v4173, %v4194
        %v4198 = vshrl.u32 %v4178, 16
        %v4200 = vshll.u32 %v4178, 16
        %v4202 = vrot.slane %v4200, 1
        %v4203 = vor.u32 %v4198, %v4202
        %v4205 = vsel %vm249, %v4203, 0
        %4207 = vmatpush.bf16.msra.mxu0 0
        %4208 = vmatpush.bf16.msra.mxu0 0
        %4209 = vmatpush.bf16.msra.mxu0 0
        %4210 = vmatpush.bf16.msra.mxu0 0
        %4211 = vmatpush.bf16.msra.mxu0 0
        %4212 = vmatpush.bf16.msra.mxu0 0
        %4213 = vmatpush.bf16.msra.mxu0 0
        %4214 = vmatpush.bf16.msra.mxu0 %v377
        %4215 = vmatmul.bf16.gmra.mxu0 %v4205
        %v4216 = vpop.f32.mrf.mxu0
        %v4217 = vadd.f32 0.0, %v4216
        %v4218 = vpop.f32.mrf.mxu0
        %v4219 = vadd.f32 0.0, %v4218
        %4220 = vdwg.mxu0
        %v4221 = vadd.f32 %v4196, %v4217
        %v4222 = vadd.f32 %v4197, %v4219
        %v4224 = vrot.slane %v4178, 1
        %v4226 = vsel %vm249, %v4224, 0
        %4228 = vmatpush.bf16.msra.mxu0 0
        %4229 = vmatpush.bf16.msra.mxu0 0
        %4230 = vmatpush.bf16.msra.mxu0 0
        %4231 = vmatpush.bf16.msra.mxu0 0
        %4232 = vmatpush.bf16.msra.mxu0 0
        %4233 = vmatpush.bf16.msra.mxu0 0
        %4234 = vmatpush.bf16.msra.mxu0 0
        %4235 = vmatpush.bf16.msra.mxu0 %v401
        %4236 = vmatmul.bf16.gmra.mxu0 %v4226
        %v4237 = vpop.f32.mrf.mxu0
        %v4238 = vadd.f32 0.0, %v4237
        %v4239 = vpop.f32.mrf.mxu0
        %v4240 = vadd.f32 0.0, %v4239
        %4241 = vdwg.mxu0
        %v4242 = vadd.f32 %v4221, %v4238
        %v4243 = vadd.f32 %v4222, %v4240
        %v4244 = vrot.slane %v4198, 1
        %v4245 = vrot.slane %v4200, 2
        %v4246 = vor.u32 %v4244, %v4245
        %v4248 = vsel %vm249, %v4246, 0
        %4250 = vmatpush.bf16.msra.mxu0 0
        %4251 = vmatpush.bf16.msra.mxu0 0
        %4252 = vmatpush.bf16.msra.mxu0 0
        %4253 = vmatpush.bf16.msra.mxu0 0
        %4254 = vmatpush.bf16.msra.mxu0 0
        %4255 = vmatpush.bf16.msra.mxu0 0
        %4256 = vmatpush.bf16.msra.mxu0 0
        %4257 = vmatpush.bf16.msra.mxu0 %v426
        %4258 = vmatmul.bf16.gmra.mxu0 %v4248
        %v4259 = vpop.f32.mrf.mxu0
        %v4260 = vadd.f32 0.0, %v4259
        %v4261 = vpop.f32.mrf.mxu0
        %v4262 = vadd.f32 0.0, %v4261
        %4263 = vdwg.mxu0
        %v4264 = vadd.f32 %v4242, %v4260
        %v4265 = vadd.f32 %v4243, %v4262
        %s4266 = sadd.s32 %s3708, 2
        %s4267 = smul.u32 %s4266, 16
        %s4268 = scalar_lea.vmem %s209, %s4267
        %v4269 = vld [vmem:[%s4268] sm:$0xff]
        %v4270 = vld [vmem:[%s4268 + $0x8] sm:$0xff]
        %v4271 = vpack.c.bf16 %v4270, %v4269
        %v4273 = vsel %vm249, %v4271, 0
        %4275 = vmatpush.bf16.msra.mxu0 0
        %4276 = vmatpush.bf16.msra.mxu0 0
        %4277 = vmatpush.bf16.msra.mxu0 0
        %4278 = vmatpush.bf16.msra.mxu0 0
        %4279 = vmatpush.bf16.msra.mxu0 0
        %4280 = vmatpush.bf16.msra.mxu0 0
        %4281 = vmatpush.bf16.msra.mxu0 0
        %4282 = vmatpush.bf16.msra.mxu0 %v454
        %4283 = vmatmul.bf16.gmra.mxu0 %v4273
        %v4284 = vpop.f32.mrf.mxu0
        %v4285 = vadd.f32 0.0, %v4284
        %v4286 = vpop.f32.mrf.mxu0
        %v4287 = vadd.f32 0.0, %v4286
        %4288 = vdwg.mxu0
        %v4289 = vadd.f32 %v4264, %v4285
        %v4290 = vadd.f32 %v4265, %v4287
        %v4291 = vshrl.u32 %v4271, 16
        %v4293 = vshll.u32 %v4271, 16
        %v4295 = vrot.slane %v4293, 1
        %v4296 = vor.u32 %v4291, %v4295
        %v4298 = vsel %vm249, %v4296, 0
        %4300 = vmatpush.bf16.msra.mxu0 0
        %4301 = vmatpush.bf16.msra.mxu0 0
        %4302 = vmatpush.bf16.msra.mxu0 0
        %4303 = vmatpush.bf16.msra.mxu0 0
        %4304 = vmatpush.bf16.msra.mxu0 0
        %4305 = vmatpush.bf16.msra.mxu0 0
        %4306 = vmatpush.bf16.msra.mxu0 0
        %4307 = vmatpush.bf16.msra.mxu0 %v482
        %4308 = vmatmul.bf16.gmra.mxu0 %v4298
        %v4309 = vpop.f32.mrf.mxu0
        %v4310 = vadd.f32 0.0, %v4309
        %v4311 = vpop.f32.mrf.mxu0
        %v4312 = vadd.f32 0.0, %v4311
        %4313 = vdwg.mxu0
        %v4314 = vadd.f32 %v4289, %v4310
        %v4315 = vadd.f32 %v4290, %v4312
        %v4317 = vrot.slane %v4271, 1
        %v4319 = vsel %vm249, %v4317, 0
        %4321 = vmatpush.bf16.msra.mxu0 0
        %4322 = vmatpush.bf16.msra.mxu0 0
        %4323 = vmatpush.bf16.msra.mxu0 0
        %4324 = vmatpush.bf16.msra.mxu0 0
        %4325 = vmatpush.bf16.msra.mxu0 0
        %4326 = vmatpush.bf16.msra.mxu0 0
        %4327 = vmatpush.bf16.msra.mxu0 0
        %4328 = vmatpush.bf16.msra.mxu0 %v506
        %4329 = vmatmul.bf16.gmra.mxu0 %v4319
        %v4330 = vpop.f32.mrf.mxu0
        %v4331 = vadd.f32 0.0, %v4330
        %v4332 = vpop.f32.mrf.mxu0
        %v4333 = vadd.f32 0.0, %v4332
        %4334 = vdwg.mxu0
        %v4335 = vadd.f32 %v4314, %v4331
        %v4336 = vadd.f32 %v4315, %v4333
        %v4337 = vrot.slane %v4291, 1
        %v4338 = vrot.slane %v4293, 2
        %v4339 = vor.u32 %v4337, %v4338
        %v4341 = vsel %vm249, %v4339, 0
        %4343 = vmatpush.bf16.msra.mxu0 0
        %4344 = vmatpush.bf16.msra.mxu0 0
        %4345 = vmatpush.bf16.msra.mxu0 0
        %4346 = vmatpush.bf16.msra.mxu0 0
        %4347 = vmatpush.bf16.msra.mxu0 0
        %4348 = vmatpush.bf16.msra.mxu0 0
        %4349 = vmatpush.bf16.msra.mxu0 0
        %4350 = vmatpush.bf16.msra.mxu0 %v531
        %4351 = vmatmul.bf16.gmra.mxu0 %v4341
        %v4352 = vpop.f32.mrf.mxu0
        %v4353 = vadd.f32 0.0, %v4352
        %v4354 = vpop.f32.mrf.mxu0
        %v4355 = vadd.f32 0.0, %v4354
        %4356 = vdwg.mxu0
        %v4357 = vadd.f32 %v4335, %v4353
        %v4358 = vadd.f32 %v4336, %v4355
        %s4359 = sadd.s32 %s3708, 3
        %s4360 = smul.u32 %s4359, 16
        %s4361 = scalar_lea.vmem %s209, %s4360
        %v4362 = vld [vmem:[%s4361] sm:$0xff]
        %v4363 = vld [vmem:[%s4361 + $0x8] sm:$0xff]
        %v4364 = vpack.c.bf16 %v4363, %v4362
        %v4366 = vsel %vm249, %v4364, 0
        %4368 = vmatpush.bf16.msra.mxu0 0
        %4369 = vmatpush.bf16.msra.mxu0 0
        %4370 = vmatpush.bf16.msra.mxu0 0
        %4371 = vmatpush.bf16.msra.mxu0 0
        %4372 = vmatpush.bf16.msra.mxu0 0
        %4373 = vmatpush.bf16.msra.mxu0 0
        %4374 = vmatpush.bf16.msra.mxu0 0
        %4375 = vmatpush.bf16.msra.mxu0 %v559
        %4376 = vmatmul.bf16.gmra.mxu0 %v4366
        %v4377 = vpop.f32.mrf.mxu0
        %v4378 = vadd.f32 0.0, %v4377
        %v4379 = vpop.f32.mrf.mxu0
        %v4380 = vadd.f32 0.0, %v4379
        %4381 = vdwg.mxu0
        %v4382 = vadd.f32 %v4357, %v4378
        %v4383 = vadd.f32 %v4358, %v4380
        %v4384 = vshrl.u32 %v4364, 16
        %v4386 = vshll.u32 %v4364, 16
        %v4388 = vrot.slane %v4386, 1
        %v4389 = vor.u32 %v4384, %v4388
        %v4391 = vsel %vm249, %v4389, 0
        %4393 = vmatpush.bf16.msra.mxu0 0
        %4394 = vmatpush.bf16.msra.mxu0 0
        %4395 = vmatpush.bf16.msra.mxu0 0
        %4396 = vmatpush.bf16.msra.mxu0 0
        %4397 = vmatpush.bf16.msra.mxu0 0
        %4398 = vmatpush.bf16.msra.mxu0 0
        %4399 = vmatpush.bf16.msra.mxu0 0
        %4400 = vmatpush.bf16.msra.mxu0 %v587
        %4401 = vmatmul.bf16.gmra.mxu0 %v4391
        %v4402 = vpop.f32.mrf.mxu0
        %v4403 = vadd.f32 0.0, %v4402
        %v4404 = vpop.f32.mrf.mxu0
        %v4405 = vadd.f32 0.0, %v4404
        %4406 = vdwg.mxu0
        %v4407 = vadd.f32 %v4382, %v4403
        %v4408 = vadd.f32 %v4383, %v4405
        %v4410 = vrot.slane %v4364, 1
        %v4412 = vsel %vm249, %v4410, 0
        %4414 = vmatpush.bf16.msra.mxu0 0
        %4415 = vmatpush.bf16.msra.mxu0 0
        %4416 = vmatpush.bf16.msra.mxu0 0
        %4417 = vmatpush.bf16.msra.mxu0 0
        %4418 = vmatpush.bf16.msra.mxu0 0
        %4419 = vmatpush.bf16.msra.mxu0 0
        %4420 = vmatpush.bf16.msra.mxu0 0
        %4421 = vmatpush.bf16.msra.mxu0 %v611
        %4422 = vmatmul.bf16.gmra.mxu0 %v4412
        %v4423 = vpop.f32.mrf.mxu0
        %v4424 = vadd.f32 0.0, %v4423
        %v4425 = vpop.f32.mrf.mxu0
        %v4426 = vadd.f32 0.0, %v4425
        %4427 = vdwg.mxu0
        %v4428 = vadd.f32 %v4407, %v4424
        %v4429 = vadd.f32 %v4408, %v4426
        %v4430 = vrot.slane %v4384, 1
        %v4431 = vrot.slane %v4386, 2
        %v4432 = vor.u32 %v4430, %v4431
        %v4434 = vsel %vm249, %v4432, 0
        %4436 = vmatpush.bf16.msra.mxu0 0
        %4437 = vmatpush.bf16.msra.mxu0 0
        %4438 = vmatpush.bf16.msra.mxu0 0
        %4439 = vmatpush.bf16.msra.mxu0 0
        %4440 = vmatpush.bf16.msra.mxu0 0
        %4441 = vmatpush.bf16.msra.mxu0 0
        %4442 = vmatpush.bf16.msra.mxu0 0
        %4443 = vmatpush.bf16.msra.mxu0 %v636
        %4444 = vmatmul.bf16.gmra.mxu0 %v4434
        %v4445 = vpop.f32.mrf.mxu0
        %v4446 = vadd.f32 0.0, %v4445
        %v4447 = vpop.f32.mrf.mxu0
        %v4448 = vadd.f32 0.0, %v4447
        %4449 = vdwg.mxu0
        %v4450 = vadd.f32 %v4428, %v4446
        %v4451 = vadd.f32 %v4429, %v4448
        %v4452 = vmul.f32 %v4450, 0.5
        %v4453 = vmul.f32 %v4451, 0.5
        %v4454 = vadd.f32 %v4084, %v4452
        %v4455 = vadd.f32 %v4085, %v4453
        %s4456 = smul.u32 %s3714, 16
        %s4457 = scalar_lea.vmem %s209, %s4456
        %v4458 = vld [vmem:[%s4457] sm:$0xff]
        %v4459 = vld [vmem:[%s4457 + $0x8] sm:$0xff]
        %v4460 = vpack.c.bf16 %v4459, %v4458
        %v4462 = vshrl.u32 %v4460, 16
        %v4464 = vshll.u32 %v4460, 16
        %v4466 = vrot.slane %v4464, 1
        %v4467 = vor.u32 %v4462, %v4466
        %v4469 = vsel %vm249, %v4467, 0
        %4471 = vmatpush.bf16.msra.mxu0 0
        %4472 = vmatpush.bf16.msra.mxu0 0
        %4473 = vmatpush.bf16.msra.mxu0 0
        %4474 = vmatpush.bf16.msra.mxu0 0
        %4475 = vmatpush.bf16.msra.mxu0 0
        %4476 = vmatpush.bf16.msra.mxu0 0
        %4477 = vmatpush.bf16.msra.mxu0 0
        %4478 = vmatpush.bf16.msra.mxu0 %v255
        %4479 = vmatmul.bf16.gmra.mxu0 %v4469
        %v4480 = vpop.f32.mrf.mxu0
        %v4481 = vadd.f32 0.0, %v4480
        %v4482 = vpop.f32.mrf.mxu0
        %v4483 = vadd.f32 0.0, %v4482
        %4484 = vdwg.mxu0
        %v4485 = vsel %vm249, %v4460, 0
        %4487 = vmatpush.bf16.msra.mxu0 0
        %4488 = vmatpush.bf16.msra.mxu0 0
        %4489 = vmatpush.bf16.msra.mxu0 0
        %4490 = vmatpush.bf16.msra.mxu0 0
        %4491 = vmatpush.bf16.msra.mxu0 0
        %4492 = vmatpush.bf16.msra.mxu0 0
        %4493 = vmatpush.bf16.msra.mxu0 0
        %4494 = vmatpush.bf16.msra.mxu0 %v274
        %4495 = vmatmul.bf16.gmra.mxu0 %v4485
        %v4496 = vpop.f32.mrf.mxu0
        %v4497 = vadd.f32 %v4481, %v4496
        %v4498 = vpop.f32.mrf.mxu0
        %v4499 = vadd.f32 %v4483, %v4498
        %4500 = vdwg.mxu0
        %v4502 = vrot.slane %v4460, 1
        %v4504 = vsel %vm249, %v4502, 0
        %4506 = vmatpush.bf16.msra.mxu0 0
        %4507 = vmatpush.bf16.msra.mxu0 0
        %4508 = vmatpush.bf16.msra.mxu0 0
        %4509 = vmatpush.bf16.msra.mxu0 0
        %4510 = vmatpush.bf16.msra.mxu0 0
        %4511 = vmatpush.bf16.msra.mxu0 0
        %4512 = vmatpush.bf16.msra.mxu0 0
        %4513 = vmatpush.bf16.msra.mxu0 %v296
        %4514 = vmatmul.bf16.gmra.mxu0 %v4504
        %v4515 = vpop.f32.mrf.mxu0
        %v4516 = vadd.f32 0.0, %v4515
        %v4517 = vpop.f32.mrf.mxu0
        %v4518 = vadd.f32 0.0, %v4517
        %4519 = vdwg.mxu0
        %v4520 = vadd.f32 %v4497, %v4516
        %v4521 = vadd.f32 %v4499, %v4518
        %v4522 = vrot.slane %v4462, 1
        %v4523 = vrot.slane %v4464, 2
        %v4524 = vor.u32 %v4522, %v4523
        %v4526 = vsel %vm249, %v4524, 0
        %4528 = vmatpush.bf16.msra.mxu0 0
        %4529 = vmatpush.bf16.msra.mxu0 0
        %4530 = vmatpush.bf16.msra.mxu0 0
        %4531 = vmatpush.bf16.msra.mxu0 0
        %4532 = vmatpush.bf16.msra.mxu0 0
        %4533 = vmatpush.bf16.msra.mxu0 0
        %4534 = vmatpush.bf16.msra.mxu0 0
        %4535 = vmatpush.bf16.msra.mxu0 %v321
        %4536 = vmatmul.bf16.gmra.mxu0 %v4526
        %v4537 = vpop.f32.mrf.mxu0
        %v4538 = vadd.f32 0.0, %v4537
        %v4539 = vpop.f32.mrf.mxu0
        %v4540 = vadd.f32 0.0, %v4539
        %4541 = vdwg.mxu0
        %v4542 = vadd.f32 %v4520, %v4538
        %v4543 = vadd.f32 %v4521, %v4540
        %s4544 = sadd.s32 %s3714, 1
        %s4545 = smul.u32 %s4544, 16
        %s4546 = scalar_lea.vmem %s209, %s4545
        %v4547 = vld [vmem:[%s4546] sm:$0xff]
        %v4548 = vld [vmem:[%s4546 + $0x8] sm:$0xff]
        %v4549 = vpack.c.bf16 %v4548, %v4547
        %v4551 = vsel %vm249, %v4549, 0
        %4553 = vmatpush.bf16.msra.mxu0 0
        %4554 = vmatpush.bf16.msra.mxu0 0
        %4555 = vmatpush.bf16.msra.mxu0 0
        %4556 = vmatpush.bf16.msra.mxu0 0
        %4557 = vmatpush.bf16.msra.mxu0 0
        %4558 = vmatpush.bf16.msra.mxu0 0
        %4559 = vmatpush.bf16.msra.mxu0 0
        %4560 = vmatpush.bf16.msra.mxu0 %v349
        %4561 = vmatmul.bf16.gmra.mxu0 %v4551
        %v4562 = vpop.f32.mrf.mxu0
        %v4563 = vadd.f32 0.0, %v4562
        %v4564 = vpop.f32.mrf.mxu0
        %v4565 = vadd.f32 0.0, %v4564
        %4566 = vdwg.mxu0
        %v4567 = vadd.f32 %v4542, %v4563
        %v4568 = vadd.f32 %v4543, %v4565
        %v4569 = vshrl.u32 %v4549, 16
        %v4571 = vshll.u32 %v4549, 16
        %v4573 = vrot.slane %v4571, 1
        %v4574 = vor.u32 %v4569, %v4573
        %v4576 = vsel %vm249, %v4574, 0
        %4578 = vmatpush.bf16.msra.mxu0 0
        %4579 = vmatpush.bf16.msra.mxu0 0
        %4580 = vmatpush.bf16.msra.mxu0 0
        %4581 = vmatpush.bf16.msra.mxu0 0
        %4582 = vmatpush.bf16.msra.mxu0 0
        %4583 = vmatpush.bf16.msra.mxu0 0
        %4584 = vmatpush.bf16.msra.mxu0 0
        %4585 = vmatpush.bf16.msra.mxu0 %v377
        %4586 = vmatmul.bf16.gmra.mxu0 %v4576
        %v4587 = vpop.f32.mrf.mxu0
        %v4588 = vadd.f32 0.0, %v4587
        %v4589 = vpop.f32.mrf.mxu0
        %v4590 = vadd.f32 0.0, %v4589
        %4591 = vdwg.mxu0
        %v4592 = vadd.f32 %v4567, %v4588
        %v4593 = vadd.f32 %v4568, %v4590
        %v4595 = vrot.slane %v4549, 1
        %v4597 = vsel %vm249, %v4595, 0
        %4599 = vmatpush.bf16.msra.mxu0 0
        %4600 = vmatpush.bf16.msra.mxu0 0
        %4601 = vmatpush.bf16.msra.mxu0 0
        %4602 = vmatpush.bf16.msra.mxu0 0
        %4603 = vmatpush.bf16.msra.mxu0 0
        %4604 = vmatpush.bf16.msra.mxu0 0
        %4605 = vmatpush.bf16.msra.mxu0 0
        %4606 = vmatpush.bf16.msra.mxu0 %v401
        %4607 = vmatmul.bf16.gmra.mxu0 %v4597
        %v4608 = vpop.f32.mrf.mxu0
        %v4609 = vadd.f32 0.0, %v4608
        %v4610 = vpop.f32.mrf.mxu0
        %v4611 = vadd.f32 0.0, %v4610
        %4612 = vdwg.mxu0
        %v4613 = vadd.f32 %v4592, %v4609
        %v4614 = vadd.f32 %v4593, %v4611
        %v4615 = vrot.slane %v4569, 1
        %v4616 = vrot.slane %v4571, 2
        %v4617 = vor.u32 %v4615, %v4616
        %v4619 = vsel %vm249, %v4617, 0
        %4621 = vmatpush.bf16.msra.mxu0 0
        %4622 = vmatpush.bf16.msra.mxu0 0
        %4623 = vmatpush.bf16.msra.mxu0 0
        %4624 = vmatpush.bf16.msra.mxu0 0
        %4625 = vmatpush.bf16.msra.mxu0 0
        %4626 = vmatpush.bf16.msra.mxu0 0
        %4627 = vmatpush.bf16.msra.mxu0 0
        %4628 = vmatpush.bf16.msra.mxu0 %v426
        %4629 = vmatmul.bf16.gmra.mxu0 %v4619
        %v4630 = vpop.f32.mrf.mxu0
        %v4631 = vadd.f32 0.0, %v4630
        %v4632 = vpop.f32.mrf.mxu0
        %v4633 = vadd.f32 0.0, %v4632
        %4634 = vdwg.mxu0
        %v4635 = vadd.f32 %v4613, %v4631
        %v4636 = vadd.f32 %v4614, %v4633
        %s4637 = sadd.s32 %s3714, 2
        %s4638 = smul.u32 %s4637, 16
        %s4639 = scalar_lea.vmem %s209, %s4638
        %v4640 = vld [vmem:[%s4639] sm:$0xff]
        %v4641 = vld [vmem:[%s4639 + $0x8] sm:$0xff]
        %v4642 = vpack.c.bf16 %v4641, %v4640
        %v4644 = vsel %vm249, %v4642, 0
        %4646 = vmatpush.bf16.msra.mxu0 0
        %4647 = vmatpush.bf16.msra.mxu0 0
        %4648 = vmatpush.bf16.msra.mxu0 0
        %4649 = vmatpush.bf16.msra.mxu0 0
        %4650 = vmatpush.bf16.msra.mxu0 0
        %4651 = vmatpush.bf16.msra.mxu0 0
        %4652 = vmatpush.bf16.msra.mxu0 0
        %4653 = vmatpush.bf16.msra.mxu0 %v454
        %4654 = vmatmul.bf16.gmra.mxu0 %v4644
        %v4655 = vpop.f32.mrf.mxu0
        %v4656 = vadd.f32 0.0, %v4655
        %v4657 = vpop.f32.mrf.mxu0
        %v4658 = vadd.f32 0.0, %v4657
        %4659 = vdwg.mxu0
        %v4660 = vadd.f32 %v4635, %v4656
        %v4661 = vadd.f32 %v4636, %v4658
        %v4662 = vshrl.u32 %v4642, 16
        %v4664 = vshll.u32 %v4642, 16
        %v4666 = vrot.slane %v4664, 1
        %v4667 = vor.u32 %v4662, %v4666
        %v4669 = vsel %vm249, %v4667, 0
        %4671 = vmatpush.bf16.msra.mxu0 0
        %4672 = vmatpush.bf16.msra.mxu0 0
        %4673 = vmatpush.bf16.msra.mxu0 0
        %4674 = vmatpush.bf16.msra.mxu0 0
        %4675 = vmatpush.bf16.msra.mxu0 0
        %4676 = vmatpush.bf16.msra.mxu0 0
        %4677 = vmatpush.bf16.msra.mxu0 0
        %4678 = vmatpush.bf16.msra.mxu0 %v482
        %4679 = vmatmul.bf16.gmra.mxu0 %v4669
        %v4680 = vpop.f32.mrf.mxu0
        %v4681 = vadd.f32 0.0, %v4680
        %v4682 = vpop.f32.mrf.mxu0
        %v4683 = vadd.f32 0.0, %v4682
        %4684 = vdwg.mxu0
        %v4685 = vadd.f32 %v4660, %v4681
        %v4686 = vadd.f32 %v4661, %v4683
        %v4688 = vrot.slane %v4642, 1
        %v4690 = vsel %vm249, %v4688, 0
        %4692 = vmatpush.bf16.msra.mxu0 0
        %4693 = vmatpush.bf16.msra.mxu0 0
        %4694 = vmatpush.bf16.msra.mxu0 0
        %4695 = vmatpush.bf16.msra.mxu0 0
        %4696 = vmatpush.bf16.msra.mxu0 0
        %4697 = vmatpush.bf16.msra.mxu0 0
        %4698 = vmatpush.bf16.msra.mxu0 0
        %4699 = vmatpush.bf16.msra.mxu0 %v506
        %4700 = vmatmul.bf16.gmra.mxu0 %v4690
        %v4701 = vpop.f32.mrf.mxu0
        %v4702 = vadd.f32 0.0, %v4701
        %v4703 = vpop.f32.mrf.mxu0
        %v4704 = vadd.f32 0.0, %v4703
        %4705 = vdwg.mxu0
        %v4706 = vadd.f32 %v4685, %v4702
        %v4707 = vadd.f32 %v4686, %v4704
        %v4708 = vrot.slane %v4662, 1
        %v4709 = vrot.slane %v4664, 2
        %v4710 = vor.u32 %v4708, %v4709
        %v4712 = vsel %vm249, %v4710, 0
        %4714 = vmatpush.bf16.msra.mxu0 0
        %4715 = vmatpush.bf16.msra.mxu0 0
        %4716 = vmatpush.bf16.msra.mxu0 0
        %4717 = vmatpush.bf16.msra.mxu0 0
        %4718 = vmatpush.bf16.msra.mxu0 0
        %4719 = vmatpush.bf16.msra.mxu0 0
        %4720 = vmatpush.bf16.msra.mxu0 0
        %4721 = vmatpush.bf16.msra.mxu0 %v531
        %4722 = vmatmul.bf16.gmra.mxu0 %v4712
        %v4723 = vpop.f32.mrf.mxu0
        %v4724 = vadd.f32 0.0, %v4723
        %v4725 = vpop.f32.mrf.mxu0
        %v4726 = vadd.f32 0.0, %v4725
        %4727 = vdwg.mxu0
        %v4728 = vadd.f32 %v4706, %v4724
        %v4729 = vadd.f32 %v4707, %v4726
        %s4730 = sadd.s32 %s3714, 3
        %s4731 = smul.u32 %s4730, 16
        %s4732 = scalar_lea.vmem %s209, %s4731
        %v4733 = vld [vmem:[%s4732] sm:$0xff]
        %v4734 = vld [vmem:[%s4732 + $0x8] sm:$0xff]
        %v4735 = vpack.c.bf16 %v4734, %v4733
        %v4737 = vsel %vm249, %v4735, 0
        %4739 = vmatpush.bf16.msra.mxu0 0
        %4740 = vmatpush.bf16.msra.mxu0 0
        %4741 = vmatpush.bf16.msra.mxu0 0
        %4742 = vmatpush.bf16.msra.mxu0 0
        %4743 = vmatpush.bf16.msra.mxu0 0
        %4744 = vmatpush.bf16.msra.mxu0 0
        %4745 = vmatpush.bf16.msra.mxu0 0
        %4746 = vmatpush.bf16.msra.mxu0 %v559
        %4747 = vmatmul.bf16.gmra.mxu0 %v4737
        %v4748 = vpop.f32.mrf.mxu0
        %v4749 = vadd.f32 0.0, %v4748
        %v4750 = vpop.f32.mrf.mxu0
        %v4751 = vadd.f32 0.0, %v4750
        %4752 = vdwg.mxu0
        %v4753 = vadd.f32 %v4728, %v4749
        %v4754 = vadd.f32 %v4729, %v4751
        %v4755 = vshrl.u32 %v4735, 16
        %v4757 = vshll.u32 %v4735, 16
        %v4759 = vrot.slane %v4757, 1
        %v4760 = vor.u32 %v4755, %v4759
        %v4762 = vsel %vm249, %v4760, 0
        %4764 = vmatpush.bf16.msra.mxu0 0
        %4765 = vmatpush.bf16.msra.mxu0 0
        %4766 = vmatpush.bf16.msra.mxu0 0
        %4767 = vmatpush.bf16.msra.mxu0 0
        %4768 = vmatpush.bf16.msra.mxu0 0
        %4769 = vmatpush.bf16.msra.mxu0 0
        %4770 = vmatpush.bf16.msra.mxu0 0
        %4771 = vmatpush.bf16.msra.mxu0 %v587
        %4772 = vmatmul.bf16.gmra.mxu0 %v4762
        %v4773 = vpop.f32.mrf.mxu0
        %v4774 = vadd.f32 0.0, %v4773
        %v4775 = vpop.f32.mrf.mxu0
        %v4776 = vadd.f32 0.0, %v4775
        %4777 = vdwg.mxu0
        %v4778 = vadd.f32 %v4753, %v4774
        %v4779 = vadd.f32 %v4754, %v4776
        %v4781 = vrot.slane %v4735, 1
        %v4783 = vsel %vm249, %v4781, 0
        %4785 = vmatpush.bf16.msra.mxu0 0
        %4786 = vmatpush.bf16.msra.mxu0 0
        %4787 = vmatpush.bf16.msra.mxu0 0
        %4788 = vmatpush.bf16.msra.mxu0 0
        %4789 = vmatpush.bf16.msra.mxu0 0
        %4790 = vmatpush.bf16.msra.mxu0 0
        %4791 = vmatpush.bf16.msra.mxu0 0
        %4792 = vmatpush.bf16.msra.mxu0 %v611
        %4793 = vmatmul.bf16.gmra.mxu0 %v4783
        %v4794 = vpop.f32.mrf.mxu0
        %v4795 = vadd.f32 0.0, %v4794
        %v4796 = vpop.f32.mrf.mxu0
        %v4797 = vadd.f32 0.0, %v4796
        %4798 = vdwg.mxu0
        %v4799 = vadd.f32 %v4778, %v4795
        %v4800 = vadd.f32 %v4779, %v4797
        %v4801 = vrot.slane %v4755, 1
        %v4802 = vrot.slane %v4757, 2
        %v4803 = vor.u32 %v4801, %v4802
        %v4805 = vsel %vm249, %v4803, 0
        %4807 = vmatpush.bf16.msra.mxu0 0
        %4808 = vmatpush.bf16.msra.mxu0 0
        %4809 = vmatpush.bf16.msra.mxu0 0
        %4810 = vmatpush.bf16.msra.mxu0 0
        %4811 = vmatpush.bf16.msra.mxu0 0
        %4812 = vmatpush.bf16.msra.mxu0 0
        %4813 = vmatpush.bf16.msra.mxu0 0
        %4814 = vmatpush.bf16.msra.mxu0 %v636
        %4815 = vmatmul.bf16.gmra.mxu0 %v4805
        %v4816 = vpop.f32.mrf.mxu0
        %v4817 = vadd.f32 0.0, %v4816
        %v4818 = vpop.f32.mrf.mxu0
        %v4819 = vadd.f32 0.0, %v4818
        %4820 = vdwg.mxu0
        %v4821 = vadd.f32 %v4799, %v4817
        %v4822 = vadd.f32 %v4800, %v4819
        %v4823 = vmul.f32 %v4821, 0.25
        %v4824 = vmul.f32 %v4822, 0.25
        %v4825 = vadd.f32 %v4454, %v4823
        %v4826 = vadd.f32 %v4455, %v4824
        %v4827 = vpack.c.bf16 %v4826, %v4825
        %v4829 = vand.u32 %v4827, %v1410
        %4831 = vmatpush.bf16.msra.mxu0 0
        %4832 = vmatpush.bf16.msra.mxu0 0
        %4833 = vmatpush.bf16.msra.mxu0 0
        %4834 = vmatpush.bf16.msra.mxu0 0
        %4835 = vmatpush.bf16.msra.mxu0 0
        %4836 = vmatpush.bf16.msra.mxu0 0
        %4837 = vmatpush.bf16.msra.mxu0 0
        %4838 = vmatpush.bf16.msra.mxu0 %v4829
        %4839 = vmatmul.bf16.gmra.mxu0 %v1405
        %v4840 = vpop.f32.mrf.mxu0
        %v4841 = vadd.f32 %v1401, %v4840
        %v4842 = vpop.f32.mrf.mxu0
        %4843 = vdwg.mxu0
        %s4844 = scalar_lea.vmem %s204, 12 [#allocation2]
        %4845 = vst [vmem:[%s4844] sm:$0xf] %v4841
        %s4846 = sand.u32 %s129, 1
        %s4847 = scalar_lea.sflag [#allocation3], %s4846
        %s4848 = sand.u32 %s129, 1
        %s4849 = smul.addr %s4848, 16
        %s4850 = scalar_lea.vmem [#allocation2], %s4849
        // Predicated region
        $region37: #{patch_embed_forward.1} parent=35 // pred_check
          %p4851 = pneg %p139
        $region38: #{patch_embed_forward.1} parent=35 // pred_check_branch
          %4853 = sbr.rel (%p4851) target = $region40
        $region39: #{patch_embed_forward.1} parent=35 // pred_region
          %s4854 = smul.u32 4, %s23
          %4856 = vsyncadd %s4847, 0
          %s4857 = smul.addr %s22, 4
          %s4858 = sadd.s32 %s4854, %s4857
          %s4859 = smul.addr %s4858, 4
          %s4860 = scalar_lea.hbm %s4, %s4859
          %s4861 = sshll.u32 %s4850, 4
          %s4862 = int_to_ptr.vmem [resolvable:$true] %s4861
          %s4863 = sshll.u32 %s4860, 4
          %s4864 = int_to_ptr.hbm [resolvable:$true] %s4863
          %4869 = dma.vmem_to_hbm [thread:$0]  %s4862, 256, %s4864, %s4847, 64, 64, 4
        $region40: #{patch_embed_forward.1} parent=35 // pred_fallthru
          _
      $region36: #{patch_embed_forward.1} parent=5 // pred_fallthru
        _
      %p4870 = scmp.le.s32.totalorder 2, %s13
      // Predicated region
      $region41: #{patch_embed_forward.1} parent=5 // pred_check
        %p4871 = pneg %p4870
      $region42: #{patch_embed_forward.1} parent=5 // pred_check_branch
        %4873 = sbr.rel (%p4871) target = $region44
      $region43: #{patch_embed_forward.1} parent=5 // pred_region
        %s4874 = ssub.s32 %s13, 2
        // Predicated region
        $region45: #{patch_embed_forward.1} parent=43 // pred_check
          %p4875 = pneg %p145
        $region46: #{patch_embed_forward.1} parent=43 // pred_check_branch
          %4877 = sbr.rel (%p4875) target = $region48
        $region47: #{patch_embed_forward.1} parent=43 // pred_region
          %s4878 = sand.u32 %s130, 1
          %s4879 = scalar_lea.sflag [#allocation3], %s4878
          %s4880 = sand.u32 %s130, 1
          %s4881 = smul.addr %s4880, 16
          %s4882 = scalar_lea.vmem [#allocation2], %s4881
          %4884 = dma.done %s4879, 256
        $region48: #{patch_embed_forward.1} parent=43 // pred_fallthru
          _
      $region44: #{patch_embed_forward.1} parent=5 // pred_fallthru
        _
    $region6: #{patch_embed_forward.1} parent=1 // loop_footer
      %s17 = sadd.s32 1, %s13
    $region7: #{patch_embed_forward.1} parent=1 // loop_footer_branch
      %12 = sbr.rel target = $region3
    $region8: #{patch_embed_forward.1} parent=1 // loop_exit
      _
    %4885 = vsyncpa [#allocation3], 1
    %s4886 = scalar_lea.sflag [#allocation3], 1
    %4887 = vsyncpa %s4886, 1

</llo_original>
